<compile_context>
chip_gen: v7x
topology: tpu7x:2x2x1
jax: 0.10.0
libtpu: 0.0.40
codegen_flags: <defaults>
</compile_context>

<pallas_src>
import math

import jax
import jax.numpy as jnp
from jax.experimental import pallas as pl
from jax.experimental.pallas import tpu as pltpu


# ----------------------------- small helpers ---------------------------------

def _cp(n_axes):
    # All grid axes (batch, HW-tile) are independent -> "parallel" (uses both
    # TensorCores on v7x, no effect on v5e/v6e).
    return pltpu.CompilerParams(dimension_semantics=("parallel",) * n_axes)


def _pick_hw_tile(hw):
    """Whole image in one block when small; 128-multiple tiles at production
    resolutions so VMEM stays bounded and the pipeline gets >2 steps/image."""
    if hw <= 2048:
        return hw
    for t in (2048, 1024, 512, 256, 128):
        if hw % t == 0:
            return t
    return hw


def _fused_dw_fits(c_in, c_out, h, w):
    """Whole-image in-kernel tap formation: rough f32 working-set bound (input,
    tap temp + accumulator, hidden + img epilogue)."""
    wp = w + 2
    L = h * wp
    need = 4 * (c_in * ((h + 2) * wp + 2) + 2 * c_in * L + (c_out + 12) * L)
    return need <= (8 << 20)


# ------------------------------ Pallas kernels --------------------------------

def styled_conv_full_img(patches_k, mod9, mod_img, w_k, demod, noise, bias,
                         w_img, bias_img):
    """StyledConv2d (full modulated 3x3 conv) fused with MultichannelImage
    (modulated 1x1 conv).  One K=9*Cin bf16 matmul, weight-side modulation.

      patches_k : (B, 9*Cin, HW) bf16   im2col patches (tap-major K)
      mod9      : (B, 1, 9*Cin)  f32    scale*(style@W+b) tiled over the 9 taps
      mod_img   : (B, 1, Cout)   f32    to_img modulation (scale included)
      w_k       : (Cout, 9*Cin)  bf16
      demod     : (Cout, 1)      f32
      noise     : (1, HW)        f32    noise_weight * noise map (lane-dense)
      bias      : (Cout, 1)      f32
      w_img     : (12, Cout)     bf16
      bias_img  : (12, 1)        f32
    Returns hidden (B, Cout, HW) bf16 and img (B, 12, HW) f32 (HW in lanes)."""
    B, K, HW = patches_k.shape
    Cout = w_k.shape[0]
    Ci = w_img.shape[0]
    HWt = _pick_hw_tile(HW)
    NT = HW // HWt

    def kernel(p_ref, m9_ref, mi_ref, w_ref, dm_ref, nz_ref, bs_ref,
               wi_ref, bi_ref, h_ref, img_ref):
        # Weight-side modulation: (Cout, 9C) * (1, 9C); cheap vs modulating HW rows.
        wm = (w_ref[...].astype(jnp.float32) * m9_ref[0]).astype(jnp.bfloat16)
        y = jnp.dot(wm, p_ref[0], preferred_element_type=jnp.float32)  # (Cout,HWt)
        y = y * dm_ref[...] + nz_ref[...] + bs_ref[...]
        h = jnp.where(y > 0, y, 0.2 * y)
        h_ref[0] = h.astype(h_ref.dtype)
        wim = (wi_ref[...].astype(jnp.float32) * mi_ref[0]).astype(jnp.bfloat16)
        img_ref[0] = (jnp.dot(wim, h.astype(jnp.bfloat16),
                              preferred_element_type=jnp.float32)
                      + bi_ref[...])

    return pl.pallas_call(
        kernel,
        out_shape=(jax.ShapeDtypeStruct((B, Cout, HW), jnp.bfloat16),
                   jax.ShapeDtypeStruct((B, Ci, HW), jnp.float32)),
        grid=(B, NT),
        in_specs=[
            pl.BlockSpec((1, K, HWt), lambda b, t: (b, 0, t)),
            pl.BlockSpec((1, 1, K), lambda b, t: (b, 0, 0)),
            pl.BlockSpec((1, 1, Cout), lambda b, t: (b, 0, 0)),
            pl.BlockSpec((Cout, K), lambda b, t: (0, 0)),
            pl.BlockSpec((Cout, 1), lambda b, t: (0, 0)),
            pl.BlockSpec((1, HWt), lambda b, t: (0, t)),
            pl.BlockSpec((Cout, 1), lambda b, t: (0, 0)),
            pl.BlockSpec((Ci, Cout), lambda b, t: (0, 0)),
            pl.BlockSpec((Ci, 1), lambda b, t: (0, 0)),
        ],
        out_specs=(pl.BlockSpec((1, Cout, HWt), lambda b, t: (b, 0, t)),
                   pl.BlockSpec((1, Ci, HWt), lambda b, t: (b, 0, t))),
        compiler_params=_cp(2),
    )(patches_k, mod9, mod_img, w_k, demod, noise, bias, w_img, bias_img)


# ---- fused depthwise-separable styled conv (in-kernel 3x3 tap formation) -----

def _dw_taps_body(xg_ref, m_ref, wd_ref, wp_ref, dm_ref, nz_ref, bs_ref, H, Wp):
    """Modulated depthwise 3x3 (taps = static lane-offset slices of the padded,
    flattened input) + pointwise 1x1 on the MXU, demod, noise, bias,
    LeakyReLU(0.2).  Returns the activated f32 hidden of shape (Cout, H*Wp);
    the two pad columns per row contain junk and are stripped in glue."""
    L = H * Wp
    wm = wd_ref[...].astype(jnp.float32) * m_ref[0]            # (C,9)*(C,1)
    acc = None
    for ky in range(3):
        for kx in range(3):
            t = ky * 3 + kx
            tap = xg_ref[0, :, pl.ds(ky * Wp + kx, L)].astype(jnp.float32)
            term = tap * wm[:, t:t + 1]
            acc = term if acc is None else acc + term          # depthwise (VPU)
    y = jnp.dot(wp_ref[...], acc.astype(jnp.bfloat16),
                preferred_element_type=jnp.float32)            # (Cout, L) MXU
    y = y * dm_ref[...] + nz_ref[...] + bs_ref[...]
    return jnp.where(y > 0, y, 0.2 * y)


def styled_conv_dw_fused(xg, mod_col, w_dw, w_pt, demod, noise, bias, H, W):
    """StyledConv2d with ModulatedDWConv2d, whole image per grid step.
      xg    : (B, C, (H+2)*(W+2)+2) bf16  zero-padded, flattened, +1 lane guard
      noise : (1, H*(W+2)) f32            noise_weight * noise, pad cols arbitrary
    Returns (B, Cout, H*(W+2)) bf16 (pad columns junk; strip in glue)."""
    B, C, Lp = xg.shape
    Cout = w_pt.shape[0]
    Wp = W + 2
    L = H * Wp

    def kernel(x_ref, m_ref, wd_ref, wp_ref, dm_ref, nz_ref, bs_ref, o_ref):
        h = _dw_taps_body(x_ref, m_ref, wd_ref, wp_ref, dm_ref, nz_ref, bs_ref,
                          H, Wp)
        o_ref[0] = h.astype(o_ref.dtype)

    return pl.pallas_call(
        kernel,
        out_shape=jax.ShapeDtypeStruct((B, Cout, L), jnp.bfloat16),
        grid=(B,),
        in_specs=[
            pl.BlockSpec((1, C, Lp), lambda b: (b, 0, 0)),
            pl.BlockSpec((1, C, 1), lambda b: (b, 0, 0)),
            pl.BlockSpec((C, 9), lambda b: (0, 0)),
            pl.BlockSpec((Cout, C), lambda b: (0, 0)),
            pl.BlockSpec((Cout, 1), lambda b: (0, 0)),
            pl.BlockSpec((1, L), lambda b: (0, 0)),
            pl.BlockSpec((Cout, 1), lambda b: (0, 0)),
        ],
        out_specs=pl.BlockSpec((1, Cout, L), lambda b: (b, 0, 0)),
        compiler_params=_cp(1),
    )(xg, mod_col, w_dw, w_pt, demod, noise, bias)


def styled_conv_dw_img_fused(xg, mod_col, mod_img, w_dw, w_pt, demod, noise,
                             bias, w_img, bias_img, H, W):
    """conv2 (ModulatedDWConv2d styled conv, in-kernel taps) fused with to_img."""
    B, C, Lp = xg.shape
    Cout = w_pt.shape[0]
    Ci = w_img.shape[0]
    Wp = W + 2
    L = H * Wp

    def kernel(x_ref, m_ref, mi_ref, wd_ref, wp_ref, dm_ref, nz_ref, bs_ref,
               wi_ref, bi_ref, h_ref, img_ref):
        h = _dw_taps_body(x_ref, m_ref, wd_ref, wp_ref, dm_ref, nz_ref, bs_ref,
                          H, Wp)
        h_ref[0] = h.astype(h_ref.dtype)
        wim = (wi_ref[...].astype(jnp.float32) * mi_ref[0]).astype(jnp.bfloat16)
        img_ref[0] = (jnp.dot(wim, h.astype(jnp.bfloat16),
                              preferred_element_type=jnp.float32)
                      + bi_ref[...])

    return pl.pallas_call(
        kernel,
        out_shape=(jax.ShapeDtypeStruct((B, Cout, L), jnp.bfloat16),
                   jax.ShapeDtypeStruct((B, Ci, L), jnp.float32)),
        grid=(B,),
        in_specs=[
            pl.BlockSpec((1, C, Lp), lambda b: (b, 0, 0)),
            pl.BlockSpec((1, C, 1), lambda b: (b, 0, 0)),
            pl.BlockSpec((1, 1, Cout), lambda b: (b, 0, 0)),
            pl.BlockSpec((C, 9), lambda b: (0, 0)),
            pl.BlockSpec((Cout, C), lambda b: (0, 0)),
            pl.BlockSpec((Cout, 1), lambda b: (0, 0)),
            pl.BlockSpec((1, L), lambda b: (0, 0)),
            pl.BlockSpec((Cout, 1), lambda b: (0, 0)),
            pl.BlockSpec((Ci, Cout), lambda b: (0, 0)),
            pl.BlockSpec((Ci, 1), lambda b: (0, 0)),
        ],
        out_specs=(pl.BlockSpec((1, Cout, L), lambda b: (b, 0, 0)),
                   pl.BlockSpec((1, Ci, L), lambda b: (b, 0, 0))),
        compiler_params=_cp(1),
    )(xg, mod_col, mod_img, w_dw, w_pt, demod, noise, bias, w_img, bias_img)


# ---- fallback depthwise kernels (im2col patches), used only when the whole ---
# ---- image does not fit VMEM (production resolutions) ------------------------

def _dw_body(p_ref, m_ref, wd_ref, wp_ref, dm_ref, nz_ref, bs_ref, n_taps):
    wm = wd_ref[...].astype(jnp.float32) * m_ref[0]            # (C,9)*(C,1)
    acc = jnp.zeros(p_ref.shape[2:], jnp.float32)              # (C, HWt)
    for t in range(n_taps):                                    # depthwise taps (VPU)
        acc = acc + p_ref[0, t].astype(jnp.float32) * wm[:, t:t + 1]
    y = jnp.dot(wp_ref[...], acc.astype(jnp.bfloat16),
                preferred_element_type=jnp.float32)            # (Cout, HWt)
    y = y * dm_ref[...] + nz_ref[...] + bs_ref[...]
    return jnp.where(y > 0, y, 0.2 * y)


def styled_conv_dw(patches, mod_col, w_dw, w_pt, demod, noise, bias):
    """StyledConv2d with ModulatedDWConv2d.  patches: (B, 9, C, HW) bf16."""
    B, KK, C, HW = patches.shape
    Cout = w_pt.shape[0]
    HWt = _pick_hw_tile(HW)
    NT = HW // HWt

    def kernel(p_ref, m_ref, wd_ref, wp_ref, dm_ref, nz_ref, bs_ref, o_ref):
        h = _dw_body(p_ref, m_ref, wd_ref, wp_ref, dm_ref, nz_ref, bs_ref, KK)
        o_ref[0] = h.astype(o_ref.dtype)

    return pl.pallas_call(
        kernel,
        out_shape=jax.ShapeDtypeStruct((B, Cout, HW), jnp.bfloat16),
        grid=(B, NT),
        in_specs=[
            pl.BlockSpec((1, KK, C, HWt), lambda b, t: (b, 0, 0, t)),
            pl.BlockSpec((1, C, 1), lambda b, t: (b, 0, 0)),
            pl.BlockSpec((C, KK), lambda b, t: (0, 0)),
            pl.BlockSpec((Cout, C), lambda b, t: (0, 0)),
            pl.BlockSpec((Cout, 1), lambda b, t: (0, 0)),
            pl.BlockSpec((1, HWt), lambda b, t: (0, t)),
            pl.BlockSpec((Cout, 1), lambda b, t: (0, 0)),
        ],
        out_specs=pl.BlockSpec((1, Cout, HWt), lambda b, t: (b, 0, t)),
        compiler_params=_cp(2),
    )(patches, mod_col, w_dw, w_pt, demod, noise, bias)


def styled_conv_dw_img(patches, mod_col, mod_img, w_dw, w_pt, demod, noise,
                       bias, w_img, bias_img):
    """conv2 (ModulatedDWConv2d styled conv) fused with to_img (1x1 mod conv)."""
    B, KK, C, HW = patches.shape
    Cout = w_pt.shape[0]
    Ci = w_img.shape[0]
    HWt = _pick_hw_tile(HW)
    NT = HW // HWt

    def kernel(p_ref, m_ref, mi_ref, wd_ref, wp_ref, dm_ref, nz_ref, bs_ref,
               wi_ref, bi_ref, h_ref, img_ref):
        h = _dw_body(p_ref, m_ref, wd_ref, wp_ref, dm_ref, nz_ref, bs_ref, KK)
        h_ref[0] = h.astype(h_ref.dtype)
        wim = (wi_ref[...].astype(jnp.float32) * mi_ref[0]).astype(jnp.bfloat16)
        img_ref[0] = (jnp.dot(wim, h.astype(jnp.bfloat16),
                              preferred_element_type=jnp.float32)
                      + bi_ref[...])

    return pl.pallas_call(
        kernel,
        out_shape=(jax.ShapeDtypeStruct((B, Cout, HW), jnp.bfloat16),
                   jax.ShapeDtypeStruct((B, Ci, HW), jnp.float32)),
        grid=(B, NT),
        in_specs=[
            pl.BlockSpec((1, KK, C, HWt), lambda b, t: (b, 0, 0, t)),
            pl.BlockSpec((1, C, 1), lambda b, t: (b, 0, 0)),
            pl.BlockSpec((1, 1, Cout), lambda b, t: (b, 0, 0)),
            pl.BlockSpec((C, KK), lambda b, t: (0, 0)),
            pl.BlockSpec((Cout, C), lambda b, t: (0, 0)),
            pl.BlockSpec((Cout, 1), lambda b, t: (0, 0)),
            pl.BlockSpec((1, HWt), lambda b, t: (0, t)),
            pl.BlockSpec((Cout, 1), lambda b, t: (0, 0)),
            pl.BlockSpec((Ci, Cout), lambda b, t: (0, 0)),
            pl.BlockSpec((Ci, 1), lambda b, t: (0, 0)),
        ],
        out_specs=(pl.BlockSpec((1, Cout, HWt), lambda b, t: (b, 0, t)),
                   pl.BlockSpec((1, Ci, HWt), lambda b, t: (b, 0, t))),
        compiler_params=_cp(2),
    )(patches, mod_col, mod_img, w_dw, w_pt, demod, noise, bias, w_img,
      bias_img)


def idwt_combine(groups, mod_g, out_dtype):
    """Per-channel modulation + Haar ('db1', mode='zero') inverse-DWT band
    combination.  groups: (B, 4, q, HW) with bands [LL, LH, HL, HH];
    mod_g: (B, 4, q, 1).  Output (B, 4, q, HW): the four output-pixel parities
    [(2i,2j), (2i,2j+1), (2i+1,2j), (2i+1,2j+1)], HW in lanes (lane-dense)."""
    B, _, q, HW = groups.shape
    HWt = _pick_hw_tile(HW)
    NT = HW // HWt

    def kernel(x_ref, m_ref, o_ref):
        ll = x_ref[0, 0].astype(jnp.float32) * m_ref[0, 0]
        lh = x_ref[0, 1].astype(jnp.float32) * m_ref[0, 1]
        hl = x_ref[0, 2].astype(jnp.float32) * m_ref[0, 2]
        hh = x_ref[0, 3].astype(jnp.float32) * m_ref[0, 3]
        o_ref[0, 0] = (0.5 * (ll + lh + hl + hh)).astype(o_ref.dtype)
        o_ref[0, 1] = (0.5 * (ll + lh - hl - hh)).astype(o_ref.dtype)
        o_ref[0, 2] = (0.5 * (ll - lh + hl - hh)).astype(o_ref.dtype)
        o_ref[0, 3] = (0.5 * (ll - lh - hl + hh)).astype(o_ref.dtype)

    return pl.pallas_call(
        kernel,
        out_shape=jax.ShapeDtypeStruct((B, 4, q, HW), out_dtype),
        grid=(B, NT),
        in_specs=[pl.BlockSpec((1, 4, q, HWt), lambda b, t: (b, 0, 0, t)),
                  pl.BlockSpec((1, 4, q, 1), lambda b, t: (b, 0, 0, 0))],
        out_specs=pl.BlockSpec((1, 4, q, HWt), lambda b, t: (b, 0, 0, t)),
        compiler_params=_cp(2),
    )(groups, mod_g)


# --------------------------------- JAX glue -----------------------------------

def pad_flat_cm(x_nchw):
    """(B,C,H,W) -> (B,C,(H+2)*(W+2)+2): spatial zero pad, flatten row-major,
    +1 zero lane guard on each side (so every 3x3 tap is a static lane slice)."""
    B, C, H, W = x_nchw.shape
    xp = jnp.pad(x_nchw, ((0, 0), (0, 0), (1, 1), (1, 1)))
    return jnp.pad(xp.reshape(B, C, (H + 2) * (W + 2)), ((0, 0), (0, 0), (1, 1)))


def unpad_cols_cm(y_flat, H, W):
    """(B,C,H*(W+2)) fused-kernel output layout -> clean (B,C,H,W) NCHW."""
    B, C, _ = y_flat.shape
    return y_flat.reshape(B, C, H, W + 2)[:, :, :, 1:-1]


def to_patches_cm(x_nchw):
    """im2col for a 3x3 'same' (zero padded) conv, channel-major (fallback path
    only).  (B, C, H, W) -> (B, 9, C, H*W), tap index t = ky*3 + kx."""
    B, C, H, W = x_nchw.shape
    xp = jnp.pad(x_nchw, ((0, 0), (0, 0), (1, 1), (1, 1)))
    taps = [xp[:, :, ky:ky + H, kx:kx + W].reshape(B, C, H * W)
            for ky in range(3) for kx in range(3)]
    return jnp.stack(taps, axis=1)


def split_groups_cm(x_cm, q):
    """(B, 4q, HW) with channel layout [low(q), then per-group (LH,HL,HH)]
    -> (B, 4, q, HW) wavelet bands [LL, LH, HL, HH]."""
    B, _, HW = x_cm.shape
    low = x_cm[:, :q][:, None]                              # (B,1,q,HW)
    high = jnp.transpose(x_cm[:, q:].reshape(B, q, 3, HW), (0, 2, 1, 3))
    return jnp.concatenate([low, high], axis=1)             # (B,4,q,HW)


def split_groups_mod(mod, q):
    """(B, 4q) per-channel modulation -> (B, 4, q, 1) grouped like the bands."""
    B, _ = mod.shape
    low = mod[:, :q][:, None]                               # (B,1,q)
    high = jnp.transpose(mod[:, q:].reshape(B, q, 3), (0, 2, 1))
    return jnp.concatenate([low, high], axis=1)[..., None]  # (B,4,q,1)


def idwt_interleave_cm(par, h, w):
    """(B, 4, q, h*w) parity maps -> (B, q, 2h, 2w) NCHW image."""
    B, _, q, _ = par.shape
    a = par[:, 0].reshape(B, q, h, w)
    b = par[:, 1].reshape(B, q, h, w)
    c = par[:, 2].reshape(B, q, h, w)
    d = par[:, 3].reshape(B, q, h, w)
    row0 = jnp.stack([a, b], axis=-1)                       # (B,q,h,w,2)
    row1 = jnp.stack([c, d], axis=-1)
    y = jnp.stack([row0, row1], axis=3)                     # (B,q,h,2,w,2)
    return y.reshape(B, q, 2 * h, 2 * w)


# --------------------------- parameter construction ----------------------------

def make_params(key, style_dim, channels):
    keys = iter(jax.random.split(key, 256))

    def nk():
        return next(keys)

    def linear_mod(cin):
        # nn.Linear(style_dim, cin) with bias filled to 1.0
        return {'w': jax.random.normal(nk(), (style_dim, cin), jnp.float32) * 0.05,
                'b': jnp.ones((cin,), jnp.float32)}

    def styled_full(cin, cout, k=3):
        w = jax.random.normal(nk(), (cout, cin, k, k), jnp.float32)
        sinv = jax.random.normal(nk(), (cin,), jnp.float32)  # registered buffer style_inv
        scale = 1.0 / math.sqrt(cin * k * k)
        # Reference demodulation: computed from the fixed style_inv buffer
        # (style-independent in this module), so it can be precomputed here.
        demod = jax.lax.rsqrt(
            jnp.sum((scale * sinv[None, :, None, None] * w) ** 2,
                    axis=(1, 2, 3)) + 1e-8)[:, None]                     # (cout,1)
        w_k = jnp.transpose(w, (0, 2, 3, 1)).reshape(
            cout, k * k * cin).astype(jnp.bfloat16)                      # tap-major K
        m = linear_mod(cin)
        return {'w_k': w_k, 'mod_w': m['w'], 'mod_b': m['b'], 'demod': demod,
                'scale': scale,
                'noise_w': jnp.float32(0.0),   # matches torch NoiseInjection init
                'bias': jnp.zeros((cout, 1), jnp.float32)}

    def styled_dw(cin, cout, k=3):
        wdw = jax.random.normal(nk(), (cin, 1, k, k), jnp.float32)
        wpt = jax.random.normal(nk(), (cout, cin, 1, 1), jnp.float32)
        sinv = jax.random.normal(nk(), (cin,), jnp.float32)
        scale = 1.0 / math.sqrt(cin * k * k)
        wc = wdw[:, 0][None] * wpt[:, :, 0, 0][:, :, None, None]         # (cout,cin,k,k)
        demod = jax.lax.rsqrt(
            jnp.sum((scale * sinv[None, :, None, None] * wc) ** 2,
                    axis=(1, 2, 3)) + 1e-8)[:, None]
        m = linear_mod(cin)
        return {'w_dw': wdw[:, 0].reshape(cin, k * k).astype(jnp.bfloat16),
                'w_pt': wpt[:, :, 0, 0].astype(jnp.bfloat16),
                'mod_w': m['w'], 'mod_b': m['b'], 'demod': demod, 'scale': scale,
                'noise_w': jnp.float32(0.0),
                'bias': jnp.zeros((cout, 1), jnp.float32)}

    def to_img_p(cin, cout=12):
        w = jax.random.normal(nk(), (cout, cin, 1, 1), jnp.float32)
        m = linear_mod(cin)
        return {'w': w[:, :, 0, 0].astype(jnp.bfloat16),
                'mod_w': m['w'], 'mod_b': m['b'],
                'scale': 1.0 / math.sqrt(cin),
                'bias': jnp.zeros((cout, 1), jnp.float32)}

    C0 = channels[0]
    P = {'const': jax.random.normal(nk(), (1, C0, 4, 4), jnp.float32),
         'conv1': styled_full(C0, C0),
         'to_img1': to_img_p(C0, 12),
         'blocks': []}
    cin = C0
    for cout in channels[1:]:
        P['blocks'].append({'up_mod': linear_mod(cin),
                            'conv1': styled_dw(cin // 4, cout),
                            'conv2': styled_dw(cout, cout),
                            'to_img': to_img_p(cout, 12)})
        cin = cout
    return P


# ----------------------------------- forward -----------------------------------

def mobile_synthesis_forward(params, style, noise_key, channels):
    B, _ = style.shape
    C0 = channels[0]
    nkeys = jax.random.split(noise_key, len(channels))
    out = {'noise': [], 'freq': [], 'img': None}

    # ConstantInput (NCHW), repeated over the batch
    hidden_nchw = jnp.broadcast_to(params['const'], (B, C0, 4, 4))

    # --- stage 0: conv1 (full modulated 3x3) + to_img1, fused ------------------
    noise0 = jax.random.normal(nkeys[0], (1, 1, 4, 4), jnp.float32)
    out['noise'].append(noise0)
    p, pi = params['conv1'], params['to_img1']
    mod = p['scale'] * (style @ p['mod_w'] + p['mod_b'])            # (B, C0)
    mod9 = jnp.tile(mod, (1, 9))[:, None, :]                        # (B,1,9*C0)
    mod_i = (pi['scale'] * (style @ pi['mod_w'] + pi['mod_b']))[:, None, :]
    nz = (p['noise_w'] * noise0[0, 0]).reshape(1, 16)
    pat = to_patches_cm(hidden_nchw.astype(jnp.bfloat16))           # (B,9,C0,16)
    pat_k = pat.reshape(B, 9 * C0, 16)
    hidden, img = styled_conv_full_img(pat_k, mod9, mod_i, p['w_k'], p['demod'],
                                       nz, p['bias'], pi['w'], pi['bias'])
    out['freq'].append(img.reshape(B, 12, 4, 4))

    cin, h, w = C0, 4, 4
    for i, cout in enumerate(channels[1:]):
        blk = params['blocks'][i]
        hn, wn = 2 * h, 2 * w
        hwn = hn * wn
        wp = wn + 2
        noise_i = jax.random.normal(nkeys[i + 1], (2, 1, 1, hn, wn), jnp.float32)
        out['noise'].append(noise_i)

        # IDWTUpsaplme: per-channel style modulation + inverse Haar DWT (x2 up)
        q = cin // 4
        um = blk['up_mod']
        mod_up = style @ um['w'] + um['b']                          # (B, cin)
        groups = split_groups_cm(hidden, q)                         # (B,4,q,h*w)
        mod_g = split_groups_mod(mod_up, q)                         # (B,4,q,1)
        par = idwt_combine(groups, mod_g, jnp.bfloat16)
        up = idwt_interleave_cm(par, h, w)                          # (B,q,hn,wn)

        # conv1: modulated depthwise 3x3 + pointwise 1x1, noise, bias, LeakyReLU
        p1 = blk['conv1']
        mod1 = (p1['scale'] * (style @ p1['mod_w'] + p1['mod_b']))[:, :, None]
        if _fused_dw_fits(q, cout, hn, wn):
            nz1 = jnp.pad(p1['noise_w'] * noise_i[0, 0, 0],
                          ((0, 0), (1, 1))).reshape(1, hn * wp)
            h1f = styled_conv_dw_fused(pad_flat_cm(up), mod1, p1['w_dw'],
                                       p1['w_pt'], p1['demod'], nz1, p1['bias'],
                                       hn, wn)
            h1_nchw = unpad_cols_cm(h1f, hn, wn)                    # (B,cout,hn,wn)
        else:
            nz1 = (p1['noise_w'] * noise_i[0, 0, 0]).reshape(1, hwn)
            h1 = styled_conv_dw(to_patches_cm(up), mod1, p1['w_dw'], p1['w_pt'],
                                p1['demod'], nz1, p1['bias'])
            h1_nchw = h1.reshape(B, cout, hn, wn)

        # conv2 + to_img, fused
        p2, pt = blk['conv2'], blk['to_img']
        mod2 = (p2['scale'] * (style @ p2['mod_w'] + p2['mod_b']))[:, :, None]
        modi = (pt['scale'] * (style @ pt['mod_w'] + pt['mod_b']))[:, None, :]
        if _fused_dw_fits(cout, cout, hn, wn):
            nz2 = jnp.pad(p2['noise_w'] * noise_i[1, 0, 0],
                          ((0, 0), (1, 1))).reshape(1, hn * wp)
            h2f, imgf = styled_conv_dw_img_fused(
                pad_flat_cm(h1_nchw), mod2, modi, p2['w_dw'], p2['w_pt'],
                p2['demod'], nz2, p2['bias'], pt['w'], pt['bias'], hn, wn)
            hidden = unpad_cols_cm(h2f, hn, wn).reshape(B, cout, hwn)
            img = unpad_cols_cm(imgf, hn, wn)                       # (B,12,hn,wn)
        else:
            nz2 = (p2['noise_w'] * noise_i[1, 0, 0]).reshape(1, hwn)
            hidden, img_flat = styled_conv_dw_img(
                to_patches_cm(h1_nchw), mod2, modi, p2['w_dw'], p2['w_pt'],
                p2['demod'], nz2, p2['bias'], pt['w'], pt['bias'])
            img = img_flat.reshape(B, 12, hn, wn)
        out['freq'].append(img)
        cin, h, w = cout, hn, wn

    # dwt_to_img: plain (unmodulated) inverse Haar on the last 12-channel freq
    # map — the reference applies no style modulation here; mod == 1 is exactly that.
    f = out['freq'][-1].reshape(B, 12, h * w)
    groups = split_groups_cm(f, 3)
    ones_mod = jnp.ones((B, 4, 3, 1), jnp.float32)
    par = idwt_combine(groups, ones_mod, jnp.float32)
    out['img'] = idwt_interleave_cm(par, h, w)                      # (B,3,2h,2w)
    return out


# ------------------------------------ main --------------------------------------

if __name__ == "__main__":
    style_dim = 16
    channels = (32, 16, 8)          # small config; the reference default is [512,...]
    batch = 2

    key = jax.random.PRNGKey(0)
    k_params, k_style, k_noise = jax.random.split(key, 3)

    params = make_params(k_params, style_dim, channels)
    style = jax.random.normal(k_style, (batch, style_dim), jnp.float32)

    fwd = jax.jit(mobile_synthesis_forward, static_argnums=(3,))
    out = fwd(params, style, k_noise, channels)
    jax.block_until_ready(out)

    # shape sanity checks against the reference semantics
    assert out['freq'][0].shape == (batch, 12, 4, 4)
    assert out['freq'][1].shape == (batch, 12, 8, 8)
    assert out['freq'][2].shape == (batch, 12, 16, 16)
    assert out['img'].shape == (batch, 3, 32, 32)
    assert out['noise'][0].shape == (1, 1, 4, 4)
    assert out['noise'][1].shape == (2, 1, 1, 8, 8)
    assert out['noise'][2].shape == (2, 1, 1, 16, 16)
    assert bool(jnp.isfinite(out['img']).all())
    assert all(bool(jnp.isfinite(f).all()) for f in out['freq'])

    print("KERNEL_OK")
</pallas_src>

<mosaic_0001>
module attributes {stable_mosaic.version = 11 : i64} {
  func.func @kernel(%arg0: i32, %arg1: i32, %arg2: memref<1x288x16xbf16, #tpu.memory_space<vmem>>, %arg3: memref<1x1x288xf32, #tpu.memory_space<vmem>>, %arg4: memref<1x1x32xf32, #tpu.memory_space<vmem>>, %arg5: memref<32x288xbf16, #tpu.memory_space<vmem>>, %arg6: memref<32x1xf32, #tpu.memory_space<vmem>>, %arg7: memref<1x16xf32, #tpu.memory_space<vmem>>, %arg8: memref<32x1xf32, #tpu.memory_space<vmem>>, %arg9: memref<12x32xbf16, #tpu.memory_space<vmem>>, %arg10: memref<12x1xf32, #tpu.memory_space<vmem>>, %arg11: memref<1x32x16xbf16, #tpu.memory_space<vmem>>, %arg12: memref<1x12x16xf32, #tpu.memory_space<vmem>>) attributes {dimension_semantics = [#tpu.dimension_semantics<parallel>, #tpu.dimension_semantics<parallel>], iteration_bounds = array<i64: 2, 1>, scalar_prefetch = 0 : i64, scratch_operands = 0 : i64, tpu.core_type = #tpu.core_type<tc>, window_params = [{transform_indices = @transform_0, window_bounds = array<i64: 1, 288, 16>}, {transform_indices = @transform_1, window_bounds = array<i64: 1, 1, 288>}, {transform_indices = @transform_2, window_bounds = array<i64: 1, 1, 32>}, {pipeline_mode = #tpu.pipeline_mode<synchronous>, transform_indices = @transform_3, window_bounds = array<i64: 32, 288>}, {pipeline_mode = #tpu.pipeline_mode<synchronous>, transform_indices = @transform_4, window_bounds = array<i64: 32, 1>}, {transform_indices = @transform_5, window_bounds = array<i64: 1, 16>}, {pipeline_mode = #tpu.pipeline_mode<synchronous>, transform_indices = @transform_6, window_bounds = array<i64: 32, 1>}, {pipeline_mode = #tpu.pipeline_mode<synchronous>, transform_indices = @transform_7, window_bounds = array<i64: 12, 32>}, {pipeline_mode = #tpu.pipeline_mode<synchronous>, transform_indices = @transform_8, window_bounds = array<i64: 12, 1>}, {transform_indices = @transform_9, window_bounds = array<i64: 1, 32, 16>}, {transform_indices = @transform_10, window_bounds = array<i64: 1, 12, 16>}]} {
    %c0 = arith.constant 0 : index
    %c0_0 = arith.constant 0 : index
    %0 = vector.load %arg5[%c0, %c0_0] : memref<32x288xbf16, #tpu.memory_space<vmem>>, vector<32x288xbf16>
    %1 = arith.extf %0 : vector<32x288xbf16> to vector<32x288xf32>
    %c0_1 = arith.constant 0 : index
    %c0_2 = arith.constant 0 : index
    %c0_3 = arith.constant 0 : index
    %2 = vector.load %arg3[%c0_1, %c0_2, %c0_3] : memref<1x1x288xf32, #tpu.memory_space<vmem>>, vector<1x1x288xf32>
    %3 = vector.shape_cast %2 : vector<1x1x288xf32> to vector<1x288xf32>
    %4 = vector.broadcast %3 : vector<1x288xf32> to vector<32x288xf32>
    %5 = arith.mulf %1, %4 : vector<32x288xf32>
    %6 = arith.truncf %5 : vector<32x288xf32> to vector<32x288xbf16>
    %c0_4 = arith.constant 0 : index
    %c0_5 = arith.constant 0 : index
    %c0_6 = arith.constant 0 : index
    %7 = vector.load %arg2[%c0_4, %c0_5, %c0_6] : memref<1x288x16xbf16, #tpu.memory_space<vmem>>, vector<1x288x16xbf16>
    %8 = vector.shape_cast %7 : vector<1x288x16xbf16> to vector<288x16xbf16>
    %cst = arith.constant dense<0.000000e+00> : vector<32x16xf32>
    %9 = tpu.matmul %6, %8, %cst {dimension_numbers = #tpu.dot_dimension_numbers<[1], [0], [0], [1], [0, 0, 1, 1], [], []>} : vector<32x288xbf16>, vector<288x16xbf16>, vector<32x16xf32> -> vector<32x16xf32>
    %c0_7 = arith.constant 0 : index
    %c0_8 = arith.constant 0 : index
    %10 = vector.load %arg6[%c0_7, %c0_8] : memref<32x1xf32, #tpu.memory_space<vmem>>, vector<32x1xf32>
    %11 = vector.broadcast %10 : vector<32x1xf32> to vector<32x16xf32>
    %12 = arith.mulf %9, %11 : vector<32x16xf32>
    %c0_9 = arith.constant 0 : index
    %c0_10 = arith.constant 0 : index
    %13 = vector.load %arg7[%c0_9, %c0_10] : memref<1x16xf32, #tpu.memory_space<vmem>>, vector<1x16xf32>
    %14 = vector.broadcast %13 : vector<1x16xf32> to vector<32x16xf32>
    %15 = arith.addf %12, %14 : vector<32x16xf32>
    %c0_11 = arith.constant 0 : index
    %c0_12 = arith.constant 0 : index
    %16 = vector.load %arg8[%c0_11, %c0_12] : memref<32x1xf32, #tpu.memory_space<vmem>>, vector<32x1xf32>
    %17 = vector.broadcast %16 : vector<32x1xf32> to vector<32x16xf32>
    %18 = arith.addf %15, %17 : vector<32x16xf32>
    %cst_13 = arith.constant 0.000000e+00 : f32
    %19 = vector.broadcast %cst_13 : f32 to vector<32x16xf32>
    %20 = arith.cmpf ogt, %18, %19 : vector<32x16xf32>
    %cst_14 = arith.constant 2.000000e-01 : f32
    %21 = vector.broadcast %cst_14 : f32 to vector<32x16xf32>
    %22 = arith.mulf %21, %18 : vector<32x16xf32>
    %23 = arith.select %20, %18, %22 : vector<32x16xi1>, vector<32x16xf32>
    %24 = arith.truncf %23 : vector<32x16xf32> to vector<32x16xbf16>
    %c0_15 = arith.constant 0 : index
    %c0_16 = arith.constant 0 : index
    %c0_17 = arith.constant 0 : index
    %25 = vector.load %arg11[%c0_15, %c0_16, %c0_17] : memref<1x32x16xbf16, #tpu.memory_space<vmem>>, vector<1x32x16xbf16>
    %26 = vector.shape_cast %25 : vector<1x32x16xbf16> to vector<32x16xbf16>
    %27 = vector.shape_cast %24 : vector<32x16xbf16> to vector<1x32x16xbf16>
    tpu.vector_store %arg11[%c0_15, %c0_16, %c0_17], %27 {strides = array<i32>} : memref<1x32x16xbf16, #tpu.memory_space<vmem>>, vector<1x32x16xbf16>,
    %c0_18 = arith.constant 0 : index
    %c0_19 = arith.constant 0 : index
    %28 = vector.load %arg9[%c0_18, %c0_19] : memref<12x32xbf16, #tpu.memory_space<vmem>>, vector<12x32xbf16>
    %29 = arith.extf %28 : vector<12x32xbf16> to vector<12x32xf32>
    %c0_20 = arith.constant 0 : index
    %c0_21 = arith.constant 0 : index
    %c0_22 = arith.constant 0 : index
    %30 = vector.load %arg4[%c0_20, %c0_21, %c0_22] : memref<1x1x32xf32, #tpu.memory_space<vmem>>, vector<1x1x32xf32>
    %31 = vector.shape_cast %30 : vector<1x1x32xf32> to vector<1x32xf32>
    %32 = vector.broadcast %31 : vector<1x32xf32> to vector<12x32xf32>
    %33 = arith.mulf %29, %32 : vector<12x32xf32>
    %34 = arith.truncf %33 : vector<12x32xf32> to vector<12x32xbf16>
    %35 = arith.truncf %23 : vector<32x16xf32> to vector<32x16xbf16>
    %cst_23 = arith.constant dense<0.000000e+00> : vector<12x16xf32>
    %36 = tpu.matmul %34, %35, %cst_23 {dimension_numbers = #tpu.dot_dimension_numbers<[1], [0], [0], [1], [0, 0, 1, 1], [], []>} : vector<12x32xbf16>, vector<32x16xbf16>, vector<12x16xf32> -> vector<12x16xf32>
    %c0_24 = arith.constant 0 : index
    %c0_25 = arith.constant 0 : index
    %37 = vector.load %arg10[%c0_24, %c0_25] : memref<12x1xf32, #tpu.memory_space<vmem>>, vector<12x1xf32>
    %38 = vector.broadcast %37 : vector<12x1xf32> to vector<12x16xf32>
    %39 = arith.addf %36, %38 : vector<12x16xf32>
    %c0_26 = arith.constant 0 : index
    %c0_27 = arith.constant 0 : index
    %c0_28 = arith.constant 0 : index
    %40 = vector.load %arg12[%c0_26, %c0_27, %c0_28] : memref<1x12x16xf32, #tpu.memory_space<vmem>>, vector<1x12x16xf32>
    %41 = vector.shape_cast %40 : vector<1x12x16xf32> to vector<12x16xf32>
    %42 = vector.shape_cast %39 : vector<12x16xf32> to vector<1x12x16xf32>
    tpu.vector_store %arg12[%c0_26, %c0_27, %c0_28], %42 {strides = array<i32>} : memref<1x12x16xf32, #tpu.memory_space<vmem>>, vector<1x12x16xf32>,
    return
  }
  func.func @transform_0(%arg0: i32, %arg1: i32) -> (i32, i32, i32) {
    %c0_i32 = arith.constant 0 : i32
    %c0_i32_0 = arith.constant 0 : i32
    return %arg0, %c0_i32, %arg1 : i32, i32, i32
  }
  func.func @transform_1(%arg0: i32, %arg1: i32) -> (i32, i32, i32) {
    %c0_i32 = arith.constant 0 : i32
    %c0_i32_0 = arith.constant 0 : i32
    %c0_i32_1 = arith.constant 0 : i32
    return %arg0, %c0_i32, %c0_i32_0 : i32, i32, i32
  }
  func.func @transform_2(%arg0: i32, %arg1: i32) -> (i32, i32, i32) {
    %c0_i32 = arith.constant 0 : i32
    %c0_i32_0 = arith.constant 0 : i32
    %c0_i32_1 = arith.constant 0 : i32
    return %arg0, %c0_i32, %c0_i32_0 : i32, i32, i32
  }
  func.func @transform_3(%arg0: i32, %arg1: i32) -> (i32, i32) {
    %c0_i32 = arith.constant 0 : i32
    %c0_i32_0 = arith.constant 0 : i32
    %c0_i32_1 = arith.constant 0 : i32
    return %c0_i32, %c0_i32_0 : i32, i32
  }
  func.func @transform_4(%arg0: i32, %arg1: i32) -> (i32, i32) {
    %c0_i32 = arith.constant 0 : i32
    %c0_i32_0 = arith.constant 0 : i32
    %c0_i32_1 = arith.constant 0 : i32
    return %c0_i32, %c0_i32_0 : i32, i32
  }
  func.func @transform_5(%arg0: i32, %arg1: i32) -> (i32, i32) {
    %c0_i32 = arith.constant 0 : i32
    %c0_i32_0 = arith.constant 0 : i32
    return %c0_i32, %arg1 : i32, i32
  }
  func.func @transform_6(%arg0: i32, %arg1: i32) -> (i32, i32) {
    %c0_i32 = arith.constant 0 : i32
    %c0_i32_0 = arith.constant 0 : i32
    %c0_i32_1 = arith.constant 0 : i32
    return %c0_i32, %c0_i32_0 : i32, i32
  }
  func.func @transform_7(%arg0: i32, %arg1: i32) -> (i32, i32) {
    %c0_i32 = arith.constant 0 : i32
    %c0_i32_0 = arith.constant 0 : i32
    %c0_i32_1 = arith.constant 0 : i32
    return %c0_i32, %c0_i32_0 : i32, i32
  }
  func.func @transform_8(%arg0: i32, %arg1: i32) -> (i32, i32) {
    %c0_i32 = arith.constant 0 : i32
    %c0_i32_0 = arith.constant 0 : i32
    %c0_i32_1 = arith.constant 0 : i32
    return %c0_i32, %c0_i32_0 : i32, i32
  }
  func.func @transform_9(%arg0: i32, %arg1: i32) -> (i32, i32, i32) {
    %c0_i32 = arith.constant 0 : i32
    %c0_i32_0 = arith.constant 0 : i32
    return %arg0, %c0_i32, %arg1 : i32, i32, i32
  }
  func.func @transform_10(%arg0: i32, %arg1: i32) -> (i32, i32, i32) {
    %c0_i32 = arith.constant 0 : i32
    %c0_i32_0 = arith.constant 0 : i32
    return %arg0, %c0_i32, %arg1 : i32, i32, i32
  }
}

module attributes {stable_mosaic.version = 11 : i64} {
  func.func @kernel(%arg0: i32, %arg1: i32, %arg2: memref<1x4x8x16xbf16, #tpu.memory_space<vmem>>, %arg3: memref<1x4x8x1xf32, #tpu.memory_space<vmem>>, %arg4: memref<1x4x8x16xbf16, #tpu.memory_space<vmem>>) attributes {dimension_semantics = [#tpu.dimension_semantics<parallel>, #tpu.dimension_semantics<parallel>], iteration_bounds = array<i64: 2, 1>, scalar_prefetch = 0 : i64, scratch_operands = 0 : i64, tpu.core_type = #tpu.core_type<tc>, window_params = [{transform_indices = @transform_0, window_bounds = array<i64: 1, 4, 8, 16>}, {transform_indices = @transform_1, window_bounds = array<i64: 1, 4, 8, 1>}, {transform_indices = @transform_2, window_bounds = array<i64: 1, 4, 8, 16>}]} {
    %c0 = arith.constant 0 : index
    %c0_0 = arith.constant 0 : index
    %c0_1 = arith.constant 0 : index
    %c0_2 = arith.constant 0 : index
    %0 = vector.load %arg2[%c0, %c0_0, %c0_1, %c0_2] : memref<1x4x8x16xbf16, #tpu.memory_space<vmem>>, vector<1x1x8x16xbf16>
    %1 = vector.shape_cast %0 : vector<1x1x8x16xbf16> to vector<8x16xbf16>
    %2 = arith.extf %1 : vector<8x16xbf16> to vector<8x16xf32>
    %c0_3 = arith.constant 0 : index
    %c0_4 = arith.constant 0 : index
    %c0_5 = arith.constant 0 : index
    %c0_6 = arith.constant 0 : index
    %3 = vector.load %arg3[%c0_3, %c0_4, %c0_5, %c0_6] : memref<1x4x8x1xf32, #tpu.memory_space<vmem>>, vector<1x1x8x1xf32>
    %4 = vector.shape_cast %3 : vector<1x1x8x1xf32> to vector<8x1xf32>
    %5 = vector.broadcast %4 : vector<8x1xf32> to vector<8x16xf32>
    %6 = arith.mulf %2, %5 : vector<8x16xf32>
    %c0_7 = arith.constant 0 : index
    %c1 = arith.constant 1 : index
    %c0_8 = arith.constant 0 : index
    %c0_9 = arith.constant 0 : index
    %7 = vector.load %arg2[%c0_7, %c1, %c0_8, %c0_9] : memref<1x4x8x16xbf16, #tpu.memory_space<vmem>>, vector<1x1x8x16xbf16>
    %8 = vector.shape_cast %7 : vector<1x1x8x16xbf16> to vector<8x16xbf16>
    %9 = arith.extf %8 : vector<8x16xbf16> to vector<8x16xf32>
    %c0_10 = arith.constant 0 : index
    %c1_11 = arith.constant 1 : index
    %c0_12 = arith.constant 0 : index
    %c0_13 = arith.constant 0 : index
    %10 = vector.load %arg3[%c0_10, %c1_11, %c0_12, %c0_13] : memref<1x4x8x1xf32, #tpu.memory_space<vmem>>, vector<1x1x8x1xf32>
    %11 = vector.shape_cast %10 : vector<1x1x8x1xf32> to vector<8x1xf32>
    %12 = vector.broadcast %11 : vector<8x1xf32> to vector<8x16xf32>
    %13 = arith.mulf %9, %12 : vector<8x16xf32>
    %c0_14 = arith.constant 0 : index
    %c2 = arith.constant 2 : index
    %c0_15 = arith.constant 0 : index
    %c0_16 = arith.constant 0 : index
    %14 = vector.load %arg2[%c0_14, %c2, %c0_15, %c0_16] : memref<1x4x8x16xbf16, #tpu.memory_space<vmem>>, vector<1x1x8x16xbf16>
    %15 = vector.shape_cast %14 : vector<1x1x8x16xbf16> to vector<8x16xbf16>
    %16 = arith.extf %15 : vector<8x16xbf16> to vector<8x16xf32>
    %c0_17 = arith.constant 0 : index
    %c2_18 = arith.constant 2 : index
    %c0_19 = arith.constant 0 : index
    %c0_20 = arith.constant 0 : index
    %17 = vector.load %arg3[%c0_17, %c2_18, %c0_19, %c0_20] : memref<1x4x8x1xf32, #tpu.memory_space<vmem>>, vector<1x1x8x1xf32>
    %18 = vector.shape_cast %17 : vector<1x1x8x1xf32> to vector<8x1xf32>
    %19 = vector.broadcast %18 : vector<8x1xf32> to vector<8x16xf32>
    %20 = arith.mulf %16, %19 : vector<8x16xf32>
    %c0_21 = arith.constant 0 : index
    %c3 = arith.constant 3 : index
    %c0_22 = arith.constant 0 : index
    %c0_23 = arith.constant 0 : index
    %21 = vector.load %arg2[%c0_21, %c3, %c0_22, %c0_23] : memref<1x4x8x16xbf16, #tpu.memory_space<vmem>>, vector<1x1x8x16xbf16>
    %22 = vector.shape_cast %21 : vector<1x1x8x16xbf16> to vector<8x16xbf16>
    %23 = arith.extf %22 : vector<8x16xbf16> to vector<8x16xf32>
    %c0_24 = arith.constant 0 : index
    %c3_25 = arith.constant 3 : index
    %c0_26 = arith.constant 0 : index
    %c0_27 = arith.constant 0 : index
    %24 = vector.load %arg3[%c0_24, %c3_25, %c0_26, %c0_27] : memref<1x4x8x1xf32, #tpu.memory_space<vmem>>, vector<1x1x8x1xf32>
    %25 = vector.shape_cast %24 : vector<1x1x8x1xf32> to vector<8x1xf32>
    %26 = vector.broadcast %25 : vector<8x1xf32> to vector<8x16xf32>
    %27 = arith.mulf %23, %26 : vector<8x16xf32>
    %28 = arith.addf %6, %13 : vector<8x16xf32>
    %29 = arith.addf %28, %20 : vector<8x16xf32>
    %30 = arith.addf %29, %27 : vector<8x16xf32>
    %cst = arith.constant 5.000000e-01 : f32
    %31 = vector.broadcast %cst : f32 to vector<8x16xf32>
    %32 = arith.mulf %31, %30 : vector<8x16xf32>
    %33 = arith.truncf %32 : vector<8x16xf32> to vector<8x16xbf16>
    %c0_28 = arith.constant 0 : index
    %c0_29 = arith.constant 0 : index
    %c0_30 = arith.constant 0 : index
    %c0_31 = arith.constant 0 : index
    %34 = vector.load %arg4[%c0_28, %c0_29, %c0_30, %c0_31] : memref<1x4x8x16xbf16, #tpu.memory_space<vmem>>, vector<1x1x8x16xbf16>
    %35 = vector.shape_cast %34 : vector<1x1x8x16xbf16> to vector<8x16xbf16>
    %36 = vector.shape_cast %33 : vector<8x16xbf16> to vector<1x1x8x16xbf16>
    tpu.vector_store %arg4[%c0_28, %c0_29, %c0_30, %c0_31], %36 {strides = array<i32>} : memref<1x4x8x16xbf16, #tpu.memory_space<vmem>>, vector<1x1x8x16xbf16>,
    %37 = arith.addf %6, %13 : vector<8x16xf32>
    %38 = arith.subf %37, %20 : vector<8x16xf32>
    %39 = arith.subf %38, %27 : vector<8x16xf32>
    %cst_32 = arith.constant 5.000000e-01 : f32
    %40 = vector.broadcast %cst_32 : f32 to vector<8x16xf32>
    %41 = arith.mulf %40, %39 : vector<8x16xf32>
    %42 = arith.truncf %41 : vector<8x16xf32> to vector<8x16xbf16>
    %c0_33 = arith.constant 0 : index
    %c1_34 = arith.constant 1 : index
    %c0_35 = arith.constant 0 : index
    %c0_36 = arith.constant 0 : index
    %43 = vector.load %arg4[%c0_33, %c1_34, %c0_35, %c0_36] : memref<1x4x8x16xbf16, #tpu.memory_space<vmem>>, vector<1x1x8x16xbf16>
    %44 = vector.shape_cast %43 : vector<1x1x8x16xbf16> to vector<8x16xbf16>
    %45 = vector.shape_cast %42 : vector<8x16xbf16> to vector<1x1x8x16xbf16>
    tpu.vector_store %arg4[%c0_33, %c1_34, %c0_35, %c0_36], %45 {strides = array<i32>} : memref<1x4x8x16xbf16, #tpu.memory_space<vmem>>, vector<1x1x8x16xbf16>,
    %46 = arith.subf %6, %13 : vector<8x16xf32>
    %47 = arith.addf %46, %20 : vector<8x16xf32>
    %48 = arith.subf %47, %27 : vector<8x16xf32>
    %cst_37 = arith.constant 5.000000e-01 : f32
    %49 = vector.broadcast %cst_37 : f32 to vector<8x16xf32>
    %50 = arith.mulf %49, %48 : vector<8x16xf32>
    %51 = arith.truncf %50 : vector<8x16xf32> to vector<8x16xbf16>
    %c0_38 = arith.constant 0 : index
    %c2_39 = arith.constant 2 : index
    %c0_40 = arith.constant 0 : index
    %c0_41 = arith.constant 0 : index
    %52 = vector.load %arg4[%c0_38, %c2_39, %c0_40, %c0_41] : memref<1x4x8x16xbf16, #tpu.memory_space<vmem>>, vector<1x1x8x16xbf16>
    %53 = vector.shape_cast %52 : vector<1x1x8x16xbf16> to vector<8x16xbf16>
    %54 = vector.shape_cast %51 : vector<8x16xbf16> to vector<1x1x8x16xbf16>
    tpu.vector_store %arg4[%c0_38, %c2_39, %c0_40, %c0_41], %54 {strides = array<i32>} : memref<1x4x8x16xbf16, #tpu.memory_space<vmem>>, vector<1x1x8x16xbf16>,
    %55 = arith.subf %6, %13 : vector<8x16xf32>
    %56 = arith.subf %55, %20 : vector<8x16xf32>
    %57 = arith.addf %56, %27 : vector<8x16xf32>
    %cst_42 = arith.constant 5.000000e-01 : f32
    %58 = vector.broadcast %cst_42 : f32 to vector<8x16xf32>
    %59 = arith.mulf %58, %57 : vector<8x16xf32>
    %60 = arith.truncf %59 : vector<8x16xf32> to vector<8x16xbf16>
    %c0_43 = arith.constant 0 : index
    %c3_44 = arith.constant 3 : index
    %c0_45 = arith.constant 0 : index
    %c0_46 = arith.constant 0 : index
    %61 = vector.load %arg4[%c0_43, %c3_44, %c0_45, %c0_46] : memref<1x4x8x16xbf16, #tpu.memory_space<vmem>>, vector<1x1x8x16xbf16>
    %62 = vector.shape_cast %61 : vector<1x1x8x16xbf16> to vector<8x16xbf16>
    %63 = vector.shape_cast %60 : vector<8x16xbf16> to vector<1x1x8x16xbf16>
    tpu.vector_store %arg4[%c0_43, %c3_44, %c0_45, %c0_46], %63 {strides = array<i32>} : memref<1x4x8x16xbf16, #tpu.memory_space<vmem>>, vector<1x1x8x16xbf16>,
    return
  }
  func.func @transform_0(%arg0: i32, %arg1: i32) -> (i32, i32, i32, i32) {
    %c0_i32 = arith.constant 0 : i32
    %c0_i32_0 = arith.constant 0 : i32
    %c0_i32_1 = arith.constant 0 : i32
    return %arg0, %c0_i32, %c0_i32_0, %arg1 : i32, i32, i32, i32
  }
  func.func @transform_1(%arg0: i32, %arg1: i32) -> (i32, i32, i32, i32) {
    %c0_i32 = arith.constant 0 : i32
    %c0_i32_0 = arith.constant 0 : i32
    %c0_i32_1 = arith.constant 0 : i32
    %c0_i32_2 = arith.constant 0 : i32
    return %arg0, %c0_i32, %c0_i32_0, %c0_i32_1 : i32, i32, i32, i32
  }
  func.func @transform_2(%arg0: i32, %arg1: i32) -> (i32, i32, i32, i32) {
    %c0_i32 = arith.constant 0 : i32
    %c0_i32_0 = arith.constant 0 : i32
    %c0_i32_1 = arith.constant 0 : i32
    return %arg0, %c0_i32, %c0_i32_0, %arg1 : i32, i32, i32, i32
  }
}

module attributes {stable_mosaic.version = 11 : i64} {
  func.func @kernel(%arg0: i32, %arg1: memref<1x8x102xbf16, #tpu.memory_space<vmem>>, %arg2: memref<1x8x1xf32, #tpu.memory_space<vmem>>, %arg3: memref<8x9xbf16, #tpu.memory_space<vmem>>, %arg4: memref<16x8xbf16, #tpu.memory_space<vmem>>, %arg5: memref<16x1xf32, #tpu.memory_space<vmem>>, %arg6: memref<1x80xf32, #tpu.memory_space<vmem>>, %arg7: memref<16x1xf32, #tpu.memory_space<vmem>>, %arg8: memref<1x16x80xbf16, #tpu.memory_space<vmem>>) attributes {dimension_semantics = [#tpu.dimension_semantics<parallel>], iteration_bounds = array<i64: 2>, scalar_prefetch = 0 : i64, scratch_operands = 0 : i64, tpu.core_type = #tpu.core_type<tc>, window_params = [{transform_indices = @transform_0, window_bounds = array<i64: 1, 8, 102>}, {transform_indices = @transform_1, window_bounds = array<i64: 1, 8, 1>}, {pipeline_mode = #tpu.pipeline_mode<synchronous>, transform_indices = @transform_2, window_bounds = array<i64: 8, 9>}, {pipeline_mode = #tpu.pipeline_mode<synchronous>, transform_indices = @transform_3, window_bounds = array<i64: 16, 8>}, {pipeline_mode = #tpu.pipeline_mode<synchronous>, transform_indices = @transform_4, window_bounds = array<i64: 16, 1>}, {pipeline_mode = #tpu.pipeline_mode<synchronous>, transform_indices = @transform_5, window_bounds = array<i64: 1, 80>}, {pipeline_mode = #tpu.pipeline_mode<synchronous>, transform_indices = @transform_6, window_bounds = array<i64: 16, 1>}, {transform_indices = @transform_7, window_bounds = array<i64: 1, 16, 80>}]} {
    %c0 = arith.constant 0 : index
    %c0_0 = arith.constant 0 : index
    %0 = vector.load %arg3[%c0, %c0_0] : memref<8x9xbf16, #tpu.memory_space<vmem>>, vector<8x9xbf16>
    %1 = arith.extf %0 : vector<8x9xbf16> to vector<8x9xf32>
    %c0_1 = arith.constant 0 : index
    %c0_2 = arith.constant 0 : index
    %c0_3 = arith.constant 0 : index
    %2 = vector.load %arg2[%c0_1, %c0_2, %c0_3] : memref<1x8x1xf32, #tpu.memory_space<vmem>>, vector<1x8x1xf32>
    %3 = vector.shape_cast %2 : vector<1x8x1xf32> to vector<8x1xf32>
    %4 = vector.broadcast %3 : vector<8x1xf32> to vector<8x9xf32>
    %5 = arith.mulf %1, %4 : vector<8x9xf32>
    %c0_4 = arith.constant 0 : index
    %c0_5 = arith.constant 0 : index
    %c0_6 = arith.constant 0 : index
    %6 = vector.load %arg1[%c0_4, %c0_5, %c0_6] : memref<1x8x102xbf16, #tpu.memory_space<vmem>>, vector<1x8x80xbf16>
    %7 = vector.shape_cast %6 : vector<1x8x80xbf16> to vector<8x80xbf16>
    %8 = arith.extf %7 : vector<8x80xbf16> to vector<8x80xf32>
    %9 = vector.extract_strided_slice %5 {offsets = [0, 0], sizes = [8, 1], strides = [1, 1]} : vector<8x9xf32> to vector<8x1xf32>
    %10 = vector.broadcast %9 : vector<8x1xf32> to vector<8x80xf32>
    %11 = arith.mulf %8, %10 : vector<8x80xf32>
    %c0_7 = arith.constant 0 : index
    %c0_8 = arith.constant 0 : index
    %c1 = arith.constant 1 : index
    %12 = vector.load %arg1[%c0_7, %c0_8, %c1] : memref<1x8x102xbf16, #tpu.memory_space<vmem>>, vector<1x8x80xbf16>
    %13 = vector.shape_cast %12 : vector<1x8x80xbf16> to vector<8x80xbf16>
    %14 = arith.extf %13 : vector<8x80xbf16> to vector<8x80xf32>
    %15 = vector.extract_strided_slice %5 {offsets = [0, 1], sizes = [8, 1], strides = [1, 1]} : vector<8x9xf32> to vector<8x1xf32>
    %16 = vector.broadcast %15 : vector<8x1xf32> to vector<8x80xf32>
    %17 = arith.mulf %14, %16 : vector<8x80xf32>
    %18 = arith.addf %11, %17 : vector<8x80xf32>
    %c0_9 = arith.constant 0 : index
    %c0_10 = arith.constant 0 : index
    %c2 = arith.constant 2 : index
    %19 = vector.load %arg1[%c0_9, %c0_10, %c2] : memref<1x8x102xbf16, #tpu.memory_space<vmem>>, vector<1x8x80xbf16>
    %20 = vector.shape_cast %19 : vector<1x8x80xbf16> to vector<8x80xbf16>
    %21 = arith.extf %20 : vector<8x80xbf16> to vector<8x80xf32>
    %22 = vector.extract_strided_slice %5 {offsets = [0, 2], sizes = [8, 1], strides = [1, 1]} : vector<8x9xf32> to vector<8x1xf32>
    %23 = vector.broadcast %22 : vector<8x1xf32> to vector<8x80xf32>
    %24 = arith.mulf %21, %23 : vector<8x80xf32>
    %25 = arith.addf %18, %24 : vector<8x80xf32>
    %c0_11 = arith.constant 0 : index
    %c0_12 = arith.constant 0 : index
    %c10 = arith.constant 10 : index
    %26 = vector.load %arg1[%c0_11, %c0_12, %c10] : memref<1x8x102xbf16, #tpu.memory_space<vmem>>, vector<1x8x80xbf16>
    %27 = vector.shape_cast %26 : vector<1x8x80xbf16> to vector<8x80xbf16>
    %28 = arith.extf %27 : vector<8x80xbf16> to vector<8x80xf32>
    %29 = vector.extract_strided_slice %5 {offsets = [0, 3], sizes = [8, 1], strides = [1, 1]} : vector<8x9xf32> to vector<8x1xf32>
    %30 = vector.broadcast %29 : vector<8x1xf32> to vector<8x80xf32>
    %31 = arith.mulf %28, %30 : vector<8x80xf32>
    %32 = arith.addf %25, %31 : vector<8x80xf32>
    %c0_13 = arith.constant 0 : index
    %c0_14 = arith.constant 0 : index
    %c11 = arith.constant 11 : index
    %33 = vector.load %arg1[%c0_13, %c0_14, %c11] : memref<1x8x102xbf16, #tpu.memory_space<vmem>>, vector<1x8x80xbf16>
    %34 = vector.shape_cast %33 : vector<1x8x80xbf16> to vector<8x80xbf16>
    %35 = arith.extf %34 : vector<8x80xbf16> to vector<8x80xf32>
    %36 = vector.extract_strided_slice %5 {offsets = [0, 4], sizes = [8, 1], strides = [1, 1]} : vector<8x9xf32> to vector<8x1xf32>
    %37 = vector.broadcast %36 : vector<8x1xf32> to vector<8x80xf32>
    %38 = arith.mulf %35, %37 : vector<8x80xf32>
    %39 = arith.addf %32, %38 : vector<8x80xf32>
    %c0_15 = arith.constant 0 : index
    %c0_16 = arith.constant 0 : index
    %c12 = arith.constant 12 : index
    %40 = vector.load %arg1[%c0_15, %c0_16, %c12] : memref<1x8x102xbf16, #tpu.memory_space<vmem>>, vector<1x8x80xbf16>
    %41 = vector.shape_cast %40 : vector<1x8x80xbf16> to vector<8x80xbf16>
    %42 = arith.extf %41 : vector<8x80xbf16> to vector<8x80xf32>
    %43 = vector.extract_strided_slice %5 {offsets = [0, 5], sizes = [8, 1], strides = [1, 1]} : vector<8x9xf32> to vector<8x1xf32>
    %44 = vector.broadcast %43 : vector<8x1xf32> to vector<8x80xf32>
    %45 = arith.mulf %42, %44 : vector<8x80xf32>
    %46 = arith.addf %39, %45 : vector<8x80xf32>
    %c0_17 = arith.constant 0 : index
    %c0_18 = arith.constant 0 : index
    %c20 = arith.constant 20 : index
    %47 = vector.load %arg1[%c0_17, %c0_18, %c20] : memref<1x8x102xbf16, #tpu.memory_space<vmem>>, vector<1x8x80xbf16>
    %48 = vector.shape_cast %47 : vector<1x8x80xbf16> to vector<8x80xbf16>
    %49 = arith.extf %48 : vector<8x80xbf16> to vector<8x80xf32>
    %50 = vector.extract_strided_slice %5 {offsets = [0, 6], sizes = [8, 1], strides = [1, 1]} : vector<8x9xf32> to vector<8x1xf32>
    %51 = vector.broadcast %50 : vector<8x1xf32> to vector<8x80xf32>
    %52 = arith.mulf %49, %51 : vector<8x80xf32>
    %53 = arith.addf %46, %52 : vector<8x80xf32>
    %c0_19 = arith.constant 0 : index
    %c0_20 = arith.constant 0 : index
    %c21 = arith.constant 21 : index
    %54 = vector.load %arg1[%c0_19, %c0_20, %c21] : memref<1x8x102xbf16, #tpu.memory_space<vmem>>, vector<1x8x80xbf16>
    %55 = vector.shape_cast %54 : vector<1x8x80xbf16> to vector<8x80xbf16>
    %56 = arith.extf %55 : vector<8x80xbf16> to vector<8x80xf32>
    %57 = vector.extract_strided_slice %5 {offsets = [0, 7], sizes = [8, 1], strides = [1, 1]} : vector<8x9xf32> to vector<8x1xf32>
    %58 = vector.broadcast %57 : vector<8x1xf32> to vector<8x80xf32>
    %59 = arith.mulf %56, %58 : vector<8x80xf32>
    %60 = arith.addf %53, %59 : vector<8x80xf32>
    %c0_21 = arith.constant 0 : index
    %c0_22 = arith.constant 0 : index
    %c22 = arith.constant 22 : index
    %61 = vector.load %arg1[%c0_21, %c0_22, %c22] : memref<1x8x102xbf16, #tpu.memory_space<vmem>>, vector<1x8x80xbf16>
    %62 = vector.shape_cast %61 : vector<1x8x80xbf16> to vector<8x80xbf16>
    %63 = arith.extf %62 : vector<8x80xbf16> to vector<8x80xf32>
    %64 = vector.extract_strided_slice %5 {offsets = [0, 8], sizes = [8, 1], strides = [1, 1]} : vector<8x9xf32> to vector<8x1xf32>
    %65 = vector.broadcast %64 : vector<8x1xf32> to vector<8x80xf32>
    %66 = arith.mulf %63, %65 : vector<8x80xf32>
    %67 = arith.addf %60, %66 : vector<8x80xf32>
    %c0_23 = arith.constant 0 : index
    %c0_24 = arith.constant 0 : index
    %68 = vector.load %arg4[%c0_23, %c0_24] : memref<16x8xbf16, #tpu.memory_space<vmem>>, vector<16x8xbf16>
    %69 = arith.truncf %67 : vector<8x80xf32> to vector<8x80xbf16>
    %cst = arith.constant dense<0.000000e+00> : vector<16x80xf32>
    %70 = tpu.matmul %68, %69, %cst {dimension_numbers = #tpu.dot_dimension_numbers<[1], [0], [0], [1], [0, 0, 1, 1], [], []>} : vector<16x8xbf16>, vector<8x80xbf16>, vector<16x80xf32> -> vector<16x80xf32>
    %c0_25 = arith.constant 0 : index
    %c0_26 = arith.constant 0 : index
    %71 = vector.load %arg5[%c0_25, %c0_26] : memref<16x1xf32, #tpu.memory_space<vmem>>, vector<16x1xf32>
    %72 = vector.broadcast %71 : vector<16x1xf32> to vector<16x80xf32>
    %73 = arith.mulf %70, %72 : vector<16x80xf32>
    %c0_27 = arith.constant 0 : index
    %c0_28 = arith.constant 0 : index
    %74 = vector.load %arg6[%c0_27, %c0_28] : memref<1x80xf32, #tpu.memory_space<vmem>>, vector<1x80xf32>
    %75 = vector.broadcast %74 : vector<1x80xf32> to vector<16x80xf32>
    %76 = arith.addf %73, %75 : vector<16x80xf32>
    %c0_29 = arith.constant 0 : index
    %c0_30 = arith.constant 0 : index
    %77 = vector.load %arg7[%c0_29, %c0_30] : memref<16x1xf32, #tpu.memory_space<vmem>>, vector<16x1xf32>
    %78 = vector.broadcast %77 : vector<16x1xf32> to vector<16x80xf32>
    %79 = arith.addf %76, %78 : vector<16x80xf32>
    %cst_31 = arith.constant 0.000000e+00 : f32
    %80 = vector.broadcast %cst_31 : f32 to vector<16x80xf32>
    %81 = arith.cmpf ogt, %79, %80 : vector<16x80xf32>
    %cst_32 = arith.constant 2.000000e-01 : f32
    %82 = vector.broadcast %cst_32 : f32 to vector<16x80xf32>
    %83 = arith.mulf %82, %79 : vector<16x80xf32>
    %84 = arith.select %81, %79, %83 : vector<16x80xi1>, vector<16x80xf32>
    %85 = arith.truncf %84 : vector<16x80xf32> to vector<16x80xbf16>
    %c0_33 = arith.constant 0 : index
    %c0_34 = arith.constant 0 : index
    %c0_35 = arith.constant 0 : index
    %86 = vector.load %arg8[%c0_33, %c0_34, %c0_35] : memref<1x16x80xbf16, #tpu.memory_space<vmem>>, vector<1x16x80xbf16>
    %87 = vector.shape_cast %86 : vector<1x16x80xbf16> to vector<16x80xbf16>
    %88 = vector.shape_cast %85 : vector<16x80xbf16> to vector<1x16x80xbf16>
    tpu.vector_store %arg8[%c0_33, %c0_34, %c0_35], %88 {strides = array<i32>} : memref<1x16x80xbf16, #tpu.memory_space<vmem>>, vector<1x16x80xbf16>,
    return
  }
  func.func @transform_0(%arg0: i32) -> (i32, i32, i32) {
    %c0_i32 = arith.constant 0 : i32
    %c0_i32_0 = arith.constant 0 : i32
    %c0_i32_1 = arith.constant 0 : i32
    return %arg0, %c0_i32, %c0_i32_0 : i32, i32, i32
  }
  func.func @transform_1(%arg0: i32) -> (i32, i32, i32) {
    %c0_i32 = arith.constant 0 : i32
    %c0_i32_0 = arith.constant 0 : i32
    %c0_i32_1 = arith.constant 0 : i32
    return %arg0, %c0_i32, %c0_i32_0 : i32, i32, i32
  }
  func.func @transform_2(%arg0: i32) -> (i32, i32) {
    %c0_i32 = arith.constant 0 : i32
    %c0_i32_0 = arith.constant 0 : i32
    %c0_i32_1 = arith.constant 0 : i32
    return %c0_i32, %c0_i32_0 : i32, i32
  }
  func.func @transform_3(%arg0: i32) -> (i32, i32) {
    %c0_i32 = arith.constant 0 : i32
    %c0_i32_0 = arith.constant 0 : i32
    %c0_i32_1 = arith.constant 0 : i32
    return %c0_i32, %c0_i32_0 : i32, i32
  }
  func.func @transform_4(%arg0: i32) -> (i32, i32) {
    %c0_i32 = arith.constant 0 : i32
    %c0_i32_0 = arith.constant 0 : i32
    %c0_i32_1 = arith.constant 0 : i32
    return %c0_i32, %c0_i32_0 : i32, i32
  }
  func.func @transform_5(%arg0: i32) -> (i32, i32) {
    %c0_i32 = arith.constant 0 : i32
    %c0_i32_0 = arith.constant 0 : i32
    %c0_i32_1 = arith.constant 0 : i32
    return %c0_i32, %c0_i32_0 : i32, i32
  }
  func.func @transform_6(%arg0: i32) -> (i32, i32) {
    %c0_i32 = arith.constant 0 : i32
    %c0_i32_0 = arith.constant 0 : i32
    %c0_i32_1 = arith.constant 0 : i32
    return %c0_i32, %c0_i32_0 : i32, i32
  }
  func.func @transform_7(%arg0: i32) -> (i32, i32, i32) {
    %c0_i32 = arith.constant 0 : i32
    %c0_i32_0 = arith.constant 0 : i32
    %c0_i32_1 = arith.constant 0 : i32
    return %arg0, %c0_i32, %c0_i32_0 : i32, i32, i32
  }
}

module attributes {stable_mosaic.version = 11 : i64} {
  func.func @kernel(%arg0: i32, %arg1: memref<1x16x102xbf16, #tpu.memory_space<vmem>>, %arg2: memref<1x16x1xf32, #tpu.memory_space<vmem>>, %arg3: memref<1x1x16xf32, #tpu.memory_space<vmem>>, %arg4: memref<16x9xbf16, #tpu.memory_space<vmem>>, %arg5: memref<16x16xbf16, #tpu.memory_space<vmem>>, %arg6: memref<16x1xf32, #tpu.memory_space<vmem>>, %arg7: memref<1x80xf32, #tpu.memory_space<vmem>>, %arg8: memref<16x1xf32, #tpu.memory_space<vmem>>, %arg9: memref<12x16xbf16, #tpu.memory_space<vmem>>, %arg10: memref<12x1xf32, #tpu.memory_space<vmem>>, %arg11: memref<1x16x80xbf16, #tpu.memory_space<vmem>>, %arg12: memref<1x12x80xf32, #tpu.memory_space<vmem>>) attributes {dimension_semantics = [#tpu.dimension_semantics<parallel>], iteration_bounds = array<i64: 2>, scalar_prefetch = 0 : i64, scratch_operands = 0 : i64, tpu.core_type = #tpu.core_type<tc>, window_params = [{transform_indices = @transform_0, window_bounds = array<i64: 1, 16, 102>}, {transform_indices = @transform_1, window_bounds = array<i64: 1, 16, 1>}, {transform_indices = @transform_2, window_bounds = array<i64: 1, 1, 16>}, {pipeline_mode = #tpu.pipeline_mode<synchronous>, transform_indices = @transform_3, window_bounds = array<i64: 16, 9>}, {pipeline_mode = #tpu.pipeline_mode<synchronous>, transform_indices = @transform_4, window_bounds = array<i64: 16, 16>}, {pipeline_mode = #tpu.pipeline_mode<synchronous>, transform_indices = @transform_5, window_bounds = array<i64: 16, 1>}, {pipeline_mode = #tpu.pipeline_mode<synchronous>, transform_indices = @transform_6, window_bounds = array<i64: 1, 80>}, {pipeline_mode = #tpu.pipeline_mode<synchronous>, transform_indices = @transform_7, window_bounds = array<i64: 16, 1>}, {pipeline_mode = #tpu.pipeline_mode<synchronous>, transform_indices = @transform_8, window_bounds = array<i64: 12, 16>}, {pipeline_mode = #tpu.pipeline_mode<synchronous>, transform_indices = @transform_9, window_bounds = array<i64: 12, 1>}, {transform_indices = @transform_10, window_bounds = array<i64: 1, 16, 80>}, {transform_indices = @transform_11, window_bounds = array<i64: 1, 12, 80>}]} {
    %c0 = arith.constant 0 : index
    %c0_0 = arith.constant 0 : index
    %0 = vector.load %arg4[%c0, %c0_0] : memref<16x9xbf16, #tpu.memory_space<vmem>>, vector<16x9xbf16>
    %1 = arith.extf %0 : vector<16x9xbf16> to vector<16x9xf32>
    %c0_1 = arith.constant 0 : index
    %c0_2 = arith.constant 0 : index
    %c0_3 = arith.constant 0 : index
    %2 = vector.load %arg2[%c0_1, %c0_2, %c0_3] : memref<1x16x1xf32, #tpu.memory_space<vmem>>, vector<1x16x1xf32>
    %3 = vector.shape_cast %2 : vector<1x16x1xf32> to vector<16x1xf32>
    %4 = vector.broadcast %3 : vector<16x1xf32> to vector<16x9xf32>
    %5 = arith.mulf %1, %4 : vector<16x9xf32>
    %c0_4 = arith.constant 0 : index
    %c0_5 = arith.constant 0 : index
    %c0_6 = arith.constant 0 : index
    %6 = vector.load %arg1[%c0_4, %c0_5, %c0_6] : memref<1x16x102xbf16, #tpu.memory_space<vmem>>, vector<1x16x80xbf16>
    %7 = vector.shape_cast %6 : vector<1x16x80xbf16> to vector<16x80xbf16>
    %8 = arith.extf %7 : vector<16x80xbf16> to vector<16x80xf32>
    %9 = vector.extract_strided_slice %5 {offsets = [0, 0], sizes = [16, 1], strides = [1, 1]} : vector<16x9xf32> to vector<16x1xf32>
    %10 = vector.broadcast %9 : vector<16x1xf32> to vector<16x80xf32>
    %11 = arith.mulf %8, %10 : vector<16x80xf32>
    %c0_7 = arith.constant 0 : index
    %c0_8 = arith.constant 0 : index
    %c1 = arith.constant 1 : index
    %12 = vector.load %arg1[%c0_7, %c0_8, %c1] : memref<1x16x102xbf16, #tpu.memory_space<vmem>>, vector<1x16x80xbf16>
    %13 = vector.shape_cast %12 : vector<1x16x80xbf16> to vector<16x80xbf16>
    %14 = arith.extf %13 : vector<16x80xbf16> to vector<16x80xf32>
    %15 = vector.extract_strided_slice %5 {offsets = [0, 1], sizes = [16, 1], strides = [1, 1]} : vector<16x9xf32> to vector<16x1xf32>
    %16 = vector.broadcast %15 : vector<16x1xf32> to vector<16x80xf32>
    %17 = arith.mulf %14, %16 : vector<16x80xf32>
    %18 = arith.addf %11, %17 : vector<16x80xf32>
    %c0_9 = arith.constant 0 : index
    %c0_10 = arith.constant 0 : index
    %c2 = arith.constant 2 : index
    %19 = vector.load %arg1[%c0_9, %c0_10, %c2] : memref<1x16x102xbf16, #tpu.memory_space<vmem>>, vector<1x16x80xbf16>
    %20 = vector.shape_cast %19 : vector<1x16x80xbf16> to vector<16x80xbf16>
    %21 = arith.extf %20 : vector<16x80xbf16> to vector<16x80xf32>
    %22 = vector.extract_strided_slice %5 {offsets = [0, 2], sizes = [16, 1], strides = [1, 1]} : vector<16x9xf32> to vector<16x1xf32>
    %23 = vector.broadcast %22 : vector<16x1xf32> to vector<16x80xf32>
    %24 = arith.mulf %21, %23 : vector<16x80xf32>
    %25 = arith.addf %18, %24 : vector<16x80xf32>
    %c0_11 = arith.constant 0 : index
    %c0_12 = arith.constant 0 : index
    %c10 = arith.constant 10 : index
    %26 = vector.load %arg1[%c0_11, %c0_12, %c10] : memref<1x16x102xbf16, #tpu.memory_space<vmem>>, vector<1x16x80xbf16>
    %27 = vector.shape_cast %26 : vector<1x16x80xbf16> to vector<16x80xbf16>
    %28 = arith.extf %27 : vector<16x80xbf16> to vector<16x80xf32>
    %29 = vector.extract_strided_slice %5 {offsets = [0, 3], sizes = [16, 1], strides = [1, 1]} : vector<16x9xf32> to vector<16x1xf32>
    %30 = vector.broadcast %29 : vector<16x1xf32> to vector<16x80xf32>
    %31 = arith.mulf %28, %30 : vector<16x80xf32>
    %32 = arith.addf %25, %31 : vector<16x80xf32>
    %c0_13 = arith.constant 0 : index
    %c0_14 = arith.constant 0 : index
    %c11 = arith.constant 11 : index
    %33 = vector.load %arg1[%c0_13, %c0_14, %c11] : memref<1x16x102xbf16, #tpu.memory_space<vmem>>, vector<1x16x80xbf16>
    %34 = vector.shape_cast %33 : vector<1x16x80xbf16> to vector<16x80xbf16>
    %35 = arith.extf %34 : vector<16x80xbf16> to vector<16x80xf32>
    %36 = vector.extract_strided_slice %5 {offsets = [0, 4], sizes = [16, 1], strides = [1, 1]} : vector<16x9xf32> to vector<16x1xf32>
    %37 = vector.broadcast %36 : vector<16x1xf32> to vector<16x80xf32>
    %38 = arith.mulf %35, %37 : vector<16x80xf32>
    %39 = arith.addf %32, %38 : vector<16x80xf32>
    %c0_15 = arith.constant 0 : index
    %c0_16 = arith.constant 0 : index
    %c12 = arith.constant 12 : index
    %40 = vector.load %arg1[%c0_15, %c0_16, %c12] : memref<1x16x102xbf16, #tpu.memory_space<vmem>>, vector<1x16x80xbf16>
    %41 = vector.shape_cast %40 : vector<1x16x80xbf16> to vector<16x80xbf16>
    %42 = arith.extf %41 : vector<16x80xbf16> to vector<16x80xf32>
    %43 = vector.extract_strided_slice %5 {offsets = [0, 5], sizes = [16, 1], strides = [1, 1]} : vector<16x9xf32> to vector<16x1xf32>
    %44 = vector.broadcast %43 : vector<16x1xf32> to vector<16x80xf32>
    %45 = arith.mulf %42, %44 : vector<16x80xf32>
    %46 = arith.addf %39, %45 : vector<16x80xf32>
    %c0_17 = arith.constant 0 : index
    %c0_18 = arith.constant 0 : index
    %c20 = arith.constant 20 : index
    %47 = vector.load %arg1[%c0_17, %c0_18, %c20] : memref<1x16x102xbf16, #tpu.memory_space<vmem>>, vector<1x16x80xbf16>
    %48 = vector.shape_cast %47 : vector<1x16x80xbf16> to vector<16x80xbf16>
    %49 = arith.extf %48 : vector<16x80xbf16> to vector<16x80xf32>
    %50 = vector.extract_strided_slice %5 {offsets = [0, 6], sizes = [16, 1], strides = [1, 1]} : vector<16x9xf32> to vector<16x1xf32>
    %51 = vector.broadcast %50 : vector<16x1xf32> to vector<16x80xf32>
    %52 = arith.mulf %49, %51 : vector<16x80xf32>
    %53 = arith.addf %46, %52 : vector<16x80xf32>
    %c0_19 = arith.constant 0 : index
    %c0_20 = arith.constant 0 : index
    %c21 = arith.constant 21 : index
    %54 = vector.load %arg1[%c0_19, %c0_20, %c21] : memref<1x16x102xbf16, #tpu.memory_space<vmem>>, vector<1x16x80xbf16>
    %55 = vector.shape_cast %54 : vector<1x16x80xbf16> to vector<16x80xbf16>
    %56 = arith.extf %55 : vector<16x80xbf16> to vector<16x80xf32>
    %57 = vector.extract_strided_slice %5 {offsets = [0, 7], sizes = [16, 1], strides = [1, 1]} : vector<16x9xf32> to vector<16x1xf32>
    %58 = vector.broadcast %57 : vector<16x1xf32> to vector<16x80xf32>
    %59 = arith.mulf %56, %58 : vector<16x80xf32>
    %60 = arith.addf %53, %59 : vector<16x80xf32>
    %c0_21 = arith.constant 0 : index
    %c0_22 = arith.constant 0 : index
    %c22 = arith.constant 22 : index
    %61 = vector.load %arg1[%c0_21, %c0_22, %c22] : memref<1x16x102xbf16, #tpu.memory_space<vmem>>, vector<1x16x80xbf16>
    %62 = vector.shape_cast %61 : vector<1x16x80xbf16> to vector<16x80xbf16>
    %63 = arith.extf %62 : vector<16x80xbf16> to vector<16x80xf32>
    %64 = vector.extract_strided_slice %5 {offsets = [0, 8], sizes = [16, 1], strides = [1, 1]} : vector<16x9xf32> to vector<16x1xf32>
    %65 = vector.broadcast %64 : vector<16x1xf32> to vector<16x80xf32>
    %66 = arith.mulf %63, %65 : vector<16x80xf32>
    %67 = arith.addf %60, %66 : vector<16x80xf32>
    %c0_23 = arith.constant 0 : index
    %c0_24 = arith.constant 0 : index
    %68 = vector.load %arg5[%c0_23, %c0_24] : memref<16x16xbf16, #tpu.memory_space<vmem>>, vector<16x16xbf16>
    %69 = arith.truncf %67 : vector<16x80xf32> to vector<16x80xbf16>
    %cst = arith.constant dense<0.000000e+00> : vector<16x80xf32>
    %70 = tpu.matmul %68, %69, %cst {dimension_numbers = #tpu.dot_dimension_numbers<[1], [0], [0], [1], [0, 0, 1, 1], [], []>} : vector<16x16xbf16>, vector<16x80xbf16>, vector<16x80xf32> -> vector<16x80xf32>
    %c0_25 = arith.constant 0 : index
    %c0_26 = arith.constant 0 : index
    %71 = vector.load %arg6[%c0_25, %c0_26] : memref<16x1xf32, #tpu.memory_space<vmem>>, vector<16x1xf32>
    %72 = vector.broadcast %71 : vector<16x1xf32> to vector<16x80xf32>
    %73 = arith.mulf %70, %72 : vector<16x80xf32>
    %c0_27 = arith.constant 0 : index
    %c0_28 = arith.constant 0 : index
    %74 = vector.load %arg7[%c0_27, %c0_28] : memref<1x80xf32, #tpu.memory_space<vmem>>, vector<1x80xf32>
    %75 = vector.broadcast %74 : vector<1x80xf32> to vector<16x80xf32>
    %76 = arith.addf %73, %75 : vector<16x80xf32>
    %c0_29 = arith.constant 0 : index
    %c0_30 = arith.constant 0 : index
    %77 = vector.load %arg8[%c0_29, %c0_30] : memref<16x1xf32, #tpu.memory_space<vmem>>, vector<16x1xf32>
    %78 = vector.broadcast %77 : vector<16x1xf32> to vector<16x80xf32>
    %79 = arith.addf %76, %78 : vector<16x80xf32>
    %cst_31 = arith.constant 0.000000e+00 : f32
    %80 = vector.broadcast %cst_31 : f32 to vector<16x80xf32>
    %81 = arith.cmpf ogt, %79, %80 : vector<16x80xf32>
    %cst_32 = arith.constant 2.000000e-01 : f32
    %82 = vector.broadcast %cst_32 : f32 to vector<16x80xf32>
    %83 = arith.mulf %82, %79 : vector<16x80xf32>
    %84 = arith.select %81, %79, %83 : vector<16x80xi1>, vector<16x80xf32>
    %85 = arith.truncf %84 : vector<16x80xf32> to vector<16x80xbf16>
    %c0_33 = arith.constant 0 : index
    %c0_34 = arith.constant 0 : index
    %c0_35 = arith.constant 0 : index
    %86 = vector.load %arg11[%c0_33, %c0_34, %c0_35] : memref<1x16x80xbf16, #tpu.memory_space<vmem>>, vector<1x16x80xbf16>
    %87 = vector.shape_cast %86 : vector<1x16x80xbf16> to vector<16x80xbf16>
    %88 = vector.shape_cast %85 : vector<16x80xbf16> to vector<1x16x80xbf16>
    tpu.vector_store %arg11[%c0_33, %c0_34, %c0_35], %88 {strides = array<i32>} : memref<1x16x80xbf16, #tpu.memory_space<vmem>>, vector<1x16x80xbf16>,
    %c0_36 = arith.constant 0 : index
    %c0_37 = arith.constant 0 : index
    %89 = vector.load %arg9[%c0_36, %c0_37] : memref<12x16xbf16, #tpu.memory_space<vmem>>, vector<12x16xbf16>
    %90 = arith.extf %89 : vector<12x16xbf16> to vector<12x16xf32>
    %c0_38 = arith.constant 0 : index
    %c0_39 = arith.constant 0 : index
    %c0_40 = arith.constant 0 : index
    %91 = vector.load %arg3[%c0_38, %c0_39, %c0_40] : memref<1x1x16xf32, #tpu.memory_space<vmem>>, vector<1x1x16xf32>
    %92 = vector.shape_cast %91 : vector<1x1x16xf32> to vector<1x16xf32>
    %93 = vector.broadcast %92 : vector<1x16xf32> to vector<12x16xf32>
    %94 = arith.mulf %90, %93 : vector<12x16xf32>
    %95 = arith.truncf %94 : vector<12x16xf32> to vector<12x16xbf16>
    %96 = arith.truncf %84 : vector<16x80xf32> to vector<16x80xbf16>
    %cst_41 = arith.constant dense<0.000000e+00> : vector<12x80xf32>
    %97 = tpu.matmul %95, %96, %cst_41 {dimension_numbers = #tpu.dot_dimension_numbers<[1], [0], [0], [1], [0, 0, 1, 1], [], []>} : vector<12x16xbf16>, vector<16x80xbf16>, vector<12x80xf32> -> vector<12x80xf32>
    %c0_42 = arith.constant 0 : index
    %c0_43 = arith.constant 0 : index
    %98 = vector.load %arg10[%c0_42, %c0_43] : memref<12x1xf32, #tpu.memory_space<vmem>>, vector<12x1xf32>
    %99 = vector.broadcast %98 : vector<12x1xf32> to vector<12x80xf32>
    %100 = arith.addf %97, %99 : vector<12x80xf32>
    %c0_44 = arith.constant 0 : index
    %c0_45 = arith.constant 0 : index
    %c0_46 = arith.constant 0 : index
    %101 = vector.load %arg12[%c0_44, %c0_45, %c0_46] : memref<1x12x80xf32, #tpu.memory_space<vmem>>, vector<1x12x80xf32>
    %102 = vector.shape_cast %101 : vector<1x12x80xf32> to vector<12x80xf32>
    %103 = vector.shape_cast %100 : vector<12x80xf32> to vector<1x12x80xf32>
    tpu.vector_store %arg12[%c0_44, %c0_45, %c0_46], %103 {strides = array<i32>} : memref<1x12x80xf32, #tpu.memory_space<vmem>>, vector<1x12x80xf32>,
    return
  }
  func.func @transform_0(%arg0: i32) -> (i32, i32, i32) {
    %c0_i32 = arith.constant 0 : i32
    %c0_i32_0 = arith.constant 0 : i32
    %c0_i32_1 = arith.constant 0 : i32
    return %arg0, %c0_i32, %c0_i32_0 : i32, i32, i32
  }
  func.func @transform_1(%arg0: i32) -> (i32, i32, i32) {
    %c0_i32 = arith.constant 0 : i32
    %c0_i32_0 = arith.constant 0 : i32
    %c0_i32_1 = arith.constant 0 : i32
    return %arg0, %c0_i32, %c0_i32_0 : i32, i32, i32
  }
  func.func @transform_2(%arg0: i32) -> (i32, i32, i32) {
    %c0_i32 = arith.constant 0 : i32
    %c0_i32_0 = arith.constant 0 : i32
    %c0_i32_1 = arith.constant 0 : i32
    return %arg0, %c0_i32, %c0_i32_0 : i32, i32, i32
  }
  func.func @transform_3(%arg0: i32) -> (i32, i32) {
    %c0_i32 = arith.constant 0 : i32
    %c0_i32_0 = arith.constant 0 : i32
    %c0_i32_1 = arith.constant 0 : i32
    return %c0_i32, %c0_i32_0 : i32, i32
  }
  func.func @transform_4(%arg0: i32) -> (i32, i32) {
    %c0_i32 = arith.constant 0 : i32
    %c0_i32_0 = arith.constant 0 : i32
    %c0_i32_1 = arith.constant 0 : i32
    return %c0_i32, %c0_i32_0 : i32, i32
  }
  func.func @transform_5(%arg0: i32) -> (i32, i32) {
    %c0_i32 = arith.constant 0 : i32
    %c0_i32_0 = arith.constant 0 : i32
    %c0_i32_1 = arith.constant 0 : i32
    return %c0_i32, %c0_i32_0 : i32, i32
  }
  func.func @transform_6(%arg0: i32) -> (i32, i32) {
    %c0_i32 = arith.constant 0 : i32
    %c0_i32_0 = arith.constant 0 : i32
    %c0_i32_1 = arith.constant 0 : i32
    return %c0_i32, %c0_i32_0 : i32, i32
  }
  func.func @transform_7(%arg0: i32) -> (i32, i32) {
    %c0_i32 = arith.constant 0 : i32
    %c0_i32_0 = arith.constant 0 : i32
    %c0_i32_1 = arith.constant 0 : i32
    return %c0_i32, %c0_i32_0 : i32, i32
  }
  func.func @transform_8(%arg0: i32) -> (i32, i32) {
    %c0_i32 = arith.constant 0 : i32
    %c0_i32_0 = arith.constant 0 : i32
    %c0_i32_1 = arith.constant 0 : i32
    return %c0_i32, %c0_i32_0 : i32, i32
  }
  func.func @transform_9(%arg0: i32) -> (i32, i32) {
    %c0_i32 = arith.constant 0 : i32
    %c0_i32_0 = arith.constant 0 : i32
    %c0_i32_1 = arith.constant 0 : i32
    return %c0_i32, %c0_i32_0 : i32, i32
  }
  func.func @transform_10(%arg0: i32) -> (i32, i32, i32) {
    %c0_i32 = arith.constant 0 : i32
    %c0_i32_0 = arith.constant 0 : i32
    %c0_i32_1 = arith.constant 0 : i32
    return %arg0, %c0_i32, %c0_i32_0 : i32, i32, i32
  }
  func.func @transform_11(%arg0: i32) -> (i32, i32, i32) {
    %c0_i32 = arith.constant 0 : i32
    %c0_i32_0 = arith.constant 0 : i32
    %c0_i32_1 = arith.constant 0 : i32
    return %arg0, %c0_i32, %c0_i32_0 : i32, i32, i32
  }
}

module attributes {stable_mosaic.version = 11 : i64} {
  func.func @kernel(%arg0: i32, %arg1: i32, %arg2: memref<1x4x4x64xbf16, #tpu.memory_space<vmem>>, %arg3: memref<1x4x4x1xf32, #tpu.memory_space<vmem>>, %arg4: memref<1x4x4x64xbf16, #tpu.memory_space<vmem>>) attributes {dimension_semantics = [#tpu.dimension_semantics<parallel>, #tpu.dimension_semantics<parallel>], iteration_bounds = array<i64: 2, 1>, scalar_prefetch = 0 : i64, scratch_operands = 0 : i64, tpu.core_type = #tpu.core_type<tc>, window_params = [{transform_indices = @transform_0, window_bounds = array<i64: 1, 4, 4, 64>}, {transform_indices = @transform_1, window_bounds = array<i64: 1, 4, 4, 1>}, {transform_indices = @transform_2, window_bounds = array<i64: 1, 4, 4, 64>}]} {
    %c0 = arith.constant 0 : index
    %c0_0 = arith.constant 0 : index
    %c0_1 = arith.constant 0 : index
    %c0_2 = arith.constant 0 : index
    %0 = vector.load %arg2[%c0, %c0_0, %c0_1, %c0_2] : memref<1x4x4x64xbf16, #tpu.memory_space<vmem>>, vector<1x1x4x64xbf16>
    %1 = vector.shape_cast %0 : vector<1x1x4x64xbf16> to vector<4x64xbf16>
    %2 = arith.extf %1 : vector<4x64xbf16> to vector<4x64xf32>
    %c0_3 = arith.constant 0 : index
    %c0_4 = arith.constant 0 : index
    %c0_5 = arith.constant 0 : index
    %c0_6 = arith.constant 0 : index
    %3 = vector.load %arg3[%c0_3, %c0_4, %c0_5, %c0_6] : memref<1x4x4x1xf32, #tpu.memory_space<vmem>>, vector<1x1x4x1xf32>
    %4 = vector.shape_cast %3 : vector<1x1x4x1xf32> to vector<4x1xf32>
    %5 = vector.broadcast %4 : vector<4x1xf32> to vector<4x64xf32>
    %6 = arith.mulf %2, %5 : vector<4x64xf32>
    %c0_7 = arith.constant 0 : index
    %c1 = arith.constant 1 : index
    %c0_8 = arith.constant 0 : index
    %c0_9 = arith.constant 0 : index
    %7 = vector.load %arg2[%c0_7, %c1, %c0_8, %c0_9] : memref<1x4x4x64xbf16, #tpu.memory_space<vmem>>, vector<1x1x4x64xbf16>
    %8 = vector.shape_cast %7 : vector<1x1x4x64xbf16> to vector<4x64xbf16>
    %9 = arith.extf %8 : vector<4x64xbf16> to vector<4x64xf32>
    %c0_10 = arith.constant 0 : index
    %c1_11 = arith.constant 1 : index
    %c0_12 = arith.constant 0 : index
    %c0_13 = arith.constant 0 : index
    %10 = vector.load %arg3[%c0_10, %c1_11, %c0_12, %c0_13] : memref<1x4x4x1xf32, #tpu.memory_space<vmem>>, vector<1x1x4x1xf32>
    %11 = vector.shape_cast %10 : vector<1x1x4x1xf32> to vector<4x1xf32>
    %12 = vector.broadcast %11 : vector<4x1xf32> to vector<4x64xf32>
    %13 = arith.mulf %9, %12 : vector<4x64xf32>
    %c0_14 = arith.constant 0 : index
    %c2 = arith.constant 2 : index
    %c0_15 = arith.constant 0 : index
    %c0_16 = arith.constant 0 : index
    %14 = vector.load %arg2[%c0_14, %c2, %c0_15, %c0_16] : memref<1x4x4x64xbf16, #tpu.memory_space<vmem>>, vector<1x1x4x64xbf16>
    %15 = vector.shape_cast %14 : vector<1x1x4x64xbf16> to vector<4x64xbf16>
    %16 = arith.extf %15 : vector<4x64xbf16> to vector<4x64xf32>
    %c0_17 = arith.constant 0 : index
    %c2_18 = arith.constant 2 : index
    %c0_19 = arith.constant 0 : index
    %c0_20 = arith.constant 0 : index
    %17 = vector.load %arg3[%c0_17, %c2_18, %c0_19, %c0_20] : memref<1x4x4x1xf32, #tpu.memory_space<vmem>>, vector<1x1x4x1xf32>
    %18 = vector.shape_cast %17 : vector<1x1x4x1xf32> to vector<4x1xf32>
    %19 = vector.broadcast %18 : vector<4x1xf32> to vector<4x64xf32>
    %20 = arith.mulf %16, %19 : vector<4x64xf32>
    %c0_21 = arith.constant 0 : index
    %c3 = arith.constant 3 : index
    %c0_22 = arith.constant 0 : index
    %c0_23 = arith.constant 0 : index
    %21 = vector.load %arg2[%c0_21, %c3, %c0_22, %c0_23] : memref<1x4x4x64xbf16, #tpu.memory_space<vmem>>, vector<1x1x4x64xbf16>
    %22 = vector.shape_cast %21 : vector<1x1x4x64xbf16> to vector<4x64xbf16>
    %23 = arith.extf %22 : vector<4x64xbf16> to vector<4x64xf32>
    %c0_24 = arith.constant 0 : index
    %c3_25 = arith.constant 3 : index
    %c0_26 = arith.constant 0 : index
    %c0_27 = arith.constant 0 : index
    %24 = vector.load %arg3[%c0_24, %c3_25, %c0_26, %c0_27] : memref<1x4x4x1xf32, #tpu.memory_space<vmem>>, vector<1x1x4x1xf32>
    %25 = vector.shape_cast %24 : vector<1x1x4x1xf32> to vector<4x1xf32>
    %26 = vector.broadcast %25 : vector<4x1xf32> to vector<4x64xf32>
    %27 = arith.mulf %23, %26 : vector<4x64xf32>
    %28 = arith.addf %6, %13 : vector<4x64xf32>
    %29 = arith.addf %28, %20 : vector<4x64xf32>
    %30 = arith.addf %29, %27 : vector<4x64xf32>
    %cst = arith.constant 5.000000e-01 : f32
    %31 = vector.broadcast %cst : f32 to vector<4x64xf32>
    %32 = arith.mulf %31, %30 : vector<4x64xf32>
    %33 = arith.truncf %32 : vector<4x64xf32> to vector<4x64xbf16>
    %c0_28 = arith.constant 0 : index
    %c0_29 = arith.constant 0 : index
    %c0_30 = arith.constant 0 : index
    %c0_31 = arith.constant 0 : index
    %34 = vector.load %arg4[%c0_28, %c0_29, %c0_30, %c0_31] : memref<1x4x4x64xbf16, #tpu.memory_space<vmem>>, vector<1x1x4x64xbf16>
    %35 = vector.shape_cast %34 : vector<1x1x4x64xbf16> to vector<4x64xbf16>
    %36 = vector.shape_cast %33 : vector<4x64xbf16> to vector<1x1x4x64xbf16>
    tpu.vector_store %arg4[%c0_28, %c0_29, %c0_30, %c0_31], %36 {strides = array<i32>} : memref<1x4x4x64xbf16, #tpu.memory_space<vmem>>, vector<1x1x4x64xbf16>,
    %37 = arith.addf %6, %13 : vector<4x64xf32>
    %38 = arith.subf %37, %20 : vector<4x64xf32>
    %39 = arith.subf %38, %27 : vector<4x64xf32>
    %cst_32 = arith.constant 5.000000e-01 : f32
    %40 = vector.broadcast %cst_32 : f32 to vector<4x64xf32>
    %41 = arith.mulf %40, %39 : vector<4x64xf32>
    %42 = arith.truncf %41 : vector<4x64xf32> to vector<4x64xbf16>
    %c0_33 = arith.constant 0 : index
    %c1_34 = arith.constant 1 : index
    %c0_35 = arith.constant 0 : index
    %c0_36 = arith.constant 0 : index
    %43 = vector.load %arg4[%c0_33, %c1_34, %c0_35, %c0_36] : memref<1x4x4x64xbf16, #tpu.memory_space<vmem>>, vector<1x1x4x64xbf16>
    %44 = vector.shape_cast %43 : vector<1x1x4x64xbf16> to vector<4x64xbf16>
    %45 = vector.shape_cast %42 : vector<4x64xbf16> to vector<1x1x4x64xbf16>
    tpu.vector_store %arg4[%c0_33, %c1_34, %c0_35, %c0_36], %45 {strides = array<i32>} : memref<1x4x4x64xbf16, #tpu.memory_space<vmem>>, vector<1x1x4x64xbf16>,
    %46 = arith.subf %6, %13 : vector<4x64xf32>
    %47 = arith.addf %46, %20 : vector<4x64xf32>
    %48 = arith.subf %47, %27 : vector<4x64xf32>
    %cst_37 = arith.constant 5.000000e-01 : f32
    %49 = vector.broadcast %cst_37 : f32 to vector<4x64xf32>
    %50 = arith.mulf %49, %48 : vector<4x64xf32>
    %51 = arith.truncf %50 : vector<4x64xf32> to vector<4x64xbf16>
    %c0_38 = arith.constant 0 : index
    %c2_39 = arith.constant 2 : index
    %c0_40 = arith.constant 0 : index
    %c0_41 = arith.constant 0 : index
    %52 = vector.load %arg4[%c0_38, %c2_39, %c0_40, %c0_41] : memref<1x4x4x64xbf16, #tpu.memory_space<vmem>>, vector<1x1x4x64xbf16>
    %53 = vector.shape_cast %52 : vector<1x1x4x64xbf16> to vector<4x64xbf16>
    %54 = vector.shape_cast %51 : vector<4x64xbf16> to vector<1x1x4x64xbf16>
    tpu.vector_store %arg4[%c0_38, %c2_39, %c0_40, %c0_41], %54 {strides = array<i32>} : memref<1x4x4x64xbf16, #tpu.memory_space<vmem>>, vector<1x1x4x64xbf16>,
    %55 = arith.subf %6, %13 : vector<4x64xf32>
    %56 = arith.subf %55, %20 : vector<4x64xf32>
    %57 = arith.addf %56, %27 : vector<4x64xf32>
    %cst_42 = arith.constant 5.000000e-01 : f32
    %58 = vector.broadcast %cst_42 : f32 to vector<4x64xf32>
    %59 = arith.mulf %58, %57 : vector<4x64xf32>
    %60 = arith.truncf %59 : vector<4x64xf32> to vector<4x64xbf16>
    %c0_43 = arith.constant 0 : index
    %c3_44 = arith.constant 3 : index
    %c0_45 = arith.constant 0 : index
    %c0_46 = arith.constant 0 : index
    %61 = vector.load %arg4[%c0_43, %c3_44, %c0_45, %c0_46] : memref<1x4x4x64xbf16, #tpu.memory_space<vmem>>, vector<1x1x4x64xbf16>
    %62 = vector.shape_cast %61 : vector<1x1x4x64xbf16> to vector<4x64xbf16>
    %63 = vector.shape_cast %60 : vector<4x64xbf16> to vector<1x1x4x64xbf16>
    tpu.vector_store %arg4[%c0_43, %c3_44, %c0_45, %c0_46], %63 {strides = array<i32>} : memref<1x4x4x64xbf16, #tpu.memory_space<vmem>>, vector<1x1x4x64xbf16>,
    return
  }
  func.func @transform_0(%arg0: i32, %arg1: i32) -> (i32, i32, i32, i32) {
    %c0_i32 = arith.constant 0 : i32
    %c0_i32_0 = arith.constant 0 : i32
    %c0_i32_1 = arith.constant 0 : i32
    return %arg0, %c0_i32, %c0_i32_0, %arg1 : i32, i32, i32, i32
  }
  func.func @transform_1(%arg0: i32, %arg1: i32) -> (i32, i32, i32, i32) {
    %c0_i32 = arith.constant 0 : i32
    %c0_i32_0 = arith.constant 0 : i32
    %c0_i32_1 = arith.constant 0 : i32
    %c0_i32_2 = arith.constant 0 : i32
    return %arg0, %c0_i32, %c0_i32_0, %c0_i32_1 : i32, i32, i32, i32
  }
  func.func @transform_2(%arg0: i32, %arg1: i32) -> (i32, i32, i32, i32) {
    %c0_i32 = arith.constant 0 : i32
    %c0_i32_0 = arith.constant 0 : i32
    %c0_i32_1 = arith.constant 0 : i32
    return %arg0, %c0_i32, %c0_i32_0, %arg1 : i32, i32, i32, i32
  }
}

module attributes {stable_mosaic.version = 11 : i64} {
  func.func @kernel(%arg0: i32, %arg1: memref<1x4x326xbf16, #tpu.memory_space<vmem>>, %arg2: memref<1x4x1xf32, #tpu.memory_space<vmem>>, %arg3: memref<4x9xbf16, #tpu.memory_space<vmem>>, %arg4: memref<8x4xbf16, #tpu.memory_space<vmem>>, %arg5: memref<8x1xf32, #tpu.memory_space<vmem>>, %arg6: memref<1x288xf32, #tpu.memory_space<vmem>>, %arg7: memref<8x1xf32, #tpu.memory_space<vmem>>, %arg8: memref<1x8x288xbf16, #tpu.memory_space<vmem>>) attributes {dimension_semantics = [#tpu.dimension_semantics<parallel>], iteration_bounds = array<i64: 2>, scalar_prefetch = 0 : i64, scratch_operands = 0 : i64, tpu.core_type = #tpu.core_type<tc>, window_params = [{transform_indices = @transform_0, window_bounds = array<i64: 1, 4, 326>}, {transform_indices = @transform_1, window_bounds = array<i64: 1, 4, 1>}, {pipeline_mode = #tpu.pipeline_mode<synchronous>, transform_indices = @transform_2, window_bounds = array<i64: 4, 9>}, {pipeline_mode = #tpu.pipeline_mode<synchronous>, transform_indices = @transform_3, window_bounds = array<i64: 8, 4>}, {pipeline_mode = #tpu.pipeline_mode<synchronous>, transform_indices = @transform_4, window_bounds = array<i64: 8, 1>}, {pipeline_mode = #tpu.pipeline_mode<synchronous>, transform_indices = @transform_5, window_bounds = array<i64: 1, 288>}, {pipeline_mode = #tpu.pipeline_mode<synchronous>, transform_indices = @transform_6, window_bounds = array<i64: 8, 1>}, {transform_indices = @transform_7, window_bounds = array<i64: 1, 8, 288>}]} {
    %c0 = arith.constant 0 : index
    %c0_0 = arith.constant 0 : index
    %0 = vector.load %arg3[%c0, %c0_0] : memref<4x9xbf16, #tpu.memory_space<vmem>>, vector<4x9xbf16>
    %1 = arith.extf %0 : vector<4x9xbf16> to vector<4x9xf32>
    %c0_1 = arith.constant 0 : index
    %c0_2 = arith.constant 0 : index
    %c0_3 = arith.constant 0 : index
    %2 = vector.load %arg2[%c0_1, %c0_2, %c0_3] : memref<1x4x1xf32, #tpu.memory_space<vmem>>, vector<1x4x1xf32>
    %3 = vector.shape_cast %2 : vector<1x4x1xf32> to vector<4x1xf32>
    %4 = vector.broadcast %3 : vector<4x1xf32> to vector<4x9xf32>
    %5 = arith.mulf %1, %4 : vector<4x9xf32>
    %c0_4 = arith.constant 0 : index
    %c0_5 = arith.constant 0 : index
    %c0_6 = arith.constant 0 : index
    %6 = vector.load %arg1[%c0_4, %c0_5, %c0_6] : memref<1x4x326xbf16, #tpu.memory_space<vmem>>, vector<1x4x288xbf16>
    %7 = vector.shape_cast %6 : vector<1x4x288xbf16> to vector<4x288xbf16>
    %8 = arith.extf %7 : vector<4x288xbf16> to vector<4x288xf32>
    %9 = vector.extract_strided_slice %5 {offsets = [0, 0], sizes = [4, 1], strides = [1, 1]} : vector<4x9xf32> to vector<4x1xf32>
    %10 = vector.broadcast %9 : vector<4x1xf32> to vector<4x288xf32>
    %11 = arith.mulf %8, %10 : vector<4x288xf32>
    %c0_7 = arith.constant 0 : index
    %c0_8 = arith.constant 0 : index
    %c1 = arith.constant 1 : index
    %12 = vector.load %arg1[%c0_7, %c0_8, %c1] : memref<1x4x326xbf16, #tpu.memory_space<vmem>>, vector<1x4x288xbf16>
    %13 = vector.shape_cast %12 : vector<1x4x288xbf16> to vector<4x288xbf16>
    %14 = arith.extf %13 : vector<4x288xbf16> to vector<4x288xf32>
    %15 = vector.extract_strided_slice %5 {offsets = [0, 1], sizes = [4, 1], strides = [1, 1]} : vector<4x9xf32> to vector<4x1xf32>
    %16 = vector.broadcast %15 : vector<4x1xf32> to vector<4x288xf32>
    %17 = arith.mulf %14, %16 : vector<4x288xf32>
    %18 = arith.addf %11, %17 : vector<4x288xf32>
    %c0_9 = arith.constant 0 : index
    %c0_10 = arith.constant 0 : index
    %c2 = arith.constant 2 : index
    %19 = vector.load %arg1[%c0_9, %c0_10, %c2] : memref<1x4x326xbf16, #tpu.memory_space<vmem>>, vector<1x4x288xbf16>
    %20 = vector.shape_cast %19 : vector<1x4x288xbf16> to vector<4x288xbf16>
    %21 = arith.extf %20 : vector<4x288xbf16> to vector<4x288xf32>
    %22 = vector.extract_strided_slice %5 {offsets = [0, 2], sizes = [4, 1], strides = [1, 1]} : vector<4x9xf32> to vector<4x1xf32>
    %23 = vector.broadcast %22 : vector<4x1xf32> to vector<4x288xf32>
    %24 = arith.mulf %21, %23 : vector<4x288xf32>
    %25 = arith.addf %18, %24 : vector<4x288xf32>
    %c0_11 = arith.constant 0 : index
    %c0_12 = arith.constant 0 : index
    %c18 = arith.constant 18 : index
    %26 = vector.load %arg1[%c0_11, %c0_12, %c18] : memref<1x4x326xbf16, #tpu.memory_space<vmem>>, vector<1x4x288xbf16>
    %27 = vector.shape_cast %26 : vector<1x4x288xbf16> to vector<4x288xbf16>
    %28 = arith.extf %27 : vector<4x288xbf16> to vector<4x288xf32>
    %29 = vector.extract_strided_slice %5 {offsets = [0, 3], sizes = [4, 1], strides = [1, 1]} : vector<4x9xf32> to vector<4x1xf32>
    %30 = vector.broadcast %29 : vector<4x1xf32> to vector<4x288xf32>
    %31 = arith.mulf %28, %30 : vector<4x288xf32>
    %32 = arith.addf %25, %31 : vector<4x288xf32>
    %c0_13 = arith.constant 0 : index
    %c0_14 = arith.constant 0 : index
    %c19 = arith.constant 19 : index
    %33 = vector.load %arg1[%c0_13, %c0_14, %c19] : memref<1x4x326xbf16, #tpu.memory_space<vmem>>, vector<1x4x288xbf16>
    %34 = vector.shape_cast %33 : vector<1x4x288xbf16> to vector<4x288xbf16>
    %35 = arith.extf %34 : vector<4x288xbf16> to vector<4x288xf32>
    %36 = vector.extract_strided_slice %5 {offsets = [0, 4], sizes = [4, 1], strides = [1, 1]} : vector<4x9xf32> to vector<4x1xf32>
    %37 = vector.broadcast %36 : vector<4x1xf32> to vector<4x288xf32>
    %38 = arith.mulf %35, %37 : vector<4x288xf32>
    %39 = arith.addf %32, %38 : vector<4x288xf32>
    %c0_15 = arith.constant 0 : index
    %c0_16 = arith.constant 0 : index
    %c20 = arith.constant 20 : index
    %40 = vector.load %arg1[%c0_15, %c0_16, %c20] : memref<1x4x326xbf16, #tpu.memory_space<vmem>>, vector<1x4x288xbf16>
    %41 = vector.shape_cast %40 : vector<1x4x288xbf16> to vector<4x288xbf16>
    %42 = arith.extf %41 : vector<4x288xbf16> to vector<4x288xf32>
    %43 = vector.extract_strided_slice %5 {offsets = [0, 5], sizes = [4, 1], strides = [1, 1]} : vector<4x9xf32> to vector<4x1xf32>
    %44 = vector.broadcast %43 : vector<4x1xf32> to vector<4x288xf32>
    %45 = arith.mulf %42, %44 : vector<4x288xf32>
    %46 = arith.addf %39, %45 : vector<4x288xf32>
    %c0_17 = arith.constant 0 : index
    %c0_18 = arith.constant 0 : index
    %c36 = arith.constant 36 : index
    %47 = vector.load %arg1[%c0_17, %c0_18, %c36] : memref<1x4x326xbf16, #tpu.memory_space<vmem>>, vector<1x4x288xbf16>
    %48 = vector.shape_cast %47 : vector<1x4x288xbf16> to vector<4x288xbf16>
    %49 = arith.extf %48 : vector<4x288xbf16> to vector<4x288xf32>
    %50 = vector.extract_strided_slice %5 {offsets = [0, 6], sizes = [4, 1], strides = [1, 1]} : vector<4x9xf32> to vector<4x1xf32>
    %51 = vector.broadcast %50 : vector<4x1xf32> to vector<4x288xf32>
    %52 = arith.mulf %49, %51 : vector<4x288xf32>
    %53 = arith.addf %46, %52 : vector<4x288xf32>
    %c0_19 = arith.constant 0 : index
    %c0_20 = arith.constant 0 : index
    %c37 = arith.constant 37 : index
    %54 = vector.load %arg1[%c0_19, %c0_20, %c37] : memref<1x4x326xbf16, #tpu.memory_space<vmem>>, vector<1x4x288xbf16>
    %55 = vector.shape_cast %54 : vector<1x4x288xbf16> to vector<4x288xbf16>
    %56 = arith.extf %55 : vector<4x288xbf16> to vector<4x288xf32>
    %57 = vector.extract_strided_slice %5 {offsets = [0, 7], sizes = [4, 1], strides = [1, 1]} : vector<4x9xf32> to vector<4x1xf32>
    %58 = vector.broadcast %57 : vector<4x1xf32> to vector<4x288xf32>
    %59 = arith.mulf %56, %58 : vector<4x288xf32>
    %60 = arith.addf %53, %59 : vector<4x288xf32>
    %c0_21 = arith.constant 0 : index
    %c0_22 = arith.constant 0 : index
    %c38 = arith.constant 38 : index
    %61 = vector.load %arg1[%c0_21, %c0_22, %c38] : memref<1x4x326xbf16, #tpu.memory_space<vmem>>, vector<1x4x288xbf16>
    %62 = vector.shape_cast %61 : vector<1x4x288xbf16> to vector<4x288xbf16>
    %63 = arith.extf %62 : vector<4x288xbf16> to vector<4x288xf32>
    %64 = vector.extract_strided_slice %5 {offsets = [0, 8], sizes = [4, 1], strides = [1, 1]} : vector<4x9xf32> to vector<4x1xf32>
    %65 = vector.broadcast %64 : vector<4x1xf32> to vector<4x288xf32>
    %66 = arith.mulf %63, %65 : vector<4x288xf32>
    %67 = arith.addf %60, %66 : vector<4x288xf32>
    %c0_23 = arith.constant 0 : index
    %c0_24 = arith.constant 0 : index
    %68 = vector.load %arg4[%c0_23, %c0_24] : memref<8x4xbf16, #tpu.memory_space<vmem>>, vector<8x4xbf16>
    %69 = arith.truncf %67 : vector<4x288xf32> to vector<4x288xbf16>
    %cst = arith.constant dense<0.000000e+00> : vector<8x288xf32>
    %70 = tpu.matmul %68, %69, %cst {dimension_numbers = #tpu.dot_dimension_numbers<[1], [0], [0], [1], [0, 0, 1, 1], [], []>} : vector<8x4xbf16>, vector<4x288xbf16>, vector<8x288xf32> -> vector<8x288xf32>
    %c0_25 = arith.constant 0 : index
    %c0_26 = arith.constant 0 : index
    %71 = vector.load %arg5[%c0_25, %c0_26] : memref<8x1xf32, #tpu.memory_space<vmem>>, vector<8x1xf32>
    %72 = vector.broadcast %71 : vector<8x1xf32> to vector<8x288xf32>
    %73 = arith.mulf %70, %72 : vector<8x288xf32>
    %c0_27 = arith.constant 0 : index
    %c0_28 = arith.constant 0 : index
    %74 = vector.load %arg6[%c0_27, %c0_28] : memref<1x288xf32, #tpu.memory_space<vmem>>, vector<1x288xf32>
    %75 = vector.broadcast %74 : vector<1x288xf32> to vector<8x288xf32>
    %76 = arith.addf %73, %75 : vector<8x288xf32>
    %c0_29 = arith.constant 0 : index
    %c0_30 = arith.constant 0 : index
    %77 = vector.load %arg7[%c0_29, %c0_30] : memref<8x1xf32, #tpu.memory_space<vmem>>, vector<8x1xf32>
    %78 = vector.broadcast %77 : vector<8x1xf32> to vector<8x288xf32>
    %79 = arith.addf %76, %78 : vector<8x288xf32>
    %cst_31 = arith.constant 0.000000e+00 : f32
    %80 = vector.broadcast %cst_31 : f32 to vector<8x288xf32>
    %81 = arith.cmpf ogt, %79, %80 : vector<8x288xf32>
    %cst_32 = arith.constant 2.000000e-01 : f32
    %82 = vector.broadcast %cst_32 : f32 to vector<8x288xf32>
    %83 = arith.mulf %82, %79 : vector<8x288xf32>
    %84 = arith.select %81, %79, %83 : vector<8x288xi1>, vector<8x288xf32>
    %85 = arith.truncf %84 : vector<8x288xf32> to vector<8x288xbf16>
    %c0_33 = arith.constant 0 : index
    %c0_34 = arith.constant 0 : index
    %c0_35 = arith.constant 0 : index
    %86 = vector.load %arg8[%c0_33, %c0_34, %c0_35] : memref<1x8x288xbf16, #tpu.memory_space<vmem>>, vector<1x8x288xbf16>
    %87 = vector.shape_cast %86 : vector<1x8x288xbf16> to vector<8x288xbf16>
    %88 = vector.shape_cast %85 : vector<8x288xbf16> to vector<1x8x288xbf16>
    tpu.vector_store %arg8[%c0_33, %c0_34, %c0_35], %88 {strides = array<i32>} : memref<1x8x288xbf16, #tpu.memory_space<vmem>>, vector<1x8x288xbf16>,
    return
  }
  func.func @transform_0(%arg0: i32) -> (i32, i32, i32) {
    %c0_i32 = arith.constant 0 : i32
    %c0_i32_0 = arith.constant 0 : i32
    %c0_i32_1 = arith.constant 0 : i32
    return %arg0, %c0_i32, %c0_i32_0 : i32, i32, i32
  }
  func.func @transform_1(%arg0: i32) -> (i32, i32, i32) {
    %c0_i32 = arith.constant 0 : i32
    %c0_i32_0 = arith.constant 0 : i32
    %c0_i32_1 = arith.constant 0 : i32
    return %arg0, %c0_i32, %c0_i32_0 : i32, i32, i32
  }
  func.func @transform_2(%arg0: i32) -> (i32, i32) {
    %c0_i32 = arith.constant 0 : i32
    %c0_i32_0 = arith.constant 0 : i32
    %c0_i32_1 = arith.constant 0 : i32
    return %c0_i32, %c0_i32_0 : i32, i32
  }
  func.func @transform_3(%arg0: i32) -> (i32, i32) {
    %c0_i32 = arith.constant 0 : i32
    %c0_i32_0 = arith.constant 0 : i32
    %c0_i32_1 = arith.constant 0 : i32
    return %c0_i32, %c0_i32_0 : i32, i32
  }
  func.func @transform_4(%arg0: i32) -> (i32, i32) {
    %c0_i32 = arith.constant 0 : i32
    %c0_i32_0 = arith.constant 0 : i32
    %c0_i32_1 = arith.constant 0 : i32
    return %c0_i32, %c0_i32_0 : i32, i32
  }
  func.func @transform_5(%arg0: i32) -> (i32, i32) {
    %c0_i32 = arith.constant 0 : i32
    %c0_i32_0 = arith.constant 0 : i32
    %c0_i32_1 = arith.constant 0 : i32
    return %c0_i32, %c0_i32_0 : i32, i32
  }
  func.func @transform_6(%arg0: i32) -> (i32, i32) {
    %c0_i32 = arith.constant 0 : i32
    %c0_i32_0 = arith.constant 0 : i32
    %c0_i32_1 = arith.constant 0 : i32
    return %c0_i32, %c0_i32_0 : i32, i32
  }
  func.func @transform_7(%arg0: i32) -> (i32, i32, i32) {
    %c0_i32 = arith.constant 0 : i32
    %c0_i32_0 = arith.constant 0 : i32
    %c0_i32_1 = arith.constant 0 : i32
    return %arg0, %c0_i32, %c0_i32_0 : i32, i32, i32
  }
}

module attributes {stable_mosaic.version = 11 : i64} {
  func.func @kernel(%arg0: i32, %arg1: memref<1x8x326xbf16, #tpu.memory_space<vmem>>, %arg2: memref<1x8x1xf32, #tpu.memory_space<vmem>>, %arg3: memref<1x1x8xf32, #tpu.memory_space<vmem>>, %arg4: memref<8x9xbf16, #tpu.memory_space<vmem>>, %arg5: memref<8x8xbf16, #tpu.memory_space<vmem>>, %arg6: memref<8x1xf32, #tpu.memory_space<vmem>>, %arg7: memref<1x288xf32, #tpu.memory_space<vmem>>, %arg8: memref<8x1xf32, #tpu.memory_space<vmem>>, %arg9: memref<12x8xbf16, #tpu.memory_space<vmem>>, %arg10: memref<12x1xf32, #tpu.memory_space<vmem>>, %arg11: memref<1x8x288xbf16, #tpu.memory_space<vmem>>, %arg12: memref<1x12x288xf32, #tpu.memory_space<vmem>>) attributes {dimension_semantics = [#tpu.dimension_semantics<parallel>], iteration_bounds = array<i64: 2>, scalar_prefetch = 0 : i64, scratch_operands = 0 : i64, tpu.core_type = #tpu.core_type<tc>, window_params = [{transform_indices = @transform_0, window_bounds = array<i64: 1, 8, 326>}, {transform_indices = @transform_1, window_bounds = array<i64: 1, 8, 1>}, {transform_indices = @transform_2, window_bounds = array<i64: 1, 1, 8>}, {pipeline_mode = #tpu.pipeline_mode<synchronous>, transform_indices = @transform_3, window_bounds = array<i64: 8, 9>}, {pipeline_mode = #tpu.pipeline_mode<synchronous>, transform_indices = @transform_4, window_bounds = array<i64: 8, 8>}, {pipeline_mode = #tpu.pipeline_mode<synchronous>, transform_indices = @transform_5, window_bounds = array<i64: 8, 1>}, {pipeline_mode = #tpu.pipeline_mode<synchronous>, transform_indices = @transform_6, window_bounds = array<i64: 1, 288>}, {pipeline_mode = #tpu.pipeline_mode<synchronous>, transform_indices = @transform_7, window_bounds = array<i64: 8, 1>}, {pipeline_mode = #tpu.pipeline_mode<synchronous>, transform_indices = @transform_8, window_bounds = array<i64: 12, 8>}, {pipeline_mode = #tpu.pipeline_mode<synchronous>, transform_indices = @transform_9, window_bounds = array<i64: 12, 1>}, {transform_indices = @transform_10, window_bounds = array<i64: 1, 8, 288>}, {transform_indices = @transform_11, window_bounds = array<i64: 1, 12, 288>}]} {
    %c0 = arith.constant 0 : index
    %c0_0 = arith.constant 0 : index
    %0 = vector.load %arg4[%c0, %c0_0] : memref<8x9xbf16, #tpu.memory_space<vmem>>, vector<8x9xbf16>
    %1 = arith.extf %0 : vector<8x9xbf16> to vector<8x9xf32>
    %c0_1 = arith.constant 0 : index
    %c0_2 = arith.constant 0 : index
    %c0_3 = arith.constant 0 : index
    %2 = vector.load %arg2[%c0_1, %c0_2, %c0_3] : memref<1x8x1xf32, #tpu.memory_space<vmem>>, vector<1x8x1xf32>
    %3 = vector.shape_cast %2 : vector<1x8x1xf32> to vector<8x1xf32>
    %4 = vector.broadcast %3 : vector<8x1xf32> to vector<8x9xf32>
    %5 = arith.mulf %1, %4 : vector<8x9xf32>
    %c0_4 = arith.constant 0 : index
    %c0_5 = arith.constant 0 : index
    %c0_6 = arith.constant 0 : index
    %6 = vector.load %arg1[%c0_4, %c0_5, %c0_6] : memref<1x8x326xbf16, #tpu.memory_space<vmem>>, vector<1x8x288xbf16>
    %7 = vector.shape_cast %6 : vector<1x8x288xbf16> to vector<8x288xbf16>
    %8 = arith.extf %7 : vector<8x288xbf16> to vector<8x288xf32>
    %9 = vector.extract_strided_slice %5 {offsets = [0, 0], sizes = [8, 1], strides = [1, 1]} : vector<8x9xf32> to vector<8x1xf32>
    %10 = vector.broadcast %9 : vector<8x1xf32> to vector<8x288xf32>
    %11 = arith.mulf %8, %10 : vector<8x288xf32>
    %c0_7 = arith.constant 0 : index
    %c0_8 = arith.constant 0 : index
    %c1 = arith.constant 1 : index
    %12 = vector.load %arg1[%c0_7, %c0_8, %c1] : memref<1x8x326xbf16, #tpu.memory_space<vmem>>, vector<1x8x288xbf16>
    %13 = vector.shape_cast %12 : vector<1x8x288xbf16> to vector<8x288xbf16>
    %14 = arith.extf %13 : vector<8x288xbf16> to vector<8x288xf32>
    %15 = vector.extract_strided_slice %5 {offsets = [0, 1], sizes = [8, 1], strides = [1, 1]} : vector<8x9xf32> to vector<8x1xf32>
    %16 = vector.broadcast %15 : vector<8x1xf32> to vector<8x288xf32>
    %17 = arith.mulf %14, %16 : vector<8x288xf32>
    %18 = arith.addf %11, %17 : vector<8x288xf32>
    %c0_9 = arith.constant 0 : index
    %c0_10 = arith.constant 0 : index
    %c2 = arith.constant 2 : index
    %19 = vector.load %arg1[%c0_9, %c0_10, %c2] : memref<1x8x326xbf16, #tpu.memory_space<vmem>>, vector<1x8x288xbf16>
    %20 = vector.shape_cast %19 : vector<1x8x288xbf16> to vector<8x288xbf16>
    %21 = arith.extf %20 : vector<8x288xbf16> to vector<8x288xf32>
    %22 = vector.extract_strided_slice %5 {offsets = [0, 2], sizes = [8, 1], strides = [1, 1]} : vector<8x9xf32> to vector<8x1xf32>
    %23 = vector.broadcast %22 : vector<8x1xf32> to vector<8x288xf32>
    %24 = arith.mulf %21, %23 : vector<8x288xf32>
    %25 = arith.addf %18, %24 : vector<8x288xf32>
    %c0_11 = arith.constant 0 : index
    %c0_12 = arith.constant 0 : index
    %c18 = arith.constant 18 : index
    %26 = vector.load %arg1[%c0_11, %c0_12, %c18] : memref<1x8x326xbf16, #tpu.memory_space<vmem>>, vector<1x8x288xbf16>
    %27 = vector.shape_cast %26 : vector<1x8x288xbf16> to vector<8x288xbf16>
    %28 = arith.extf %27 : vector<8x288xbf16> to vector<8x288xf32>
    %29 = vector.extract_strided_slice %5 {offsets = [0, 3], sizes = [8, 1], strides = [1, 1]} : vector<8x9xf32> to vector<8x1xf32>
    %30 = vector.broadcast %29 : vector<8x1xf32> to vector<8x288xf32>
    %31 = arith.mulf %28, %30 : vector<8x288xf32>
    %32 = arith.addf %25, %31 : vector<8x288xf32>
    %c0_13 = arith.constant 0 : index
    %c0_14 = arith.constant 0 : index
    %c19 = arith.constant 19 : index
    %33 = vector.load %arg1[%c0_13, %c0_14, %c19] : memref<1x8x326xbf16, #tpu.memory_space<vmem>>, vector<1x8x288xbf16>
    %34 = vector.shape_cast %33 : vector<1x8x288xbf16> to vector<8x288xbf16>
    %35 = arith.extf %34 : vector<8x288xbf16> to vector<8x288xf32>
    %36 = vector.extract_strided_slice %5 {offsets = [0, 4], sizes = [8, 1], strides = [1, 1]} : vector<8x9xf32> to vector<8x1xf32>
    %37 = vector.broadcast %36 : vector<8x1xf32> to vector<8x288xf32>
    %38 = arith.mulf %35, %37 : vector<8x288xf32>
    %39 = arith.addf %32, %38 : vector<8x288xf32>
    %c0_15 = arith.constant 0 : index
    %c0_16 = arith.constant 0 : index
    %c20 = arith.constant 20 : index
    %40 = vector.load %arg1[%c0_15, %c0_16, %c20] : memref<1x8x326xbf16, #tpu.memory_space<vmem>>, vector<1x8x288xbf16>
    %41 = vector.shape_cast %40 : vector<1x8x288xbf16> to vector<8x288xbf16>
    %42 = arith.extf %41 : vector<8x288xbf16> to vector<8x288xf32>
    %43 = vector.extract_strided_slice %5 {offsets = [0, 5], sizes = [8, 1], strides = [1, 1]} : vector<8x9xf32> to vector<8x1xf32>
    %44 = vector.broadcast %43 : vector<8x1xf32> to vector<8x288xf32>
    %45 = arith.mulf %42, %44 : vector<8x288xf32>
    %46 = arith.addf %39, %45 : vector<8x288xf32>
    %c0_17 = arith.constant 0 : index
    %c0_18 = arith.constant 0 : index
    %c36 = arith.constant 36 : index
    %47 = vector.load %arg1[%c0_17, %c0_18, %c36] : memref<1x8x326xbf16, #tpu.memory_space<vmem>>, vector<1x8x288xbf16>
    %48 = vector.shape_cast %47 : vector<1x8x288xbf16> to vector<8x288xbf16>
    %49 = arith.extf %48 : vector<8x288xbf16> to vector<8x288xf32>
    %50 = vector.extract_strided_slice %5 {offsets = [0, 6], sizes = [8, 1], strides = [1, 1]} : vector<8x9xf32> to vector<8x1xf32>
    %51 = vector.broadcast %50 : vector<8x1xf32> to vector<8x288xf32>
    %52 = arith.mulf %49, %51 : vector<8x288xf32>
    %53 = arith.addf %46, %52 : vector<8x288xf32>
    %c0_19 = arith.constant 0 : index
    %c0_20 = arith.constant 0 : index
    %c37 = arith.constant 37 : index
    %54 = vector.load %arg1[%c0_19, %c0_20, %c37] : memref<1x8x326xbf16, #tpu.memory_space<vmem>>, vector<1x8x288xbf16>
    %55 = vector.shape_cast %54 : vector<1x8x288xbf16> to vector<8x288xbf16>
    %56 = arith.extf %55 : vector<8x288xbf16> to vector<8x288xf32>
    %57 = vector.extract_strided_slice %5 {offsets = [0, 7], sizes = [8, 1], strides = [1, 1]} : vector<8x9xf32> to vector<8x1xf32>
    %58 = vector.broadcast %57 : vector<8x1xf32> to vector<8x288xf32>
    %59 = arith.mulf %56, %58 : vector<8x288xf32>
    %60 = arith.addf %53, %59 : vector<8x288xf32>
    %c0_21 = arith.constant 0 : index
    %c0_22 = arith.constant 0 : index
    %c38 = arith.constant 38 : index
    %61 = vector.load %arg1[%c0_21, %c0_22, %c38] : memref<1x8x326xbf16, #tpu.memory_space<vmem>>, vector<1x8x288xbf16>
    %62 = vector.shape_cast %61 : vector<1x8x288xbf16> to vector<8x288xbf16>
    %63 = arith.extf %62 : vector<8x288xbf16> to vector<8x288xf32>
    %64 = vector.extract_strided_slice %5 {offsets = [0, 8], sizes = [8, 1], strides = [1, 1]} : vector<8x9xf32> to vector<8x1xf32>
    %65 = vector.broadcast %64 : vector<8x1xf32> to vector<8x288xf32>
    %66 = arith.mulf %63, %65 : vector<8x288xf32>
    %67 = arith.addf %60, %66 : vector<8x288xf32>
    %c0_23 = arith.constant 0 : index
    %c0_24 = arith.constant 0 : index
    %68 = vector.load %arg5[%c0_23, %c0_24] : memref<8x8xbf16, #tpu.memory_space<vmem>>, vector<8x8xbf16>
    %69 = arith.truncf %67 : vector<8x288xf32> to vector<8x288xbf16>
    %cst = arith.constant dense<0.000000e+00> : vector<8x288xf32>
    %70 = tpu.matmul %68, %69, %cst {dimension_numbers = #tpu.dot_dimension_numbers<[1], [0], [0], [1], [0, 0, 1, 1], [], []>} : vector<8x8xbf16>, vector<8x288xbf16>, vector<8x288xf32> -> vector<8x288xf32>
    %c0_25 = arith.constant 0 : index
    %c0_26 = arith.constant 0 : index
    %71 = vector.load %arg6[%c0_25, %c0_26] : memref<8x1xf32, #tpu.memory_space<vmem>>, vector<8x1xf32>
    %72 = vector.broadcast %71 : vector<8x1xf32> to vector<8x288xf32>
    %73 = arith.mulf %70, %72 : vector<8x288xf32>
    %c0_27 = arith.constant 0 : index
    %c0_28 = arith.constant 0 : index
    %74 = vector.load %arg7[%c0_27, %c0_28] : memref<1x288xf32, #tpu.memory_space<vmem>>, vector<1x288xf32>
    %75 = vector.broadcast %74 : vector<1x288xf32> to vector<8x288xf32>
    %76 = arith.addf %73, %75 : vector<8x288xf32>
    %c0_29 = arith.constant 0 : index
    %c0_30 = arith.constant 0 : index
    %77 = vector.load %arg8[%c0_29, %c0_30] : memref<8x1xf32, #tpu.memory_space<vmem>>, vector<8x1xf32>
    %78 = vector.broadcast %77 : vector<8x1xf32> to vector<8x288xf32>
    %79 = arith.addf %76, %78 : vector<8x288xf32>
    %cst_31 = arith.constant 0.000000e+00 : f32
    %80 = vector.broadcast %cst_31 : f32 to vector<8x288xf32>
    %81 = arith.cmpf ogt, %79, %80 : vector<8x288xf32>
    %cst_32 = arith.constant 2.000000e-01 : f32
    %82 = vector.broadcast %cst_32 : f32 to vector<8x288xf32>
    %83 = arith.mulf %82, %79 : vector<8x288xf32>
    %84 = arith.select %81, %79, %83 : vector<8x288xi1>, vector<8x288xf32>
    %85 = arith.truncf %84 : vector<8x288xf32> to vector<8x288xbf16>
    %c0_33 = arith.constant 0 : index
    %c0_34 = arith.constant 0 : index
    %c0_35 = arith.constant 0 : index
    %86 = vector.load %arg11[%c0_33, %c0_34, %c0_35] : memref<1x8x288xbf16, #tpu.memory_space<vmem>>, vector<1x8x288xbf16>
    %87 = vector.shape_cast %86 : vector<1x8x288xbf16> to vector<8x288xbf16>
    %88 = vector.shape_cast %85 : vector<8x288xbf16> to vector<1x8x288xbf16>
    tpu.vector_store %arg11[%c0_33, %c0_34, %c0_35], %88 {strides = array<i32>} : memref<1x8x288xbf16, #tpu.memory_space<vmem>>, vector<1x8x288xbf16>,
    %c0_36 = arith.constant 0 : index
    %c0_37 = arith.constant 0 : index
    %89 = vector.load %arg9[%c0_36, %c0_37] : memref<12x8xbf16, #tpu.memory_space<vmem>>, vector<12x8xbf16>
    %90 = arith.extf %89 : vector<12x8xbf16> to vector<12x8xf32>
    %c0_38 = arith.constant 0 : index
    %c0_39 = arith.constant 0 : index
    %c0_40 = arith.constant 0 : index
    %91 = vector.load %arg3[%c0_38, %c0_39, %c0_40] : memref<1x1x8xf32, #tpu.memory_space<vmem>>, vector<1x1x8xf32>
    %92 = vector.shape_cast %91 : vector<1x1x8xf32> to vector<1x8xf32>
    %93 = vector.broadcast %92 : vector<1x8xf32> to vector<12x8xf32>
    %94 = arith.mulf %90, %93 : vector<12x8xf32>
    %95 = arith.truncf %94 : vector<12x8xf32> to vector<12x8xbf16>
    %96 = arith.truncf %84 : vector<8x288xf32> to vector<8x288xbf16>
    %cst_41 = arith.constant dense<0.000000e+00> : vector<12x288xf32>
    %97 = tpu.matmul %95, %96, %cst_41 {dimension_numbers = #tpu.dot_dimension_numbers<[1], [0], [0], [1], [0, 0, 1, 1], [], []>} : vector<12x8xbf16>, vector<8x288xbf16>, vector<12x288xf32> -> vector<12x288xf32>
    %c0_42 = arith.constant 0 : index
    %c0_43 = arith.constant 0 : index
    %98 = vector.load %arg10[%c0_42, %c0_43] : memref<12x1xf32, #tpu.memory_space<vmem>>, vector<12x1xf32>
    %99 = vector.broadcast %98 : vector<12x1xf32> to vector<12x288xf32>
    %100 = arith.addf %97, %99 : vector<12x288xf32>
    %c0_44 = arith.constant 0 : index
    %c0_45 = arith.constant 0 : index
    %c0_46 = arith.constant 0 : index
    %101 = vector.load %arg12[%c0_44, %c0_45, %c0_46] : memref<1x12x288xf32, #tpu.memory_space<vmem>>, vector<1x12x288xf32>
    %102 = vector.shape_cast %101 : vector<1x12x288xf32> to vector<12x288xf32>
    %103 = vector.shape_cast %100 : vector<12x288xf32> to vector<1x12x288xf32>
    tpu.vector_store %arg12[%c0_44, %c0_45, %c0_46], %103 {strides = array<i32>} : memref<1x12x288xf32, #tpu.memory_space<vmem>>, vector<1x12x288xf32>,
    return
  }
  func.func @transform_0(%arg0: i32) -> (i32, i32, i32) {
    %c0_i32 = arith.constant 0 : i32
    %c0_i32_0 = arith.constant 0 : i32
    %c0_i32_1 = arith.constant 0 : i32
    return %arg0, %c0_i32, %c0_i32_0 : i32, i32, i32
  }
  func.func @transform_1(%arg0: i32) -> (i32, i32, i32) {
    %c0_i32 = arith.constant 0 : i32
    %c0_i32_0 = arith.constant 0 : i32
    %c0_i32_1 = arith.constant 0 : i32
    return %arg0, %c0_i32, %c0_i32_0 : i32, i32, i32
  }
  func.func @transform_2(%arg0: i32) -> (i32, i32, i32) {
    %c0_i32 = arith.constant 0 : i32
    %c0_i32_0 = arith.constant 0 : i32
    %c0_i32_1 = arith.constant 0 : i32
    return %arg0, %c0_i32, %c0_i32_0 : i32, i32, i32
  }
  func.func @transform_3(%arg0: i32) -> (i32, i32) {
    %c0_i32 = arith.constant 0 : i32
    %c0_i32_0 = arith.constant 0 : i32
    %c0_i32_1 = arith.constant 0 : i32
    return %c0_i32, %c0_i32_0 : i32, i32
  }
  func.func @transform_4(%arg0: i32) -> (i32, i32) {
    %c0_i32 = arith.constant 0 : i32
    %c0_i32_0 = arith.constant 0 : i32
    %c0_i32_1 = arith.constant 0 : i32
    return %c0_i32, %c0_i32_0 : i32, i32
  }
  func.func @transform_5(%arg0: i32) -> (i32, i32) {
    %c0_i32 = arith.constant 0 : i32
    %c0_i32_0 = arith.constant 0 : i32
    %c0_i32_1 = arith.constant 0 : i32
    return %c0_i32, %c0_i32_0 : i32, i32
  }
  func.func @transform_6(%arg0: i32) -> (i32, i32) {
    %c0_i32 = arith.constant 0 : i32
    %c0_i32_0 = arith.constant 0 : i32
    %c0_i32_1 = arith.constant 0 : i32
    return %c0_i32, %c0_i32_0 : i32, i32
  }
  func.func @transform_7(%arg0: i32) -> (i32, i32) {
    %c0_i32 = arith.constant 0 : i32
    %c0_i32_0 = arith.constant 0 : i32
    %c0_i32_1 = arith.constant 0 : i32
    return %c0_i32, %c0_i32_0 : i32, i32
  }
  func.func @transform_8(%arg0: i32) -> (i32, i32) {
    %c0_i32 = arith.constant 0 : i32
    %c0_i32_0 = arith.constant 0 : i32
    %c0_i32_1 = arith.constant 0 : i32
    return %c0_i32, %c0_i32_0 : i32, i32
  }
  func.func @transform_9(%arg0: i32) -> (i32, i32) {
    %c0_i32 = arith.constant 0 : i32
    %c0_i32_0 = arith.constant 0 : i32
    %c0_i32_1 = arith.constant 0 : i32
    return %c0_i32, %c0_i32_0 : i32, i32
  }
  func.func @transform_10(%arg0: i32) -> (i32, i32, i32) {
    %c0_i32 = arith.constant 0 : i32
    %c0_i32_0 = arith.constant 0 : i32
    %c0_i32_1 = arith.constant 0 : i32
    return %arg0, %c0_i32, %c0_i32_0 : i32, i32, i32
  }
  func.func @transform_11(%arg0: i32) -> (i32, i32, i32) {
    %c0_i32 = arith.constant 0 : i32
    %c0_i32_0 = arith.constant 0 : i32
    %c0_i32_1 = arith.constant 0 : i32
    return %arg0, %c0_i32, %c0_i32_0 : i32, i32, i32
  }
}

module attributes {stable_mosaic.version = 11 : i64} {
  func.func @kernel(%arg0: i32, %arg1: i32, %arg2: memref<1x4x3x256xf32, #tpu.memory_space<vmem>>, %arg3: memref<1x4x3x1xf32, #tpu.memory_space<vmem>>, %arg4: memref<1x4x3x256xf32, #tpu.memory_space<vmem>>) attributes {dimension_semantics = [#tpu.dimension_semantics<parallel>, #tpu.dimension_semantics<parallel>], iteration_bounds = array<i64: 2, 1>, scalar_prefetch = 0 : i64, scratch_operands = 0 : i64, tpu.core_type = #tpu.core_type<tc>, window_params = [{transform_indices = @transform_0, window_bounds = array<i64: 1, 4, 3, 256>}, {transform_indices = @transform_1, window_bounds = array<i64: 1, 4, 3, 1>}, {transform_indices = @transform_2, window_bounds = array<i64: 1, 4, 3, 256>}]} {
    %c0 = arith.constant 0 : index
    %c0_0 = arith.constant 0 : index
    %c0_1 = arith.constant 0 : index
    %c0_2 = arith.constant 0 : index
    %0 = vector.load %arg2[%c0, %c0_0, %c0_1, %c0_2] : memref<1x4x3x256xf32, #tpu.memory_space<vmem>>, vector<1x1x3x256xf32>
    %1 = vector.shape_cast %0 : vector<1x1x3x256xf32> to vector<3x256xf32>
    %c0_3 = arith.constant 0 : index
    %c0_4 = arith.constant 0 : index
    %c0_5 = arith.constant 0 : index
    %c0_6 = arith.constant 0 : index
    %2 = vector.load %arg3[%c0_3, %c0_4, %c0_5, %c0_6] : memref<1x4x3x1xf32, #tpu.memory_space<vmem>>, vector<1x1x3x1xf32>
    %3 = vector.shape_cast %2 : vector<1x1x3x1xf32> to vector<3x1xf32>
    %4 = vector.broadcast %3 : vector<3x1xf32> to vector<3x256xf32>
    %5 = arith.mulf %1, %4 : vector<3x256xf32>
    %c0_7 = arith.constant 0 : index
    %c1 = arith.constant 1 : index
    %c0_8 = arith.constant 0 : index
    %c0_9 = arith.constant 0 : index
    %6 = vector.load %arg2[%c0_7, %c1, %c0_8, %c0_9] : memref<1x4x3x256xf32, #tpu.memory_space<vmem>>, vector<1x1x3x256xf32>
    %7 = vector.shape_cast %6 : vector<1x1x3x256xf32> to vector<3x256xf32>
    %c0_10 = arith.constant 0 : index
    %c1_11 = arith.constant 1 : index
    %c0_12 = arith.constant 0 : index
    %c0_13 = arith.constant 0 : index
    %8 = vector.load %arg3[%c0_10, %c1_11, %c0_12, %c0_13] : memref<1x4x3x1xf32, #tpu.memory_space<vmem>>, vector<1x1x3x1xf32>
    %9 = vector.shape_cast %8 : vector<1x1x3x1xf32> to vector<3x1xf32>
    %10 = vector.broadcast %9 : vector<3x1xf32> to vector<3x256xf32>
    %11 = arith.mulf %7, %10 : vector<3x256xf32>
    %c0_14 = arith.constant 0 : index
    %c2 = arith.constant 2 : index
    %c0_15 = arith.constant 0 : index
    %c0_16 = arith.constant 0 : index
    %12 = vector.load %arg2[%c0_14, %c2, %c0_15, %c0_16] : memref<1x4x3x256xf32, #tpu.memory_space<vmem>>, vector<1x1x3x256xf32>
    %13 = vector.shape_cast %12 : vector<1x1x3x256xf32> to vector<3x256xf32>
    %c0_17 = arith.constant 0 : index
    %c2_18 = arith.constant 2 : index
    %c0_19 = arith.constant 0 : index
    %c0_20 = arith.constant 0 : index
    %14 = vector.load %arg3[%c0_17, %c2_18, %c0_19, %c0_20] : memref<1x4x3x1xf32, #tpu.memory_space<vmem>>, vector<1x1x3x1xf32>
    %15 = vector.shape_cast %14 : vector<1x1x3x1xf32> to vector<3x1xf32>
    %16 = vector.broadcast %15 : vector<3x1xf32> to vector<3x256xf32>
    %17 = arith.mulf %13, %16 : vector<3x256xf32>
    %c0_21 = arith.constant 0 : index
    %c3 = arith.constant 3 : index
    %c0_22 = arith.constant 0 : index
    %c0_23 = arith.constant 0 : index
    %18 = vector.load %arg2[%c0_21, %c3, %c0_22, %c0_23] : memref<1x4x3x256xf32, #tpu.memory_space<vmem>>, vector<1x1x3x256xf32>
    %19 = vector.shape_cast %18 : vector<1x1x3x256xf32> to vector<3x256xf32>
    %c0_24 = arith.constant 0 : index
    %c3_25 = arith.constant 3 : index
    %c0_26 = arith.constant 0 : index
    %c0_27 = arith.constant 0 : index
    %20 = vector.load %arg3[%c0_24, %c3_25, %c0_26, %c0_27] : memref<1x4x3x1xf32, #tpu.memory_space<vmem>>, vector<1x1x3x1xf32>
    %21 = vector.shape_cast %20 : vector<1x1x3x1xf32> to vector<3x1xf32>
    %22 = vector.broadcast %21 : vector<3x1xf32> to vector<3x256xf32>
    %23 = arith.mulf %19, %22 : vector<3x256xf32>
    %24 = arith.addf %5, %11 : vector<3x256xf32>
    %25 = arith.addf %24, %17 : vector<3x256xf32>
    %26 = arith.addf %25, %23 : vector<3x256xf32>
    %cst = arith.constant 5.000000e-01 : f32
    %27 = vector.broadcast %cst : f32 to vector<3x256xf32>
    %28 = arith.mulf %27, %26 : vector<3x256xf32>
    %c0_28 = arith.constant 0 : index
    %c0_29 = arith.constant 0 : index
    %c0_30 = arith.constant 0 : index
    %c0_31 = arith.constant 0 : index
    %29 = vector.load %arg4[%c0_28, %c0_29, %c0_30, %c0_31] : memref<1x4x3x256xf32, #tpu.memory_space<vmem>>, vector<1x1x3x256xf32>
    %30 = vector.shape_cast %29 : vector<1x1x3x256xf32> to vector<3x256xf32>
    %31 = vector.shape_cast %28 : vector<3x256xf32> to vector<1x1x3x256xf32>
    tpu.vector_store %arg4[%c0_28, %c0_29, %c0_30, %c0_31], %31 {strides = array<i32>} : memref<1x4x3x256xf32, #tpu.memory_space<vmem>>, vector<1x1x3x256xf32>,
    %32 = arith.addf %5, %11 : vector<3x256xf32>
    %33 = arith.subf %32, %17 : vector<3x256xf32>
    %34 = arith.subf %33, %23 : vector<3x256xf32>
    %cst_32 = arith.constant 5.000000e-01 : f32
    %35 = vector.broadcast %cst_32 : f32 to vector<3x256xf32>
    %36 = arith.mulf %35, %34 : vector<3x256xf32>
    %c0_33 = arith.constant 0 : index
    %c1_34 = arith.constant 1 : index
    %c0_35 = arith.constant 0 : index
    %c0_36 = arith.constant 0 : index
    %37 = vector.load %arg4[%c0_33, %c1_34, %c0_35, %c0_36] : memref<1x4x3x256xf32, #tpu.memory_space<vmem>>, vector<1x1x3x256xf32>
    %38 = vector.shape_cast %37 : vector<1x1x3x256xf32> to vector<3x256xf32>
    %39 = vector.shape_cast %36 : vector<3x256xf32> to vector<1x1x3x256xf32>
    tpu.vector_store %arg4[%c0_33, %c1_34, %c0_35, %c0_36], %39 {strides = array<i32>} : memref<1x4x3x256xf32, #tpu.memory_space<vmem>>, vector<1x1x3x256xf32>,
    %40 = arith.subf %5, %11 : vector<3x256xf32>
    %41 = arith.addf %40, %17 : vector<3x256xf32>
    %42 = arith.subf %41, %23 : vector<3x256xf32>
    %cst_37 = arith.constant 5.000000e-01 : f32
    %43 = vector.broadcast %cst_37 : f32 to vector<3x256xf32>
    %44 = arith.mulf %43, %42 : vector<3x256xf32>
    %c0_38 = arith.constant 0 : index
    %c2_39 = arith.constant 2 : index
    %c0_40 = arith.constant 0 : index
    %c0_41 = arith.constant 0 : index
    %45 = vector.load %arg4[%c0_38, %c2_39, %c0_40, %c0_41] : memref<1x4x3x256xf32, #tpu.memory_space<vmem>>, vector<1x1x3x256xf32>
    %46 = vector.shape_cast %45 : vector<1x1x3x256xf32> to vector<3x256xf32>
    %47 = vector.shape_cast %44 : vector<3x256xf32> to vector<1x1x3x256xf32>
    tpu.vector_store %arg4[%c0_38, %c2_39, %c0_40, %c0_41], %47 {strides = array<i32>} : memref<1x4x3x256xf32, #tpu.memory_space<vmem>>, vector<1x1x3x256xf32>,
    %48 = arith.subf %5, %11 : vector<3x256xf32>
    %49 = arith.subf %48, %17 : vector<3x256xf32>
    %50 = arith.addf %49, %23 : vector<3x256xf32>
    %cst_42 = arith.constant 5.000000e-01 : f32
    %51 = vector.broadcast %cst_42 : f32 to vector<3x256xf32>
    %52 = arith.mulf %51, %50 : vector<3x256xf32>
    %c0_43 = arith.constant 0 : index
    %c3_44 = arith.constant 3 : index
    %c0_45 = arith.constant 0 : index
    %c0_46 = arith.constant 0 : index
    %53 = vector.load %arg4[%c0_43, %c3_44, %c0_45, %c0_46] : memref<1x4x3x256xf32, #tpu.memory_space<vmem>>, vector<1x1x3x256xf32>
    %54 = vector.shape_cast %53 : vector<1x1x3x256xf32> to vector<3x256xf32>
    %55 = vector.shape_cast %52 : vector<3x256xf32> to vector<1x1x3x256xf32>
    tpu.vector_store %arg4[%c0_43, %c3_44, %c0_45, %c0_46], %55 {strides = array<i32>} : memref<1x4x3x256xf32, #tpu.memory_space<vmem>>, vector<1x1x3x256xf32>,
    return
  }
  func.func @transform_0(%arg0: i32, %arg1: i32) -> (i32, i32, i32, i32) {
    %c0_i32 = arith.constant 0 : i32
    %c0_i32_0 = arith.constant 0 : i32
    %c0_i32_1 = arith.constant 0 : i32
    return %arg0, %c0_i32, %c0_i32_0, %arg1 : i32, i32, i32, i32
  }
  func.func @transform_1(%arg0: i32, %arg1: i32) -> (i32, i32, i32, i32) {
    %c0_i32 = arith.constant 0 : i32
    %c0_i32_0 = arith.constant 0 : i32
    %c0_i32_1 = arith.constant 0 : i32
    %c0_i32_2 = arith.constant 0 : i32
    return %arg0, %c0_i32, %c0_i32_0, %c0_i32_1 : i32, i32, i32, i32
  }
  func.func @transform_2(%arg0: i32, %arg1: i32) -> (i32, i32, i32, i32) {
    %c0_i32 = arith.constant 0 : i32
    %c0_i32_0 = arith.constant 0 : i32
    %c0_i32_1 = arith.constant 0 : i32
    return %arg0, %c0_i32, %c0_i32_0, %arg1 : i32, i32, i32, i32
  }
}

</mosaic_0001>

<llo_original>
// kernel: mobile_synthesis_forward.10
$region0: #{mobile_synthesis_forward.10}
  #allocation0 [shape = 'u32[]', space=smem, size = 0x4, offset = 0x4, fixed_abs, tag = 'smem constant byte address 0x4 - core index']
  #allocation1 [shape = 'u32[144,128]{1,0:T(1,128)}', space=vmem, size = 0x12000, scoped, tag = 'internal scratch']
  %s0 = inlined_call_operand.vmem [shape: bf16[2,288,16], index: 0, kind: input, shape index: {}]
  %s1 = inlined_call_operand.vmem [shape: f32[2,1,288], index: 1, kind: input, shape index: {}]
  %s2 = inlined_call_operand.vmem [shape: f32[2,1,32], index: 2, kind: input, shape index: {}]
  %s3 = inlined_call_operand.hbm [shape: bf16[32,288], index: 3, kind: input, shape index: {}]
  %s4 = inlined_call_operand.vmem [shape: f32[32,1], index: 4, kind: input, shape index: {}]
  %s5 = inlined_call_operand.vmem [shape: f32[1,16], index: 5, kind: input, shape index: {}]
  %s6 = inlined_call_operand.vmem [shape: f32[32,1], index: 6, kind: input, shape index: {}]
  %s7 = inlined_call_operand.hbm [shape: bf16[12,32], index: 7, kind: input, shape index: {}]
  %s8 = inlined_call_operand.vmem [shape: f32[12,1], index: 8, kind: input, shape index: {}]
  %s9 = inlined_call_operand.vmem [shape: bf16[2,32,16], index: 9, kind: output, shape index: {0}]
  %s10 = inlined_call_operand.vmem [shape: f32[2,12,16], index: 10, kind: output, shape index: {1}]
  %11 = xla_tuple %s9, %s10
  %s12 = sld [smem:[#allocation0]]
  $region85: #{mobile_synthesis_forward.10} parent=0
    _
  %s14 = ssub.s32 1, %s12
  %s15 = scalar_select 0, %s14, %s12
  $region1: #{mobile_synthesis_forward.10} parent=0
    #allocation2 [shape = 'u8[24576]{0}', space=vmem, size = 0x6000, scoped, tag = 'input window, operand 3, single buffered']
    #allocation3 [shape = 's32[2]{0}', space=sflag, size = 0x8, scoped, tag = 'scoped memory for mobile_synthesis_forward.10']
    #allocation4 [shape = 'u8[4096]{0}', space=vmem, size = 0x1000, scoped, tag = 'input window, operand 7, single buffered']
    #allocation5 [shape = 's32[1]{0}', space=sflag, size = 0x4, scoped, tag = 'scoped memory for mobile_synthesis_forward.10']
    %16 = vsyncpa [#allocation3], 0
    %17 = vsyncpa [#allocation5], 0
    loop: start=0, step=1, limit=4
    $region2: #{mobile_synthesis_forward.10} parent=1 // loop_pre_header
      _
    $region3: #{mobile_synthesis_forward.10} parent=1 // loop_header
      %s19 = sphi 0, %s23
      %p20 = scmp.ge.s32.totalorder %s19, 4
      %s26 = sphi 0, %s38
      %s27 = sphi 0, %s34
      %s28 = sphi 0, %s26
      %s29 = sphi 0, %s27
      %s30 = sphi 0, %s28
      %s31 = sphi 0, %s29
      %s43 = sphi 0, %s45
      %s46 = sphi 0, %s43
      %s47 = sphi 0, %s46
      %s63 = sphi 0, %s47
      %s69 = sphi 0, %s71
      %s72 = sphi 0, %s69
      %s73 = sphi 0, %s72
      %s89 = sphi 0, %s73
      %s95 = sphi 0, %s97
      %s98 = sphi 0, %s95
      %s99 = sphi 0, %s98
      %s115 = sphi 0, %s99
      %s119 = sphi 0, %s119
      %s121 = sphi 0, %s119
      %s122 = sphi 0, %s121
      %s136 = sphi 0, %s122
      %s140 = sphi 0, %s140
      %s142 = sphi 0, %s140
      %s143 = sphi 0, %s142
      %s157 = sphi 0, %s143
      %s163 = sphi 0, %s165
      %s166 = sphi 0, %s163
      %s167 = sphi 0, %s166
      %s183 = sphi 0, %s167
      %s187 = sphi 0, %s187
      %s189 = sphi 0, %s187
      %s190 = sphi 0, %s189
      %s204 = sphi 0, %s190
      %s208 = sphi 0, %s208
      %s210 = sphi 0, %s208
      %s211 = sphi 0, %s210
      %s225 = sphi 0, %s211
      %s229 = sphi 0, %s229
      %s231 = sphi 0, %s229
      %s232 = sphi 0, %s231
      %s246 = sphi 0, %s232
      %s254 = sphi 0, %s256
      %s257 = sphi 0, %s254
      %s258 = sphi 0, %s257
      %s274 = sphi 0, %s258
      %s282 = sphi 0, %s284
      %s285 = sphi 0, %s282
      %s286 = sphi 0, %s285
      %s302 = sphi 0, %s286
    $region4: #{mobile_synthesis_forward.10} parent=1 // loop_header_branch
      %22 = sbr.rel (%p20) target = $region8
    $region5: #{mobile_synthesis_forward.10} parent=1 // loop_body
      %s24 = ssub.s32 %s19, 1
      %s25 = ssub.s32 %s19, 2
      %s32 = sadd.s32 1, %s27
      %p33 = scmp.ge.s32.totalorder %s32, 1
      %s34 = scalar_select %p33, 0, %s32
      %s35 = sadd.s32 1, %s26
      %s36 = scalar_select %p33, %s35, %s26
      %p37 = scmp.ge.s32.totalorder %s36, 2
      %s38 = scalar_select %p37, 0, %s36
      %s39 = ssub.s32 %s26, %s38
      %s40 = ssub.s32 %s27, %s34
      %s41 = sor.u32 %s39, %s40
      %p42 = scmp.eq.s32.totalorder %s41, 0
      %s44 = sadd.s32 %s43, 1
      %s45 = scalar_select %p42, %s43, %s44
      %p48 = pneg %p42
      %p49 = scmp.eq.s32.totalorder %s19, 1
      %p50 = por %p48, %p49
      %p51 = scmp.ne.s32.totalorder %s43, %s46
      %p52 = scmp.eq.s32.totalorder %s19, 0
      %p53 = por %p51, %p52
      %p54 = scmp.ne.s32.totalorder %s43, %s46
      %p55 = scmp.eq.s32.totalorder %s24, 1
      %p56 = por %p54, %p55
      %p57 = scmp.ne.s32.totalorder %s46, %s47
      %p58 = scmp.eq.s32.totalorder %s24, 0
      %p59 = por %p57, %p58
      %p60 = scmp.ne.s32.totalorder %s46, %s47
      %p61 = scmp.eq.s32.totalorder %s25, 1
      %p62 = por %p60, %p61
      %p64 = scmp.ne.s32.totalorder %s47, %s63
      %p65 = scmp.eq.s32.totalorder %s25, 0
      %p66 = por %p64, %p65
      %s67 = ssub.s32 %s26, %s38
      %p68 = scmp.eq.s32.totalorder %s67, 0
      %s70 = sadd.s32 %s69, 1
      %s71 = scalar_select %p68, %s69, %s70
      %p74 = pneg %p68
      %p75 = scmp.eq.s32.totalorder %s19, 1
      %p76 = por %p74, %p75
      %p77 = scmp.ne.s32.totalorder %s69, %s72
      %p78 = scmp.eq.s32.totalorder %s19, 0
      %p79 = por %p77, %p78
      %p80 = scmp.ne.s32.totalorder %s69, %s72
      %p81 = scmp.eq.s32.totalorder %s24, 1
      %p82 = por %p80, %p81
      %p83 = scmp.ne.s32.totalorder %s72, %s73
      %p84 = scmp.eq.s32.totalorder %s24, 0
      %p85 = por %p83, %p84
      %p86 = scmp.ne.s32.totalorder %s72, %s73
      %p87 = scmp.eq.s32.totalorder %s25, 1
      %p88 = por %p86, %p87
      %p90 = scmp.ne.s32.totalorder %s73, %s89
      %p91 = scmp.eq.s32.totalorder %s25, 0
      %p92 = por %p90, %p91
      %s93 = ssub.s32 %s26, %s38
      %p94 = scmp.eq.s32.totalorder %s93, 0
      %s96 = sadd.s32 %s95, 1
      %s97 = scalar_select %p94, %s95, %s96
      %p100 = pneg %p94
      %p101 = scmp.eq.s32.totalorder %s19, 1
      %p102 = por %p100, %p101
      %p103 = scmp.ne.s32.totalorder %s95, %s98
      %p104 = scmp.eq.s32.totalorder %s19, 0
      %p105 = por %p103, %p104
      %p106 = scmp.ne.s32.totalorder %s95, %s98
      %p107 = scmp.eq.s32.totalorder %s24, 1
      %p108 = por %p106, %p107
      %p109 = scmp.ne.s32.totalorder %s98, %s99
      %p110 = scmp.eq.s32.totalorder %s24, 0
      %p111 = por %p109, %p110
      %p112 = scmp.ne.s32.totalorder %s98, %s99
      %p113 = scmp.eq.s32.totalorder %s25, 1
      %p114 = por %p112, %p113
      %p116 = scmp.ne.s32.totalorder %s99, %s115
      %p117 = scmp.eq.s32.totalorder %s25, 0
      %p118 = por %p116, %p117
      %s120 = sadd.s32 %s119, 1
      %p123 = scmp.eq.s32.totalorder %s19, 1
      %p124 = scmp.ne.s32.totalorder %s119, %s121
      %p125 = scmp.eq.s32.totalorder %s19, 0
      %p126 = por %p124, %p125
      %p127 = scmp.ne.s32.totalorder %s119, %s121
      %p128 = scmp.eq.s32.totalorder %s24, 1
      %p129 = por %p127, %p128
      %p130 = scmp.ne.s32.totalorder %s121, %s122
      %p131 = scmp.eq.s32.totalorder %s24, 0
      %p132 = por %p130, %p131
      %p133 = scmp.ne.s32.totalorder %s121, %s122
      %p134 = scmp.eq.s32.totalorder %s25, 1
      %p135 = por %p133, %p134
      %p137 = scmp.ne.s32.totalorder %s122, %s136
      %p138 = scmp.eq.s32.totalorder %s25, 0
      %p139 = por %p137, %p138
      %s141 = sadd.s32 %s140, 1
      %p144 = scmp.eq.s32.totalorder %s19, 1
      %p145 = scmp.ne.s32.totalorder %s140, %s142
      %p146 = scmp.eq.s32.totalorder %s19, 0
      %p147 = por %p145, %p146
      %p148 = scmp.ne.s32.totalorder %s140, %s142
      %p149 = scmp.eq.s32.totalorder %s24, 1
      %p150 = por %p148, %p149
      %p151 = scmp.ne.s32.totalorder %s142, %s143
      %p152 = scmp.eq.s32.totalorder %s24, 0
      %p153 = por %p151, %p152
      %p154 = scmp.ne.s32.totalorder %s142, %s143
      %p155 = scmp.eq.s32.totalorder %s25, 1
      %p156 = por %p154, %p155
      %p158 = scmp.ne.s32.totalorder %s143, %s157
      %p159 = scmp.eq.s32.totalorder %s25, 0
      %p160 = por %p158, %p159
      %s161 = ssub.s32 %s27, %s34
      %p162 = scmp.eq.s32.totalorder %s161, 0
      %s164 = sadd.s32 %s163, 1
      %s165 = scalar_select %p162, %s163, %s164
      %p168 = pneg %p162
      %p169 = scmp.eq.s32.totalorder %s19, 1
      %p170 = por %p168, %p169
      %p171 = scmp.ne.s32.totalorder %s163, %s166
      %p172 = scmp.eq.s32.totalorder %s19, 0
      %p173 = por %p171, %p172
      %p174 = scmp.ne.s32.totalorder %s163, %s166
      %p175 = scmp.eq.s32.totalorder %s24, 1
      %p176 = por %p174, %p175
      %p177 = scmp.ne.s32.totalorder %s166, %s167
      %p178 = scmp.eq.s32.totalorder %s24, 0
      %p179 = por %p177, %p178
      %p180 = scmp.ne.s32.totalorder %s166, %s167
      %p181 = scmp.eq.s32.totalorder %s25, 1
      %p182 = por %p180, %p181
      %p184 = scmp.ne.s32.totalorder %s167, %s183
      %p185 = scmp.eq.s32.totalorder %s25, 0
      %p186 = por %p184, %p185
      %s188 = sadd.s32 %s187, 1
      %p191 = scmp.eq.s32.totalorder %s19, 1
      %p192 = scmp.ne.s32.totalorder %s187, %s189
      %p193 = scmp.eq.s32.totalorder %s19, 0
      %p194 = por %p192, %p193
      %p195 = scmp.ne.s32.totalorder %s187, %s189
      %p196 = scmp.eq.s32.totalorder %s24, 1
      %p197 = por %p195, %p196
      %p198 = scmp.ne.s32.totalorder %s189, %s190
      %p199 = scmp.eq.s32.totalorder %s24, 0
      %p200 = por %p198, %p199
      %p201 = scmp.ne.s32.totalorder %s189, %s190
      %p202 = scmp.eq.s32.totalorder %s25, 1
      %p203 = por %p201, %p202
      %p205 = scmp.ne.s32.totalorder %s190, %s204
      %p206 = scmp.eq.s32.totalorder %s25, 0
      %p207 = por %p205, %p206
      %s209 = sadd.s32 %s208, 1
      %p212 = scmp.eq.s32.totalorder %s19, 1
      %p213 = scmp.ne.s32.totalorder %s208, %s210
      %p214 = scmp.eq.s32.totalorder %s19, 0
      %p215 = por %p213, %p214
      %p216 = scmp.ne.s32.totalorder %s208, %s210
      %p217 = scmp.eq.s32.totalorder %s24, 1
      %p218 = por %p216, %p217
      %p219 = scmp.ne.s32.totalorder %s210, %s211
      %p220 = scmp.eq.s32.totalorder %s24, 0
      %p221 = por %p219, %p220
      %p222 = scmp.ne.s32.totalorder %s210, %s211
      %p223 = scmp.eq.s32.totalorder %s25, 1
      %p224 = por %p222, %p223
      %p226 = scmp.ne.s32.totalorder %s211, %s225
      %p227 = scmp.eq.s32.totalorder %s25, 0
      %p228 = por %p226, %p227
      %s230 = sadd.s32 %s229, 1
      %p233 = scmp.eq.s32.totalorder %s19, 1
      %p234 = scmp.ne.s32.totalorder %s229, %s231
      %p235 = scmp.eq.s32.totalorder %s19, 0
      %p236 = por %p234, %p235
      %p237 = scmp.ne.s32.totalorder %s229, %s231
      %p238 = scmp.eq.s32.totalorder %s24, 1
      %p239 = por %p237, %p238
      %p240 = scmp.ne.s32.totalorder %s231, %s232
      %p241 = scmp.eq.s32.totalorder %s24, 0
      %p242 = por %p240, %p241
      %p243 = scmp.ne.s32.totalorder %s231, %s232
      %p244 = scmp.eq.s32.totalorder %s25, 1
      %p245 = por %p243, %p244
      %p247 = scmp.ne.s32.totalorder %s232, %s246
      %p248 = scmp.eq.s32.totalorder %s25, 0
      %p249 = por %p247, %p248
      %s250 = ssub.s32 %s26, %s38
      %s251 = ssub.s32 %s27, %s34
      %s252 = sor.u32 %s250, %s251
      %p253 = scmp.eq.s32.totalorder %s252, 0
      %s255 = sadd.s32 %s254, 1
      %s256 = scalar_select %p253, %s254, %s255
      %p259 = pneg %p253
      %p260 = scmp.eq.s32.totalorder %s19, 1
      %p261 = por %p259, %p260
      %p262 = scmp.ne.s32.totalorder %s254, %s257
      %p263 = scmp.eq.s32.totalorder %s19, 0
      %p264 = por %p262, %p263
      %p265 = scmp.ne.s32.totalorder %s254, %s257
      %p266 = scmp.eq.s32.totalorder %s24, 1
      %p267 = por %p265, %p266
      %p268 = scmp.ne.s32.totalorder %s257, %s258
      %p269 = scmp.eq.s32.totalorder %s24, 0
      %p270 = por %p268, %p269
      %p271 = scmp.ne.s32.totalorder %s257, %s258
      %p272 = scmp.eq.s32.totalorder %s25, 1
      %p273 = por %p271, %p272
      %p275 = scmp.ne.s32.totalorder %s258, %s274
      %p276 = scmp.eq.s32.totalorder %s25, 0
      %p277 = por %p275, %p276
      %s278 = ssub.s32 %s26, %s38
      %s279 = ssub.s32 %s27, %s34
      %s280 = sor.u32 %s278, %s279
      %p281 = scmp.eq.s32.totalorder %s280, 0
      %s283 = sadd.s32 %s282, 1
      %s284 = scalar_select %p281, %s282, %s283
      %p287 = pneg %p281
      %p288 = scmp.eq.s32.totalorder %s19, 1
      %p289 = por %p287, %p288
      %p290 = scmp.ne.s32.totalorder %s282, %s285
      %p291 = scmp.eq.s32.totalorder %s19, 0
      %p292 = por %p290, %p291
      %p293 = scmp.ne.s32.totalorder %s282, %s285
      %p294 = scmp.eq.s32.totalorder %s24, 1
      %p295 = por %p293, %p294
      %p296 = scmp.ne.s32.totalorder %s285, %s286
      %p297 = scmp.eq.s32.totalorder %s24, 0
      %p298 = por %p296, %p297
      %p299 = scmp.ne.s32.totalorder %s285, %s286
      %p300 = scmp.eq.s32.totalorder %s25, 1
      %p301 = por %p299, %p300
      %p303 = scmp.ne.s32.totalorder %s286, %s302
      %p304 = scmp.eq.s32.totalorder %s25, 0
      %p305 = por %p303, %p304
      %p306 = scmp.le.s32.totalorder 1, %s19
      %p307 = scmp.lt.s32.totalorder %s19, 3
      %p308 = pnand %p306, %p307
      %p309 = pneg %p308
      // Predicated region
      $region9: #{mobile_synthesis_forward.10} parent=5 // pred_check
        _
      $region10: #{mobile_synthesis_forward.10} parent=5 // pred_check_branch
        %311 = sbr.rel (%p308) target = $region12
      $region11: #{mobile_synthesis_forward.10} parent=5 // pred_region
        %s312 = ssub.s32 %s19, 1
        // Predicated region
        $region13: #{mobile_synthesis_forward.10} parent=11 // pred_check
          %p313 = pneg %p132
        $region14: #{mobile_synthesis_forward.10} parent=11 // pred_check_branch
          %315 = sbr.rel (%p313) target = $region16
        $region15: #{mobile_synthesis_forward.10} parent=11 // pred_region
          %s317 = ssub.s32 768, 768
          %318 = vsyncadd [#allocation3], %s317
          %s319 = sshll.u32 [#allocation2], 4
          %s320 = int_to_ptr.vmem [resolvable:$true] %s319
          %325 = dma.hbm_to_vmem [thread:$0]  %s3, 768, %s320, [#allocation3], 192, 192, 12
        $region16: #{mobile_synthesis_forward.10} parent=11 // pred_fallthru
          _
        // Predicated region
        $region17: #{mobile_synthesis_forward.10} parent=11 // pred_check
          %p326 = pneg %p153
        $region18: #{mobile_synthesis_forward.10} parent=11 // pred_check_branch
          %328 = sbr.rel (%p326) target = $region20
        $region19: #{mobile_synthesis_forward.10} parent=11 // pred_region
          _
        $region20: #{mobile_synthesis_forward.10} parent=11 // pred_fallthru
          _
        // Predicated region
        $region21: #{mobile_synthesis_forward.10} parent=11 // pred_check
          %p329 = pneg %p179
        $region22: #{mobile_synthesis_forward.10} parent=11 // pred_check_branch
          %331 = sbr.rel (%p329) target = $region24
        $region23: #{mobile_synthesis_forward.10} parent=11 // pred_region
          %p332 = scmp.lt.s32.totalorder %s29, 0
          %s333 = scalar_select %p332, %s29, 0
          %s334 = scalar_lea.vmem %s5, %s333
        $region24: #{mobile_synthesis_forward.10} parent=11 // pred_fallthru
          _
        // Predicated region
        $region25: #{mobile_synthesis_forward.10} parent=11 // pred_check
          %p335 = pneg %p200
        $region26: #{mobile_synthesis_forward.10} parent=11 // pred_check_branch
          %337 = sbr.rel (%p335) target = $region28
        $region27: #{mobile_synthesis_forward.10} parent=11 // pred_region
          _
        $region28: #{mobile_synthesis_forward.10} parent=11 // pred_fallthru
          _
        // Predicated region
        $region29: #{mobile_synthesis_forward.10} parent=11 // pred_check
          %p338 = pneg %p221
        $region30: #{mobile_synthesis_forward.10} parent=11 // pred_check_branch
          %340 = sbr.rel (%p338) target = $region32
        $region31: #{mobile_synthesis_forward.10} parent=11 // pred_region
          %s342 = ssub.s32 128, 128
          %343 = vsyncadd [#allocation5], %s342
          %s344 = sshll.u32 [#allocation4], 4
          %s345 = int_to_ptr.vmem [resolvable:$true] %s344
          %350 = dma.hbm_to_vmem [thread:$0]  %s7, 128, %s345, [#allocation5], 64, 64, 4
        $region32: #{mobile_synthesis_forward.10} parent=11 // pred_fallthru
          _
        // Predicated region
        $region33: #{mobile_synthesis_forward.10} parent=11 // pred_check
          %p351 = pneg %p242
        $region34: #{mobile_synthesis_forward.10} parent=11 // pred_check_branch
          %353 = sbr.rel (%p351) target = $region36
        $region35: #{mobile_synthesis_forward.10} parent=11 // pred_region
          _
        $region36: #{mobile_synthesis_forward.10} parent=11 // pred_fallthru
          _
      $region12: #{mobile_synthesis_forward.10} parent=5 // pred_fallthru
        _
      %p354 = scmp.lt.s32.totalorder %s19, 2
      // Predicated region
      $region37: #{mobile_synthesis_forward.10} parent=5 // pred_check
        %p355 = pneg %p354
      $region38: #{mobile_synthesis_forward.10} parent=5 // pred_check_branch
        %357 = sbr.rel (%p355) target = $region40
      $region39: #{mobile_synthesis_forward.10} parent=5 // pred_region
        // Predicated region
        $region41: #{mobile_synthesis_forward.10} parent=39 // pred_check
          %p358 = pneg %p53
        $region42: #{mobile_synthesis_forward.10} parent=39 // pred_check_branch
          %360 = sbr.rel (%p358) target = $region44
        $region43: #{mobile_synthesis_forward.10} parent=39 // pred_region
          %p361 = scmp.lt.s32.totalorder %s26, 1
          %s362 = scalar_select %p361, %s26, 1
          %p363 = scmp.lt.s32.totalorder %s27, 0
          %s364 = scalar_select %p363, %s27, 0
          %s365 = smul.addr %s362, 36
          %s366 = sadd.s32 %s364, %s365
          %s367 = smul.addr %s366, 4
          %s368 = scalar_lea.vmem %s0, %s367
        $region44: #{mobile_synthesis_forward.10} parent=39 // pred_fallthru
          _
        // Predicated region
        $region45: #{mobile_synthesis_forward.10} parent=39 // pred_check
          %p369 = pneg %p79
        $region46: #{mobile_synthesis_forward.10} parent=39 // pred_check_branch
          %371 = sbr.rel (%p369) target = $region48
        $region47: #{mobile_synthesis_forward.10} parent=39 // pred_region
          %p372 = scmp.lt.s32.totalorder %s26, 1
          %s373 = scalar_select %p372, %s26, 1
          %s374 = smul.addr %s373, 3
          %s375 = scalar_lea.vmem %s1, %s374
        $region48: #{mobile_synthesis_forward.10} parent=39 // pred_fallthru
          _
        // Predicated region
        $region49: #{mobile_synthesis_forward.10} parent=39 // pred_check
          %p376 = pneg %p105
        $region50: #{mobile_synthesis_forward.10} parent=39 // pred_check_branch
          %378 = sbr.rel (%p376) target = $region52
        $region51: #{mobile_synthesis_forward.10} parent=39 // pred_region
          %p379 = scmp.lt.s32.totalorder %s26, 1
          %s380 = scalar_select %p379, %s26, 1
          %s381 = scalar_lea.vmem %s2, %s380
        $region52: #{mobile_synthesis_forward.10} parent=39 // pred_fallthru
          _
      $region40: #{mobile_synthesis_forward.10} parent=5 // pred_fallthru
        _
      %p382 = scmp.le.s32.totalorder 1, %s19
      %p383 = scmp.lt.s32.totalorder %s19, 3
      %p384 = pnand %p382, %p383
      %p385 = pneg %p384
      // Predicated region
      $region53: #{mobile_synthesis_forward.10} parent=5 // pred_check
        _
      $region54: #{mobile_synthesis_forward.10} parent=5 // pred_check_branch
        %387 = sbr.rel (%p384) target = $region56
      $region55: #{mobile_synthesis_forward.10} parent=5 // pred_region
        %s388 = ssub.s32 %s19, 1
        // Predicated region
        $region57: #{mobile_synthesis_forward.10} parent=55 // pred_check
          %p389 = pneg %p132
        $region58: #{mobile_synthesis_forward.10} parent=55 // pred_check_branch
          %391 = sbr.rel (%p389) target = $region60
        $region59: #{mobile_synthesis_forward.10} parent=55 // pred_region
          %392 = dma.done [#allocation3], 768
        $region60: #{mobile_synthesis_forward.10} parent=55 // pred_fallthru
          _
        // Predicated region
        $region61: #{mobile_synthesis_forward.10} parent=55 // pred_check
          %p393 = pneg %p221
        $region62: #{mobile_synthesis_forward.10} parent=55 // pred_check_branch
          %395 = sbr.rel (%p393) target = $region64
        $region63: #{mobile_synthesis_forward.10} parent=55 // pred_region
          %396 = dma.done [#allocation5], 128
        $region64: #{mobile_synthesis_forward.10} parent=55 // pred_fallthru
          _
        %p397 = scmp.lt.s32.totalorder %s28, 1
        %s398 = scalar_select %p397, %s28, 1
        %p399 = scmp.lt.s32.totalorder %s29, 0
        %s400 = scalar_select %p399, %s29, 0
        %s401 = smul.addr %s398, 36
        %s402 = sadd.s32 %s400, %s401
        %s403 = smul.addr %s402, 4
        %s404 = scalar_lea.vmem %s0, %s403
        %p405 = pneg %p59
        %p406 = pneg %p56
        %p407 = scmp.lt.s32.totalorder %s28, 1
        %s408 = scalar_select %p407, %s28, 1
        %s409 = smul.addr %s408, 3
        %s410 = scalar_lea.vmem %s1, %s409
        %p411 = pneg %p85
        %p412 = pneg %p82
        %p413 = scmp.lt.s32.totalorder %s28, 1
        %s414 = scalar_select %p413, %s28, 1
        %s415 = scalar_lea.vmem %s2, %s414
        %p416 = pneg %p111
        %p417 = pneg %p108
        %p418 = pneg %p132
        %p419 = pneg %p129
        %p420 = pneg %p153
        %p421 = pneg %p150
        %p422 = scmp.lt.s32.totalorder %s29, 0
        %s423 = scalar_select %p422, %s29, 0
        %s424 = scalar_lea.vmem %s5, %s423
        %p425 = pneg %p179
        %p426 = pneg %p176
        %p427 = pneg %p200
        %p428 = pneg %p197
        %p429 = pneg %p221
        %p430 = pneg %p218
        %p431 = pneg %p242
        %p432 = pneg %p239
        %p433 = pneg %p270
        %p434 = pneg %p267
        %p435 = scmp.lt.s32.totalorder %s28, 1
        %s436 = scalar_select %p435, %s28, 1
        %p437 = scmp.lt.s32.totalorder %s29, 0
        %s438 = scalar_select %p437, %s29, 0
        %s439 = smul.addr %s436, 4
        %s440 = sadd.s32 %s438, %s439
        %s441 = smul.addr %s440, 4
        %s442 = scalar_lea.vmem %s9, %s441
        %p443 = pneg %p298
        %p444 = pneg %p295
        %p445 = scmp.lt.s32.totalorder %s28, 1
        %s446 = scalar_select %p445, %s28, 1
        %p447 = scmp.lt.s32.totalorder %s29, 0
        %s448 = scalar_select %p447, %s29, 0
        %s449 = smul.addr %s446, 2
        %s450 = sadd.s32 %s448, %s449
        %s451 = smul.addr %s450, 8
        %s452 = scalar_lea.vmem %s10, %s451
        %p453 = scmp.lt.s32.totalorder %s28, 1
        %s454 = scalar_select %p453, %s28, 1
        %p455 = scmp.lt.s32.totalorder %s29, 0
        %s456 = scalar_select %p455, %s29, 0
        %s457 = smul.addr %s454, 36
        %s458 = sadd.s32 %s456, %s457
        %s459 = smul.addr %s458, 4
        %s460 = scalar_lea.vmem %s0, %s459
        %p461 = scmp.lt.s32.totalorder %s28, 1
        %s462 = scalar_select %p461, %s28, 1
        %s463 = smul.addr %s462, 3
        %s464 = scalar_lea.vmem %s1, %s463
        %p465 = scmp.lt.s32.totalorder %s28, 1
        %s466 = scalar_select %p465, %s28, 1
        %s467 = scalar_lea.vmem %s2, %s466
        %p468 = scmp.lt.s32.totalorder %s29, 0
        %s469 = scalar_select %p468, %s29, 0
        %s470 = scalar_lea.vmem %s5, %s469
        %p471 = scmp.lt.s32.totalorder %s28, 1
        %s472 = scalar_select %p471, %s28, 1
        %p473 = scmp.lt.s32.totalorder %s29, 0
        %s474 = scalar_select %p473, %s29, 0
        %s475 = smul.addr %s472, 4
        %s476 = sadd.s32 %s474, %s475
        %s477 = smul.addr %s476, 4
        %s478 = scalar_lea.vmem %s9, %s477
        %p479 = scmp.lt.s32.totalorder %s28, 1
        %s480 = scalar_select %p479, %s28, 1
        %p481 = scmp.lt.s32.totalorder %s29, 0
        %s482 = scalar_select %p481, %s29, 0
        %s483 = smul.addr %s480, 2
        %s484 = sadd.s32 %s482, %s483
        %s485 = smul.addr %s484, 8
        %s486 = scalar_lea.vmem %s10, %s485
        %v488 = vld [vmem:[#allocation2] sm:$0xff]
        %v489 = vld [vmem:[#allocation2 + $0x8] sm:$0xf]
        %v490 = vld [vmem:[#allocation2 + $0xc] sm:$0xff]
        %v491 = vld [vmem:[#allocation2 + $0x14] sm:$0xf]
        %v492 = vld [vmem:[#allocation2 + $0x18] sm:$0xff]
        %v493 = vld [vmem:[#allocation2 + $0x20] sm:$0xf]
        %v494 = vld [vmem:[#allocation2 + $0x24] sm:$0xff]
        %v495 = vld [vmem:[#allocation2 + $0x2c] sm:$0xf]
        %v496 = vunpack.c.l.bf16 %v488
        %v497 = vunpack.c.h.bf16 %v488
        %v498 = vunpack.c.l.bf16 %v489
        %v499 = vunpack.c.l.bf16 %v490
        %v500 = vunpack.c.h.bf16 %v490
        %v501 = vunpack.c.l.bf16 %v491
        %v502 = vunpack.c.l.bf16 %v492
        %v503 = vunpack.c.h.bf16 %v492
        %v504 = vunpack.c.l.bf16 %v493
        %v505 = vunpack.c.l.bf16 %v494
        %v506 = vunpack.c.h.bf16 %v494
        %v507 = vunpack.c.l.bf16 %v495
        %v508 = vld [vmem:[%s464] sm:$0x7]
        %v510 = vlaneseq
        %v511 = vshrl.u32 %v510, 7
        %v512 = vsub.s32 0, %v511
        %v513 = vrot.slane %v508, %v512
        %v514 = vlaneseq
        %v515 = vshrl.u32 %v514, 7
        %v516 = vsub.s32 1, %v515
        %v517 = vrot.slane %v508, %v516
        %v518 = vlaneseq
        %v519 = vshrl.u32 %v518, 7
        %v520 = vsub.s32 2, %v519
        %v521 = vrot.slane %v508, %v520
        %v525 = vmul.f32 %v496, %v513
        %v526 = vmul.f32 %v497, %v517
        %v527 = vmul.f32 %v498, %v521
        %v528 = vmul.f32 %v499, %v513
        %v529 = vmul.f32 %v500, %v517
        %v530 = vmul.f32 %v501, %v521
        %v531 = vmul.f32 %v502, %v513
        %v532 = vmul.f32 %v503, %v517
        %v533 = vmul.f32 %v504, %v521
        %v534 = vmul.f32 %v505, %v513
        %v535 = vmul.f32 %v506, %v517
        %v536 = vmul.f32 %v507, %v521
        %v537 = vpack.c.bf16 %v528, %v525
        %v538 = vpack.c.bf16 %v529, %v526
        %v539 = vpack.c.bf16 %v530, %v527
        %v540 = vpack.c.bf16 %v534, %v531
        %v541 = vpack.c.bf16 %v535, %v532
        %v542 = vpack.c.bf16 %v536, %v533
        %v543 = vld [vmem:[%s460] sm:$0xf]
        %v544 = vld [vmem:[%s460 + $0x4] sm:$0xf]
        %v545 = vld [vmem:[%s460 + $0x8] sm:$0xf]
        %v546 = vld [vmem:[%s460 + $0xc] sm:$0xf]
        %v547 = vld [vmem:[%s460 + $0x10] sm:$0xf]
        %v548 = vld [vmem:[%s460 + $0x14] sm:$0xf]
        %v549 = vld [vmem:[%s460 + $0x18] sm:$0xf]
        %v550 = vld [vmem:[%s460 + $0x1c] sm:$0xf]
        %v551 = vld [vmem:[%s460 + $0x20] sm:$0xf]
        %v552 = vld [vmem:[%s460 + $0x24] sm:$0xf]
        %v553 = vld [vmem:[%s460 + $0x28] sm:$0xf]
        %v554 = vld [vmem:[%s460 + $0x2c] sm:$0xf]
        %v555 = vld [vmem:[%s460 + $0x30] sm:$0xf]
        %v556 = vld [vmem:[%s460 + $0x34] sm:$0xf]
        %v557 = vld [vmem:[%s460 + $0x38] sm:$0xf]
        %v558 = vld [vmem:[%s460 + $0x3c] sm:$0xf]
        %v559 = vld [vmem:[%s460 + $0x40] sm:$0xf]
        %v560 = vld [vmem:[%s460 + $0x44] sm:$0xf]
        %v561 = vld [vmem:[%s460 + $0x48] sm:$0xf]
        %v562 = vld [vmem:[%s460 + $0x4c] sm:$0xf]
        %v563 = vld [vmem:[%s460 + $0x50] sm:$0xf]
        %v564 = vld [vmem:[%s460 + $0x54] sm:$0xf]
        %v565 = vld [vmem:[%s460 + $0x58] sm:$0xf]
        %v566 = vld [vmem:[%s460 + $0x5c] sm:$0xf]
        %v567 = vld [vmem:[%s460 + $0x60] sm:$0xf]
        %v568 = vld [vmem:[%s460 + $0x64] sm:$0xf]
        %v569 = vld [vmem:[%s460 + $0x68] sm:$0xf]
        %v570 = vld [vmem:[%s460 + $0x6c] sm:$0xf]
        %v571 = vld [vmem:[%s460 + $0x70] sm:$0xf]
        %v572 = vld [vmem:[%s460 + $0x74] sm:$0xf]
        %v573 = vld [vmem:[%s460 + $0x78] sm:$0xf]
        %v574 = vld [vmem:[%s460 + $0x7c] sm:$0xf]
        %v575 = vld [vmem:[%s460 + $0x80] sm:$0xf]
        %v576 = vld [vmem:[%s460 + $0x84] sm:$0xf]
        %v577 = vld [vmem:[%s460 + $0x88] sm:$0xf]
        %v578 = vld [vmem:[%s460 + $0x8c] sm:$0xf]
        %v615 = vunpack.c.l.b16 %v543
        %v616 = vunpack.c.l.b16 %v544
        %v617 = vunpack.c.l.b16 %v545
        %v618 = vunpack.c.l.b16 %v546
        %v619 = vunpack.c.l.b16 %v547
        %v620 = vunpack.c.l.b16 %v548
        %v621 = vunpack.c.l.b16 %v549
        %v622 = vunpack.c.l.b16 %v550
        %v623 = vunpack.c.l.b16 %v551
        %v624 = vunpack.c.l.b16 %v552
        %v625 = vunpack.c.l.b16 %v553
        %v626 = vunpack.c.l.b16 %v554
        %v627 = vunpack.c.l.b16 %v555
        %v628 = vunpack.c.l.b16 %v556
        %v629 = vunpack.c.l.b16 %v557
        %v630 = vunpack.c.l.b16 %v558
        %v631 = vunpack.c.l.b16 %v559
        %v632 = vunpack.c.l.b16 %v560
        %v633 = vunpack.c.l.b16 %v561
        %v634 = vunpack.c.l.b16 %v562
        %v635 = vunpack.c.l.b16 %v563
        %v636 = vunpack.c.l.b16 %v564
        %v637 = vunpack.c.l.b16 %v565
        %v638 = vunpack.c.l.b16 %v566
        %v639 = vunpack.c.l.b16 %v567
        %v640 = vunpack.c.l.b16 %v568
        %v641 = vunpack.c.l.b16 %v569
        %v642 = vunpack.c.l.b16 %v570
        %v643 = vunpack.c.l.b16 %v571
        %v644 = vunpack.c.l.b16 %v572
        %v645 = vunpack.c.l.b16 %v573
        %v646 = vunpack.c.l.b16 %v574
        %v647 = vunpack.c.l.b16 %v575
        %v648 = vunpack.c.l.b16 %v576
        %v649 = vunpack.c.l.b16 %v577
        %v650 = vunpack.c.l.b16 %v578
        %v651 = vpack.c.b16 %v616, %v615
        %v652 = vpack.c.b16 %v618, %v617
        %v653 = vpack.c.b16 %v620, %v619
        %v654 = vpack.c.b16 %v622, %v621
        %v655 = vpack.c.b16 %v624, %v623
        %v656 = vpack.c.b16 %v626, %v625
        %v657 = vpack.c.b16 %v628, %v627
        %v658 = vpack.c.b16 %v630, %v629
        %v659 = vpack.c.b16 %v632, %v631
        %v660 = vpack.c.b16 %v634, %v633
        %v661 = vpack.c.b16 %v636, %v635
        %v662 = vpack.c.b16 %v638, %v637
        %v663 = vpack.c.b16 %v640, %v639
        %v664 = vpack.c.b16 %v642, %v641
        %v665 = vpack.c.b16 %v644, %v643
        %v666 = vpack.c.b16 %v646, %v645
        %v667 = vpack.c.b16 %v648, %v647
        %v668 = vpack.c.b16 %v650, %v649
        %vm687 = vcmask 261120
        %v689 = vsel %vm687, %v539, 0
        %v692 = vsel %vm687, %v542, 0
        %694 = vmatprep.subr.bf16.mxu0 0
        %695 = vmatpush1.bf16.msra.mxu0 %v651
        %696 = vmatprep.subr.bf16.mxu0 0
        %697 = vmatpush1.bf16.msra.mxu0 %v652
        %698 = vmatprep.subr.bf16.mxu0 0
        %699 = vmatpush1.bf16.msra.mxu0 %v653
        %700 = vmatprep.subr.bf16.mxu0 0
        %701 = vmatpush1.bf16.msra.mxu0 %v654
        %702 = vmatprep.subr.bf16.mxu0 0
        %703 = vmatpush1.bf16.msra.mxu0 %v655
        %704 = vmatprep.subr.bf16.mxu0 0
        %705 = vmatpush1.bf16.msra.mxu0 %v656
        %706 = vmatprep.subr.bf16.mxu0 0
        %707 = vmatpush1.bf16.msra.mxu0 %v657
        %708 = vmatprep.subr.bf16.mxu0 0
        %709 = vmatpush1.bf16.msra.mxu0 %v658
        %710 = vmatprep.subr.bf16.mxu0 0
        %711 = vmatpush1.bf16.msra.mxu0 %v659
        %712 = vmatprep.subr.bf16.mxu0 0
        %713 = vmatpush1.bf16.msra.mxu0 %v660
        %714 = vmatprep.subr.bf16.mxu0 0
        %715 = vmatpush1.bf16.msra.mxu0 %v661
        %716 = vmatprep.subr.bf16.mxu0 0
        %717 = vmatpush1.bf16.msra.mxu0 %v662
        %718 = vmatprep.subr.bf16.mxu0 0
        %719 = vmatpush1.bf16.msra.mxu0 %v663
        %720 = vmatprep.subr.bf16.mxu0 0
        %721 = vmatpush1.bf16.msra.mxu0 %v664
        %722 = vmatprep.subr.bf16.mxu0 0
        %723 = vmatpush1.bf16.msra.mxu0 %v665
        %724 = vmatprep.subr.bf16.mxu0 0
        %725 = vmatpush1.bf16.msra.mxu0 %v666
        %726 = vmatprep.mubr.bf16.mxu0 %v538
        %727 = vmatmul.mubr.bf16.gmra.mrb[0].mxu0 %v537
        %v728 = vpop.f32.mrb[0].mxu0
        %v729 = vadd.f32 0.0, %v728
        %v730 = vpop.f32.mrb[0].mxu0
        %v731 = vpop.f32.mrb[0].mxu0
        %v732 = vadd.f32 0.0, %v731
        %v733 = vpop.f32.mrb[0].mxu0
        %734 = vmatprep.mubr.bf16.mxu0 %v541
        %735 = vmatmul.mubr.bf16.gmra.mrb[0].mxu0 %v540
        %v736 = vpop.f32.mrb[0].mxu0
        %v737 = vadd.f32 0.0, %v736
        %v738 = vpop.f32.mrb[0].mxu0
        %v739 = vpop.f32.mrb[0].mxu0
        %v740 = vadd.f32 0.0, %v739
        %v741 = vpop.f32.mrb[0].mxu0
        %742 = vdwg.mxu0
        %743 = vmatprep.subr.bf16.mxu0 0
        %744 = vmatpush1.bf16.msra.mxu0 %v667
        %745 = vmatprep.subr.bf16.mxu0 0
        %746 = vmatpush1.bf16.msra.mxu0 %v668
        %747 = vmatprep.subr.bf16.mxu0 0
        %748 = vmatpush1.bf16.msra.mxu0 0
        %749 = vmatprep.subr.bf16.mxu0 0
        %750 = vmatpush1.bf16.msra.mxu0 0
        %751 = vmatprep.subr.bf16.mxu0 0
        %752 = vmatpush1.bf16.msra.mxu0 0
        %753 = vmatprep.subr.bf16.mxu0 0
        %754 = vmatpush1.bf16.msra.mxu0 0
        %755 = vmatprep.subr.bf16.mxu0 0
        %756 = vmatpush1.bf16.msra.mxu0 0
        %757 = vmatprep.subr.bf16.mxu0 0
        %758 = vmatpush1.bf16.msra.mxu0 0
        %759 = vmatprep.subr.bf16.mxu0 0
        %760 = vmatpush1.bf16.msra.mxu0 0
        %761 = vmatprep.subr.bf16.mxu0 0
        %762 = vmatpush1.bf16.msra.mxu0 0
        %763 = vmatprep.subr.bf16.mxu0 0
        %764 = vmatpush1.bf16.msra.mxu0 0
        %765 = vmatprep.subr.bf16.mxu0 0
        %766 = vmatpush1.bf16.msra.mxu0 0
        %767 = vmatprep.subr.bf16.mxu0 0
        %768 = vmatpush1.bf16.msra.mxu0 0
        %769 = vmatprep.subr.bf16.mxu0 0
        %770 = vmatpush1.bf16.msra.mxu0 0
        %771 = vmatprep.subr.bf16.mxu0 0
        %772 = vmatpush1.bf16.msra.mxu0 0
        %773 = vmatprep.subr.bf16.mxu0 0
        %774 = vmatpush1.bf16.msra.mxu0 0
        %775 = vmatprep.mubr.bf16.mxu0 0
        %776 = vmatmul.mubr.bf16.gmra.mrb[0].mxu0 %v689
        %v777 = vpop.f32.mrb[0].mxu0
        %v778 = vadd.f32 %v729, %v777
        %v779 = vpop.f32.mrb[0].mxu0
        %v780 = vpop.f32.mrb[0].mxu0
        %v781 = vadd.f32 %v732, %v780
        %v782 = vpop.f32.mrb[0].mxu0
        %783 = vmatprep.mubr.bf16.mxu0 0
        %784 = vmatmul.mubr.bf16.gmra.mrb[0].mxu0 %v692
        %v785 = vpop.f32.mrb[0].mxu0
        %v786 = vadd.f32 %v737, %v785
        %v787 = vpop.f32.mrb[0].mxu0
        %v788 = vpop.f32.mrb[0].mxu0
        %v789 = vadd.f32 %v740, %v788
        %v790 = vpop.f32.mrb[0].mxu0
        %791 = vdwg.mxu0
        %v792 = vld [vmem:[%s4] sm:$0xff]
        %v793 = vld [vmem:[%s4 + $0x8] sm:$0xff]
        %v794 = vld [vmem:[%s4 + $0x10] sm:$0xff]
        %v795 = vld [vmem:[%s4 + $0x18] sm:$0xff]
        %797 = vset.pattern.permute.xlu0 0
        %798 = vperm.xlu0 %797, %v792
        %v799 = vpop.permute.xlu0 %798
        %802 = vset.pattern.permute.xlu0 0
        %803 = vperm.xlu0 %802, %v793
        %v804 = vpop.permute.xlu0 %803
        %807 = vset.pattern.permute.xlu0 0
        %808 = vperm.xlu0 %807, %v794
        %v809 = vpop.permute.xlu0 %808
        %812 = vset.pattern.permute.xlu0 0
        %813 = vperm.xlu0 %812, %v795
        %v814 = vpop.permute.xlu0 %813
        %v816 = vmul.f32 %v778, %v799
        %v817 = vmul.f32 %v781, %v804
        %v818 = vmul.f32 %v786, %v809
        %v819 = vmul.f32 %v789, %v814
        %v820 = vld [vmem:[%s470] sm:$0x1]
        %v822 = vlaneseq
        %v823 = vshrl.u32 %v822, 7
        %v824 = vsub.s32 0, %v823
        %v825 = vrot.slane %v820, %v824
        %v827 = vadd.f32 %v816, %v825
        %v828 = vadd.f32 %v817, %v825
        %v829 = vadd.f32 %v818, %v825
        %v830 = vadd.f32 %v819, %v825
        %v831 = vld [vmem:[%s6] sm:$0xff]
        %v832 = vld [vmem:[%s6 + $0x8] sm:$0xff]
        %v833 = vld [vmem:[%s6 + $0x10] sm:$0xff]
        %v834 = vld [vmem:[%s6 + $0x18] sm:$0xff]
        %836 = vset.pattern.permute.xlu0 0
        %837 = vperm.xlu0 %836, %v831
        %v838 = vpop.permute.xlu0 %837
        %841 = vset.pattern.permute.xlu0 0
        %842 = vperm.xlu0 %841, %v832
        %v843 = vpop.permute.xlu0 %842
        %846 = vset.pattern.permute.xlu0 0
        %847 = vperm.xlu0 %846, %v833
        %v848 = vpop.permute.xlu0 %847
        %851 = vset.pattern.permute.xlu0 0
        %852 = vperm.xlu0 %851, %v834
        %v853 = vpop.permute.xlu0 %852
        %v855 = vadd.f32 %v827, %v838
        %v856 = vadd.f32 %v828, %v843
        %v857 = vadd.f32 %v829, %v848
        %v858 = vadd.f32 %v830, %v853
        %vm859 = vcmp.gt.f32.partialorder %v855, 0.0
        %vm860 = vcmp.gt.f32.partialorder %v856, 0.0
        %vm861 = vcmp.gt.f32.partialorder %v857, 0.0
        %vm862 = vcmp.gt.f32.partialorder %v858, 0.0
        %v863 = vmul.f32 %v855, 0.2
        %v864 = vmul.f32 %v856, 0.2
        %v865 = vmul.f32 %v857, 0.2
        %v866 = vmul.f32 %v858, 0.2
        %v867 = vsel %vm859, %v855, %v863
        %v868 = vsel %vm860, %v856, %v864
        %v869 = vsel %vm861, %v857, %v865
        %v870 = vsel %vm862, %v858, %v866
        %v871 = vpack.c.bf16 %v868, %v867
        %v872 = vpack.c.bf16 %v870, %v869
        %v875 = vunpack.c.l.b16 %v871
        %v876 = vunpack.c.h.b16 %v871
        %v877 = vunpack.c.l.b16 %v872
        %v878 = vunpack.c.h.b16 %v872
        %v879 = vpack.c.b16 %v875, %v875
        %v880 = vpack.c.b16 %v876, %v876
        %v881 = vpack.c.b16 %v877, %v877
        %v882 = vpack.c.b16 %v878, %v878
        %vm887 = vcmask 125952
        %888 = vst.msk [vmem:[%s478] sm:$0xf] %vm887, %v879
        %889 = vst.msk [vmem:[%s478 + $0x4] sm:$0xf] %vm887, %v880
        %890 = vst.msk [vmem:[%s478 + $0x8] sm:$0xf] %vm887, %v881
        %891 = vst.msk [vmem:[%s478 + $0xc] sm:$0xf] %vm887, %v882
        %v892 = vld [vmem:[#allocation4] sm:$0xf]
        %v893 = vld [vmem:[#allocation4 + $0x4] sm:$0x3]
        %v894 = vunpack.c.l.bf16 %v892
        %v895 = vunpack.c.l.bf16 %v893
        %v896 = vld [vmem:[%s467] sm:$0x1]
        %v898 = vlaneseq
        %v899 = vshrl.u32 %v898, 7
        %v900 = vsub.s32 0, %v899
        %v901 = vrot.slane %v896, %v900
        %v903 = vmul.f32 %v894, %v901
        %v904 = vmul.f32 %v895, %v901
        %v905 = vpack.c.bf16 %v904, %v903
        %v906 = vld [vmem:[%s8] sm:$0xff]
        %v907 = vld [vmem:[%s8 + $0x8] sm:$0xf]
        %909 = vset.pattern.permute.xlu0 0
        %910 = vperm.xlu0 %909, %v906
        %v911 = vpop.permute.xlu0 %910
        %914 = vset.pattern.permute.xlu0 0
        %915 = vperm.xlu0 %914, %v907
        %v916 = vpop.permute.xlu0 %915
        %v919 = vsel %vm687, %v905, 0
        %921 = vmatprep.subr.bf16.mxu0 0
        %922 = vmatpush1.bf16.msra.mxu0 %v871
        %923 = vmatprep.subr.bf16.mxu0 0
        %924 = vmatpush1.bf16.msra.mxu0 %v872
        %925 = vmatprep.subr.bf16.mxu0 0
        %926 = vmatpush1.bf16.msra.mxu0 0
        %927 = vmatprep.subr.bf16.mxu0 0
        %928 = vmatpush1.bf16.msra.mxu0 0
        %929 = vmatprep.subr.bf16.mxu0 0
        %930 = vmatpush1.bf16.msra.mxu0 0
        %931 = vmatprep.subr.bf16.mxu0 0
        %932 = vmatpush1.bf16.msra.mxu0 0
        %933 = vmatprep.subr.bf16.mxu0 0
        %934 = vmatpush1.bf16.msra.mxu0 0
        %935 = vmatprep.subr.bf16.mxu0 0
        %936 = vmatpush1.bf16.msra.mxu0 0
        %937 = vmatprep.subr.bf16.mxu0 0
        %938 = vmatpush1.bf16.msra.mxu0 0
        %939 = vmatprep.subr.bf16.mxu0 0
        %940 = vmatpush1.bf16.msra.mxu0 0
        %941 = vmatprep.subr.bf16.mxu0 0
        %942 = vmatpush1.bf16.msra.mxu0 0
        %943 = vmatprep.subr.bf16.mxu0 0
        %944 = vmatpush1.bf16.msra.mxu0 0
        %945 = vmatprep.subr.bf16.mxu0 0
        %946 = vmatpush1.bf16.msra.mxu0 0
        %947 = vmatprep.subr.bf16.mxu0 0
        %948 = vmatpush1.bf16.msra.mxu0 0
        %949 = vmatprep.subr.bf16.mxu0 0
        %950 = vmatpush1.bf16.msra.mxu0 0
        %951 = vmatprep.subr.bf16.mxu0 0
        %952 = vmatpush1.bf16.msra.mxu0 0
        %953 = vmatprep.mubr.bf16.mxu0 0
        %954 = vmatmul.mubr.bf16.gmra.mrb[0].mxu0 %v919
        %v955 = vpop.f32.mrb[0].mxu0
        %v956 = vadd.f32 %v911, %v955
        %v957 = vpop.f32.mrb[0].mxu0
        %v958 = vpop.f32.mrb[0].mxu0
        %v959 = vadd.f32 %v916, %v958
        %v960 = vpop.f32.mrb[0].mxu0
        %961 = vdwg.mxu0
        %vm962 = vcmask 130048
        %963 = vst.msk [vmem:[%s486] sm:$0xff] %vm962, %v956
        %964 = vst.msk [vmem:[%s486 + $0x8] sm:$0xf] %vm887, %v959
        %p965 = scmp.lt.s32.totalorder %s28, 1
        %s966 = scalar_select %p965, %s28, 1
        %p967 = scmp.lt.s32.totalorder %s29, 0
        %s968 = scalar_select %p967, %s29, 0
        %s969 = smul.addr %s966, 4
        %s970 = sadd.s32 %s968, %s969
        %s971 = smul.addr %s970, 4
        %s972 = scalar_lea.vmem %s9, %s971
        %p973 = scmp.lt.s32.totalorder %s28, 1
        %s974 = scalar_select %p973, %s28, 1
        %p975 = scmp.lt.s32.totalorder %s29, 0
        %s976 = scalar_select %p975, %s29, 0
        %s977 = smul.addr %s974, 2
        %s978 = sadd.s32 %s976, %s977
        %s979 = smul.addr %s978, 8
        %s980 = scalar_lea.vmem %s10, %s979
        // Predicated region
        $region65: #{mobile_synthesis_forward.10} parent=55 // pred_check
          %p981 = pneg %p267
        $region66: #{mobile_synthesis_forward.10} parent=55 // pred_check_branch
          %983 = sbr.rel (%p981) target = $region68
        $region67: #{mobile_synthesis_forward.10} parent=55 // pred_region
          _
        $region68: #{mobile_synthesis_forward.10} parent=55 // pred_fallthru
          _
        // Predicated region
        $region69: #{mobile_synthesis_forward.10} parent=55 // pred_check
          %p984 = pneg %p295
        $region70: #{mobile_synthesis_forward.10} parent=55 // pred_check_branch
          %986 = sbr.rel (%p984) target = $region72
        $region71: #{mobile_synthesis_forward.10} parent=55 // pred_region
          _
        $region72: #{mobile_synthesis_forward.10} parent=55 // pred_fallthru
          _
      $region56: #{mobile_synthesis_forward.10} parent=5 // pred_fallthru
        _
      %p987 = scmp.le.s32.totalorder 2, %s19
      // Predicated region
      $region73: #{mobile_synthesis_forward.10} parent=5 // pred_check
        %p988 = pneg %p987
      $region74: #{mobile_synthesis_forward.10} parent=5 // pred_check_branch
        %990 = sbr.rel (%p988) target = $region76
      $region75: #{mobile_synthesis_forward.10} parent=5 // pred_region
        %s991 = ssub.s32 %s19, 2
        // Predicated region
        $region77: #{mobile_synthesis_forward.10} parent=75 // pred_check
          %p992 = pneg %p273
        $region78: #{mobile_synthesis_forward.10} parent=75 // pred_check_branch
          %994 = sbr.rel (%p992) target = $region80
        $region79: #{mobile_synthesis_forward.10} parent=75 // pred_region
          %p995 = scmp.lt.s32.totalorder %s30, 1
          %s996 = scalar_select %p995, %s30, 1
          %p997 = scmp.lt.s32.totalorder %s31, 0
          %s998 = scalar_select %p997, %s31, 0
          %s999 = smul.addr %s996, 4
          %s1000 = sadd.s32 %s998, %s999
          %s1001 = smul.addr %s1000, 4
          %s1002 = scalar_lea.vmem %s9, %s1001
        $region80: #{mobile_synthesis_forward.10} parent=75 // pred_fallthru
          _
        // Predicated region
        $region81: #{mobile_synthesis_forward.10} parent=75 // pred_check
          %p1003 = pneg %p301
        $region82: #{mobile_synthesis_forward.10} parent=75 // pred_check_branch
          %1005 = sbr.rel (%p1003) target = $region84
        $region83: #{mobile_synthesis_forward.10} parent=75 // pred_region
          %p1006 = scmp.lt.s32.totalorder %s30, 1
          %s1007 = scalar_select %p1006, %s30, 1
          %p1008 = scmp.lt.s32.totalorder %s31, 0
          %s1009 = scalar_select %p1008, %s31, 0
          %s1010 = smul.addr %s1007, 2
          %s1011 = sadd.s32 %s1009, %s1010
          %s1012 = smul.addr %s1011, 8
          %s1013 = scalar_lea.vmem %s10, %s1012
        $region84: #{mobile_synthesis_forward.10} parent=75 // pred_fallthru
          _
      $region76: #{mobile_synthesis_forward.10} parent=5 // pred_fallthru
        _
    $region6: #{mobile_synthesis_forward.10} parent=1 // loop_footer
      %s23 = sadd.s32 1, %s19
    $region7: #{mobile_synthesis_forward.10} parent=1 // loop_footer_branch
      %18 = sbr.rel target = $region3
    $region8: #{mobile_synthesis_forward.10} parent=1 // loop_exit
      _
    %1014 = vsyncpa [#allocation3], 1
    %s1015 = scalar_lea.sflag [#allocation3], 1
    %1016 = vsyncpa %s1015, 1
    %1017 = vsyncpa [#allocation5], 1

// kernel: mobile_synthesis_forward.11
$region0: #{mobile_synthesis_forward.11}
  #allocation0 [shape = 'u32[]', space=smem, size = 0x4, offset = 0x4, fixed_abs, tag = 'smem constant byte address 0x4 - core index']
  #allocation1 [shape = 'u32[144,128]{1,0:T(1,128)}', space=vmem, size = 0x12000, scoped, tag = 'internal scratch']
  %s0 = inlined_call_operand.vmem [shape: bf16[2,4,8,16], index: 0, kind: input, shape index: {}]
  %s1 = inlined_call_operand.vmem [shape: f32[2,4,8,1], index: 1, kind: input, shape index: {}]
  %s2 = inlined_call_operand.vmem [shape: bf16[2,4,8,16], index: 2, kind: output, shape index: {}]
  %s3 = sld [smem:[#allocation0]]
  $region41: #{mobile_synthesis_forward.11} parent=0
    _
  %s5 = ssub.s32 1, %s3
  %s6 = scalar_select 0, %s5, %s3
  loop: start=0, step=1, limit=4
  $region2: #{mobile_synthesis_forward.11} parent=0 // loop_pre_header
    _
  $region3: #{mobile_synthesis_forward.11} parent=0 // loop_header
    %s8 = sphi 0, %s12
    %p9 = scmp.ge.s32.totalorder %s8, 4
    %s15 = sphi 0, %s27
    %s16 = sphi 0, %s23
    %s17 = sphi 0, %s15
    %s18 = sphi 0, %s16
    %s19 = sphi 0, %s17
    %s20 = sphi 0, %s18
    %s32 = sphi 0, %s34
    %s35 = sphi 0, %s32
    %s36 = sphi 0, %s35
    %s52 = sphi 0, %s36
    %s58 = sphi 0, %s60
    %s61 = sphi 0, %s58
    %s62 = sphi 0, %s61
    %s78 = sphi 0, %s62
    %s86 = sphi 0, %s88
    %s89 = sphi 0, %s86
    %s90 = sphi 0, %s89
    %s106 = sphi 0, %s90
  $region4: #{mobile_synthesis_forward.11} parent=0 // loop_header_branch
    %11 = sbr.rel (%p9) target = $region8
  $region5: #{mobile_synthesis_forward.11} parent=0 // loop_body
    %s13 = ssub.s32 %s8, 1
    %s14 = ssub.s32 %s8, 2
    %s21 = sadd.s32 1, %s16
    %p22 = scmp.ge.s32.totalorder %s21, 1
    %s23 = scalar_select %p22, 0, %s21
    %s24 = sadd.s32 1, %s15
    %s25 = scalar_select %p22, %s24, %s15
    %p26 = scmp.ge.s32.totalorder %s25, 2
    %s27 = scalar_select %p26, 0, %s25
    %s28 = ssub.s32 %s15, %s27
    %s29 = ssub.s32 %s16, %s23
    %s30 = sor.u32 %s28, %s29
    %p31 = scmp.eq.s32.totalorder %s30, 0
    %s33 = sadd.s32 %s32, 1
    %s34 = scalar_select %p31, %s32, %s33
    %p37 = pneg %p31
    %p38 = scmp.eq.s32.totalorder %s8, 1
    %p39 = por %p37, %p38
    %p40 = scmp.ne.s32.totalorder %s32, %s35
    %p41 = scmp.eq.s32.totalorder %s8, 0
    %p42 = por %p40, %p41
    %p43 = scmp.ne.s32.totalorder %s32, %s35
    %p44 = scmp.eq.s32.totalorder %s13, 1
    %p45 = por %p43, %p44
    %p46 = scmp.ne.s32.totalorder %s35, %s36
    %p47 = scmp.eq.s32.totalorder %s13, 0
    %p48 = por %p46, %p47
    %p49 = scmp.ne.s32.totalorder %s35, %s36
    %p50 = scmp.eq.s32.totalorder %s14, 1
    %p51 = por %p49, %p50
    %p53 = scmp.ne.s32.totalorder %s36, %s52
    %p54 = scmp.eq.s32.totalorder %s14, 0
    %p55 = por %p53, %p54
    %s56 = ssub.s32 %s15, %s27
    %p57 = scmp.eq.s32.totalorder %s56, 0
    %s59 = sadd.s32 %s58, 1
    %s60 = scalar_select %p57, %s58, %s59
    %p63 = pneg %p57
    %p64 = scmp.eq.s32.totalorder %s8, 1
    %p65 = por %p63, %p64
    %p66 = scmp.ne.s32.totalorder %s58, %s61
    %p67 = scmp.eq.s32.totalorder %s8, 0
    %p68 = por %p66, %p67
    %p69 = scmp.ne.s32.totalorder %s58, %s61
    %p70 = scmp.eq.s32.totalorder %s13, 1
    %p71 = por %p69, %p70
    %p72 = scmp.ne.s32.totalorder %s61, %s62
    %p73 = scmp.eq.s32.totalorder %s13, 0
    %p74 = por %p72, %p73
    %p75 = scmp.ne.s32.totalorder %s61, %s62
    %p76 = scmp.eq.s32.totalorder %s14, 1
    %p77 = por %p75, %p76
    %p79 = scmp.ne.s32.totalorder %s62, %s78
    %p80 = scmp.eq.s32.totalorder %s14, 0
    %p81 = por %p79, %p80
    %s82 = ssub.s32 %s15, %s27
    %s83 = ssub.s32 %s16, %s23
    %s84 = sor.u32 %s82, %s83
    %p85 = scmp.eq.s32.totalorder %s84, 0
    %s87 = sadd.s32 %s86, 1
    %s88 = scalar_select %p85, %s86, %s87
    %p91 = pneg %p85
    %p92 = scmp.eq.s32.totalorder %s8, 1
    %p93 = por %p91, %p92
    %p94 = scmp.ne.s32.totalorder %s86, %s89
    %p95 = scmp.eq.s32.totalorder %s8, 0
    %p96 = por %p94, %p95
    %p97 = scmp.ne.s32.totalorder %s86, %s89
    %p98 = scmp.eq.s32.totalorder %s13, 1
    %p99 = por %p97, %p98
    %p100 = scmp.ne.s32.totalorder %s89, %s90
    %p101 = scmp.eq.s32.totalorder %s13, 0
    %p102 = por %p100, %p101
    %p103 = scmp.ne.s32.totalorder %s89, %s90
    %p104 = scmp.eq.s32.totalorder %s14, 1
    %p105 = por %p103, %p104
    %p107 = scmp.ne.s32.totalorder %s90, %s106
    %p108 = scmp.eq.s32.totalorder %s14, 0
    %p109 = por %p107, %p108
    %p110 = scmp.le.s32.totalorder 1, %s8
    %p111 = scmp.lt.s32.totalorder %s8, 3
    %p112 = pnand %p110, %p111
    %p113 = pneg %p112
    // Predicated region
    $region9: #{mobile_synthesis_forward.11} parent=5 // pred_check
      _
    $region10: #{mobile_synthesis_forward.11} parent=5 // pred_check_branch
      %115 = sbr.rel (%p112) target = $region12
    $region11: #{mobile_synthesis_forward.11} parent=5 // pred_region
      %s116 = ssub.s32 %s8, 1
    $region12: #{mobile_synthesis_forward.11} parent=5 // pred_fallthru
      _
    %p117 = scmp.lt.s32.totalorder %s8, 2
    // Predicated region
    $region13: #{mobile_synthesis_forward.11} parent=5 // pred_check
      %p118 = pneg %p117
    $region14: #{mobile_synthesis_forward.11} parent=5 // pred_check_branch
      %120 = sbr.rel (%p118) target = $region16
    $region15: #{mobile_synthesis_forward.11} parent=5 // pred_region
      // Predicated region
      $region17: #{mobile_synthesis_forward.11} parent=15 // pred_check
        %p121 = pneg %p42
      $region18: #{mobile_synthesis_forward.11} parent=15 // pred_check_branch
        %123 = sbr.rel (%p121) target = $region20
      $region19: #{mobile_synthesis_forward.11} parent=15 // pred_region
        %p124 = scmp.lt.s32.totalorder %s15, 1
        %s125 = scalar_select %p124, %s15, 1
        %p126 = scmp.lt.s32.totalorder %s16, 0
        %s127 = scalar_select %p126, %s16, 0
        %s128 = smul.addr %s125, 4
        %s129 = sadd.s32 %s127, %s128
        %s130 = smul.addr %s129, 4
        %s131 = scalar_lea.vmem %s0, %s130
      $region20: #{mobile_synthesis_forward.11} parent=15 // pred_fallthru
        _
      // Predicated region
      $region21: #{mobile_synthesis_forward.11} parent=15 // pred_check
        %p132 = pneg %p68
      $region22: #{mobile_synthesis_forward.11} parent=15 // pred_check_branch
        %134 = sbr.rel (%p132) target = $region24
      $region23: #{mobile_synthesis_forward.11} parent=15 // pred_region
        %p135 = scmp.lt.s32.totalorder %s15, 1
        %s136 = scalar_select %p135, %s15, 1
        %s137 = smul.addr %s136, 4
        %s138 = smul.addr %s137, 8
        %s139 = scalar_lea.vmem %s1, %s138
      $region24: #{mobile_synthesis_forward.11} parent=15 // pred_fallthru
        _
    $region16: #{mobile_synthesis_forward.11} parent=5 // pred_fallthru
      _
    %p140 = scmp.le.s32.totalorder 1, %s8
    %p141 = scmp.lt.s32.totalorder %s8, 3
    %p142 = pnand %p140, %p141
    %p143 = pneg %p142
    // Predicated region
    $region25: #{mobile_synthesis_forward.11} parent=5 // pred_check
      _
    $region26: #{mobile_synthesis_forward.11} parent=5 // pred_check_branch
      %145 = sbr.rel (%p142) target = $region28
    $region27: #{mobile_synthesis_forward.11} parent=5 // pred_region
      %s146 = ssub.s32 %s8, 1
      %p147 = scmp.lt.s32.totalorder %s17, 1
      %s148 = scalar_select %p147, %s17, 1
      %p149 = scmp.lt.s32.totalorder %s18, 0
      %s150 = scalar_select %p149, %s18, 0
      %s151 = smul.addr %s148, 4
      %s152 = sadd.s32 %s150, %s151
      %s153 = smul.addr %s152, 4
      %s154 = scalar_lea.vmem %s0, %s153
      %p155 = pneg %p48
      %p156 = pneg %p45
      %p157 = scmp.lt.s32.totalorder %s17, 1
      %s158 = scalar_select %p157, %s17, 1
      %s159 = smul.addr %s158, 4
      %s160 = smul.addr %s159, 8
      %s161 = scalar_lea.vmem %s1, %s160
      %p162 = pneg %p74
      %p163 = pneg %p71
      %p164 = pneg %p102
      %p165 = pneg %p99
      %p166 = scmp.lt.s32.totalorder %s17, 1
      %s167 = scalar_select %p166, %s17, 1
      %p168 = scmp.lt.s32.totalorder %s18, 0
      %s169 = scalar_select %p168, %s18, 0
      %s170 = smul.addr %s167, 4
      %s171 = sadd.s32 %s169, %s170
      %s172 = smul.addr %s171, 4
      %s173 = scalar_lea.vmem %s2, %s172
      %p174 = scmp.lt.s32.totalorder %s17, 1
      %s175 = scalar_select %p174, %s17, 1
      %p176 = scmp.lt.s32.totalorder %s18, 0
      %s177 = scalar_select %p176, %s18, 0
      %s178 = smul.addr %s175, 4
      %s179 = sadd.s32 %s177, %s178
      %s180 = smul.addr %s179, 4
      %s181 = scalar_lea.vmem %s0, %s180
      %p182 = scmp.lt.s32.totalorder %s17, 1
      %s183 = scalar_select %p182, %s17, 1
      %s184 = smul.addr %s183, 4
      %s185 = smul.addr %s184, 8
      %s186 = scalar_lea.vmem %s1, %s185
      %p187 = scmp.lt.s32.totalorder %s17, 1
      %s188 = scalar_select %p187, %s17, 1
      %p189 = scmp.lt.s32.totalorder %s18, 0
      %s190 = scalar_select %p189, %s18, 0
      %s191 = smul.addr %s188, 4
      %s192 = sadd.s32 %s190, %s191
      %s193 = smul.addr %s192, 4
      %s194 = scalar_lea.vmem %s2, %s193
      %v195 = vld [vmem:[%s181] sm:$0xf]
      %v196 = vunpack.c.l.bf16 %v195
      %v197 = vld [vmem:[%s186] sm:$0xff]
      %199 = vset.pattern.permute.xlu0 0
      %200 = vperm.xlu0 %199, %v197
      %v201 = vpop.permute.xlu0 %200
      %v203 = vmul.f32 %v196, %v201
      %s204 = scalar_lea.vmem %s181, 4
      %v205 = vld [vmem:[%s204] sm:$0xf]
      %v206 = vunpack.c.l.bf16 %v205
      %s207 = scalar_lea.vmem %s186, 8
      %v208 = vld [vmem:[%s207] sm:$0xff]
      %210 = vset.pattern.permute.xlu0 0
      %211 = vperm.xlu0 %210, %v208
      %v212 = vpop.permute.xlu0 %211
      %v214 = vmul.f32 %v206, %v212
      %s215 = scalar_lea.vmem %s181, 8
      %v216 = vld [vmem:[%s215] sm:$0xf]
      %v217 = vunpack.c.l.bf16 %v216
      %s218 = scalar_lea.vmem %s186, 16
      %v219 = vld [vmem:[%s218] sm:$0xff]
      %221 = vset.pattern.permute.xlu0 0
      %222 = vperm.xlu0 %221, %v219
      %v223 = vpop.permute.xlu0 %222
      %v225 = vmul.f32 %v217, %v223
      %s226 = scalar_lea.vmem %s181, 12
      %v227 = vld [vmem:[%s226] sm:$0xf]
      %v228 = vunpack.c.l.bf16 %v227
      %s229 = scalar_lea.vmem %s186, 24
      %v230 = vld [vmem:[%s229] sm:$0xff]
      %232 = vset.pattern.permute.xlu0 0
      %233 = vperm.xlu0 %232, %v230
      %v234 = vpop.permute.xlu0 %233
      %v236 = vmul.f32 %v228, %v234
      %v237 = vadd.f32 %v203, %v214
      %v238 = vadd.f32 %v237, %v225
      %v239 = vadd.f32 %v238, %v236
      %v240 = vmul.f32 %v239, 0.5
      %v241 = vpack.c.bf16 %v240, %v240
      %vm242 = vcmask 125952
      %243 = vst.msk [vmem:[%s194] sm:$0xf] %vm242, %v241
      %v244 = vsub.f32 %v237, %v225
      %v245 = vsub.f32 %v244, %v236
      %v246 = vmul.f32 %v245, 0.5
      %v247 = vpack.c.bf16 %v246, %v246
      %s248 = scalar_lea.vmem %s194, 4
      %249 = vst.msk [vmem:[%s248] sm:$0xf] %vm242, %v247
      %v250 = vsub.f32 %v203, %v214
      %v251 = vadd.f32 %v250, %v225
      %v252 = vsub.f32 %v251, %v236
      %v253 = vmul.f32 %v252, 0.5
      %v254 = vpack.c.bf16 %v253, %v253
      %s255 = scalar_lea.vmem %s194, 8
      %256 = vst.msk [vmem:[%s255] sm:$0xf] %vm242, %v254
      %v257 = vsub.f32 %v250, %v225
      %v258 = vadd.f32 %v257, %v236
      %v259 = vmul.f32 %v258, 0.5
      %v260 = vpack.c.bf16 %v259, %v259
      %s261 = scalar_lea.vmem %s194, 12
      %262 = vst.msk [vmem:[%s261] sm:$0xf] %vm242, %v260
      %p263 = scmp.lt.s32.totalorder %s17, 1
      %s264 = scalar_select %p263, %s17, 1
      %p265 = scmp.lt.s32.totalorder %s18, 0
      %s266 = scalar_select %p265, %s18, 0
      %s267 = smul.addr %s264, 4
      %s268 = sadd.s32 %s266, %s267
      %s269 = smul.addr %s268, 4
      %s270 = scalar_lea.vmem %s2, %s269
      // Predicated region
      $region29: #{mobile_synthesis_forward.11} parent=27 // pred_check
        %p271 = pneg %p99
      $region30: #{mobile_synthesis_forward.11} parent=27 // pred_check_branch
        %273 = sbr.rel (%p271) target = $region32
      $region31: #{mobile_synthesis_forward.11} parent=27 // pred_region
        _
      $region32: #{mobile_synthesis_forward.11} parent=27 // pred_fallthru
        _
    $region28: #{mobile_synthesis_forward.11} parent=5 // pred_fallthru
      _
    %p274 = scmp.le.s32.totalorder 2, %s8
    // Predicated region
    $region33: #{mobile_synthesis_forward.11} parent=5 // pred_check
      %p275 = pneg %p274
    $region34: #{mobile_synthesis_forward.11} parent=5 // pred_check_branch
      %277 = sbr.rel (%p275) target = $region36
    $region35: #{mobile_synthesis_forward.11} parent=5 // pred_region
      %s278 = ssub.s32 %s8, 2
      // Predicated region
      $region37: #{mobile_synthesis_forward.11} parent=35 // pred_check
        %p279 = pneg %p105
      $region38: #{mobile_synthesis_forward.11} parent=35 // pred_check_branch
        %281 = sbr.rel (%p279) target = $region40
      $region39: #{mobile_synthesis_forward.11} parent=35 // pred_region
        %p282 = scmp.lt.s32.totalorder %s19, 1
        %s283 = scalar_select %p282, %s19, 1
        %p284 = scmp.lt.s32.totalorder %s20, 0
        %s285 = scalar_select %p284, %s20, 0
        %s286 = smul.addr %s283, 4
        %s287 = sadd.s32 %s285, %s286
        %s288 = smul.addr %s287, 4
        %s289 = scalar_lea.vmem %s2, %s288
      $region40: #{mobile_synthesis_forward.11} parent=35 // pred_fallthru
        _
    $region36: #{mobile_synthesis_forward.11} parent=5 // pred_fallthru
      _
  $region6: #{mobile_synthesis_forward.11} parent=0 // loop_footer
    %s12 = sadd.s32 1, %s8
  $region7: #{mobile_synthesis_forward.11} parent=0 // loop_footer_branch
    %7 = sbr.rel target = $region3
  $region8: #{mobile_synthesis_forward.11} parent=0 // loop_exit
    _

// kernel: mobile_synthesis_forward.12
$region0: #{mobile_synthesis_forward.12}
  #allocation0 [shape = 'u32[]', space=smem, size = 0x4, offset = 0x4, fixed_abs, tag = 'smem constant byte address 0x4 - core index']
  #allocation1 [shape = 'u32[144,128]{1,0:T(1,128)}', space=vmem, size = 0x12000, scoped, tag = 'internal scratch']
  %s0 = inlined_call_operand.vmem [shape: bf16[2,8,102], index: 0, kind: input, shape index: {}]
  %s1 = inlined_call_operand.vmem [shape: f32[2,8,1], index: 1, kind: input, shape index: {}]
  %s2 = inlined_call_operand.vmem [shape: bf16[8,9], index: 2, kind: input, shape index: {}]
  %s3 = inlined_call_operand.vmem [shape: bf16[16,8], index: 3, kind: input, shape index: {}]
  %s4 = inlined_call_operand.vmem [shape: f32[16,1], index: 4, kind: input, shape index: {}]
  %s5 = inlined_call_operand.vmem [shape: f32[1,80], index: 5, kind: input, shape index: {}]
  %s6 = inlined_call_operand.vmem [shape: f32[16,1], index: 6, kind: input, shape index: {}]
  %s7 = inlined_call_operand.vmem [shape: bf16[2,16,80], index: 7, kind: output, shape index: {}]
  %s8 = sld [smem:[#allocation0]]
  $region61: #{mobile_synthesis_forward.12} parent=0
    _
  %s10 = ssub.s32 1, %s8
  %s11 = scalar_select 0, %s10, %s8
  loop: start=0, step=1, limit=4
  $region2: #{mobile_synthesis_forward.12} parent=0 // loop_pre_header
    _
  $region3: #{mobile_synthesis_forward.12} parent=0 // loop_header
    %s13 = sphi 0, %s17
    %p14 = scmp.ge.s32.totalorder %s13, 4
    %s23 = sphi 0, %s25
    %s26 = sphi 0, %s23
    %s27 = sphi 0, %s26
    %s43 = sphi 0, %s27
    %s49 = sphi 0, %s51
    %s52 = sphi 0, %s49
    %s53 = sphi 0, %s52
    %s69 = sphi 0, %s53
    %s73 = sphi 0, %s73
    %s75 = sphi 0, %s73
    %s76 = sphi 0, %s75
    %s90 = sphi 0, %s76
    %s94 = sphi 0, %s94
    %s96 = sphi 0, %s94
    %s97 = sphi 0, %s96
    %s111 = sphi 0, %s97
    %s115 = sphi 0, %s115
    %s117 = sphi 0, %s115
    %s118 = sphi 0, %s117
    %s132 = sphi 0, %s118
    %s136 = sphi 0, %s136
    %s138 = sphi 0, %s136
    %s139 = sphi 0, %s138
    %s153 = sphi 0, %s139
    %s157 = sphi 0, %s157
    %s159 = sphi 0, %s157
    %s160 = sphi 0, %s159
    %s174 = sphi 0, %s160
    %s180 = sphi 0, %s182
    %s183 = sphi 0, %s180
    %s184 = sphi 0, %s183
    %s200 = sphi 0, %s184
  $region4: #{mobile_synthesis_forward.12} parent=0 // loop_header_branch
    %16 = sbr.rel (%p14) target = $region8
  $region5: #{mobile_synthesis_forward.12} parent=0 // loop_body
    %s18 = ssub.s32 %s13, 1
    %s19 = ssub.s32 %s13, 2
    %s20 = sadd.s32 %s13, 1
    %s21 = ssub.s32 %s13, %s20
    %p22 = scmp.eq.s32.totalorder %s21, 0
    %s24 = sadd.s32 %s23, 1
    %s25 = scalar_select %p22, %s23, %s24
    %p28 = pneg %p22
    %p29 = scmp.eq.s32.totalorder %s13, 1
    %p30 = por %p28, %p29
    %p31 = scmp.ne.s32.totalorder %s23, %s26
    %p32 = scmp.eq.s32.totalorder %s13, 0
    %p33 = por %p31, %p32
    %p34 = scmp.ne.s32.totalorder %s23, %s26
    %p35 = scmp.eq.s32.totalorder %s18, 1
    %p36 = por %p34, %p35
    %p37 = scmp.ne.s32.totalorder %s26, %s27
    %p38 = scmp.eq.s32.totalorder %s18, 0
    %p39 = por %p37, %p38
    %p40 = scmp.ne.s32.totalorder %s26, %s27
    %p41 = scmp.eq.s32.totalorder %s19, 1
    %p42 = por %p40, %p41
    %p44 = scmp.ne.s32.totalorder %s27, %s43
    %p45 = scmp.eq.s32.totalorder %s19, 0
    %p46 = por %p44, %p45
    %s47 = ssub.s32 %s13, %s20
    %p48 = scmp.eq.s32.totalorder %s47, 0
    %s50 = sadd.s32 %s49, 1
    %s51 = scalar_select %p48, %s49, %s50
    %p54 = pneg %p48
    %p55 = scmp.eq.s32.totalorder %s13, 1
    %p56 = por %p54, %p55
    %p57 = scmp.ne.s32.totalorder %s49, %s52
    %p58 = scmp.eq.s32.totalorder %s13, 0
    %p59 = por %p57, %p58
    %p60 = scmp.ne.s32.totalorder %s49, %s52
    %p61 = scmp.eq.s32.totalorder %s18, 1
    %p62 = por %p60, %p61
    %p63 = scmp.ne.s32.totalorder %s52, %s53
    %p64 = scmp.eq.s32.totalorder %s18, 0
    %p65 = por %p63, %p64
    %p66 = scmp.ne.s32.totalorder %s52, %s53
    %p67 = scmp.eq.s32.totalorder %s19, 1
    %p68 = por %p66, %p67
    %p70 = scmp.ne.s32.totalorder %s53, %s69
    %p71 = scmp.eq.s32.totalorder %s19, 0
    %p72 = por %p70, %p71
    %s74 = sadd.s32 %s73, 1
    %p77 = scmp.eq.s32.totalorder %s13, 1
    %p78 = scmp.ne.s32.totalorder %s73, %s75
    %p79 = scmp.eq.s32.totalorder %s13, 0
    %p80 = por %p78, %p79
    %p81 = scmp.ne.s32.totalorder %s73, %s75
    %p82 = scmp.eq.s32.totalorder %s18, 1
    %p83 = por %p81, %p82
    %p84 = scmp.ne.s32.totalorder %s75, %s76
    %p85 = scmp.eq.s32.totalorder %s18, 0
    %p86 = por %p84, %p85
    %p87 = scmp.ne.s32.totalorder %s75, %s76
    %p88 = scmp.eq.s32.totalorder %s19, 1
    %p89 = por %p87, %p88
    %p91 = scmp.ne.s32.totalorder %s76, %s90
    %p92 = scmp.eq.s32.totalorder %s19, 0
    %p93 = por %p91, %p92
    %s95 = sadd.s32 %s94, 1
    %p98 = scmp.eq.s32.totalorder %s13, 1
    %p99 = scmp.ne.s32.totalorder %s94, %s96
    %p100 = scmp.eq.s32.totalorder %s13, 0
    %p101 = por %p99, %p100
    %p102 = scmp.ne.s32.totalorder %s94, %s96
    %p103 = scmp.eq.s32.totalorder %s18, 1
    %p104 = por %p102, %p103
    %p105 = scmp.ne.s32.totalorder %s96, %s97
    %p106 = scmp.eq.s32.totalorder %s18, 0
    %p107 = por %p105, %p106
    %p108 = scmp.ne.s32.totalorder %s96, %s97
    %p109 = scmp.eq.s32.totalorder %s19, 1
    %p110 = por %p108, %p109
    %p112 = scmp.ne.s32.totalorder %s97, %s111
    %p113 = scmp.eq.s32.totalorder %s19, 0
    %p114 = por %p112, %p113
    %s116 = sadd.s32 %s115, 1
    %p119 = scmp.eq.s32.totalorder %s13, 1
    %p120 = scmp.ne.s32.totalorder %s115, %s117
    %p121 = scmp.eq.s32.totalorder %s13, 0
    %p122 = por %p120, %p121
    %p123 = scmp.ne.s32.totalorder %s115, %s117
    %p124 = scmp.eq.s32.totalorder %s18, 1
    %p125 = por %p123, %p124
    %p126 = scmp.ne.s32.totalorder %s117, %s118
    %p127 = scmp.eq.s32.totalorder %s18, 0
    %p128 = por %p126, %p127
    %p129 = scmp.ne.s32.totalorder %s117, %s118
    %p130 = scmp.eq.s32.totalorder %s19, 1
    %p131 = por %p129, %p130
    %p133 = scmp.ne.s32.totalorder %s118, %s132
    %p134 = scmp.eq.s32.totalorder %s19, 0
    %p135 = por %p133, %p134
    %s137 = sadd.s32 %s136, 1
    %p140 = scmp.eq.s32.totalorder %s13, 1
    %p141 = scmp.ne.s32.totalorder %s136, %s138
    %p142 = scmp.eq.s32.totalorder %s13, 0
    %p143 = por %p141, %p142
    %p144 = scmp.ne.s32.totalorder %s136, %s138
    %p145 = scmp.eq.s32.totalorder %s18, 1
    %p146 = por %p144, %p145
    %p147 = scmp.ne.s32.totalorder %s138, %s139
    %p148 = scmp.eq.s32.totalorder %s18, 0
    %p149 = por %p147, %p148
    %p150 = scmp.ne.s32.totalorder %s138, %s139
    %p151 = scmp.eq.s32.totalorder %s19, 1
    %p152 = por %p150, %p151
    %p154 = scmp.ne.s32.totalorder %s139, %s153
    %p155 = scmp.eq.s32.totalorder %s19, 0
    %p156 = por %p154, %p155
    %s158 = sadd.s32 %s157, 1
    %p161 = scmp.eq.s32.totalorder %s13, 1
    %p162 = scmp.ne.s32.totalorder %s157, %s159
    %p163 = scmp.eq.s32.totalorder %s13, 0
    %p164 = por %p162, %p163
    %p165 = scmp.ne.s32.totalorder %s157, %s159
    %p166 = scmp.eq.s32.totalorder %s18, 1
    %p167 = por %p165, %p166
    %p168 = scmp.ne.s32.totalorder %s159, %s160
    %p169 = scmp.eq.s32.totalorder %s18, 0
    %p170 = por %p168, %p169
    %p171 = scmp.ne.s32.totalorder %s159, %s160
    %p172 = scmp.eq.s32.totalorder %s19, 1
    %p173 = por %p171, %p172
    %p175 = scmp.ne.s32.totalorder %s160, %s174
    %p176 = scmp.eq.s32.totalorder %s19, 0
    %p177 = por %p175, %p176
    %s178 = ssub.s32 %s13, %s20
    %p179 = scmp.eq.s32.totalorder %s178, 0
    %s181 = sadd.s32 %s180, 1
    %s182 = scalar_select %p179, %s180, %s181
    %p185 = pneg %p179
    %p186 = scmp.eq.s32.totalorder %s13, 1
    %p187 = por %p185, %p186
    %p188 = scmp.ne.s32.totalorder %s180, %s183
    %p189 = scmp.eq.s32.totalorder %s13, 0
    %p190 = por %p188, %p189
    %p191 = scmp.ne.s32.totalorder %s180, %s183
    %p192 = scmp.eq.s32.totalorder %s18, 1
    %p193 = por %p191, %p192
    %p194 = scmp.ne.s32.totalorder %s183, %s184
    %p195 = scmp.eq.s32.totalorder %s18, 0
    %p196 = por %p194, %p195
    %p197 = scmp.ne.s32.totalorder %s183, %s184
    %p198 = scmp.eq.s32.totalorder %s19, 1
    %p199 = por %p197, %p198
    %p201 = scmp.ne.s32.totalorder %s184, %s200
    %p202 = scmp.eq.s32.totalorder %s19, 0
    %p203 = por %p201, %p202
    %p204 = scmp.le.s32.totalorder 1, %s13
    %p205 = scmp.lt.s32.totalorder %s13, 3
    %p206 = pnand %p204, %p205
    %p207 = pneg %p206
    // Predicated region
    $region9: #{mobile_synthesis_forward.12} parent=5 // pred_check
      _
    $region10: #{mobile_synthesis_forward.12} parent=5 // pred_check_branch
      %209 = sbr.rel (%p206) target = $region12
    $region11: #{mobile_synthesis_forward.12} parent=5 // pred_region
      %s210 = ssub.s32 %s13, 1
      // Predicated region
      $region13: #{mobile_synthesis_forward.12} parent=11 // pred_check
        %p211 = pneg %p86
      $region14: #{mobile_synthesis_forward.12} parent=11 // pred_check_branch
        %213 = sbr.rel (%p211) target = $region16
      $region15: #{mobile_synthesis_forward.12} parent=11 // pred_region
        _
      $region16: #{mobile_synthesis_forward.12} parent=11 // pred_fallthru
        _
      // Predicated region
      $region17: #{mobile_synthesis_forward.12} parent=11 // pred_check
        %p214 = pneg %p107
      $region18: #{mobile_synthesis_forward.12} parent=11 // pred_check_branch
        %216 = sbr.rel (%p214) target = $region20
      $region19: #{mobile_synthesis_forward.12} parent=11 // pred_region
        _
      $region20: #{mobile_synthesis_forward.12} parent=11 // pred_fallthru
        _
      // Predicated region
      $region21: #{mobile_synthesis_forward.12} parent=11 // pred_check
        %p217 = pneg %p128
      $region22: #{mobile_synthesis_forward.12} parent=11 // pred_check_branch
        %219 = sbr.rel (%p217) target = $region24
      $region23: #{mobile_synthesis_forward.12} parent=11 // pred_region
        _
      $region24: #{mobile_synthesis_forward.12} parent=11 // pred_fallthru
        _
      // Predicated region
      $region25: #{mobile_synthesis_forward.12} parent=11 // pred_check
        %p220 = pneg %p149
      $region26: #{mobile_synthesis_forward.12} parent=11 // pred_check_branch
        %222 = sbr.rel (%p220) target = $region28
      $region27: #{mobile_synthesis_forward.12} parent=11 // pred_region
        _
      $region28: #{mobile_synthesis_forward.12} parent=11 // pred_fallthru
        _
      // Predicated region
      $region29: #{mobile_synthesis_forward.12} parent=11 // pred_check
        %p223 = pneg %p170
      $region30: #{mobile_synthesis_forward.12} parent=11 // pred_check_branch
        %225 = sbr.rel (%p223) target = $region32
      $region31: #{mobile_synthesis_forward.12} parent=11 // pred_region
        _
      $region32: #{mobile_synthesis_forward.12} parent=11 // pred_fallthru
        _
    $region12: #{mobile_synthesis_forward.12} parent=5 // pred_fallthru
      _
    %p226 = scmp.lt.s32.totalorder %s13, 2
    // Predicated region
    $region33: #{mobile_synthesis_forward.12} parent=5 // pred_check
      %p227 = pneg %p226
    $region34: #{mobile_synthesis_forward.12} parent=5 // pred_check_branch
      %229 = sbr.rel (%p227) target = $region36
    $region35: #{mobile_synthesis_forward.12} parent=5 // pred_region
      // Predicated region
      $region37: #{mobile_synthesis_forward.12} parent=35 // pred_check
        %p230 = pneg %p33
      $region38: #{mobile_synthesis_forward.12} parent=35 // pred_check_branch
        %232 = sbr.rel (%p230) target = $region40
      $region39: #{mobile_synthesis_forward.12} parent=35 // pred_region
        %p233 = scmp.lt.s32.totalorder %s13, 1
        %s234 = scalar_select %p233, %s13, 1
        %s235 = smul.addr %s234, 4
        %s236 = scalar_lea.vmem %s0, %s235
      $region40: #{mobile_synthesis_forward.12} parent=35 // pred_fallthru
        _
      // Predicated region
      $region41: #{mobile_synthesis_forward.12} parent=35 // pred_check
        %p237 = pneg %p59
      $region42: #{mobile_synthesis_forward.12} parent=35 // pred_check_branch
        %239 = sbr.rel (%p237) target = $region44
      $region43: #{mobile_synthesis_forward.12} parent=35 // pred_region
        %p240 = scmp.lt.s32.totalorder %s13, 1
        %s241 = scalar_select %p240, %s13, 1
        %s242 = smul.addr %s241, 8
        %s243 = scalar_lea.vmem %s1, %s242
      $region44: #{mobile_synthesis_forward.12} parent=35 // pred_fallthru
        _
    $region36: #{mobile_synthesis_forward.12} parent=5 // pred_fallthru
      _
    %p244 = scmp.le.s32.totalorder 1, %s13
    %p245 = scmp.lt.s32.totalorder %s13, 3
    %p246 = pnand %p244, %p245
    %p247 = pneg %p246
    // Predicated region
    $region45: #{mobile_synthesis_forward.12} parent=5 // pred_check
      _
    $region46: #{mobile_synthesis_forward.12} parent=5 // pred_check_branch
      %249 = sbr.rel (%p246) target = $region48
    $region47: #{mobile_synthesis_forward.12} parent=5 // pred_region
      %s250 = ssub.s32 %s13, 1
      %p251 = scmp.lt.s32.totalorder %s18, 1
      %s252 = scalar_select %p251, %s18, 1
      %s253 = smul.addr %s252, 4
      %s254 = scalar_lea.vmem %s0, %s253
      %p255 = pneg %p39
      %p256 = pneg %p36
      %p257 = scmp.lt.s32.totalorder %s18, 1
      %s258 = scalar_select %p257, %s18, 1
      %s259 = smul.addr %s258, 8
      %s260 = scalar_lea.vmem %s1, %s259
      %p261 = pneg %p65
      %p262 = pneg %p62
      %p263 = pneg %p86
      %p264 = pneg %p83
      %p265 = pneg %p107
      %p266 = pneg %p104
      %p267 = pneg %p128
      %p268 = pneg %p125
      %p269 = pneg %p149
      %p270 = pneg %p146
      %p271 = pneg %p170
      %p272 = pneg %p167
      %p273 = pneg %p196
      %p274 = pneg %p193
      %p275 = scmp.lt.s32.totalorder %s18, 1
      %s276 = scalar_select %p275, %s18, 1
      %s277 = smul.addr %s276, 2
      %s278 = smul.addr %s277, 4
      %s279 = scalar_lea.vmem %s7, %s278
      %p280 = scmp.lt.s32.totalorder %s18, 1
      %s281 = scalar_select %p280, %s18, 1
      %s282 = smul.addr %s281, 4
      %s283 = scalar_lea.vmem %s0, %s282
      %p284 = scmp.lt.s32.totalorder %s18, 1
      %s285 = scalar_select %p284, %s18, 1
      %s286 = smul.addr %s285, 8
      %s287 = scalar_lea.vmem %s1, %s286
      %p288 = scmp.lt.s32.totalorder %s18, 1
      %s289 = scalar_select %p288, %s18, 1
      %s290 = smul.addr %s289, 2
      %s291 = smul.addr %s290, 4
      %s292 = scalar_lea.vmem %s7, %s291
      %v294 = vld [vmem:[%s2] sm:$0xf]
      %v295 = vunpack.c.l.bf16 %v294
      %v296 = vld [vmem:[%s287] sm:$0xff]
      %298 = vset.pattern.permute.xlu0 0
      %299 = vperm.xlu0 %298, %v296
      %v300 = vpop.permute.xlu0 %299
      %v302 = vmul.f32 %v295, %v300
      %v303 = vld [vmem:[%s283] sm:$0xf]
      %v304 = vunpack.c.l.bf16 %v303
      %306 = vset.pattern.permute.xlu0 0
      %307 = vperm.xlu0 %306, %v302
      %v308 = vpop.permute.xlu0 %307
      %v310 = vmul.f32 %v304, %v308
      %311 = vset.pattern.permute.xlu0 1
      %312 = vperm.xlu0 %311, %v302
      %v313 = vpop.permute.xlu0 %312
      %v315 = vmul.f32 %v304, %v313
      %317 = vrot.lane.b32.xlu0 %v315, 127
      %v318 = vpop.permute.xlu0 %317
      %v320 = vadd.f32 %v310, %v318
      %321 = vset.pattern.permute.xlu0 2
      %322 = vperm.xlu0 %321, %v302
      %v323 = vpop.permute.xlu0 %322
      %v325 = vmul.f32 %v304, %v323
      %327 = vrot.lane.b32.xlu0 %v325, 126
      %v328 = vpop.permute.xlu0 %327
      %v330 = vadd.f32 %v320, %v328
      %331 = vset.pattern.permute.xlu0 3
      %332 = vperm.xlu0 %331, %v302
      %v333 = vpop.permute.xlu0 %332
      %v335 = vmul.f32 %v304, %v333
      %337 = vrot.lane.b32.xlu0 %v335, 118
      %v338 = vpop.permute.xlu0 %337
      %v340 = vadd.f32 %v330, %v338
      %341 = vset.pattern.permute.xlu0 4
      %342 = vperm.xlu0 %341, %v302
      %v343 = vpop.permute.xlu0 %342
      %v345 = vmul.f32 %v304, %v343
      %347 = vrot.lane.b32.xlu0 %v345, 117
      %v348 = vpop.permute.xlu0 %347
      %v350 = vadd.f32 %v340, %v348
      %351 = vset.pattern.permute.xlu0 5
      %352 = vperm.xlu0 %351, %v302
      %v353 = vpop.permute.xlu0 %352
      %v355 = vmul.f32 %v304, %v353
      %357 = vrot.lane.b32.xlu0 %v355, 116
      %v358 = vpop.permute.xlu0 %357
      %v360 = vadd.f32 %v350, %v358
      %361 = vset.pattern.permute.xlu0 6
      %362 = vperm.xlu0 %361, %v302
      %v363 = vpop.permute.xlu0 %362
      %v365 = vmul.f32 %v304, %v363
      %367 = vrot.lane.b32.xlu0 %v365, 108
      %v368 = vpop.permute.xlu0 %367
      %v370 = vadd.f32 %v360, %v368
      %371 = vset.pattern.permute.xlu0 7
      %372 = vperm.xlu0 %371, %v302
      %v373 = vpop.permute.xlu0 %372
      %v375 = vmul.f32 %v304, %v373
      %377 = vrot.lane.b32.xlu0 %v375, 107
      %v378 = vpop.permute.xlu0 %377
      %v380 = vadd.f32 %v370, %v378
      %381 = vset.pattern.permute.xlu0 8
      %382 = vperm.xlu0 %381, %v302
      %v383 = vpop.permute.xlu0 %382
      %v385 = vmul.f32 %v304, %v383
      %387 = vrot.lane.b32.xlu0 %v385, 106
      %v388 = vpop.permute.xlu0 %387
      %v390 = vadd.f32 %v380, %v388
      %v391 = vld [vmem:[%s3] sm:$0xf]
      %v392 = vld [vmem:[%s3 + $0x4] sm:$0xf]
      %v393 = vpack.c.bf16 %v390, %v390
      %v396 = vunpack.c.l.b16 %v391
      %v397 = vunpack.c.l.b16 %v392
      %v398 = vpack.c.b16 %v397, %v396
      %vm399 = vcmask 64512
      %v401 = vsel %vm399, %v398, 0
      %vm403 = vcmask 1043456
      %v405 = vsel %vm403, %v393, 0
      %407 = vmatprep.subr.bf16.mxu0 0
      %408 = vmatpush1.bf16.msra.mxu0 %v405
      %409 = vmatprep.subr.bf16.mxu0 0
      %410 = vmatpush1.bf16.msra.mxu0 0
      %411 = vmatprep.subr.bf16.mxu0 0
      %412 = vmatpush1.bf16.msra.mxu0 0
      %413 = vmatprep.subr.bf16.mxu0 0
      %414 = vmatpush1.bf16.msra.mxu0 0
      %415 = vmatprep.subr.bf16.mxu0 0
      %416 = vmatpush1.bf16.msra.mxu0 0
      %417 = vmatprep.subr.bf16.mxu0 0
      %418 = vmatpush1.bf16.msra.mxu0 0
      %419 = vmatprep.subr.bf16.mxu0 0
      %420 = vmatpush1.bf16.msra.mxu0 0
      %421 = vmatprep.subr.bf16.mxu0 0
      %422 = vmatpush1.bf16.msra.mxu0 0
      %423 = vmatprep.subr.bf16.mxu0 0
      %424 = vmatpush1.bf16.msra.mxu0 0
      %425 = vmatprep.subr.bf16.mxu0 0
      %426 = vmatpush1.bf16.msra.mxu0 0
      %427 = vmatprep.subr.bf16.mxu0 0
      %428 = vmatpush1.bf16.msra.mxu0 0
      %429 = vmatprep.subr.bf16.mxu0 0
      %430 = vmatpush1.bf16.msra.mxu0 0
      %431 = vmatprep.subr.bf16.mxu0 0
      %432 = vmatpush1.bf16.msra.mxu0 0
      %433 = vmatprep.subr.bf16.mxu0 0
      %434 = vmatpush1.bf16.msra.mxu0 0
      %435 = vmatprep.subr.bf16.mxu0 0
      %436 = vmatpush1.bf16.msra.mxu0 0
      %437 = vmatprep.subr.bf16.mxu0 0
      %438 = vmatpush1.bf16.msra.mxu0 0
      %439 = vmatprep.mubr.bf16.mxu0 0
      %440 = vmatmul.mubr.bf16.gmra.mrb[0].mxu0 %v401
      %v441 = vpop.f32.mrb[0].mxu0
      %v442 = vadd.f32 0.0, %v441
      %v443 = vpop.f32.mrb[0].mxu0
      %v444 = vpop.f32.mrb[0].mxu0
      %v445 = vadd.f32 0.0, %v444
      %v446 = vpop.f32.mrb[0].mxu0
      %447 = vdwg.mxu0
      %v448 = vld [vmem:[%s4] sm:$0xff]
      %v449 = vld [vmem:[%s4 + $0x8] sm:$0xff]
      %451 = vset.pattern.permute.xlu0 0
      %452 = vperm.xlu0 %451, %v448
      %v453 = vpop.permute.xlu0 %452
      %456 = vset.pattern.permute.xlu0 0
      %457 = vperm.xlu0 %456, %v449
      %v458 = vpop.permute.xlu0 %457
      %v460 = vmul.f32 %v442, %v453
      %v461 = vmul.f32 %v445, %v458
      %v462 = vld [vmem:[%s5] sm:$0x1]
      %v464 = vlaneseq
      %v465 = vshrl.u32 %v464, 7
      %v466 = vsub.s32 0, %v465
      %v467 = vrot.slane %v462, %v466
      %v469 = vadd.f32 %v460, %v467
      %v470 = vadd.f32 %v461, %v467
      %v471 = vld [vmem:[%s6] sm:$0xff]
      %v472 = vld [vmem:[%s6 + $0x8] sm:$0xff]
      %474 = vset.pattern.permute.xlu0 0
      %475 = vperm.xlu0 %474, %v471
      %v476 = vpop.permute.xlu0 %475
      %479 = vset.pattern.permute.xlu0 0
      %480 = vperm.xlu0 %479, %v472
      %v481 = vpop.permute.xlu0 %480
      %v483 = vadd.f32 %v469, %v476
      %v484 = vadd.f32 %v470, %v481
      %vm485 = vcmp.gt.f32.partialorder %v483, 0.0
      %vm486 = vcmp.gt.f32.partialorder %v484, 0.0
      %v487 = vmul.f32 %v483, 0.2
      %v488 = vmul.f32 %v484, 0.2
      %v489 = vsel %vm485, %v483, %v487
      %v490 = vsel %vm486, %v484, %v488
      %v491 = vpack.c.bf16 %v490, %v489
      %v493 = vunpack.c.l.b16 %v491
      %v494 = vunpack.c.h.b16 %v491
      %v495 = vpack.c.b16 %v493, %v493
      %v496 = vpack.c.b16 %v494, %v494
      %vm499 = vcmask 650240
      %500 = vst.msk [vmem:[%s292] sm:$0xf] %vm499, %v495
      %501 = vst.msk [vmem:[%s292 + $0x4] sm:$0xf] %vm499, %v496
      %p502 = scmp.lt.s32.totalorder %s18, 1
      %s503 = scalar_select %p502, %s18, 1
      %s504 = smul.addr %s503, 2
      %s505 = smul.addr %s504, 4
      %s506 = scalar_lea.vmem %s7, %s505
      // Predicated region
      $region49: #{mobile_synthesis_forward.12} parent=47 // pred_check
        %p507 = pneg %p193
      $region50: #{mobile_synthesis_forward.12} parent=47 // pred_check_branch
        %509 = sbr.rel (%p507) target = $region52
      $region51: #{mobile_synthesis_forward.12} parent=47 // pred_region
        _
      $region52: #{mobile_synthesis_forward.12} parent=47 // pred_fallthru
        _
    $region48: #{mobile_synthesis_forward.12} parent=5 // pred_fallthru
      _
    %p510 = scmp.le.s32.totalorder 2, %s13
    // Predicated region
    $region53: #{mobile_synthesis_forward.12} parent=5 // pred_check
      %p511 = pneg %p510
    $region54: #{mobile_synthesis_forward.12} parent=5 // pred_check_branch
      %513 = sbr.rel (%p511) target = $region56
    $region55: #{mobile_synthesis_forward.12} parent=5 // pred_region
      %s514 = ssub.s32 %s13, 2
      // Predicated region
      $region57: #{mobile_synthesis_forward.12} parent=55 // pred_check
        %p515 = pneg %p199
      $region58: #{mobile_synthesis_forward.12} parent=55 // pred_check_branch
        %517 = sbr.rel (%p515) target = $region60
      $region59: #{mobile_synthesis_forward.12} parent=55 // pred_region
        %p518 = scmp.lt.s32.totalorder %s19, 1
        %s519 = scalar_select %p518, %s19, 1
        %s520 = smul.addr %s519, 2
        %s521 = smul.addr %s520, 4
        %s522 = scalar_lea.vmem %s7, %s521
      $region60: #{mobile_synthesis_forward.12} parent=55 // pred_fallthru
        _
    $region56: #{mobile_synthesis_forward.12} parent=5 // pred_fallthru
      _
  $region6: #{mobile_synthesis_forward.12} parent=0 // loop_footer
    %s17 = sadd.s32 1, %s13
  $region7: #{mobile_synthesis_forward.12} parent=0 // loop_footer_branch
    %12 = sbr.rel target = $region3
  $region8: #{mobile_synthesis_forward.12} parent=0 // loop_exit
    _

// kernel: squeeze.46
$region0: #{squeeze.46}
  %s0 = inlined_call_operand.vmem [shape: bf16[2,1,4,64], index: 0, kind: input, shape index: {}]
  %s1 = inlined_call_operand.vmem [shape: bf16[2,4,8,8,1], index: 1, kind: output, shape index: {}]
  $region1: #{squeeze.46} parent=0
    #allocation0 [shape = 'u8[32768]{0}', space=vmem, size = 0x8000, scoped, tag = 'scoped mem for output reshape']
    #allocation1 [shape = 'u8[8192]{0}', space=vmem, size = 0x2000, scoped, tag = 'scoped mem for input reshape']
    %s3 = smul.u32 2, 2
    %s4 = sshllo.u32 0, %s3
    %s5 = scalar_lea.vmem %s0, 2
    %s6 = sshrl.u32 %s4, 1
    %s7 = sor.u32 %s4, %s6
    %s8 = sand.u32 %s7, 85
    %s9 = sshrl.u32 %s8, 1
    %s10 = sor.u32 %s8, %s9
    %s11 = sand.u32 51, %s10
    %s12 = sshrl.u32 %s11, 2
    %s13 = sor.u32 %s11, %s12
    %s14 = sand.u32 15, %s13
    %v15 = vld [vmem:[%s5] sm:%s14]
    %v16 = vunpack.c.l.bf16 %v15
    %v17 = vunpack.c.h.bf16 %v15
    %s18 = scalar_lea.vmem [#allocation1], 8
    %19 = vst [vmem:[%s18] sm:%s4] %v16
    %s20 = sshrl.u32 %s4, 1
    %s21 = sor.u32 %s4, %s20
    %s22 = sand.u32 %s21, 85
    %s23 = sshrl.u32 %s22, 1
    %s24 = sor.u32 %s22, %s23
    %s25 = sand.u32 51, %s24
    %s26 = sshrl.u32 %s25, 2
    %s27 = sor.u32 %s25, %s26
    %s28 = sand.u32 15, %s27
    %v29 = vld [vmem:[%s0] sm:%s28]
    %v30 = vunpack.c.l.bf16 %v29
    %v31 = vunpack.c.h.bf16 %v29
    %32 = vst [vmem:[#allocation1] sm:%s4] %v30
    %v33 = vld [vmem:[#allocation1] sm:$0xf]
    %vm34 = vcmask 64512
    %35 = vst.msk [vmem:[#allocation0] ss:$8 sm:$0xf] %vm34, %v33
    %s36 = scalar_lea.vmem [#allocation1], 8
    %v37 = vld [vmem:[%s36] sm:$0xf]
    %vm38 = vcmask 64512
    %s39 = scalar_lea.vmem [#allocation0], 32
    %40 = vst.msk [vmem:[%s39] ss:$8 sm:$0xf] %vm38, %v37
    %v41 = vld.sshfl [vmem:[#allocation1] sm:$0xff pattern:$0xba983210]
    %42 = vrot.lane.b32.xlu0 %v41, 120
    %v43 = vpop.permute.xlu0 %42
    %vm44 = vcmask 64512
    %s45 = scalar_lea.vmem [#allocation0], 1
    %46 = vst.msk [vmem:[%s45] ss:$8 sm:$0xf] %vm44, %v43
    %s47 = scalar_lea.vmem [#allocation0], 1
    %48 = vst.msk [vmem:[%s47] ss:$8 sm:$0xf0] %vm44, %v43
    %v49 = vld.sshfl [vmem:[#allocation1] sm:$0xff pattern:$0xba983210]
    %50 = vrot.lane.b32.xlu0 %v49, 112
    %v51 = vpop.permute.xlu0 %50
    %vm52 = vcmask 64512
    %s53 = scalar_lea.vmem [#allocation0], 2
    %54 = vst.msk [vmem:[%s53] ss:$8 sm:$0xf] %vm52, %v51
    %s55 = scalar_lea.vmem [#allocation0], 2
    %56 = vst.msk [vmem:[%s55] ss:$8 sm:$0xf0] %vm52, %v51
    %v57 = vld.sshfl [vmem:[#allocation1] sm:$0xff pattern:$0xba983210]
    %58 = vrot.lane.b32.xlu0 %v57, 104
    %v59 = vpop.permute.xlu0 %58
    %vm60 = vcmask 64512
    %s61 = scalar_lea.vmem [#allocation0], 3
    %62 = vst.msk [vmem:[%s61] ss:$8 sm:$0xf] %vm60, %v59
    %s63 = scalar_lea.vmem [#allocation0], 3
    %64 = vst.msk [vmem:[%s63] ss:$8 sm:$0xf0] %vm60, %v59
    %v65 = vld.sshfl [vmem:[#allocation1] sm:$0xff pattern:$0xba983210]
    %66 = vrot.lane.b32.xlu0 %v65, 96
    %v67 = vpop.permute.xlu0 %66
    %vm68 = vcmask 64512
    %s69 = scalar_lea.vmem [#allocation0], 4
    %70 = vst.msk [vmem:[%s69] ss:$8 sm:$0xf] %vm68, %v67
    %s71 = scalar_lea.vmem [#allocation0], 4
    %72 = vst.msk [vmem:[%s71] ss:$8 sm:$0xf0] %vm68, %v67
    %v73 = vld.sshfl [vmem:[#allocation1] sm:$0xff pattern:$0xba983210]
    %74 = vrot.lane.b32.xlu0 %v73, 88
    %v75 = vpop.permute.xlu0 %74
    %vm76 = vcmask 64512
    %s77 = scalar_lea.vmem [#allocation0], 5
    %78 = vst.msk [vmem:[%s77] ss:$8 sm:$0xf] %vm76, %v75
    %s79 = scalar_lea.vmem [#allocation0], 5
    %80 = vst.msk [vmem:[%s79] ss:$8 sm:$0xf0] %vm76, %v75
    %v81 = vld.sshfl [vmem:[#allocation1] sm:$0xff pattern:$0xba983210]
    %82 = vrot.lane.b32.xlu0 %v81, 80
    %v83 = vpop.permute.xlu0 %82
    %vm84 = vcmask 64512
    %s85 = scalar_lea.vmem [#allocation0], 6
    %86 = vst.msk [vmem:[%s85] ss:$8 sm:$0xf] %vm84, %v83
    %s87 = scalar_lea.vmem [#allocation0], 6
    %88 = vst.msk [vmem:[%s87] ss:$8 sm:$0xf0] %vm84, %v83
    %v89 = vld.sshfl [vmem:[#allocation1] sm:$0xff pattern:$0xba983210]
    %90 = vrot.lane.b32.xlu0 %v89, 72
    %v91 = vpop.permute.xlu0 %90
    %vm92 = vcmask 64512
    %s93 = scalar_lea.vmem [#allocation0], 7
    %94 = vst.msk [vmem:[%s93] ss:$8 sm:$0xf] %vm92, %v91
    %s95 = scalar_lea.vmem [#allocation0], 7
    %96 = vst.msk [vmem:[%s95] ss:$8 sm:$0xf0] %vm92, %v91
    %s98 = smul.u32 4, 2
    %s99 = sshllo.u32 0, %s98
    %s100 = sshrl.u32 %s98, 1
    %v101 = vld [vmem:[#allocation0] sm:%s99]
    %v102 = vpack.c.bf16 0.0, %v101
    %s103 = sshllo.u32 0, %s100
    %104 = vst [vmem:[%s1] sm:%s103] %v102
    %s105 = scalar_lea.vmem [#allocation0], 8
    %v106 = vld [vmem:[%s105] sm:%s99]
    %v107 = vpack.c.bf16 0.0, %v106
    %s108 = sshllo.u32 0, %s100
    %s109 = scalar_lea.vmem %s1, 4
    %110 = vst [vmem:[%s109] sm:%s108] %v107
    %s111 = scalar_lea.vmem [#allocation0], 16
    %v112 = vld [vmem:[%s111] sm:%s99]
    %v113 = vpack.c.bf16 0.0, %v112
    %s114 = sshllo.u32 0, %s100
    %s115 = smul.addr 4, 2
    %s116 = scalar_lea.vmem %s1, %s115
    %117 = vst [vmem:[%s116] sm:%s114] %v113
    %s118 = scalar_lea.vmem [#allocation0], 24
    %v119 = vld [vmem:[%s118] sm:%s99]
    %v120 = vpack.c.bf16 0.0, %v119
    %s121 = sshllo.u32 0, %s100
    %s122 = smul.addr 4, 3
    %s123 = scalar_lea.vmem %s1, %s122
    %124 = vst [vmem:[%s123] sm:%s121] %v120
    %s125 = scalar_lea.vmem [#allocation0], 32
    %v126 = vld [vmem:[%s125] sm:%s99]
    %v127 = vpack.c.bf16 0.0, %v126
    %s128 = sshllo.u32 0, %s100
    %s129 = smul.addr 4, 4
    %s130 = scalar_lea.vmem %s1, %s129
    %131 = vst [vmem:[%s130] sm:%s128] %v127
    %s132 = scalar_lea.vmem [#allocation0], 40
    %v133 = vld [vmem:[%s132] sm:%s99]
    %v134 = vpack.c.bf16 0.0, %v133
    %s135 = sshllo.u32 0, %s100
    %s136 = smul.addr 4, 5
    %s137 = scalar_lea.vmem %s1, %s136
    %138 = vst [vmem:[%s137] sm:%s135] %v134
    %s139 = scalar_lea.vmem [#allocation0], 48
    %v140 = vld [vmem:[%s139] sm:%s99]
    %v141 = vpack.c.bf16 0.0, %v140
    %s142 = sshllo.u32 0, %s100
    %s143 = smul.addr 4, 6
    %s144 = scalar_lea.vmem %s1, %s143
    %145 = vst [vmem:[%s144] sm:%s142] %v141
    %s146 = scalar_lea.vmem [#allocation0], 56
    %v147 = vld [vmem:[%s146] sm:%s99]
    %v148 = vpack.c.bf16 0.0, %v147
    %s149 = sshllo.u32 0, %s100
    %s150 = smul.addr 4, 7
    %s151 = scalar_lea.vmem %s1, %s150
    %152 = vst [vmem:[%s151] sm:%s149] %v148

// kernel: mobile_synthesis_forward.13
$region0: #{mobile_synthesis_forward.13}
  #allocation0 [shape = 'u32[]', space=smem, size = 0x4, offset = 0x4, fixed_abs, tag = 'smem constant byte address 0x4 - core index']
  #allocation1 [shape = 'u32[144,128]{1,0:T(1,128)}', space=vmem, size = 0x12000, scoped, tag = 'internal scratch']
  %s0 = inlined_call_operand.vmem [shape: bf16[2,16,102], index: 0, kind: input, shape index: {}]
  %s1 = inlined_call_operand.vmem [shape: f32[2,16,1], index: 1, kind: input, shape index: {}]
  %s2 = inlined_call_operand.vmem [shape: f32[2,1,16], index: 2, kind: input, shape index: {}]
  %s3 = inlined_call_operand.vmem [shape: bf16[16,9], index: 3, kind: input, shape index: {}]
  %s4 = inlined_call_operand.vmem [shape: bf16[16,16], index: 4, kind: input, shape index: {}]
  %s5 = inlined_call_operand.vmem [shape: f32[16,1], index: 5, kind: input, shape index: {}]
  %s6 = inlined_call_operand.vmem [shape: f32[1,80], index: 6, kind: input, shape index: {}]
  %s7 = inlined_call_operand.vmem [shape: f32[16,1], index: 7, kind: input, shape index: {}]
  %s8 = inlined_call_operand.vmem [shape: bf16[12,16], index: 8, kind: input, shape index: {}]
  %s9 = inlined_call_operand.vmem [shape: f32[12,1], index: 9, kind: input, shape index: {}]
  %s10 = inlined_call_operand.vmem [shape: bf16[2,16,80], index: 10, kind: output, shape index: {0}]
  %s11 = inlined_call_operand.vmem [shape: f32[2,12,80], index: 11, kind: output, shape index: {1}]
  %12 = xla_tuple %s10, %s11
  %s13 = sld [smem:[#allocation0]]
  $region81: #{mobile_synthesis_forward.13} parent=0
    _
  %s15 = ssub.s32 1, %s13
  %s16 = scalar_select 0, %s15, %s13
  loop: start=0, step=1, limit=4
  $region2: #{mobile_synthesis_forward.13} parent=0 // loop_pre_header
    _
  $region3: #{mobile_synthesis_forward.13} parent=0 // loop_header
    %s18 = sphi 0, %s22
    %p19 = scmp.ge.s32.totalorder %s18, 4
    %s28 = sphi 0, %s30
    %s31 = sphi 0, %s28
    %s32 = sphi 0, %s31
    %s48 = sphi 0, %s32
    %s54 = sphi 0, %s56
    %s57 = sphi 0, %s54
    %s58 = sphi 0, %s57
    %s74 = sphi 0, %s58
    %s80 = sphi 0, %s82
    %s83 = sphi 0, %s80
    %s84 = sphi 0, %s83
    %s100 = sphi 0, %s84
    %s104 = sphi 0, %s104
    %s106 = sphi 0, %s104
    %s107 = sphi 0, %s106
    %s121 = sphi 0, %s107
    %s125 = sphi 0, %s125
    %s127 = sphi 0, %s125
    %s128 = sphi 0, %s127
    %s142 = sphi 0, %s128
    %s146 = sphi 0, %s146
    %s148 = sphi 0, %s146
    %s149 = sphi 0, %s148
    %s163 = sphi 0, %s149
    %s167 = sphi 0, %s167
    %s169 = sphi 0, %s167
    %s170 = sphi 0, %s169
    %s184 = sphi 0, %s170
    %s188 = sphi 0, %s188
    %s190 = sphi 0, %s188
    %s191 = sphi 0, %s190
    %s205 = sphi 0, %s191
    %s209 = sphi 0, %s209
    %s211 = sphi 0, %s209
    %s212 = sphi 0, %s211
    %s226 = sphi 0, %s212
    %s230 = sphi 0, %s230
    %s232 = sphi 0, %s230
    %s233 = sphi 0, %s232
    %s247 = sphi 0, %s233
    %s253 = sphi 0, %s255
    %s256 = sphi 0, %s253
    %s257 = sphi 0, %s256
    %s273 = sphi 0, %s257
    %s279 = sphi 0, %s281
    %s282 = sphi 0, %s279
    %s283 = sphi 0, %s282
    %s299 = sphi 0, %s283
  $region4: #{mobile_synthesis_forward.13} parent=0 // loop_header_branch
    %21 = sbr.rel (%p19) target = $region8
  $region5: #{mobile_synthesis_forward.13} parent=0 // loop_body
    %s23 = ssub.s32 %s18, 1
    %s24 = ssub.s32 %s18, 2
    %s25 = sadd.s32 %s18, 1
    %s26 = ssub.s32 %s18, %s25
    %p27 = scmp.eq.s32.totalorder %s26, 0
    %s29 = sadd.s32 %s28, 1
    %s30 = scalar_select %p27, %s28, %s29
    %p33 = pneg %p27
    %p34 = scmp.eq.s32.totalorder %s18, 1
    %p35 = por %p33, %p34
    %p36 = scmp.ne.s32.totalorder %s28, %s31
    %p37 = scmp.eq.s32.totalorder %s18, 0
    %p38 = por %p36, %p37
    %p39 = scmp.ne.s32.totalorder %s28, %s31
    %p40 = scmp.eq.s32.totalorder %s23, 1
    %p41 = por %p39, %p40
    %p42 = scmp.ne.s32.totalorder %s31, %s32
    %p43 = scmp.eq.s32.totalorder %s23, 0
    %p44 = por %p42, %p43
    %p45 = scmp.ne.s32.totalorder %s31, %s32
    %p46 = scmp.eq.s32.totalorder %s24, 1
    %p47 = por %p45, %p46
    %p49 = scmp.ne.s32.totalorder %s32, %s48
    %p50 = scmp.eq.s32.totalorder %s24, 0
    %p51 = por %p49, %p50
    %s52 = ssub.s32 %s18, %s25
    %p53 = scmp.eq.s32.totalorder %s52, 0
    %s55 = sadd.s32 %s54, 1
    %s56 = scalar_select %p53, %s54, %s55
    %p59 = pneg %p53
    %p60 = scmp.eq.s32.totalorder %s18, 1
    %p61 = por %p59, %p60
    %p62 = scmp.ne.s32.totalorder %s54, %s57
    %p63 = scmp.eq.s32.totalorder %s18, 0
    %p64 = por %p62, %p63
    %p65 = scmp.ne.s32.totalorder %s54, %s57
    %p66 = scmp.eq.s32.totalorder %s23, 1
    %p67 = por %p65, %p66
    %p68 = scmp.ne.s32.totalorder %s57, %s58
    %p69 = scmp.eq.s32.totalorder %s23, 0
    %p70 = por %p68, %p69
    %p71 = scmp.ne.s32.totalorder %s57, %s58
    %p72 = scmp.eq.s32.totalorder %s24, 1
    %p73 = por %p71, %p72
    %p75 = scmp.ne.s32.totalorder %s58, %s74
    %p76 = scmp.eq.s32.totalorder %s24, 0
    %p77 = por %p75, %p76
    %s78 = ssub.s32 %s18, %s25
    %p79 = scmp.eq.s32.totalorder %s78, 0
    %s81 = sadd.s32 %s80, 1
    %s82 = scalar_select %p79, %s80, %s81
    %p85 = pneg %p79
    %p86 = scmp.eq.s32.totalorder %s18, 1
    %p87 = por %p85, %p86
    %p88 = scmp.ne.s32.totalorder %s80, %s83
    %p89 = scmp.eq.s32.totalorder %s18, 0
    %p90 = por %p88, %p89
    %p91 = scmp.ne.s32.totalorder %s80, %s83
    %p92 = scmp.eq.s32.totalorder %s23, 1
    %p93 = por %p91, %p92
    %p94 = scmp.ne.s32.totalorder %s83, %s84
    %p95 = scmp.eq.s32.totalorder %s23, 0
    %p96 = por %p94, %p95
    %p97 = scmp.ne.s32.totalorder %s83, %s84
    %p98 = scmp.eq.s32.totalorder %s24, 1
    %p99 = por %p97, %p98
    %p101 = scmp.ne.s32.totalorder %s84, %s100
    %p102 = scmp.eq.s32.totalorder %s24, 0
    %p103 = por %p101, %p102
    %s105 = sadd.s32 %s104, 1
    %p108 = scmp.eq.s32.totalorder %s18, 1
    %p109 = scmp.ne.s32.totalorder %s104, %s106
    %p110 = scmp.eq.s32.totalorder %s18, 0
    %p111 = por %p109, %p110
    %p112 = scmp.ne.s32.totalorder %s104, %s106
    %p113 = scmp.eq.s32.totalorder %s23, 1
    %p114 = por %p112, %p113
    %p115 = scmp.ne.s32.totalorder %s106, %s107
    %p116 = scmp.eq.s32.totalorder %s23, 0
    %p117 = por %p115, %p116
    %p118 = scmp.ne.s32.totalorder %s106, %s107
    %p119 = scmp.eq.s32.totalorder %s24, 1
    %p120 = por %p118, %p119
    %p122 = scmp.ne.s32.totalorder %s107, %s121
    %p123 = scmp.eq.s32.totalorder %s24, 0
    %p124 = por %p122, %p123
    %s126 = sadd.s32 %s125, 1
    %p129 = scmp.eq.s32.totalorder %s18, 1
    %p130 = scmp.ne.s32.totalorder %s125, %s127
    %p131 = scmp.eq.s32.totalorder %s18, 0
    %p132 = por %p130, %p131
    %p133 = scmp.ne.s32.totalorder %s125, %s127
    %p134 = scmp.eq.s32.totalorder %s23, 1
    %p135 = por %p133, %p134
    %p136 = scmp.ne.s32.totalorder %s127, %s128
    %p137 = scmp.eq.s32.totalorder %s23, 0
    %p138 = por %p136, %p137
    %p139 = scmp.ne.s32.totalorder %s127, %s128
    %p140 = scmp.eq.s32.totalorder %s24, 1
    %p141 = por %p139, %p140
    %p143 = scmp.ne.s32.totalorder %s128, %s142
    %p144 = scmp.eq.s32.totalorder %s24, 0
    %p145 = por %p143, %p144
    %s147 = sadd.s32 %s146, 1
    %p150 = scmp.eq.s32.totalorder %s18, 1
    %p151 = scmp.ne.s32.totalorder %s146, %s148
    %p152 = scmp.eq.s32.totalorder %s18, 0
    %p153 = por %p151, %p152
    %p154 = scmp.ne.s32.totalorder %s146, %s148
    %p155 = scmp.eq.s32.totalorder %s23, 1
    %p156 = por %p154, %p155
    %p157 = scmp.ne.s32.totalorder %s148, %s149
    %p158 = scmp.eq.s32.totalorder %s23, 0
    %p159 = por %p157, %p158
    %p160 = scmp.ne.s32.totalorder %s148, %s149
    %p161 = scmp.eq.s32.totalorder %s24, 1
    %p162 = por %p160, %p161
    %p164 = scmp.ne.s32.totalorder %s149, %s163
    %p165 = scmp.eq.s32.totalorder %s24, 0
    %p166 = por %p164, %p165
    %s168 = sadd.s32 %s167, 1
    %p171 = scmp.eq.s32.totalorder %s18, 1
    %p172 = scmp.ne.s32.totalorder %s167, %s169
    %p173 = scmp.eq.s32.totalorder %s18, 0
    %p174 = por %p172, %p173
    %p175 = scmp.ne.s32.totalorder %s167, %s169
    %p176 = scmp.eq.s32.totalorder %s23, 1
    %p177 = por %p175, %p176
    %p178 = scmp.ne.s32.totalorder %s169, %s170
    %p179 = scmp.eq.s32.totalorder %s23, 0
    %p180 = por %p178, %p179
    %p181 = scmp.ne.s32.totalorder %s169, %s170
    %p182 = scmp.eq.s32.totalorder %s24, 1
    %p183 = por %p181, %p182
    %p185 = scmp.ne.s32.totalorder %s170, %s184
    %p186 = scmp.eq.s32.totalorder %s24, 0
    %p187 = por %p185, %p186
    %s189 = sadd.s32 %s188, 1
    %p192 = scmp.eq.s32.totalorder %s18, 1
    %p193 = scmp.ne.s32.totalorder %s188, %s190
    %p194 = scmp.eq.s32.totalorder %s18, 0
    %p195 = por %p193, %p194
    %p196 = scmp.ne.s32.totalorder %s188, %s190
    %p197 = scmp.eq.s32.totalorder %s23, 1
    %p198 = por %p196, %p197
    %p199 = scmp.ne.s32.totalorder %s190, %s191
    %p200 = scmp.eq.s32.totalorder %s23, 0
    %p201 = por %p199, %p200
    %p202 = scmp.ne.s32.totalorder %s190, %s191
    %p203 = scmp.eq.s32.totalorder %s24, 1
    %p204 = por %p202, %p203
    %p206 = scmp.ne.s32.totalorder %s191, %s205
    %p207 = scmp.eq.s32.totalorder %s24, 0
    %p208 = por %p206, %p207
    %s210 = sadd.s32 %s209, 1
    %p213 = scmp.eq.s32.totalorder %s18, 1
    %p214 = scmp.ne.s32.totalorder %s209, %s211
    %p215 = scmp.eq.s32.totalorder %s18, 0
    %p216 = por %p214, %p215
    %p217 = scmp.ne.s32.totalorder %s209, %s211
    %p218 = scmp.eq.s32.totalorder %s23, 1
    %p219 = por %p217, %p218
    %p220 = scmp.ne.s32.totalorder %s211, %s212
    %p221 = scmp.eq.s32.totalorder %s23, 0
    %p222 = por %p220, %p221
    %p223 = scmp.ne.s32.totalorder %s211, %s212
    %p224 = scmp.eq.s32.totalorder %s24, 1
    %p225 = por %p223, %p224
    %p227 = scmp.ne.s32.totalorder %s212, %s226
    %p228 = scmp.eq.s32.totalorder %s24, 0
    %p229 = por %p227, %p228
    %s231 = sadd.s32 %s230, 1
    %p234 = scmp.eq.s32.totalorder %s18, 1
    %p235 = scmp.ne.s32.totalorder %s230, %s232
    %p236 = scmp.eq.s32.totalorder %s18, 0
    %p237 = por %p235, %p236
    %p238 = scmp.ne.s32.totalorder %s230, %s232
    %p239 = scmp.eq.s32.totalorder %s23, 1
    %p240 = por %p238, %p239
    %p241 = scmp.ne.s32.totalorder %s232, %s233
    %p242 = scmp.eq.s32.totalorder %s23, 0
    %p243 = por %p241, %p242
    %p244 = scmp.ne.s32.totalorder %s232, %s233
    %p245 = scmp.eq.s32.totalorder %s24, 1
    %p246 = por %p244, %p245
    %p248 = scmp.ne.s32.totalorder %s233, %s247
    %p249 = scmp.eq.s32.totalorder %s24, 0
    %p250 = por %p248, %p249
    %s251 = ssub.s32 %s18, %s25
    %p252 = scmp.eq.s32.totalorder %s251, 0
    %s254 = sadd.s32 %s253, 1
    %s255 = scalar_select %p252, %s253, %s254
    %p258 = pneg %p252
    %p259 = scmp.eq.s32.totalorder %s18, 1
    %p260 = por %p258, %p259
    %p261 = scmp.ne.s32.totalorder %s253, %s256
    %p262 = scmp.eq.s32.totalorder %s18, 0
    %p263 = por %p261, %p262
    %p264 = scmp.ne.s32.totalorder %s253, %s256
    %p265 = scmp.eq.s32.totalorder %s23, 1
    %p266 = por %p264, %p265
    %p267 = scmp.ne.s32.totalorder %s256, %s257
    %p268 = scmp.eq.s32.totalorder %s23, 0
    %p269 = por %p267, %p268
    %p270 = scmp.ne.s32.totalorder %s256, %s257
    %p271 = scmp.eq.s32.totalorder %s24, 1
    %p272 = por %p270, %p271
    %p274 = scmp.ne.s32.totalorder %s257, %s273
    %p275 = scmp.eq.s32.totalorder %s24, 0
    %p276 = por %p274, %p275
    %s277 = ssub.s32 %s18, %s25
    %p278 = scmp.eq.s32.totalorder %s277, 0
    %s280 = sadd.s32 %s279, 1
    %s281 = scalar_select %p278, %s279, %s280
    %p284 = pneg %p278
    %p285 = scmp.eq.s32.totalorder %s18, 1
    %p286 = por %p284, %p285
    %p287 = scmp.ne.s32.totalorder %s279, %s282
    %p288 = scmp.eq.s32.totalorder %s18, 0
    %p289 = por %p287, %p288
    %p290 = scmp.ne.s32.totalorder %s279, %s282
    %p291 = scmp.eq.s32.totalorder %s23, 1
    %p292 = por %p290, %p291
    %p293 = scmp.ne.s32.totalorder %s282, %s283
    %p294 = scmp.eq.s32.totalorder %s23, 0
    %p295 = por %p293, %p294
    %p296 = scmp.ne.s32.totalorder %s282, %s283
    %p297 = scmp.eq.s32.totalorder %s24, 1
    %p298 = por %p296, %p297
    %p300 = scmp.ne.s32.totalorder %s283, %s299
    %p301 = scmp.eq.s32.totalorder %s24, 0
    %p302 = por %p300, %p301
    %p303 = scmp.le.s32.totalorder 1, %s18
    %p304 = scmp.lt.s32.totalorder %s18, 3
    %p305 = pnand %p303, %p304
    %p306 = pneg %p305
    // Predicated region
    $region9: #{mobile_synthesis_forward.13} parent=5 // pred_check
      _
    $region10: #{mobile_synthesis_forward.13} parent=5 // pred_check_branch
      %308 = sbr.rel (%p305) target = $region12
    $region11: #{mobile_synthesis_forward.13} parent=5 // pred_region
      %s309 = ssub.s32 %s18, 1
      // Predicated region
      $region13: #{mobile_synthesis_forward.13} parent=11 // pred_check
        %p310 = pneg %p117
      $region14: #{mobile_synthesis_forward.13} parent=11 // pred_check_branch
        %312 = sbr.rel (%p310) target = $region16
      $region15: #{mobile_synthesis_forward.13} parent=11 // pred_region
        _
      $region16: #{mobile_synthesis_forward.13} parent=11 // pred_fallthru
        _
      // Predicated region
      $region17: #{mobile_synthesis_forward.13} parent=11 // pred_check
        %p313 = pneg %p138
      $region18: #{mobile_synthesis_forward.13} parent=11 // pred_check_branch
        %315 = sbr.rel (%p313) target = $region20
      $region19: #{mobile_synthesis_forward.13} parent=11 // pred_region
        _
      $region20: #{mobile_synthesis_forward.13} parent=11 // pred_fallthru
        _
      // Predicated region
      $region21: #{mobile_synthesis_forward.13} parent=11 // pred_check
        %p316 = pneg %p159
      $region22: #{mobile_synthesis_forward.13} parent=11 // pred_check_branch
        %318 = sbr.rel (%p316) target = $region24
      $region23: #{mobile_synthesis_forward.13} parent=11 // pred_region
        _
      $region24: #{mobile_synthesis_forward.13} parent=11 // pred_fallthru
        _
      // Predicated region
      $region25: #{mobile_synthesis_forward.13} parent=11 // pred_check
        %p319 = pneg %p180
      $region26: #{mobile_synthesis_forward.13} parent=11 // pred_check_branch
        %321 = sbr.rel (%p319) target = $region28
      $region27: #{mobile_synthesis_forward.13} parent=11 // pred_region
        _
      $region28: #{mobile_synthesis_forward.13} parent=11 // pred_fallthru
        _
      // Predicated region
      $region29: #{mobile_synthesis_forward.13} parent=11 // pred_check
        %p322 = pneg %p201
      $region30: #{mobile_synthesis_forward.13} parent=11 // pred_check_branch
        %324 = sbr.rel (%p322) target = $region32
      $region31: #{mobile_synthesis_forward.13} parent=11 // pred_region
        _
      $region32: #{mobile_synthesis_forward.13} parent=11 // pred_fallthru
        _
      // Predicated region
      $region33: #{mobile_synthesis_forward.13} parent=11 // pred_check
        %p325 = pneg %p222
      $region34: #{mobile_synthesis_forward.13} parent=11 // pred_check_branch
        %327 = sbr.rel (%p325) target = $region36
      $region35: #{mobile_synthesis_forward.13} parent=11 // pred_region
        _
      $region36: #{mobile_synthesis_forward.13} parent=11 // pred_fallthru
        _
      // Predicated region
      $region37: #{mobile_synthesis_forward.13} parent=11 // pred_check
        %p328 = pneg %p243
      $region38: #{mobile_synthesis_forward.13} parent=11 // pred_check_branch
        %330 = sbr.rel (%p328) target = $region40
      $region39: #{mobile_synthesis_forward.13} parent=11 // pred_region
        _
      $region40: #{mobile_synthesis_forward.13} parent=11 // pred_fallthru
        _
    $region12: #{mobile_synthesis_forward.13} parent=5 // pred_fallthru
      _
    %p331 = scmp.lt.s32.totalorder %s18, 2
    // Predicated region
    $region41: #{mobile_synthesis_forward.13} parent=5 // pred_check
      %p332 = pneg %p331
    $region42: #{mobile_synthesis_forward.13} parent=5 // pred_check_branch
      %334 = sbr.rel (%p332) target = $region44
    $region43: #{mobile_synthesis_forward.13} parent=5 // pred_region
      // Predicated region
      $region45: #{mobile_synthesis_forward.13} parent=43 // pred_check
        %p335 = pneg %p38
      $region46: #{mobile_synthesis_forward.13} parent=43 // pred_check_branch
        %337 = sbr.rel (%p335) target = $region48
      $region47: #{mobile_synthesis_forward.13} parent=43 // pred_region
        %p338 = scmp.lt.s32.totalorder %s18, 1
        %s339 = scalar_select %p338, %s18, 1
        %s340 = smul.addr %s339, 2
        %s341 = smul.addr %s340, 4
        %s342 = scalar_lea.vmem %s0, %s341
      $region48: #{mobile_synthesis_forward.13} parent=43 // pred_fallthru
        _
      // Predicated region
      $region49: #{mobile_synthesis_forward.13} parent=43 // pred_check
        %p343 = pneg %p64
      $region50: #{mobile_synthesis_forward.13} parent=43 // pred_check_branch
        %345 = sbr.rel (%p343) target = $region52
      $region51: #{mobile_synthesis_forward.13} parent=43 // pred_region
        %p346 = scmp.lt.s32.totalorder %s18, 1
        %s347 = scalar_select %p346, %s18, 1
        %s348 = smul.addr %s347, 2
        %s349 = smul.addr %s348, 8
        %s350 = scalar_lea.vmem %s1, %s349
      $region52: #{mobile_synthesis_forward.13} parent=43 // pred_fallthru
        _
      // Predicated region
      $region53: #{mobile_synthesis_forward.13} parent=43 // pred_check
        %p351 = pneg %p90
      $region54: #{mobile_synthesis_forward.13} parent=43 // pred_check_branch
        %353 = sbr.rel (%p351) target = $region56
      $region55: #{mobile_synthesis_forward.13} parent=43 // pred_region
        %p354 = scmp.lt.s32.totalorder %s18, 1
        %s355 = scalar_select %p354, %s18, 1
        %s356 = scalar_lea.vmem %s2, %s355
      $region56: #{mobile_synthesis_forward.13} parent=43 // pred_fallthru
        _
    $region44: #{mobile_synthesis_forward.13} parent=5 // pred_fallthru
      _
    %p357 = scmp.le.s32.totalorder 1, %s18
    %p358 = scmp.lt.s32.totalorder %s18, 3
    %p359 = pnand %p357, %p358
    %p360 = pneg %p359
    // Predicated region
    $region57: #{mobile_synthesis_forward.13} parent=5 // pred_check
      _
    $region58: #{mobile_synthesis_forward.13} parent=5 // pred_check_branch
      %362 = sbr.rel (%p359) target = $region60
    $region59: #{mobile_synthesis_forward.13} parent=5 // pred_region
      %s363 = ssub.s32 %s18, 1
      %p364 = scmp.lt.s32.totalorder %s23, 1
      %s365 = scalar_select %p364, %s23, 1
      %s366 = smul.addr %s365, 2
      %s367 = smul.addr %s366, 4
      %s368 = scalar_lea.vmem %s0, %s367
      %p369 = pneg %p44
      %p370 = pneg %p41
      %p371 = scmp.lt.s32.totalorder %s23, 1
      %s372 = scalar_select %p371, %s23, 1
      %s373 = smul.addr %s372, 2
      %s374 = smul.addr %s373, 8
      %s375 = scalar_lea.vmem %s1, %s374
      %p376 = pneg %p70
      %p377 = pneg %p67
      %p378 = scmp.lt.s32.totalorder %s23, 1
      %s379 = scalar_select %p378, %s23, 1
      %s380 = scalar_lea.vmem %s2, %s379
      %p381 = pneg %p96
      %p382 = pneg %p93
      %p383 = pneg %p117
      %p384 = pneg %p114
      %p385 = pneg %p138
      %p386 = pneg %p135
      %p387 = pneg %p159
      %p388 = pneg %p156
      %p389 = pneg %p180
      %p390 = pneg %p177
      %p391 = pneg %p201
      %p392 = pneg %p198
      %p393 = pneg %p222
      %p394 = pneg %p219
      %p395 = pneg %p243
      %p396 = pneg %p240
      %p397 = pneg %p269
      %p398 = pneg %p266
      %p399 = scmp.lt.s32.totalorder %s23, 1
      %s400 = scalar_select %p399, %s23, 1
      %s401 = smul.addr %s400, 2
      %s402 = smul.addr %s401, 4
      %s403 = scalar_lea.vmem %s10, %s402
      %p404 = pneg %p295
      %p405 = pneg %p292
      %p406 = scmp.lt.s32.totalorder %s23, 1
      %s407 = scalar_select %p406, %s23, 1
      %s408 = smul.addr %s407, 2
      %s409 = smul.addr %s408, 8
      %s410 = scalar_lea.vmem %s11, %s409
      %p411 = scmp.lt.s32.totalorder %s23, 1
      %s412 = scalar_select %p411, %s23, 1
      %s413 = smul.addr %s412, 2
      %s414 = smul.addr %s413, 4
      %s415 = scalar_lea.vmem %s0, %s414
      %p416 = scmp.lt.s32.totalorder %s23, 1
      %s417 = scalar_select %p416, %s23, 1
      %s418 = smul.addr %s417, 2
      %s419 = smul.addr %s418, 8
      %s420 = scalar_lea.vmem %s1, %s419
      %p421 = scmp.lt.s32.totalorder %s23, 1
      %s422 = scalar_select %p421, %s23, 1
      %s423 = scalar_lea.vmem %s2, %s422
      %p424 = scmp.lt.s32.totalorder %s23, 1
      %s425 = scalar_select %p424, %s23, 1
      %s426 = smul.addr %s425, 2
      %s427 = smul.addr %s426, 4
      %s428 = scalar_lea.vmem %s10, %s427
      %p429 = scmp.lt.s32.totalorder %s23, 1
      %s430 = scalar_select %p429, %s23, 1
      %s431 = smul.addr %s430, 2
      %s432 = smul.addr %s431, 8
      %s433 = scalar_lea.vmem %s11, %s432
      %v435 = vld [vmem:[%s3] sm:$0xf]
      %v436 = vld [vmem:[%s3 + $0x4] sm:$0xf]
      %v437 = vunpack.c.l.bf16 %v435
      %v438 = vunpack.c.l.bf16 %v436
      %v439 = vld [vmem:[%s420] sm:$0xff]
      %v440 = vld [vmem:[%s420 + $0x8] sm:$0xff]
      %442 = vset.pattern.permute.xlu0 0
      %443 = vperm.xlu0 %442, %v439
      %v444 = vpop.permute.xlu0 %443
      %447 = vset.pattern.permute.xlu0 0
      %448 = vperm.xlu0 %447, %v440
      %v449 = vpop.permute.xlu0 %448
      %v451 = vmul.f32 %v437, %v444
      %v452 = vmul.f32 %v438, %v449
      %v453 = vld [vmem:[%s415] sm:$0xf]
      %v454 = vld [vmem:[%s415 + $0x4] sm:$0xf]
      %v455 = vunpack.c.l.bf16 %v453
      %v456 = vunpack.c.l.bf16 %v454
      %458 = vset.pattern.permute.xlu0 0
      %459 = vperm.xlu0 %458, %v451
      %v460 = vpop.permute.xlu0 %459
      %463 = vset.pattern.permute.xlu0 0
      %464 = vperm.xlu0 %463, %v452
      %v465 = vpop.permute.xlu0 %464
      %v467 = vmul.f32 %v455, %v460
      %v468 = vmul.f32 %v456, %v465
      %469 = vset.pattern.permute.xlu0 1
      %470 = vperm.xlu0 %469, %v451
      %v471 = vpop.permute.xlu0 %470
      %473 = vset.pattern.permute.xlu0 1
      %474 = vperm.xlu0 %473, %v452
      %v475 = vpop.permute.xlu0 %474
      %v477 = vmul.f32 %v455, %v471
      %v478 = vmul.f32 %v456, %v475
      %481 = vrot.lane.b32.xlu0 %v477, 127
      %v482 = vpop.permute.xlu0 %481
      %483 = vrot.lane.b32.xlu0 %v478, 127
      %v484 = vpop.permute.xlu0 %483
      %v487 = vadd.f32 %v467, %v482
      %v488 = vadd.f32 %v468, %v484
      %489 = vset.pattern.permute.xlu0 2
      %490 = vperm.xlu0 %489, %v451
      %v491 = vpop.permute.xlu0 %490
      %493 = vset.pattern.permute.xlu0 2
      %494 = vperm.xlu0 %493, %v452
      %v495 = vpop.permute.xlu0 %494
      %v497 = vmul.f32 %v455, %v491
      %v498 = vmul.f32 %v456, %v495
      %501 = vrot.lane.b32.xlu0 %v497, 126
      %v502 = vpop.permute.xlu0 %501
      %503 = vrot.lane.b32.xlu0 %v498, 126
      %v504 = vpop.permute.xlu0 %503
      %v507 = vadd.f32 %v487, %v502
      %v508 = vadd.f32 %v488, %v504
      %509 = vset.pattern.permute.xlu0 3
      %510 = vperm.xlu0 %509, %v451
      %v511 = vpop.permute.xlu0 %510
      %513 = vset.pattern.permute.xlu0 3
      %514 = vperm.xlu0 %513, %v452
      %v515 = vpop.permute.xlu0 %514
      %v517 = vmul.f32 %v455, %v511
      %v518 = vmul.f32 %v456, %v515
      %521 = vrot.lane.b32.xlu0 %v517, 118
      %v522 = vpop.permute.xlu0 %521
      %523 = vrot.lane.b32.xlu0 %v518, 118
      %v524 = vpop.permute.xlu0 %523
      %v527 = vadd.f32 %v507, %v522
      %v528 = vadd.f32 %v508, %v524
      %529 = vset.pattern.permute.xlu0 4
      %530 = vperm.xlu0 %529, %v451
      %v531 = vpop.permute.xlu0 %530
      %533 = vset.pattern.permute.xlu0 4
      %534 = vperm.xlu0 %533, %v452
      %v535 = vpop.permute.xlu0 %534
      %v537 = vmul.f32 %v455, %v531
      %v538 = vmul.f32 %v456, %v535
      %541 = vrot.lane.b32.xlu0 %v537, 117
      %v542 = vpop.permute.xlu0 %541
      %543 = vrot.lane.b32.xlu0 %v538, 117
      %v544 = vpop.permute.xlu0 %543
      %v547 = vadd.f32 %v527, %v542
      %v548 = vadd.f32 %v528, %v544
      %549 = vset.pattern.permute.xlu0 5
      %550 = vperm.xlu0 %549, %v451
      %v551 = vpop.permute.xlu0 %550
      %553 = vset.pattern.permute.xlu0 5
      %554 = vperm.xlu0 %553, %v452
      %v555 = vpop.permute.xlu0 %554
      %v557 = vmul.f32 %v455, %v551
      %v558 = vmul.f32 %v456, %v555
      %561 = vrot.lane.b32.xlu0 %v557, 116
      %v562 = vpop.permute.xlu0 %561
      %563 = vrot.lane.b32.xlu0 %v558, 116
      %v564 = vpop.permute.xlu0 %563
      %v567 = vadd.f32 %v547, %v562
      %v568 = vadd.f32 %v548, %v564
      %569 = vset.pattern.permute.xlu0 6
      %570 = vperm.xlu0 %569, %v451
      %v571 = vpop.permute.xlu0 %570
      %573 = vset.pattern.permute.xlu0 6
      %574 = vperm.xlu0 %573, %v452
      %v575 = vpop.permute.xlu0 %574
      %v577 = vmul.f32 %v455, %v571
      %v578 = vmul.f32 %v456, %v575
      %581 = vrot.lane.b32.xlu0 %v577, 108
      %v582 = vpop.permute.xlu0 %581
      %583 = vrot.lane.b32.xlu0 %v578, 108
      %v584 = vpop.permute.xlu0 %583
      %v587 = vadd.f32 %v567, %v582
      %v588 = vadd.f32 %v568, %v584
      %589 = vset.pattern.permute.xlu0 7
      %590 = vperm.xlu0 %589, %v451
      %v591 = vpop.permute.xlu0 %590
      %593 = vset.pattern.permute.xlu0 7
      %594 = vperm.xlu0 %593, %v452
      %v595 = vpop.permute.xlu0 %594
      %v597 = vmul.f32 %v455, %v591
      %v598 = vmul.f32 %v456, %v595
      %601 = vrot.lane.b32.xlu0 %v597, 107
      %v602 = vpop.permute.xlu0 %601
      %603 = vrot.lane.b32.xlu0 %v598, 107
      %v604 = vpop.permute.xlu0 %603
      %v607 = vadd.f32 %v587, %v602
      %v608 = vadd.f32 %v588, %v604
      %609 = vset.pattern.permute.xlu0 8
      %610 = vperm.xlu0 %609, %v451
      %v611 = vpop.permute.xlu0 %610
      %613 = vset.pattern.permute.xlu0 8
      %614 = vperm.xlu0 %613, %v452
      %v615 = vpop.permute.xlu0 %614
      %v617 = vmul.f32 %v455, %v611
      %v618 = vmul.f32 %v456, %v615
      %621 = vrot.lane.b32.xlu0 %v617, 106
      %v622 = vpop.permute.xlu0 %621
      %623 = vrot.lane.b32.xlu0 %v618, 106
      %v624 = vpop.permute.xlu0 %623
      %v627 = vadd.f32 %v607, %v622
      %v628 = vadd.f32 %v608, %v624
      %v629 = vld [vmem:[%s4] sm:$0xf]
      %v630 = vld [vmem:[%s4 + $0x4] sm:$0xf]
      %v631 = vpack.c.bf16 %v628, %v627
      %v634 = vunpack.c.l.b16 %v629
      %v635 = vunpack.c.l.b16 %v630
      %v636 = vpack.c.b16 %v635, %v634
      %vm637 = vcmask 130048
      %v639 = vsel %vm637, %v636, 0
      %641 = vmatprep.subr.bf16.mxu0 0
      %642 = vmatpush1.bf16.msra.mxu0 %v631
      %643 = vmatprep.subr.bf16.mxu0 0
      %644 = vmatpush1.bf16.msra.mxu0 0
      %645 = vmatprep.subr.bf16.mxu0 0
      %646 = vmatpush1.bf16.msra.mxu0 0
      %647 = vmatprep.subr.bf16.mxu0 0
      %648 = vmatpush1.bf16.msra.mxu0 0
      %649 = vmatprep.subr.bf16.mxu0 0
      %650 = vmatpush1.bf16.msra.mxu0 0
      %651 = vmatprep.subr.bf16.mxu0 0
      %652 = vmatpush1.bf16.msra.mxu0 0
      %653 = vmatprep.subr.bf16.mxu0 0
      %654 = vmatpush1.bf16.msra.mxu0 0
      %655 = vmatprep.subr.bf16.mxu0 0
      %656 = vmatpush1.bf16.msra.mxu0 0
      %657 = vmatprep.subr.bf16.mxu0 0
      %658 = vmatpush1.bf16.msra.mxu0 0
      %659 = vmatprep.subr.bf16.mxu0 0
      %660 = vmatpush1.bf16.msra.mxu0 0
      %661 = vmatprep.subr.bf16.mxu0 0
      %662 = vmatpush1.bf16.msra.mxu0 0
      %663 = vmatprep.subr.bf16.mxu0 0
      %664 = vmatpush1.bf16.msra.mxu0 0
      %665 = vmatprep.subr.bf16.mxu0 0
      %666 = vmatpush1.bf16.msra.mxu0 0
      %667 = vmatprep.subr.bf16.mxu0 0
      %668 = vmatpush1.bf16.msra.mxu0 0
      %669 = vmatprep.subr.bf16.mxu0 0
      %670 = vmatpush1.bf16.msra.mxu0 0
      %671 = vmatprep.subr.bf16.mxu0 0
      %672 = vmatpush1.bf16.msra.mxu0 0
      %673 = vmatprep.mubr.bf16.mxu0 0
      %674 = vmatmul.mubr.bf16.gmra.mrb[0].mxu0 %v639
      %v675 = vpop.f32.mrb[0].mxu0
      %v676 = vadd.f32 0.0, %v675
      %v677 = vpop.f32.mrb[0].mxu0
      %v678 = vpop.f32.mrb[0].mxu0
      %v679 = vadd.f32 0.0, %v678
      %v680 = vpop.f32.mrb[0].mxu0
      %681 = vdwg.mxu0
      %v682 = vld [vmem:[%s5] sm:$0xff]
      %v683 = vld [vmem:[%s5 + $0x8] sm:$0xff]
      %685 = vset.pattern.permute.xlu0 0
      %686 = vperm.xlu0 %685, %v682
      %v687 = vpop.permute.xlu0 %686
      %690 = vset.pattern.permute.xlu0 0
      %691 = vperm.xlu0 %690, %v683
      %v692 = vpop.permute.xlu0 %691
      %v694 = vmul.f32 %v676, %v687
      %v695 = vmul.f32 %v679, %v692
      %v696 = vld [vmem:[%s6] sm:$0x1]
      %v698 = vlaneseq
      %v699 = vshrl.u32 %v698, 7
      %v700 = vsub.s32 0, %v699
      %v701 = vrot.slane %v696, %v700
      %v703 = vadd.f32 %v694, %v701
      %v704 = vadd.f32 %v695, %v701
      %v705 = vld [vmem:[%s7] sm:$0xff]
      %v706 = vld [vmem:[%s7 + $0x8] sm:$0xff]
      %708 = vset.pattern.permute.xlu0 0
      %709 = vperm.xlu0 %708, %v705
      %v710 = vpop.permute.xlu0 %709
      %713 = vset.pattern.permute.xlu0 0
      %714 = vperm.xlu0 %713, %v706
      %v715 = vpop.permute.xlu0 %714
      %v717 = vadd.f32 %v703, %v710
      %v718 = vadd.f32 %v704, %v715
      %vm719 = vcmp.gt.f32.partialorder %v717, 0.0
      %vm720 = vcmp.gt.f32.partialorder %v718, 0.0
      %v721 = vmul.f32 %v717, 0.2
      %v722 = vmul.f32 %v718, 0.2
      %v723 = vsel %vm719, %v717, %v721
      %v724 = vsel %vm720, %v718, %v722
      %v725 = vpack.c.bf16 %v724, %v723
      %v727 = vunpack.c.l.b16 %v725
      %v728 = vunpack.c.h.b16 %v725
      %v729 = vpack.c.b16 %v727, %v727
      %v730 = vpack.c.b16 %v728, %v728
      %vm733 = vcmask 650240
      %734 = vst.msk [vmem:[%s428] sm:$0xf] %vm733, %v729
      %735 = vst.msk [vmem:[%s428 + $0x4] sm:$0xf] %vm733, %v730
      %v736 = vld [vmem:[%s8] sm:$0xf]
      %v737 = vld [vmem:[%s8 + $0x4] sm:$0x3]
      %v738 = vunpack.c.l.bf16 %v736
      %v739 = vunpack.c.l.bf16 %v737
      %v740 = vld [vmem:[%s423] sm:$0x1]
      %v742 = vlaneseq
      %v743 = vshrl.u32 %v742, 7
      %v744 = vsub.s32 0, %v743
      %v745 = vrot.slane %v740, %v744
      %v747 = vmul.f32 %v738, %v745
      %v748 = vmul.f32 %v739, %v745
      %v749 = vpack.c.bf16 %v748, %v747
      %v750 = vld [vmem:[%s9] sm:$0xff]
      %v751 = vld [vmem:[%s9 + $0x8] sm:$0xf]
      %753 = vset.pattern.permute.xlu0 0
      %754 = vperm.xlu0 %753, %v750
      %v755 = vpop.permute.xlu0 %754
      %758 = vset.pattern.permute.xlu0 0
      %759 = vperm.xlu0 %758, %v751
      %v760 = vpop.permute.xlu0 %759
      %v763 = vsel %vm637, %v749, 0
      %765 = vmatprep.subr.bf16.mxu0 0
      %766 = vmatpush1.bf16.msra.mxu0 %v725
      %767 = vmatprep.subr.bf16.mxu0 0
      %768 = vmatpush1.bf16.msra.mxu0 0
      %769 = vmatprep.subr.bf16.mxu0 0
      %770 = vmatpush1.bf16.msra.mxu0 0
      %771 = vmatprep.subr.bf16.mxu0 0
      %772 = vmatpush1.bf16.msra.mxu0 0
      %773 = vmatprep.subr.bf16.mxu0 0
      %774 = vmatpush1.bf16.msra.mxu0 0
      %775 = vmatprep.subr.bf16.mxu0 0
      %776 = vmatpush1.bf16.msra.mxu0 0
      %777 = vmatprep.subr.bf16.mxu0 0
      %778 = vmatpush1.bf16.msra.mxu0 0
      %779 = vmatprep.subr.bf16.mxu0 0
      %780 = vmatpush1.bf16.msra.mxu0 0
      %781 = vmatprep.subr.bf16.mxu0 0
      %782 = vmatpush1.bf16.msra.mxu0 0
      %783 = vmatprep.subr.bf16.mxu0 0
      %784 = vmatpush1.bf16.msra.mxu0 0
      %785 = vmatprep.subr.bf16.mxu0 0
      %786 = vmatpush1.bf16.msra.mxu0 0
      %787 = vmatprep.subr.bf16.mxu0 0
      %788 = vmatpush1.bf16.msra.mxu0 0
      %789 = vmatprep.subr.bf16.mxu0 0
      %790 = vmatpush1.bf16.msra.mxu0 0
      %791 = vmatprep.subr.bf16.mxu0 0
      %792 = vmatpush1.bf16.msra.mxu0 0
      %793 = vmatprep.subr.bf16.mxu0 0
      %794 = vmatpush1.bf16.msra.mxu0 0
      %795 = vmatprep.subr.bf16.mxu0 0
      %796 = vmatpush1.bf16.msra.mxu0 0
      %797 = vmatprep.mubr.bf16.mxu0 0
      %798 = vmatmul.mubr.bf16.gmra.mrb[0].mxu0 %v763
      %v799 = vpop.f32.mrb[0].mxu0
      %v800 = vadd.f32 %v755, %v799
      %v801 = vpop.f32.mrb[0].mxu0
      %v802 = vpop.f32.mrb[0].mxu0
      %v803 = vadd.f32 %v760, %v802
      %v804 = vpop.f32.mrb[0].mxu0
      %805 = vdwg.mxu0
      %vm806 = vcmask 654336
      %807 = vst.msk [vmem:[%s433] sm:$0xff] %vm806, %v800
      %808 = vst.msk [vmem:[%s433 + $0x8] sm:$0xf] %vm733, %v803
      %p809 = scmp.lt.s32.totalorder %s23, 1
      %s810 = scalar_select %p809, %s23, 1
      %s811 = smul.addr %s810, 2
      %s812 = smul.addr %s811, 4
      %s813 = scalar_lea.vmem %s10, %s812
      %p814 = scmp.lt.s32.totalorder %s23, 1
      %s815 = scalar_select %p814, %s23, 1
      %s816 = smul.addr %s815, 2
      %s817 = smul.addr %s816, 8
      %s818 = scalar_lea.vmem %s11, %s817
      // Predicated region
      $region61: #{mobile_synthesis_forward.13} parent=59 // pred_check
        %p819 = pneg %p266
      $region62: #{mobile_synthesis_forward.13} parent=59 // pred_check_branch
        %821 = sbr.rel (%p819) target = $region64
      $region63: #{mobile_synthesis_forward.13} parent=59 // pred_region
        _
      $region64: #{mobile_synthesis_forward.13} parent=59 // pred_fallthru
        _
      // Predicated region
      $region65: #{mobile_synthesis_forward.13} parent=59 // pred_check
        %p822 = pneg %p292
      $region66: #{mobile_synthesis_forward.13} parent=59 // pred_check_branch
        %824 = sbr.rel (%p822) target = $region68
      $region67: #{mobile_synthesis_forward.13} parent=59 // pred_region
        _
      $region68: #{mobile_synthesis_forward.13} parent=59 // pred_fallthru
        _
    $region60: #{mobile_synthesis_forward.13} parent=5 // pred_fallthru
      _
    %p825 = scmp.le.s32.totalorder 2, %s18
    // Predicated region
    $region69: #{mobile_synthesis_forward.13} parent=5 // pred_check
      %p826 = pneg %p825
    $region70: #{mobile_synthesis_forward.13} parent=5 // pred_check_branch
      %828 = sbr.rel (%p826) target = $region72
    $region71: #{mobile_synthesis_forward.13} parent=5 // pred_region
      %s829 = ssub.s32 %s18, 2
      // Predicated region
      $region73: #{mobile_synthesis_forward.13} parent=71 // pred_check
        %p830 = pneg %p272
      $region74: #{mobile_synthesis_forward.13} parent=71 // pred_check_branch
        %832 = sbr.rel (%p830) target = $region76
      $region75: #{mobile_synthesis_forward.13} parent=71 // pred_region
        %p833 = scmp.lt.s32.totalorder %s24, 1
        %s834 = scalar_select %p833, %s24, 1
        %s835 = smul.addr %s834, 2
        %s836 = smul.addr %s835, 4
        %s837 = scalar_lea.vmem %s10, %s836
      $region76: #{mobile_synthesis_forward.13} parent=71 // pred_fallthru
        _
      // Predicated region
      $region77: #{mobile_synthesis_forward.13} parent=71 // pred_check
        %p838 = pneg %p298
      $region78: #{mobile_synthesis_forward.13} parent=71 // pred_check_branch
        %840 = sbr.rel (%p838) target = $region80
      $region79: #{mobile_synthesis_forward.13} parent=71 // pred_region
        %p841 = scmp.lt.s32.totalorder %s24, 1
        %s842 = scalar_select %p841, %s24, 1
        %s843 = smul.addr %s842, 2
        %s844 = smul.addr %s843, 8
        %s845 = scalar_lea.vmem %s11, %s844
      $region80: #{mobile_synthesis_forward.13} parent=71 // pred_fallthru
        _
    $region72: #{mobile_synthesis_forward.13} parent=5 // pred_fallthru
      _
  $region6: #{mobile_synthesis_forward.13} parent=0 // loop_footer
    %s22 = sadd.s32 1, %s18
  $region7: #{mobile_synthesis_forward.13} parent=0 // loop_footer_branch
    %17 = sbr.rel target = $region3
  $region8: #{mobile_synthesis_forward.13} parent=0 // loop_exit
    _

// kernel: mobile_synthesis_forward.14
$region0: #{mobile_synthesis_forward.14}
  #allocation0 [shape = 'u32[]', space=smem, size = 0x4, offset = 0x4, fixed_abs, tag = 'smem constant byte address 0x4 - core index']
  #allocation1 [shape = 'u32[144,128]{1,0:T(1,128)}', space=vmem, size = 0x12000, scoped, tag = 'internal scratch']
  %s0 = inlined_call_operand.vmem [shape: bf16[2,4,4,64], index: 0, kind: input, shape index: {}]
  %s1 = inlined_call_operand.vmem [shape: f32[2,4,4,1], index: 1, kind: input, shape index: {}]
  %s2 = inlined_call_operand.vmem [shape: bf16[2,4,4,64], index: 2, kind: output, shape index: {}]
  %s3 = sld [smem:[#allocation0]]
  $region41: #{mobile_synthesis_forward.14} parent=0
    _
  %s5 = ssub.s32 1, %s3
  %s6 = scalar_select 0, %s5, %s3
  loop: start=0, step=1, limit=4
  $region2: #{mobile_synthesis_forward.14} parent=0 // loop_pre_header
    _
  $region3: #{mobile_synthesis_forward.14} parent=0 // loop_header
    %s8 = sphi 0, %s12
    %p9 = scmp.ge.s32.totalorder %s8, 4
    %s15 = sphi 0, %s27
    %s16 = sphi 0, %s23
    %s17 = sphi 0, %s15
    %s18 = sphi 0, %s16
    %s19 = sphi 0, %s17
    %s20 = sphi 0, %s18
    %s32 = sphi 0, %s34
    %s35 = sphi 0, %s32
    %s36 = sphi 0, %s35
    %s52 = sphi 0, %s36
    %s58 = sphi 0, %s60
    %s61 = sphi 0, %s58
    %s62 = sphi 0, %s61
    %s78 = sphi 0, %s62
    %s86 = sphi 0, %s88
    %s89 = sphi 0, %s86
    %s90 = sphi 0, %s89
    %s106 = sphi 0, %s90
  $region4: #{mobile_synthesis_forward.14} parent=0 // loop_header_branch
    %11 = sbr.rel (%p9) target = $region8
  $region5: #{mobile_synthesis_forward.14} parent=0 // loop_body
    %s13 = ssub.s32 %s8, 1
    %s14 = ssub.s32 %s8, 2
    %s21 = sadd.s32 1, %s16
    %p22 = scmp.ge.s32.totalorder %s21, 1
    %s23 = scalar_select %p22, 0, %s21
    %s24 = sadd.s32 1, %s15
    %s25 = scalar_select %p22, %s24, %s15
    %p26 = scmp.ge.s32.totalorder %s25, 2
    %s27 = scalar_select %p26, 0, %s25
    %s28 = ssub.s32 %s15, %s27
    %s29 = ssub.s32 %s16, %s23
    %s30 = sor.u32 %s28, %s29
    %p31 = scmp.eq.s32.totalorder %s30, 0
    %s33 = sadd.s32 %s32, 1
    %s34 = scalar_select %p31, %s32, %s33
    %p37 = pneg %p31
    %p38 = scmp.eq.s32.totalorder %s8, 1
    %p39 = por %p37, %p38
    %p40 = scmp.ne.s32.totalorder %s32, %s35
    %p41 = scmp.eq.s32.totalorder %s8, 0
    %p42 = por %p40, %p41
    %p43 = scmp.ne.s32.totalorder %s32, %s35
    %p44 = scmp.eq.s32.totalorder %s13, 1
    %p45 = por %p43, %p44
    %p46 = scmp.ne.s32.totalorder %s35, %s36
    %p47 = scmp.eq.s32.totalorder %s13, 0
    %p48 = por %p46, %p47
    %p49 = scmp.ne.s32.totalorder %s35, %s36
    %p50 = scmp.eq.s32.totalorder %s14, 1
    %p51 = por %p49, %p50
    %p53 = scmp.ne.s32.totalorder %s36, %s52
    %p54 = scmp.eq.s32.totalorder %s14, 0
    %p55 = por %p53, %p54
    %s56 = ssub.s32 %s15, %s27
    %p57 = scmp.eq.s32.totalorder %s56, 0
    %s59 = sadd.s32 %s58, 1
    %s60 = scalar_select %p57, %s58, %s59
    %p63 = pneg %p57
    %p64 = scmp.eq.s32.totalorder %s8, 1
    %p65 = por %p63, %p64
    %p66 = scmp.ne.s32.totalorder %s58, %s61
    %p67 = scmp.eq.s32.totalorder %s8, 0
    %p68 = por %p66, %p67
    %p69 = scmp.ne.s32.totalorder %s58, %s61
    %p70 = scmp.eq.s32.totalorder %s13, 1
    %p71 = por %p69, %p70
    %p72 = scmp.ne.s32.totalorder %s61, %s62
    %p73 = scmp.eq.s32.totalorder %s13, 0
    %p74 = por %p72, %p73
    %p75 = scmp.ne.s32.totalorder %s61, %s62
    %p76 = scmp.eq.s32.totalorder %s14, 1
    %p77 = por %p75, %p76
    %p79 = scmp.ne.s32.totalorder %s62, %s78
    %p80 = scmp.eq.s32.totalorder %s14, 0
    %p81 = por %p79, %p80
    %s82 = ssub.s32 %s15, %s27
    %s83 = ssub.s32 %s16, %s23
    %s84 = sor.u32 %s82, %s83
    %p85 = scmp.eq.s32.totalorder %s84, 0
    %s87 = sadd.s32 %s86, 1
    %s88 = scalar_select %p85, %s86, %s87
    %p91 = pneg %p85
    %p92 = scmp.eq.s32.totalorder %s8, 1
    %p93 = por %p91, %p92
    %p94 = scmp.ne.s32.totalorder %s86, %s89
    %p95 = scmp.eq.s32.totalorder %s8, 0
    %p96 = por %p94, %p95
    %p97 = scmp.ne.s32.totalorder %s86, %s89
    %p98 = scmp.eq.s32.totalorder %s13, 1
    %p99 = por %p97, %p98
    %p100 = scmp.ne.s32.totalorder %s89, %s90
    %p101 = scmp.eq.s32.totalorder %s13, 0
    %p102 = por %p100, %p101
    %p103 = scmp.ne.s32.totalorder %s89, %s90
    %p104 = scmp.eq.s32.totalorder %s14, 1
    %p105 = por %p103, %p104
    %p107 = scmp.ne.s32.totalorder %s90, %s106
    %p108 = scmp.eq.s32.totalorder %s14, 0
    %p109 = por %p107, %p108
    %p110 = scmp.le.s32.totalorder 1, %s8
    %p111 = scmp.lt.s32.totalorder %s8, 3
    %p112 = pnand %p110, %p111
    %p113 = pneg %p112
    // Predicated region
    $region9: #{mobile_synthesis_forward.14} parent=5 // pred_check
      _
    $region10: #{mobile_synthesis_forward.14} parent=5 // pred_check_branch
      %115 = sbr.rel (%p112) target = $region12
    $region11: #{mobile_synthesis_forward.14} parent=5 // pred_region
      %s116 = ssub.s32 %s8, 1
    $region12: #{mobile_synthesis_forward.14} parent=5 // pred_fallthru
      _
    %p117 = scmp.lt.s32.totalorder %s8, 2
    // Predicated region
    $region13: #{mobile_synthesis_forward.14} parent=5 // pred_check
      %p118 = pneg %p117
    $region14: #{mobile_synthesis_forward.14} parent=5 // pred_check_branch
      %120 = sbr.rel (%p118) target = $region16
    $region15: #{mobile_synthesis_forward.14} parent=5 // pred_region
      // Predicated region
      $region17: #{mobile_synthesis_forward.14} parent=15 // pred_check
        %p121 = pneg %p42
      $region18: #{mobile_synthesis_forward.14} parent=15 // pred_check_branch
        %123 = sbr.rel (%p121) target = $region20
      $region19: #{mobile_synthesis_forward.14} parent=15 // pred_region
        %p124 = scmp.lt.s32.totalorder %s15, 1
        %s125 = scalar_select %p124, %s15, 1
        %p126 = scmp.lt.s32.totalorder %s16, 0
        %s127 = scalar_select %p126, %s16, 0
        %s128 = smul.addr %s125, 4
        %s129 = sadd.s32 %s127, %s128
        %s130 = smul.addr %s129, 2
        %s131 = scalar_lea.vmem %s0, %s130
      $region20: #{mobile_synthesis_forward.14} parent=15 // pred_fallthru
        _
      // Predicated region
      $region21: #{mobile_synthesis_forward.14} parent=15 // pred_check
        %p132 = pneg %p68
      $region22: #{mobile_synthesis_forward.14} parent=15 // pred_check_branch
        %134 = sbr.rel (%p132) target = $region24
      $region23: #{mobile_synthesis_forward.14} parent=15 // pred_region
        %p135 = scmp.lt.s32.totalorder %s15, 1
        %s136 = scalar_select %p135, %s15, 1
        %s137 = smul.addr %s136, 4
        %s138 = smul.addr %s137, 4
        %s139 = scalar_lea.vmem %s1, %s138
      $region24: #{mobile_synthesis_forward.14} parent=15 // pred_fallthru
        _
    $region16: #{mobile_synthesis_forward.14} parent=5 // pred_fallthru
      _
    %p140 = scmp.le.s32.totalorder 1, %s8
    %p141 = scmp.lt.s32.totalorder %s8, 3
    %p142 = pnand %p140, %p141
    %p143 = pneg %p142
    // Predicated region
    $region25: #{mobile_synthesis_forward.14} parent=5 // pred_check
      _
    $region26: #{mobile_synthesis_forward.14} parent=5 // pred_check_branch
      %145 = sbr.rel (%p142) target = $region28
    $region27: #{mobile_synthesis_forward.14} parent=5 // pred_region
      %s146 = ssub.s32 %s8, 1
      %p147 = scmp.lt.s32.totalorder %s17, 1
      %s148 = scalar_select %p147, %s17, 1
      %p149 = scmp.lt.s32.totalorder %s18, 0
      %s150 = scalar_select %p149, %s18, 0
      %s151 = smul.addr %s148, 4
      %s152 = sadd.s32 %s150, %s151
      %s153 = smul.addr %s152, 2
      %s154 = scalar_lea.vmem %s0, %s153
      %p155 = pneg %p48
      %p156 = pneg %p45
      %p157 = scmp.lt.s32.totalorder %s17, 1
      %s158 = scalar_select %p157, %s17, 1
      %s159 = smul.addr %s158, 4
      %s160 = smul.addr %s159, 4
      %s161 = scalar_lea.vmem %s1, %s160
      %p162 = pneg %p74
      %p163 = pneg %p71
      %p164 = pneg %p102
      %p165 = pneg %p99
      %p166 = scmp.lt.s32.totalorder %s17, 1
      %s167 = scalar_select %p166, %s17, 1
      %p168 = scmp.lt.s32.totalorder %s18, 0
      %s169 = scalar_select %p168, %s18, 0
      %s170 = smul.addr %s167, 4
      %s171 = sadd.s32 %s169, %s170
      %s172 = smul.addr %s171, 2
      %s173 = scalar_lea.vmem %s2, %s172
      %p174 = scmp.lt.s32.totalorder %s17, 1
      %s175 = scalar_select %p174, %s17, 1
      %p176 = scmp.lt.s32.totalorder %s18, 0
      %s177 = scalar_select %p176, %s18, 0
      %s178 = smul.addr %s175, 4
      %s179 = sadd.s32 %s177, %s178
      %s180 = smul.addr %s179, 2
      %s181 = scalar_lea.vmem %s0, %s180
      %p182 = scmp.lt.s32.totalorder %s17, 1
      %s183 = scalar_select %p182, %s17, 1
      %s184 = smul.addr %s183, 4
      %s185 = smul.addr %s184, 4
      %s186 = scalar_lea.vmem %s1, %s185
      %p187 = scmp.lt.s32.totalorder %s17, 1
      %s188 = scalar_select %p187, %s17, 1
      %p189 = scmp.lt.s32.totalorder %s18, 0
      %s190 = scalar_select %p189, %s18, 0
      %s191 = smul.addr %s188, 4
      %s192 = sadd.s32 %s190, %s191
      %s193 = smul.addr %s192, 2
      %s194 = scalar_lea.vmem %s2, %s193
      %v195 = vld [vmem:[%s181] sm:$0x3]
      %v196 = vunpack.c.l.bf16 %v195
      %v197 = vld [vmem:[%s186] sm:$0xf]
      %199 = vset.pattern.permute.xlu0 0
      %200 = vperm.xlu0 %199, %v197
      %v201 = vpop.permute.xlu0 %200
      %v203 = vmul.f32 %v196, %v201
      %s204 = scalar_lea.vmem %s181, 2
      %v205 = vld [vmem:[%s204] sm:$0x3]
      %v206 = vunpack.c.l.bf16 %v205
      %s207 = scalar_lea.vmem %s186, 4
      %v208 = vld [vmem:[%s207] sm:$0xf]
      %210 = vset.pattern.permute.xlu0 0
      %211 = vperm.xlu0 %210, %v208
      %v212 = vpop.permute.xlu0 %211
      %v214 = vmul.f32 %v206, %v212
      %s215 = scalar_lea.vmem %s181, 4
      %v216 = vld [vmem:[%s215] sm:$0x3]
      %v217 = vunpack.c.l.bf16 %v216
      %s218 = scalar_lea.vmem %s186, 8
      %v219 = vld [vmem:[%s218] sm:$0xf]
      %221 = vset.pattern.permute.xlu0 0
      %222 = vperm.xlu0 %221, %v219
      %v223 = vpop.permute.xlu0 %222
      %v225 = vmul.f32 %v217, %v223
      %s226 = scalar_lea.vmem %s181, 6
      %v227 = vld [vmem:[%s226] sm:$0x3]
      %v228 = vunpack.c.l.bf16 %v227
      %s229 = scalar_lea.vmem %s186, 12
      %v230 = vld [vmem:[%s229] sm:$0xf]
      %232 = vset.pattern.permute.xlu0 0
      %233 = vperm.xlu0 %232, %v230
      %v234 = vpop.permute.xlu0 %233
      %v236 = vmul.f32 %v228, %v234
      %v237 = vadd.f32 %v203, %v214
      %v238 = vadd.f32 %v237, %v225
      %v239 = vadd.f32 %v238, %v236
      %v240 = vmul.f32 %v239, 0.5
      %v241 = vpack.c.bf16 %v240, %v240
      %vm242 = vcmask 517120
      %243 = vst.msk [vmem:[%s194] sm:$0x3] %vm242, %v241
      %v244 = vsub.f32 %v237, %v225
      %v245 = vsub.f32 %v244, %v236
      %v246 = vmul.f32 %v245, 0.5
      %v247 = vpack.c.bf16 %v246, %v246
      %s248 = scalar_lea.vmem %s194, 2
      %249 = vst.msk [vmem:[%s248] sm:$0x3] %vm242, %v247
      %v250 = vsub.f32 %v203, %v214
      %v251 = vadd.f32 %v250, %v225
      %v252 = vsub.f32 %v251, %v236
      %v253 = vmul.f32 %v252, 0.5
      %v254 = vpack.c.bf16 %v253, %v253
      %s255 = scalar_lea.vmem %s194, 4
      %256 = vst.msk [vmem:[%s255] sm:$0x3] %vm242, %v254
      %v257 = vsub.f32 %v250, %v225
      %v258 = vadd.f32 %v257, %v236
      %v259 = vmul.f32 %v258, 0.5
      %v260 = vpack.c.bf16 %v259, %v259
      %s261 = scalar_lea.vmem %s194, 6
      %262 = vst.msk [vmem:[%s261] sm:$0x3] %vm242, %v260
      %p263 = scmp.lt.s32.totalorder %s17, 1
      %s264 = scalar_select %p263, %s17, 1
      %p265 = scmp.lt.s32.totalorder %s18, 0
      %s266 = scalar_select %p265, %s18, 0
      %s267 = smul.addr %s264, 4
      %s268 = sadd.s32 %s266, %s267
      %s269 = smul.addr %s268, 2
      %s270 = scalar_lea.vmem %s2, %s269
      // Predicated region
      $region29: #{mobile_synthesis_forward.14} parent=27 // pred_check
        %p271 = pneg %p99
      $region30: #{mobile_synthesis_forward.14} parent=27 // pred_check_branch
        %273 = sbr.rel (%p271) target = $region32
      $region31: #{mobile_synthesis_forward.14} parent=27 // pred_region
        _
      $region32: #{mobile_synthesis_forward.14} parent=27 // pred_fallthru
        _
    $region28: #{mobile_synthesis_forward.14} parent=5 // pred_fallthru
      _
    %p274 = scmp.le.s32.totalorder 2, %s8
    // Predicated region
    $region33: #{mobile_synthesis_forward.14} parent=5 // pred_check
      %p275 = pneg %p274
    $region34: #{mobile_synthesis_forward.14} parent=5 // pred_check_branch
      %277 = sbr.rel (%p275) target = $region36
    $region35: #{mobile_synthesis_forward.14} parent=5 // pred_region
      %s278 = ssub.s32 %s8, 2
      // Predicated region
      $region37: #{mobile_synthesis_forward.14} parent=35 // pred_check
        %p279 = pneg %p105
      $region38: #{mobile_synthesis_forward.14} parent=35 // pred_check_branch
        %281 = sbr.rel (%p279) target = $region40
      $region39: #{mobile_synthesis_forward.14} parent=35 // pred_region
        %p282 = scmp.lt.s32.totalorder %s19, 1
        %s283 = scalar_select %p282, %s19, 1
        %p284 = scmp.lt.s32.totalorder %s20, 0
        %s285 = scalar_select %p284, %s20, 0
        %s286 = smul.addr %s283, 4
        %s287 = sadd.s32 %s285, %s286
        %s288 = smul.addr %s287, 2
        %s289 = scalar_lea.vmem %s2, %s288
      $region40: #{mobile_synthesis_forward.14} parent=35 // pred_fallthru
        _
    $region36: #{mobile_synthesis_forward.14} parent=5 // pred_fallthru
      _
  $region6: #{mobile_synthesis_forward.14} parent=0 // loop_footer
    %s12 = sadd.s32 1, %s8
  $region7: #{mobile_synthesis_forward.14} parent=0 // loop_footer_branch
    %7 = sbr.rel target = $region3
  $region8: #{mobile_synthesis_forward.14} parent=0 // loop_exit
    _

// kernel: mobile_synthesis_forward.15
$region0: #{mobile_synthesis_forward.15}
  #allocation0 [shape = 'u32[]', space=smem, size = 0x4, offset = 0x4, fixed_abs, tag = 'smem constant byte address 0x4 - core index']
  #allocation1 [shape = 'u32[144,128]{1,0:T(1,128)}', space=vmem, size = 0x12000, scoped, tag = 'internal scratch']
  %s0 = inlined_call_operand.vmem [shape: bf16[2,4,326], index: 0, kind: input, shape index: {}]
  %s1 = inlined_call_operand.vmem [shape: f32[2,4,1], index: 1, kind: input, shape index: {}]
  %s2 = inlined_call_operand.vmem [shape: bf16[4,9], index: 2, kind: input, shape index: {}]
  %s3 = inlined_call_operand.vmem [shape: bf16[8,4], index: 3, kind: input, shape index: {}]
  %s4 = inlined_call_operand.vmem [shape: f32[8,1], index: 4, kind: input, shape index: {}]
  %s5 = inlined_call_operand.vmem [shape: f32[1,288], index: 5, kind: input, shape index: {}]
  %s6 = inlined_call_operand.vmem [shape: f32[8,1], index: 6, kind: input, shape index: {}]
  %s7 = inlined_call_operand.vmem [shape: bf16[2,8,288], index: 7, kind: output, shape index: {}]
  %s8 = sld [smem:[#allocation0]]
  $region61: #{mobile_synthesis_forward.15} parent=0
    _
  %s10 = ssub.s32 1, %s8
  %s11 = scalar_select 0, %s10, %s8
  loop: start=0, step=1, limit=4
  $region2: #{mobile_synthesis_forward.15} parent=0 // loop_pre_header
    _
  $region3: #{mobile_synthesis_forward.15} parent=0 // loop_header
    %s13 = sphi 0, %s17
    %p14 = scmp.ge.s32.totalorder %s13, 4
    %s23 = sphi 0, %s25
    %s26 = sphi 0, %s23
    %s27 = sphi 0, %s26
    %s43 = sphi 0, %s27
    %s49 = sphi 0, %s51
    %s52 = sphi 0, %s49
    %s53 = sphi 0, %s52
    %s69 = sphi 0, %s53
    %s73 = sphi 0, %s73
    %s75 = sphi 0, %s73
    %s76 = sphi 0, %s75
    %s90 = sphi 0, %s76
    %s94 = sphi 0, %s94
    %s96 = sphi 0, %s94
    %s97 = sphi 0, %s96
    %s111 = sphi 0, %s97
    %s115 = sphi 0, %s115
    %s117 = sphi 0, %s115
    %s118 = sphi 0, %s117
    %s132 = sphi 0, %s118
    %s136 = sphi 0, %s136
    %s138 = sphi 0, %s136
    %s139 = sphi 0, %s138
    %s153 = sphi 0, %s139
    %s157 = sphi 0, %s157
    %s159 = sphi 0, %s157
    %s160 = sphi 0, %s159
    %s174 = sphi 0, %s160
    %s180 = sphi 0, %s182
    %s183 = sphi 0, %s180
    %s184 = sphi 0, %s183
    %s200 = sphi 0, %s184
  $region4: #{mobile_synthesis_forward.15} parent=0 // loop_header_branch
    %16 = sbr.rel (%p14) target = $region8
  $region5: #{mobile_synthesis_forward.15} parent=0 // loop_body
    %s18 = ssub.s32 %s13, 1
    %s19 = ssub.s32 %s13, 2
    %s20 = sadd.s32 %s13, 1
    %s21 = ssub.s32 %s13, %s20
    %p22 = scmp.eq.s32.totalorder %s21, 0
    %s24 = sadd.s32 %s23, 1
    %s25 = scalar_select %p22, %s23, %s24
    %p28 = pneg %p22
    %p29 = scmp.eq.s32.totalorder %s13, 1
    %p30 = por %p28, %p29
    %p31 = scmp.ne.s32.totalorder %s23, %s26
    %p32 = scmp.eq.s32.totalorder %s13, 0
    %p33 = por %p31, %p32
    %p34 = scmp.ne.s32.totalorder %s23, %s26
    %p35 = scmp.eq.s32.totalorder %s18, 1
    %p36 = por %p34, %p35
    %p37 = scmp.ne.s32.totalorder %s26, %s27
    %p38 = scmp.eq.s32.totalorder %s18, 0
    %p39 = por %p37, %p38
    %p40 = scmp.ne.s32.totalorder %s26, %s27
    %p41 = scmp.eq.s32.totalorder %s19, 1
    %p42 = por %p40, %p41
    %p44 = scmp.ne.s32.totalorder %s27, %s43
    %p45 = scmp.eq.s32.totalorder %s19, 0
    %p46 = por %p44, %p45
    %s47 = ssub.s32 %s13, %s20
    %p48 = scmp.eq.s32.totalorder %s47, 0
    %s50 = sadd.s32 %s49, 1
    %s51 = scalar_select %p48, %s49, %s50
    %p54 = pneg %p48
    %p55 = scmp.eq.s32.totalorder %s13, 1
    %p56 = por %p54, %p55
    %p57 = scmp.ne.s32.totalorder %s49, %s52
    %p58 = scmp.eq.s32.totalorder %s13, 0
    %p59 = por %p57, %p58
    %p60 = scmp.ne.s32.totalorder %s49, %s52
    %p61 = scmp.eq.s32.totalorder %s18, 1
    %p62 = por %p60, %p61
    %p63 = scmp.ne.s32.totalorder %s52, %s53
    %p64 = scmp.eq.s32.totalorder %s18, 0
    %p65 = por %p63, %p64
    %p66 = scmp.ne.s32.totalorder %s52, %s53
    %p67 = scmp.eq.s32.totalorder %s19, 1
    %p68 = por %p66, %p67
    %p70 = scmp.ne.s32.totalorder %s53, %s69
    %p71 = scmp.eq.s32.totalorder %s19, 0
    %p72 = por %p70, %p71
    %s74 = sadd.s32 %s73, 1
    %p77 = scmp.eq.s32.totalorder %s13, 1
    %p78 = scmp.ne.s32.totalorder %s73, %s75
    %p79 = scmp.eq.s32.totalorder %s13, 0
    %p80 = por %p78, %p79
    %p81 = scmp.ne.s32.totalorder %s73, %s75
    %p82 = scmp.eq.s32.totalorder %s18, 1
    %p83 = por %p81, %p82
    %p84 = scmp.ne.s32.totalorder %s75, %s76
    %p85 = scmp.eq.s32.totalorder %s18, 0
    %p86 = por %p84, %p85
    %p87 = scmp.ne.s32.totalorder %s75, %s76
    %p88 = scmp.eq.s32.totalorder %s19, 1
    %p89 = por %p87, %p88
    %p91 = scmp.ne.s32.totalorder %s76, %s90
    %p92 = scmp.eq.s32.totalorder %s19, 0
    %p93 = por %p91, %p92
    %s95 = sadd.s32 %s94, 1
    %p98 = scmp.eq.s32.totalorder %s13, 1
    %p99 = scmp.ne.s32.totalorder %s94, %s96
    %p100 = scmp.eq.s32.totalorder %s13, 0
    %p101 = por %p99, %p100
    %p102 = scmp.ne.s32.totalorder %s94, %s96
    %p103 = scmp.eq.s32.totalorder %s18, 1
    %p104 = por %p102, %p103
    %p105 = scmp.ne.s32.totalorder %s96, %s97
    %p106 = scmp.eq.s32.totalorder %s18, 0
    %p107 = por %p105, %p106
    %p108 = scmp.ne.s32.totalorder %s96, %s97
    %p109 = scmp.eq.s32.totalorder %s19, 1
    %p110 = por %p108, %p109
    %p112 = scmp.ne.s32.totalorder %s97, %s111
    %p113 = scmp.eq.s32.totalorder %s19, 0
    %p114 = por %p112, %p113
    %s116 = sadd.s32 %s115, 1
    %p119 = scmp.eq.s32.totalorder %s13, 1
    %p120 = scmp.ne.s32.totalorder %s115, %s117
    %p121 = scmp.eq.s32.totalorder %s13, 0
    %p122 = por %p120, %p121
    %p123 = scmp.ne.s32.totalorder %s115, %s117
    %p124 = scmp.eq.s32.totalorder %s18, 1
    %p125 = por %p123, %p124
    %p126 = scmp.ne.s32.totalorder %s117, %s118
    %p127 = scmp.eq.s32.totalorder %s18, 0
    %p128 = por %p126, %p127
    %p129 = scmp.ne.s32.totalorder %s117, %s118
    %p130 = scmp.eq.s32.totalorder %s19, 1
    %p131 = por %p129, %p130
    %p133 = scmp.ne.s32.totalorder %s118, %s132
    %p134 = scmp.eq.s32.totalorder %s19, 0
    %p135 = por %p133, %p134
    %s137 = sadd.s32 %s136, 1
    %p140 = scmp.eq.s32.totalorder %s13, 1
    %p141 = scmp.ne.s32.totalorder %s136, %s138
    %p142 = scmp.eq.s32.totalorder %s13, 0
    %p143 = por %p141, %p142
    %p144 = scmp.ne.s32.totalorder %s136, %s138
    %p145 = scmp.eq.s32.totalorder %s18, 1
    %p146 = por %p144, %p145
    %p147 = scmp.ne.s32.totalorder %s138, %s139
    %p148 = scmp.eq.s32.totalorder %s18, 0
    %p149 = por %p147, %p148
    %p150 = scmp.ne.s32.totalorder %s138, %s139
    %p151 = scmp.eq.s32.totalorder %s19, 1
    %p152 = por %p150, %p151
    %p154 = scmp.ne.s32.totalorder %s139, %s153
    %p155 = scmp.eq.s32.totalorder %s19, 0
    %p156 = por %p154, %p155
    %s158 = sadd.s32 %s157, 1
    %p161 = scmp.eq.s32.totalorder %s13, 1
    %p162 = scmp.ne.s32.totalorder %s157, %s159
    %p163 = scmp.eq.s32.totalorder %s13, 0
    %p164 = por %p162, %p163
    %p165 = scmp.ne.s32.totalorder %s157, %s159
    %p166 = scmp.eq.s32.totalorder %s18, 1
    %p167 = por %p165, %p166
    %p168 = scmp.ne.s32.totalorder %s159, %s160
    %p169 = scmp.eq.s32.totalorder %s18, 0
    %p170 = por %p168, %p169
    %p171 = scmp.ne.s32.totalorder %s159, %s160
    %p172 = scmp.eq.s32.totalorder %s19, 1
    %p173 = por %p171, %p172
    %p175 = scmp.ne.s32.totalorder %s160, %s174
    %p176 = scmp.eq.s32.totalorder %s19, 0
    %p177 = por %p175, %p176
    %s178 = ssub.s32 %s13, %s20
    %p179 = scmp.eq.s32.totalorder %s178, 0
    %s181 = sadd.s32 %s180, 1
    %s182 = scalar_select %p179, %s180, %s181
    %p185 = pneg %p179
    %p186 = scmp.eq.s32.totalorder %s13, 1
    %p187 = por %p185, %p186
    %p188 = scmp.ne.s32.totalorder %s180, %s183
    %p189 = scmp.eq.s32.totalorder %s13, 0
    %p190 = por %p188, %p189
    %p191 = scmp.ne.s32.totalorder %s180, %s183
    %p192 = scmp.eq.s32.totalorder %s18, 1
    %p193 = por %p191, %p192
    %p194 = scmp.ne.s32.totalorder %s183, %s184
    %p195 = scmp.eq.s32.totalorder %s18, 0
    %p196 = por %p194, %p195
    %p197 = scmp.ne.s32.totalorder %s183, %s184
    %p198 = scmp.eq.s32.totalorder %s19, 1
    %p199 = por %p197, %p198
    %p201 = scmp.ne.s32.totalorder %s184, %s200
    %p202 = scmp.eq.s32.totalorder %s19, 0
    %p203 = por %p201, %p202
    %p204 = scmp.le.s32.totalorder 1, %s13
    %p205 = scmp.lt.s32.totalorder %s13, 3
    %p206 = pnand %p204, %p205
    %p207 = pneg %p206
    // Predicated region
    $region9: #{mobile_synthesis_forward.15} parent=5 // pred_check
      _
    $region10: #{mobile_synthesis_forward.15} parent=5 // pred_check_branch
      %209 = sbr.rel (%p206) target = $region12
    $region11: #{mobile_synthesis_forward.15} parent=5 // pred_region
      %s210 = ssub.s32 %s13, 1
      // Predicated region
      $region13: #{mobile_synthesis_forward.15} parent=11 // pred_check
        %p211 = pneg %p86
      $region14: #{mobile_synthesis_forward.15} parent=11 // pred_check_branch
        %213 = sbr.rel (%p211) target = $region16
      $region15: #{mobile_synthesis_forward.15} parent=11 // pred_region
        _
      $region16: #{mobile_synthesis_forward.15} parent=11 // pred_fallthru
        _
      // Predicated region
      $region17: #{mobile_synthesis_forward.15} parent=11 // pred_check
        %p214 = pneg %p107
      $region18: #{mobile_synthesis_forward.15} parent=11 // pred_check_branch
        %216 = sbr.rel (%p214) target = $region20
      $region19: #{mobile_synthesis_forward.15} parent=11 // pred_region
        _
      $region20: #{mobile_synthesis_forward.15} parent=11 // pred_fallthru
        _
      // Predicated region
      $region21: #{mobile_synthesis_forward.15} parent=11 // pred_check
        %p217 = pneg %p128
      $region22: #{mobile_synthesis_forward.15} parent=11 // pred_check_branch
        %219 = sbr.rel (%p217) target = $region24
      $region23: #{mobile_synthesis_forward.15} parent=11 // pred_region
        _
      $region24: #{mobile_synthesis_forward.15} parent=11 // pred_fallthru
        _
      // Predicated region
      $region25: #{mobile_synthesis_forward.15} parent=11 // pred_check
        %p220 = pneg %p149
      $region26: #{mobile_synthesis_forward.15} parent=11 // pred_check_branch
        %222 = sbr.rel (%p220) target = $region28
      $region27: #{mobile_synthesis_forward.15} parent=11 // pred_region
        _
      $region28: #{mobile_synthesis_forward.15} parent=11 // pred_fallthru
        _
      // Predicated region
      $region29: #{mobile_synthesis_forward.15} parent=11 // pred_check
        %p223 = pneg %p170
      $region30: #{mobile_synthesis_forward.15} parent=11 // pred_check_branch
        %225 = sbr.rel (%p223) target = $region32
      $region31: #{mobile_synthesis_forward.15} parent=11 // pred_region
        _
      $region32: #{mobile_synthesis_forward.15} parent=11 // pred_fallthru
        _
    $region12: #{mobile_synthesis_forward.15} parent=5 // pred_fallthru
      _
    %p226 = scmp.lt.s32.totalorder %s13, 2
    // Predicated region
    $region33: #{mobile_synthesis_forward.15} parent=5 // pred_check
      %p227 = pneg %p226
    $region34: #{mobile_synthesis_forward.15} parent=5 // pred_check_branch
      %229 = sbr.rel (%p227) target = $region36
    $region35: #{mobile_synthesis_forward.15} parent=5 // pred_region
      // Predicated region
      $region37: #{mobile_synthesis_forward.15} parent=35 // pred_check
        %p230 = pneg %p33
      $region38: #{mobile_synthesis_forward.15} parent=35 // pred_check_branch
        %232 = sbr.rel (%p230) target = $region40
      $region39: #{mobile_synthesis_forward.15} parent=35 // pred_region
        %p233 = scmp.lt.s32.totalorder %s13, 1
        %s234 = scalar_select %p233, %s13, 1
        %s235 = smul.addr %s234, 3
        %s236 = smul.addr %s235, 2
        %s237 = scalar_lea.vmem %s0, %s236
      $region40: #{mobile_synthesis_forward.15} parent=35 // pred_fallthru
        _
      // Predicated region
      $region41: #{mobile_synthesis_forward.15} parent=35 // pred_check
        %p238 = pneg %p59
      $region42: #{mobile_synthesis_forward.15} parent=35 // pred_check_branch
        %240 = sbr.rel (%p238) target = $region44
      $region43: #{mobile_synthesis_forward.15} parent=35 // pred_region
        %p241 = scmp.lt.s32.totalorder %s13, 1
        %s242 = scalar_select %p241, %s13, 1
        %s243 = smul.addr %s242, 4
        %s244 = scalar_lea.vmem %s1, %s243
      $region44: #{mobile_synthesis_forward.15} parent=35 // pred_fallthru
        _
    $region36: #{mobile_synthesis_forward.15} parent=5 // pred_fallthru
      _
    %p245 = scmp.le.s32.totalorder 1, %s13
    %p246 = scmp.lt.s32.totalorder %s13, 3
    %p247 = pnand %p245, %p246
    %p248 = pneg %p247
    // Predicated region
    $region45: #{mobile_synthesis_forward.15} parent=5 // pred_check
      _
    $region46: #{mobile_synthesis_forward.15} parent=5 // pred_check_branch
      %250 = sbr.rel (%p247) target = $region48
    $region47: #{mobile_synthesis_forward.15} parent=5 // pred_region
      %s251 = ssub.s32 %s13, 1
      %p252 = scmp.lt.s32.totalorder %s18, 1
      %s253 = scalar_select %p252, %s18, 1
      %s254 = smul.addr %s253, 3
      %s255 = smul.addr %s254, 2
      %s256 = scalar_lea.vmem %s0, %s255
      %p257 = pneg %p39
      %p258 = pneg %p36
      %p259 = scmp.lt.s32.totalorder %s18, 1
      %s260 = scalar_select %p259, %s18, 1
      %s261 = smul.addr %s260, 4
      %s262 = scalar_lea.vmem %s1, %s261
      %p263 = pneg %p65
      %p264 = pneg %p62
      %p265 = pneg %p86
      %p266 = pneg %p83
      %p267 = pneg %p107
      %p268 = pneg %p104
      %p269 = pneg %p128
      %p270 = pneg %p125
      %p271 = pneg %p149
      %p272 = pneg %p146
      %p273 = pneg %p170
      %p274 = pneg %p167
      %p275 = pneg %p196
      %p276 = pneg %p193
      %p277 = scmp.lt.s32.totalorder %s18, 1
      %s278 = scalar_select %p277, %s18, 1
      %s279 = smul.addr %s278, 3
      %s280 = smul.addr %s279, 4
      %s281 = scalar_lea.vmem %s7, %s280
      %p282 = scmp.lt.s32.totalorder %s18, 1
      %s283 = scalar_select %p282, %s18, 1
      %s284 = smul.addr %s283, 3
      %s285 = smul.addr %s284, 2
      %s286 = scalar_lea.vmem %s0, %s285
      %p287 = scmp.lt.s32.totalorder %s18, 1
      %s288 = scalar_select %p287, %s18, 1
      %s289 = smul.addr %s288, 4
      %s290 = scalar_lea.vmem %s1, %s289
      %p291 = scmp.lt.s32.totalorder %s18, 1
      %s292 = scalar_select %p291, %s18, 1
      %s293 = smul.addr %s292, 3
      %s294 = smul.addr %s293, 4
      %s295 = scalar_lea.vmem %s7, %s294
      %v297 = vld [vmem:[%s2] sm:$0x3]
      %v298 = vunpack.c.l.bf16 %v297
      %v299 = vld [vmem:[%s290] sm:$0xf]
      %301 = vset.pattern.permute.xlu0 0
      %302 = vperm.xlu0 %301, %v299
      %v303 = vpop.permute.xlu0 %302
      %v305 = vmul.f32 %v298, %v303
      %v306 = vld [vmem:[%s286] sm:$0x3f]
      %v307 = vunpack.c.l.bf16 %v306
      %v308 = vunpack.c.h.bf16 %v306
      %310 = vset.pattern.permute.xlu0 0
      %311 = vperm.xlu0 %310, %v305
      %v312 = vpop.permute.xlu0 %311
      %v315 = vunpack.c.l.s4 839922192
      %v316 = vunpack.c.0.s8 %v315
      %v317 = vlaneseq
      %v318 = vshrl.u32 %v317, 7
      %v319 = vsub.s32 %v316, %v318
      %v320 = vrot.slane %v312, %v319
      %v321 = vmul.f32 %v307, %v320
      %v322 = vmul.f32 %v308, %v320
      %323 = vset.pattern.permute.xlu0 1
      %324 = vperm.xlu0 %323, %v305
      %v325 = vpop.permute.xlu0 %324
      %v328 = vunpack.c.l.s4 839922192
      %v329 = vunpack.c.0.s8 %v328
      %v330 = vlaneseq
      %v331 = vshrl.u32 %v330, 7
      %v332 = vsub.s32 %v329, %v331
      %v333 = vrot.slane %v325, %v332
      %v334 = vmul.f32 %v307, %v333
      %v335 = vmul.f32 %v308, %v333
      %338 = vrot.lane.b32.xlu0 %v334, 127
      %v339 = vpop.permute.xlu0 %338
      %340 = vrot.lane.b32.xlu0 %v335, 127
      %v341 = vpop.permute.xlu0 %340
      %v342 = vrot.slane %v339, 4
      %v343 = vrot.slane %v341, 4
      %vm344 = vcmask 1043456
      %v345 = vsel %vm344, %v342, %v343
      %vm346 = vcmask 1039360
      %v347 = vsel %vm346, %v339, %v345
      %v350 = vadd.f32 %v321, %v347
      %v351 = vadd.f32 %v322, %v341
      %352 = vset.pattern.permute.xlu0 2
      %353 = vperm.xlu0 %352, %v305
      %v354 = vpop.permute.xlu0 %353
      %v357 = vunpack.c.l.s4 839922192
      %v358 = vunpack.c.0.s8 %v357
      %v359 = vlaneseq
      %v360 = vshrl.u32 %v359, 7
      %v361 = vsub.s32 %v358, %v360
      %v362 = vrot.slane %v354, %v361
      %v363 = vmul.f32 %v307, %v362
      %v364 = vmul.f32 %v308, %v362
      %367 = vrot.lane.b32.xlu0 %v363, 126
      %v368 = vpop.permute.xlu0 %367
      %369 = vrot.lane.b32.xlu0 %v364, 126
      %v370 = vpop.permute.xlu0 %369
      %v371 = vrot.slane %v368, 4
      %v372 = vrot.slane %v370, 4
      %v373 = vsel %vm344, %v371, %v372
      %vm374 = vcmask 1031168
      %v375 = vsel %vm374, %v368, %v373
      %v378 = vadd.f32 %v350, %v375
      %v379 = vadd.f32 %v351, %v370
      %380 = vset.pattern.permute.xlu0 3
      %381 = vperm.xlu0 %380, %v305
      %v382 = vpop.permute.xlu0 %381
      %v385 = vunpack.c.l.s4 839922192
      %v386 = vunpack.c.0.s8 %v385
      %v387 = vlaneseq
      %v388 = vshrl.u32 %v387, 7
      %v389 = vsub.s32 %v386, %v388
      %v390 = vrot.slane %v382, %v389
      %v391 = vmul.f32 %v307, %v390
      %v392 = vmul.f32 %v308, %v390
      %395 = vrot.lane.b32.xlu0 %v391, 110
      %v396 = vpop.permute.xlu0 %395
      %397 = vrot.lane.b32.xlu0 %v392, 110
      %v398 = vpop.permute.xlu0 %397
      %v399 = vrot.slane %v396, 4
      %v400 = vrot.slane %v398, 4
      %v401 = vsel %vm344, %v399, %v400
      %vm402 = vcmask 900096
      %v403 = vsel %vm402, %v396, %v401
      %v406 = vadd.f32 %v378, %v403
      %v407 = vadd.f32 %v379, %v398
      %408 = vset.pattern.permute.xlu0 4
      %409 = vperm.xlu0 %408, %v305
      %v410 = vpop.permute.xlu0 %409
      %v413 = vunpack.c.l.s4 839922192
      %v414 = vunpack.c.0.s8 %v413
      %v415 = vlaneseq
      %v416 = vshrl.u32 %v415, 7
      %v417 = vsub.s32 %v414, %v416
      %v418 = vrot.slane %v410, %v417
      %v419 = vmul.f32 %v307, %v418
      %v420 = vmul.f32 %v308, %v418
      %423 = vrot.lane.b32.xlu0 %v419, 109
      %v424 = vpop.permute.xlu0 %423
      %425 = vrot.lane.b32.xlu0 %v420, 109
      %v426 = vpop.permute.xlu0 %425
      %v427 = vrot.slane %v424, 4
      %v428 = vrot.slane %v426, 4
      %v429 = vsel %vm344, %v427, %v428
      %vm430 = vcmask 891904
      %v431 = vsel %vm430, %v424, %v429
      %v434 = vadd.f32 %v406, %v431
      %v435 = vadd.f32 %v407, %v426
      %436 = vset.pattern.permute.xlu0 5
      %437 = vperm.xlu0 %436, %v305
      %v438 = vpop.permute.xlu0 %437
      %v441 = vunpack.c.l.s4 839922192
      %v442 = vunpack.c.0.s8 %v441
      %v443 = vlaneseq
      %v444 = vshrl.u32 %v443, 7
      %v445 = vsub.s32 %v442, %v444
      %v446 = vrot.slane %v438, %v445
      %v447 = vmul.f32 %v307, %v446
      %v448 = vmul.f32 %v308, %v446
      %451 = vrot.lane.b32.xlu0 %v447, 108
      %v452 = vpop.permute.xlu0 %451
      %453 = vrot.lane.b32.xlu0 %v448, 108
      %v454 = vpop.permute.xlu0 %453
      %v455 = vrot.slane %v452, 4
      %v456 = vrot.slane %v454, 4
      %v457 = vsel %vm344, %v455, %v456
      %vm458 = vcmask 883712
      %v459 = vsel %vm458, %v452, %v457
      %v462 = vadd.f32 %v434, %v459
      %v463 = vadd.f32 %v435, %v454
      %464 = vset.pattern.permute.xlu0 6
      %465 = vperm.xlu0 %464, %v305
      %v466 = vpop.permute.xlu0 %465
      %v469 = vunpack.c.l.s4 839922192
      %v470 = vunpack.c.0.s8 %v469
      %v471 = vlaneseq
      %v472 = vshrl.u32 %v471, 7
      %v473 = vsub.s32 %v470, %v472
      %v474 = vrot.slane %v466, %v473
      %v475 = vmul.f32 %v307, %v474
      %v476 = vmul.f32 %v308, %v474
      %479 = vrot.lane.b32.xlu0 %v475, 92
      %v480 = vpop.permute.xlu0 %479
      %481 = vrot.lane.b32.xlu0 %v476, 92
      %v482 = vpop.permute.xlu0 %481
      %v483 = vrot.slane %v480, 4
      %v484 = vrot.slane %v482, 4
      %v485 = vsel %vm344, %v483, %v484
      %vm486 = vcmask 752640
      %v487 = vsel %vm486, %v480, %v485
      %v490 = vadd.f32 %v462, %v487
      %v491 = vadd.f32 %v463, %v482
      %492 = vset.pattern.permute.xlu0 7
      %493 = vperm.xlu0 %492, %v305
      %v494 = vpop.permute.xlu0 %493
      %v497 = vunpack.c.l.s4 839922192
      %v498 = vunpack.c.0.s8 %v497
      %v499 = vlaneseq
      %v500 = vshrl.u32 %v499, 7
      %v501 = vsub.s32 %v498, %v500
      %v502 = vrot.slane %v494, %v501
      %v503 = vmul.f32 %v307, %v502
      %v504 = vmul.f32 %v308, %v502
      %507 = vrot.lane.b32.xlu0 %v503, 91
      %v508 = vpop.permute.xlu0 %507
      %509 = vrot.lane.b32.xlu0 %v504, 91
      %v510 = vpop.permute.xlu0 %509
      %v511 = vrot.slane %v508, 4
      %v512 = vrot.slane %v510, 4
      %v513 = vsel %vm344, %v511, %v512
      %vm514 = vcmask 744448
      %v515 = vsel %vm514, %v508, %v513
      %v518 = vadd.f32 %v490, %v515
      %v519 = vadd.f32 %v491, %v510
      %520 = vset.pattern.permute.xlu0 8
      %521 = vperm.xlu0 %520, %v305
      %v522 = vpop.permute.xlu0 %521
      %v525 = vunpack.c.l.s4 839922192
      %v526 = vunpack.c.0.s8 %v525
      %v527 = vlaneseq
      %v528 = vshrl.u32 %v527, 7
      %v529 = vsub.s32 %v526, %v528
      %v530 = vrot.slane %v522, %v529
      %v531 = vmul.f32 %v307, %v530
      %v532 = vmul.f32 %v308, %v530
      %535 = vrot.lane.b32.xlu0 %v531, 90
      %v536 = vpop.permute.xlu0 %535
      %537 = vrot.lane.b32.xlu0 %v532, 90
      %v538 = vpop.permute.xlu0 %537
      %v539 = vrot.slane %v536, 4
      %v540 = vrot.slane %v538, 4
      %v541 = vsel %vm344, %v539, %v540
      %vm542 = vcmask 736256
      %v543 = vsel %vm542, %v536, %v541
      %v546 = vadd.f32 %v518, %v543
      %v547 = vadd.f32 %v519, %v538
      %v548 = vld [vmem:[%s3] sm:$0xf]
      %v550 = vcombine.high %v546, %v546
      %v552 = vpack.c.bf16 %v546, %v546
      %v553 = vpack.c.bf16 %v550, %v550
      %v554 = vpack.c.bf16 %v547, %v547
      %vm555 = vcmask 31744
      %v557 = vsel %vm555, %v548, 0
      %vm559 = vcmask 1041408
      %v561 = vsel %vm559, %v552, 0
      %v564 = vsel %vm559, %v553, 0
      %v567 = vsel %vm559, %v554, 0
      %569 = vmatprep.subr.bf16.mxu0 %v564
      %570 = vmatpush1.bf16.msra.mxu0 %v561
      %571 = vmatprep.subr.bf16.mxu0 0
      %572 = vmatpush1.bf16.msra.mxu0 0
      %573 = vmatprep.subr.bf16.mxu0 0
      %574 = vmatpush1.bf16.msra.mxu0 0
      %575 = vmatprep.subr.bf16.mxu0 0
      %576 = vmatpush1.bf16.msra.mxu0 0
      %577 = vmatprep.subr.bf16.mxu0 0
      %578 = vmatpush1.bf16.msra.mxu0 0
      %579 = vmatprep.subr.bf16.mxu0 0
      %580 = vmatpush1.bf16.msra.mxu0 0
      %581 = vmatprep.subr.bf16.mxu0 0
      %582 = vmatpush1.bf16.msra.mxu0 0
      %583 = vmatprep.subr.bf16.mxu0 0
      %584 = vmatpush1.bf16.msra.mxu0 0
      %585 = vmatprep.subr.bf16.mxu0 0
      %586 = vmatpush1.bf16.msra.mxu0 0
      %587 = vmatprep.subr.bf16.mxu0 0
      %588 = vmatpush1.bf16.msra.mxu0 0
      %589 = vmatprep.subr.bf16.mxu0 0
      %590 = vmatpush1.bf16.msra.mxu0 0
      %591 = vmatprep.subr.bf16.mxu0 0
      %592 = vmatpush1.bf16.msra.mxu0 0
      %593 = vmatprep.subr.bf16.mxu0 0
      %594 = vmatpush1.bf16.msra.mxu0 0
      %595 = vmatprep.subr.bf16.mxu0 0
      %596 = vmatpush1.bf16.msra.mxu0 0
      %597 = vmatprep.subr.bf16.mxu0 0
      %598 = vmatpush1.bf16.msra.mxu0 0
      %599 = vmatprep.subr.bf16.mxu0 0
      %600 = vmatpush1.bf16.msra.mxu0 0
      %601 = vmatprep.mubr.bf16.mxu0 0
      %602 = vmatmul.mubr.bf16.gmra.mrb[0].mxu0 %v557
      %v603 = vpop.f32.mrb[0].mxu0
      %v604 = vadd.f32 0.0, %v603
      %v605 = vpop.f32.mrb[0].mxu0
      %v606 = vadd.f32 0.0, %v605
      %v607 = vpop.f32.mrb[0].mxu0
      %v608 = vpop.f32.mrb[0].mxu0
      %609 = vdwg.mxu0
      %610 = vmatprep.subr.bf16.mxu0 0
      %611 = vmatpush1.bf16.msra.mxu0 %v567
      %612 = vmatprep.subr.bf16.mxu0 0
      %613 = vmatpush1.bf16.msra.mxu0 0
      %614 = vmatprep.subr.bf16.mxu0 0
      %615 = vmatpush1.bf16.msra.mxu0 0
      %616 = vmatprep.subr.bf16.mxu0 0
      %617 = vmatpush1.bf16.msra.mxu0 0
      %618 = vmatprep.subr.bf16.mxu0 0
      %619 = vmatpush1.bf16.msra.mxu0 0
      %620 = vmatprep.subr.bf16.mxu0 0
      %621 = vmatpush1.bf16.msra.mxu0 0
      %622 = vmatprep.subr.bf16.mxu0 0
      %623 = vmatpush1.bf16.msra.mxu0 0
      %624 = vmatprep.subr.bf16.mxu0 0
      %625 = vmatpush1.bf16.msra.mxu0 0
      %626 = vmatprep.subr.bf16.mxu0 0
      %627 = vmatpush1.bf16.msra.mxu0 0
      %628 = vmatprep.subr.bf16.mxu0 0
      %629 = vmatpush1.bf16.msra.mxu0 0
      %630 = vmatprep.subr.bf16.mxu0 0
      %631 = vmatpush1.bf16.msra.mxu0 0
      %632 = vmatprep.subr.bf16.mxu0 0
      %633 = vmatpush1.bf16.msra.mxu0 0
      %634 = vmatprep.subr.bf16.mxu0 0
      %635 = vmatpush1.bf16.msra.mxu0 0
      %636 = vmatprep.subr.bf16.mxu0 0
      %637 = vmatpush1.bf16.msra.mxu0 0
      %638 = vmatprep.subr.bf16.mxu0 0
      %639 = vmatpush1.bf16.msra.mxu0 0
      %640 = vmatprep.subr.bf16.mxu0 0
      %641 = vmatpush1.bf16.msra.mxu0 0
      %642 = vmatprep.mubr.bf16.mxu0 0
      %643 = vmatmul.mubr.bf16.gmra.mrb[0].mxu0 %v557
      %v644 = vpop.f32.mrb[0].mxu0
      %v645 = vadd.f32 0.0, %v644
      %v646 = vpop.f32.mrb[0].mxu0
      %v647 = vpop.f32.mrb[0].mxu0
      %v648 = vpop.f32.mrb[0].mxu0
      %649 = vdwg.mxu0
      %v650 = vld [vmem:[%s4] sm:$0xff]
      %652 = vset.pattern.permute.xlu0 0
      %653 = vperm.xlu0 %652, %v650
      %v654 = vpop.permute.xlu0 %653
      %v656 = vmul.f32 %v604, %v654
      %v657 = vmul.f32 %v606, %v654
      %v658 = vmul.f32 %v645, %v654
      %v659 = vld [vmem:[%s5] sm:$0x7]
      %v661 = vlaneseq
      %v662 = vshrl.u32 %v661, 7
      %v663 = vsub.s32 0, %v662
      %v664 = vrot.slane %v659, %v663
      %v665 = vlaneseq
      %v666 = vshrl.u32 %v665, 7
      %v667 = vsub.s32 1, %v666
      %v668 = vrot.slane %v659, %v667
      %v669 = vlaneseq
      %v670 = vshrl.u32 %v669, 7
      %v671 = vsub.s32 2, %v670
      %v672 = vrot.slane %v659, %v671
      %v676 = vadd.f32 %v656, %v664
      %v677 = vadd.f32 %v657, %v668
      %v678 = vadd.f32 %v658, %v672
      %v679 = vld [vmem:[%s6] sm:$0xff]
      %681 = vset.pattern.permute.xlu0 0
      %682 = vperm.xlu0 %681, %v679
      %v683 = vpop.permute.xlu0 %682
      %v685 = vadd.f32 %v676, %v683
      %v686 = vadd.f32 %v677, %v683
      %v687 = vadd.f32 %v678, %v683
      %vm688 = vcmp.gt.f32.partialorder %v685, 0.0
      %vm689 = vcmp.gt.f32.partialorder %v686, 0.0
      %vm690 = vcmp.gt.f32.partialorder %v687, 0.0
      %v691 = vmul.f32 %v685, 0.2
      %v692 = vmul.f32 %v686, 0.2
      %v693 = vmul.f32 %v687, 0.2
      %v694 = vsel %vm688, %v685, %v691
      %v695 = vsel %vm689, %v686, %v692
      %v696 = vsel %vm690, %v687, %v693
      %v697 = vpack.c.bf16 %v694, %v694
      %v698 = vpack.c.bf16 %v695, %v695
      %v699 = vpack.c.bf16 %v696, %v696
      %v703 = vunpack.c.l.b16 %v697
      %v704 = vunpack.c.l.b16 %v698
      %v705 = vunpack.c.l.b16 %v699
      %v706 = vpack.c.b16 %v704, %v703
      %v707 = vpack.c.b16 %v705, %v705
      %710 = vst [vmem:[%s295] sm:$0xff] %v706
      %vm711 = vcmask 257024
      %712 = vst.msk [vmem:[%s295 + $0x8] sm:$0xf] %vm711, %v707
      %p713 = scmp.lt.s32.totalorder %s18, 1
      %s714 = scalar_select %p713, %s18, 1
      %s715 = smul.addr %s714, 3
      %s716 = smul.addr %s715, 4
      %s717 = scalar_lea.vmem %s7, %s716
      // Predicated region
      $region49: #{mobile_synthesis_forward.15} parent=47 // pred_check
        %p718 = pneg %p193
      $region50: #{mobile_synthesis_forward.15} parent=47 // pred_check_branch
        %720 = sbr.rel (%p718) target = $region52
      $region51: #{mobile_synthesis_forward.15} parent=47 // pred_region
        _
      $region52: #{mobile_synthesis_forward.15} parent=47 // pred_fallthru
        _
    $region48: #{mobile_synthesis_forward.15} parent=5 // pred_fallthru
      _
    %p721 = scmp.le.s32.totalorder 2, %s13
    // Predicated region
    $region53: #{mobile_synthesis_forward.15} parent=5 // pred_check
      %p722 = pneg %p721
    $region54: #{mobile_synthesis_forward.15} parent=5 // pred_check_branch
      %724 = sbr.rel (%p722) target = $region56
    $region55: #{mobile_synthesis_forward.15} parent=5 // pred_region
      %s725 = ssub.s32 %s13, 2
      // Predicated region
      $region57: #{mobile_synthesis_forward.15} parent=55 // pred_check
        %p726 = pneg %p199
      $region58: #{mobile_synthesis_forward.15} parent=55 // pred_check_branch
        %728 = sbr.rel (%p726) target = $region60
      $region59: #{mobile_synthesis_forward.15} parent=55 // pred_region
        %p729 = scmp.lt.s32.totalorder %s19, 1
        %s730 = scalar_select %p729, %s19, 1
        %s731 = smul.addr %s730, 3
        %s732 = smul.addr %s731, 4
        %s733 = scalar_lea.vmem %s7, %s732
      $region60: #{mobile_synthesis_forward.15} parent=55 // pred_fallthru
        _
    $region56: #{mobile_synthesis_forward.15} parent=5 // pred_fallthru
      _
  $region6: #{mobile_synthesis_forward.15} parent=0 // loop_footer
    %s17 = sadd.s32 1, %s13
  $region7: #{mobile_synthesis_forward.15} parent=0 // loop_footer_branch
    %12 = sbr.rel target = $region3
  $region8: #{mobile_synthesis_forward.15} parent=0 // loop_exit
    _

// kernel: squeeze.52
$region0: #{squeeze.52}
  %s0 = inlined_call_operand.vmem [shape: f32[2,1,3,256], index: 0, kind: input, shape index: {}]
  %s1 = inlined_call_operand.vmem [shape: f32[2,3,16,16,1], index: 1, kind: output, shape index: {}]
  $region1: #{squeeze.52} parent=0
    #allocation0 [shape = 'u8[24576]{0}', space=vmem, size = 0x6000, scoped, tag = 'scoped mem for input reshape']
    %s3 = sshllo.u32 0, 2
    %s4 = smul.addr 2, 5
    %s5 = scalar_lea.vmem %s0, %s4
    %v6 = vld [vmem:[%s5] sm:%s3]
    %s7 = scalar_lea.vmem [#allocation0], 40
    %8 = vst [vmem:[%s7] sm:%s3] %v6
    %s9 = smul.addr 2, 4
    %s10 = scalar_lea.vmem %s0, %s9
    %v11 = vld [vmem:[%s10] sm:%s3]
    %s12 = scalar_lea.vmem [#allocation0], 32
    %13 = vst [vmem:[%s12] sm:%s3] %v11
    %s14 = smul.addr 2, 3
    %s15 = scalar_lea.vmem %s0, %s14
    %v16 = vld [vmem:[%s15] sm:%s3]
    %s17 = scalar_lea.vmem [#allocation0], 24
    %18 = vst [vmem:[%s17] sm:%s3] %v16
    %s19 = smul.addr 2, 2
    %s20 = scalar_lea.vmem %s0, %s19
    %v21 = vld [vmem:[%s20] sm:%s3]
    %s22 = scalar_lea.vmem [#allocation0], 16
    %23 = vst [vmem:[%s22] sm:%s3] %v21
    %s24 = scalar_lea.vmem %s0, 2
    %v25 = vld [vmem:[%s24] sm:%s3]
    %s26 = scalar_lea.vmem [#allocation0], 8
    %27 = vst [vmem:[%s26] sm:%s3] %v25
    %v28 = vld [vmem:[%s0] sm:%s3]
    %29 = vst [vmem:[#allocation0] sm:%s3] %v28
    %v30 = vld [vmem:[#allocation0] sm:$0x3]
    %vm31 = vcmask 130048
    %32 = vst.msk [vmem:[%s1] ss:$16 sm:$0x3] %vm31, %v30
    %s33 = scalar_lea.vmem [#allocation0], 8
    %v34 = vld [vmem:[%s33] sm:$0x3]
    %vm35 = vcmask 130048
    %s36 = scalar_lea.vmem %s1, 8
    %37 = vst.msk [vmem:[%s36] ss:$16 sm:$0x3] %vm35, %v34
    %s38 = scalar_lea.vmem [#allocation0], 16
    %v39 = vld [vmem:[%s38] sm:$0x3]
    %vm40 = vcmask 130048
    %s41 = scalar_lea.vmem %s1, 32
    %42 = vst.msk [vmem:[%s41] ss:$16 sm:$0x3] %vm40, %v39
    %s43 = scalar_lea.vmem [#allocation0], 24
    %v44 = vld [vmem:[%s43] sm:$0x3]
    %vm45 = vcmask 130048
    %s46 = scalar_lea.vmem %s1, 40
    %47 = vst.msk [vmem:[%s46] ss:$16 sm:$0x3] %vm45, %v44
    %s48 = scalar_lea.vmem [#allocation0], 32
    %v49 = vld [vmem:[%s48] sm:$0x3]
    %vm50 = vcmask 130048
    %s51 = scalar_lea.vmem %s1, 64
    %52 = vst.msk [vmem:[%s51] ss:$16 sm:$0x3] %vm50, %v49
    %s53 = scalar_lea.vmem [#allocation0], 40
    %v54 = vld [vmem:[%s53] sm:$0x3]
    %vm55 = vcmask 130048
    %s56 = scalar_lea.vmem %s1, 72
    %57 = vst.msk [vmem:[%s56] ss:$16 sm:$0x3] %vm55, %v54
    %v58 = vld.sshfl [vmem:[#allocation0] sm:$0xff pattern:$0x99999180]
    %s59 = scalar_lea.vmem [#allocation0], 16
    %v60 = vld.sshfl [vmem:[%s59] sm:$0xff pattern:$0x91800000]
    %vm61 = vcmask 1047556
    %v62 = vsel %vm61, %v60, %v58
    %63 = vrot.lane.b32.xlu0 %v62, 112
    %v64 = vpop.permute.xlu0 %63
    %vm65 = vcmask 130048
    %s66 = scalar_lea.vmem %s1, 1
    %67 = vst.msk [vmem:[%s66] ss:$8 sm:$0xf] %vm65, %v64
    %s68 = scalar_lea.vmem %s1, 1
    %69 = vst.msk [vmem:[%s68] ss:$8 sm:$0xf0] %vm65, %v64
    %s70 = scalar_lea.vmem [#allocation0], 32
    %v71 = vld.sshfl [vmem:[%s70] sm:$0xff pattern:$0x99999180]
    %72 = vrot.lane.b32.xlu0 %v71, 112
    %v73 = vpop.permute.xlu0 %72
    %vm74 = vcmask 130048
    %s75 = scalar_lea.vmem %s1, 65
    %76 = vst.msk [vmem:[%s75] ss:$8 sm:$0xf] %vm74, %v73
    %v77 = vld.sshfl [vmem:[#allocation0] sm:$0xff pattern:$0x99999180]
    %s78 = scalar_lea.vmem [#allocation0], 16
    %v79 = vld.sshfl [vmem:[%s78] sm:$0xff pattern:$0x91800000]
    %vm80 = vcmask 1047556
    %v81 = vsel %vm80, %v79, %v77
    %82 = vrot.lane.b32.xlu0 %v81, 96
    %v83 = vpop.permute.xlu0 %82
    %vm84 = vcmask 130048
    %s85 = scalar_lea.vmem %s1, 2
    %86 = vst.msk [vmem:[%s85] ss:$8 sm:$0xf] %vm84, %v83
    %s87 = scalar_lea.vmem %s1, 2
    %88 = vst.msk [vmem:[%s87] ss:$8 sm:$0xf0] %vm84, %v83
    %s89 = scalar_lea.vmem [#allocation0], 32
    %v90 = vld.sshfl [vmem:[%s89] sm:$0xff pattern:$0x99999180]
    %91 = vrot.lane.b32.xlu0 %v90, 96
    %v92 = vpop.permute.xlu0 %91
    %vm93 = vcmask 130048
    %s94 = scalar_lea.vmem %s1, 66
    %95 = vst.msk [vmem:[%s94] ss:$8 sm:$0xf] %vm93, %v92
    %v96 = vld.sshfl [vmem:[#allocation0] sm:$0xff pattern:$0x99999180]
    %s97 = scalar_lea.vmem [#allocation0], 16
    %v98 = vld.sshfl [vmem:[%s97] sm:$0xff pattern:$0x91800000]
    %vm99 = vcmask 1047556
    %v100 = vsel %vm99, %v98, %v96
    %101 = vrot.lane.b32.xlu0 %v100, 80
    %v102 = vpop.permute.xlu0 %101
    %vm103 = vcmask 130048
    %s104 = scalar_lea.vmem %s1, 3
    %105 = vst.msk [vmem:[%s104] ss:$8 sm:$0xf] %vm103, %v102
    %s106 = scalar_lea.vmem %s1, 3
    %107 = vst.msk [vmem:[%s106] ss:$8 sm:$0xf0] %vm103, %v102
    %s108 = scalar_lea.vmem [#allocation0], 32
    %v109 = vld.sshfl [vmem:[%s108] sm:$0xff pattern:$0x99999180]
    %110 = vrot.lane.b32.xlu0 %v109, 80
    %v111 = vpop.permute.xlu0 %110
    %vm112 = vcmask 130048
    %s113 = scalar_lea.vmem %s1, 67
    %114 = vst.msk [vmem:[%s113] ss:$8 sm:$0xf] %vm112, %v111
    %v115 = vld.sshfl [vmem:[#allocation0] sm:$0xff pattern:$0x99999180]
    %s116 = scalar_lea.vmem [#allocation0], 16
    %v117 = vld.sshfl [vmem:[%s116] sm:$0xff pattern:$0x91800000]
    %vm118 = vcmask 1047556
    %v119 = vsel %vm118, %v117, %v115
    %120 = vrot.lane.b32.xlu0 %v119, 64
    %v121 = vpop.permute.xlu0 %120
    %vm122 = vcmask 130048
    %s123 = scalar_lea.vmem %s1, 4
    %124 = vst.msk [vmem:[%s123] ss:$8 sm:$0xf] %vm122, %v121
    %s125 = scalar_lea.vmem %s1, 4
    %126 = vst.msk [vmem:[%s125] ss:$8 sm:$0xf0] %vm122, %v121
    %s127 = scalar_lea.vmem [#allocation0], 32
    %v128 = vld.sshfl [vmem:[%s127] sm:$0xff pattern:$0x99999180]
    %129 = vrot.lane.b32.xlu0 %v128, 64
    %v130 = vpop.permute.xlu0 %129
    %vm131 = vcmask 130048
    %s132 = scalar_lea.vmem %s1, 68
    %133 = vst.msk [vmem:[%s132] ss:$8 sm:$0xf] %vm131, %v130
    %v134 = vld.sshfl [vmem:[#allocation0] sm:$0xff pattern:$0x99999180]
    %s135 = scalar_lea.vmem [#allocation0], 16
    %v136 = vld.sshfl [vmem:[%s135] sm:$0xff pattern:$0x91800000]
    %vm137 = vcmask 1047556
    %v138 = vsel %vm137, %v136, %v134
    %139 = vrot.lane.b32.xlu0 %v138, 48
    %v140 = vpop.permute.xlu0 %139
    %vm141 = vcmask 130048
    %s142 = scalar_lea.vmem %s1, 5
    %143 = vst.msk [vmem:[%s142] ss:$8 sm:$0xf] %vm141, %v140
    %s144 = scalar_lea.vmem %s1, 5
    %145 = vst.msk [vmem:[%s144] ss:$8 sm:$0xf0] %vm141, %v140
    %s146 = scalar_lea.vmem [#allocation0], 32
    %v147 = vld.sshfl [vmem:[%s146] sm:$0xff pattern:$0x99999180]
    %148 = vrot.lane.b32.xlu0 %v147, 48
    %v149 = vpop.permute.xlu0 %148
    %vm150 = vcmask 130048
    %s151 = scalar_lea.vmem %s1, 69
    %152 = vst.msk [vmem:[%s151] ss:$8 sm:$0xf] %vm150, %v149
    %v153 = vld.sshfl [vmem:[#allocation0] sm:$0xff pattern:$0x99999180]
    %s154 = scalar_lea.vmem [#allocation0], 16
    %v155 = vld.sshfl [vmem:[%s154] sm:$0xff pattern:$0x91800000]
    %vm156 = vcmask 1047556
    %v157 = vsel %vm156, %v155, %v153
    %158 = vrot.lane.b32.xlu0 %v157, 32
    %v159 = vpop.permute.xlu0 %158
    %vm160 = vcmask 130048
    %s161 = scalar_lea.vmem %s1, 6
    %162 = vst.msk [vmem:[%s161] ss:$8 sm:$0xf] %vm160, %v159
    %s163 = scalar_lea.vmem %s1, 6
    %164 = vst.msk [vmem:[%s163] ss:$8 sm:$0xf0] %vm160, %v159
    %s165 = scalar_lea.vmem [#allocation0], 32
    %v166 = vld.sshfl [vmem:[%s165] sm:$0xff pattern:$0x99999180]
    %167 = vrot.lane.b32.xlu0 %v166, 32
    %v168 = vpop.permute.xlu0 %167
    %vm169 = vcmask 130048
    %s170 = scalar_lea.vmem %s1, 70
    %171 = vst.msk [vmem:[%s170] ss:$8 sm:$0xf] %vm169, %v168
    %v172 = vld.sshfl [vmem:[#allocation0] sm:$0xff pattern:$0x99999180]
    %s173 = scalar_lea.vmem [#allocation0], 16
    %v174 = vld.sshfl [vmem:[%s173] sm:$0xff pattern:$0x91800000]
    %vm175 = vcmask 1047556
    %v176 = vsel %vm175, %v174, %v172
    %177 = vrot.lane.b32.xlu0 %v176, 16
    %v178 = vpop.permute.xlu0 %177
    %vm179 = vcmask 130048
    %s180 = scalar_lea.vmem %s1, 7
    %181 = vst.msk [vmem:[%s180] ss:$8 sm:$0xf] %vm179, %v178
    %s182 = scalar_lea.vmem %s1, 7
    %183 = vst.msk [vmem:[%s182] ss:$8 sm:$0xf0] %vm179, %v178
    %s184 = scalar_lea.vmem [#allocation0], 32
    %v185 = vld.sshfl [vmem:[%s184] sm:$0xff pattern:$0x99999180]
    %186 = vrot.lane.b32.xlu0 %v185, 16
    %v187 = vpop.permute.xlu0 %186
    %vm188 = vcmask 130048
    %s189 = scalar_lea.vmem %s1, 71
    %190 = vst.msk [vmem:[%s189] ss:$8 sm:$0xf] %vm188, %v187

// kernel: mobile_synthesis_forward.17
$region0: #{mobile_synthesis_forward.17}
  #allocation0 [shape = 'u32[]', space=smem, size = 0x4, offset = 0x4, fixed_abs, tag = 'smem constant byte address 0x4 - core index']
  #allocation1 [shape = 'u32[144,128]{1,0:T(1,128)}', space=vmem, size = 0x12000, scoped, tag = 'internal scratch']
  %s0 = inlined_call_operand.vmem [shape: f32[2,4,3,256], index: 0, kind: input, shape index: {}]
  %s1 = inlined_call_operand.vmem [shape: f32[2,4,3,1], index: 1, kind: input, shape index: {}]
  %s2 = inlined_call_operand.vmem [shape: f32[2,4,3,256], index: 2, kind: output, shape index: {}]
  %s3 = sld [smem:[#allocation0]]
  $region41: #{mobile_synthesis_forward.17} parent=0
    _
  %s5 = ssub.s32 1, %s3
  %s6 = scalar_select 0, %s5, %s3
  loop: start=0, step=1, limit=4
  $region2: #{mobile_synthesis_forward.17} parent=0 // loop_pre_header
    _
  $region3: #{mobile_synthesis_forward.17} parent=0 // loop_header
    %s8 = sphi 0, %s12
    %p9 = scmp.ge.s32.totalorder %s8, 4
    %s15 = sphi 0, %s27
    %s16 = sphi 0, %s23
    %s17 = sphi 0, %s15
    %s18 = sphi 0, %s16
    %s19 = sphi 0, %s17
    %s20 = sphi 0, %s18
    %s32 = sphi 0, %s34
    %s35 = sphi 0, %s32
    %s36 = sphi 0, %s35
    %s52 = sphi 0, %s36
    %s58 = sphi 0, %s60
    %s61 = sphi 0, %s58
    %s62 = sphi 0, %s61
    %s78 = sphi 0, %s62
    %s86 = sphi 0, %s88
    %s89 = sphi 0, %s86
    %s90 = sphi 0, %s89
    %s106 = sphi 0, %s90
  $region4: #{mobile_synthesis_forward.17} parent=0 // loop_header_branch
    %11 = sbr.rel (%p9) target = $region8
  $region5: #{mobile_synthesis_forward.17} parent=0 // loop_body
    %s13 = ssub.s32 %s8, 1
    %s14 = ssub.s32 %s8, 2
    %s21 = sadd.s32 1, %s16
    %p22 = scmp.ge.s32.totalorder %s21, 1
    %s23 = scalar_select %p22, 0, %s21
    %s24 = sadd.s32 1, %s15
    %s25 = scalar_select %p22, %s24, %s15
    %p26 = scmp.ge.s32.totalorder %s25, 2
    %s27 = scalar_select %p26, 0, %s25
    %s28 = ssub.s32 %s15, %s27
    %s29 = ssub.s32 %s16, %s23
    %s30 = sor.u32 %s28, %s29
    %p31 = scmp.eq.s32.totalorder %s30, 0
    %s33 = sadd.s32 %s32, 1
    %s34 = scalar_select %p31, %s32, %s33
    %p37 = pneg %p31
    %p38 = scmp.eq.s32.totalorder %s8, 1
    %p39 = por %p37, %p38
    %p40 = scmp.ne.s32.totalorder %s32, %s35
    %p41 = scmp.eq.s32.totalorder %s8, 0
    %p42 = por %p40, %p41
    %p43 = scmp.ne.s32.totalorder %s32, %s35
    %p44 = scmp.eq.s32.totalorder %s13, 1
    %p45 = por %p43, %p44
    %p46 = scmp.ne.s32.totalorder %s35, %s36
    %p47 = scmp.eq.s32.totalorder %s13, 0
    %p48 = por %p46, %p47
    %p49 = scmp.ne.s32.totalorder %s35, %s36
    %p50 = scmp.eq.s32.totalorder %s14, 1
    %p51 = por %p49, %p50
    %p53 = scmp.ne.s32.totalorder %s36, %s52
    %p54 = scmp.eq.s32.totalorder %s14, 0
    %p55 = por %p53, %p54
    %s56 = ssub.s32 %s15, %s27
    %p57 = scmp.eq.s32.totalorder %s56, 0
    %s59 = sadd.s32 %s58, 1
    %s60 = scalar_select %p57, %s58, %s59
    %p63 = pneg %p57
    %p64 = scmp.eq.s32.totalorder %s8, 1
    %p65 = por %p63, %p64
    %p66 = scmp.ne.s32.totalorder %s58, %s61
    %p67 = scmp.eq.s32.totalorder %s8, 0
    %p68 = por %p66, %p67
    %p69 = scmp.ne.s32.totalorder %s58, %s61
    %p70 = scmp.eq.s32.totalorder %s13, 1
    %p71 = por %p69, %p70
    %p72 = scmp.ne.s32.totalorder %s61, %s62
    %p73 = scmp.eq.s32.totalorder %s13, 0
    %p74 = por %p72, %p73
    %p75 = scmp.ne.s32.totalorder %s61, %s62
    %p76 = scmp.eq.s32.totalorder %s14, 1
    %p77 = por %p75, %p76
    %p79 = scmp.ne.s32.totalorder %s62, %s78
    %p80 = scmp.eq.s32.totalorder %s14, 0
    %p81 = por %p79, %p80
    %s82 = ssub.s32 %s15, %s27
    %s83 = ssub.s32 %s16, %s23
    %s84 = sor.u32 %s82, %s83
    %p85 = scmp.eq.s32.totalorder %s84, 0
    %s87 = sadd.s32 %s86, 1
    %s88 = scalar_select %p85, %s86, %s87
    %p91 = pneg %p85
    %p92 = scmp.eq.s32.totalorder %s8, 1
    %p93 = por %p91, %p92
    %p94 = scmp.ne.s32.totalorder %s86, %s89
    %p95 = scmp.eq.s32.totalorder %s8, 0
    %p96 = por %p94, %p95
    %p97 = scmp.ne.s32.totalorder %s86, %s89
    %p98 = scmp.eq.s32.totalorder %s13, 1
    %p99 = por %p97, %p98
    %p100 = scmp.ne.s32.totalorder %s89, %s90
    %p101 = scmp.eq.s32.totalorder %s13, 0
    %p102 = por %p100, %p101
    %p103 = scmp.ne.s32.totalorder %s89, %s90
    %p104 = scmp.eq.s32.totalorder %s14, 1
    %p105 = por %p103, %p104
    %p107 = scmp.ne.s32.totalorder %s90, %s106
    %p108 = scmp.eq.s32.totalorder %s14, 0
    %p109 = por %p107, %p108
    %p110 = scmp.le.s32.totalorder 1, %s8
    %p111 = scmp.lt.s32.totalorder %s8, 3
    %p112 = pnand %p110, %p111
    %p113 = pneg %p112
    // Predicated region
    $region9: #{mobile_synthesis_forward.17} parent=5 // pred_check
      _
    $region10: #{mobile_synthesis_forward.17} parent=5 // pred_check_branch
      %115 = sbr.rel (%p112) target = $region12
    $region11: #{mobile_synthesis_forward.17} parent=5 // pred_region
      %s116 = ssub.s32 %s8, 1
    $region12: #{mobile_synthesis_forward.17} parent=5 // pred_fallthru
      _
    %p117 = scmp.lt.s32.totalorder %s8, 2
    // Predicated region
    $region13: #{mobile_synthesis_forward.17} parent=5 // pred_check
      %p118 = pneg %p117
    $region14: #{mobile_synthesis_forward.17} parent=5 // pred_check_branch
      %120 = sbr.rel (%p118) target = $region16
    $region15: #{mobile_synthesis_forward.17} parent=5 // pred_region
      // Predicated region
      $region17: #{mobile_synthesis_forward.17} parent=15 // pred_check
        %p121 = pneg %p42
      $region18: #{mobile_synthesis_forward.17} parent=15 // pred_check_branch
        %123 = sbr.rel (%p121) target = $region20
      $region19: #{mobile_synthesis_forward.17} parent=15 // pred_region
        %s124 = smul.u32 2, %s16
        %p125 = scmp.lt.s32.totalorder %s15, 1
        %s126 = scalar_select %p125, %s15, 1
        %p127 = scmp.lt.s32.totalorder %s124, 1
        %s128 = scalar_select %p127, %s124, 1
        %s129 = smul.addr %s126, 8
        %s130 = sadd.s32 %s128, %s129
        %s131 = smul.addr %s130, 4
        %s132 = scalar_lea.vmem %s0, %s131
        %s133 = smul.u32 2, %s16
      $region20: #{mobile_synthesis_forward.17} parent=15 // pred_fallthru
        _
      // Predicated region
      $region21: #{mobile_synthesis_forward.17} parent=15 // pred_check
        %p134 = pneg %p68
      $region22: #{mobile_synthesis_forward.17} parent=15 // pred_check_branch
        %136 = sbr.rel (%p134) target = $region24
      $region23: #{mobile_synthesis_forward.17} parent=15 // pred_region
        %p137 = scmp.lt.s32.totalorder %s15, 1
        %s138 = scalar_select %p137, %s15, 1
        %s139 = smul.addr %s138, 4
        %s140 = smul.addr %s139, 4
        %s141 = scalar_lea.vmem %s1, %s140
      $region24: #{mobile_synthesis_forward.17} parent=15 // pred_fallthru
        _
    $region16: #{mobile_synthesis_forward.17} parent=5 // pred_fallthru
      _
    %p142 = scmp.le.s32.totalorder 1, %s8
    %p143 = scmp.lt.s32.totalorder %s8, 3
    %p144 = pnand %p142, %p143
    %p145 = pneg %p144
    // Predicated region
    $region25: #{mobile_synthesis_forward.17} parent=5 // pred_check
      _
    $region26: #{mobile_synthesis_forward.17} parent=5 // pred_check_branch
      %147 = sbr.rel (%p144) target = $region28
    $region27: #{mobile_synthesis_forward.17} parent=5 // pred_region
      %s148 = ssub.s32 %s8, 1
      %s149 = smul.u32 2, %s18
      %p150 = scmp.lt.s32.totalorder %s17, 1
      %s151 = scalar_select %p150, %s17, 1
      %p152 = scmp.lt.s32.totalorder %s149, 1
      %s153 = scalar_select %p152, %s149, 1
      %s154 = smul.addr %s151, 8
      %s155 = sadd.s32 %s153, %s154
      %s156 = smul.addr %s155, 4
      %s157 = scalar_lea.vmem %s0, %s156
      %p158 = pneg %p48
      %p159 = pneg %p45
      %p160 = scmp.lt.s32.totalorder %s17, 1
      %s161 = scalar_select %p160, %s17, 1
      %s162 = smul.addr %s161, 4
      %s163 = smul.addr %s162, 4
      %s164 = scalar_lea.vmem %s1, %s163
      %p165 = pneg %p74
      %p166 = pneg %p71
      %p167 = pneg %p102
      %p168 = pneg %p99
      %s169 = smul.u32 2, %s18
      %p170 = scmp.lt.s32.totalorder %s17, 1
      %s171 = scalar_select %p170, %s17, 1
      %p172 = scmp.lt.s32.totalorder %s169, 1
      %s173 = scalar_select %p172, %s169, 1
      %s174 = smul.addr %s171, 8
      %s175 = sadd.s32 %s173, %s174
      %s176 = smul.addr %s175, 4
      %s177 = scalar_lea.vmem %s2, %s176
      %s178 = smul.u32 2, %s18
      %p179 = scmp.lt.s32.totalorder %s17, 1
      %s180 = scalar_select %p179, %s17, 1
      %p181 = scmp.lt.s32.totalorder %s178, 1
      %s182 = scalar_select %p181, %s178, 1
      %s183 = smul.addr %s180, 8
      %s184 = sadd.s32 %s182, %s183
      %s185 = smul.addr %s184, 4
      %s186 = scalar_lea.vmem %s0, %s185
      %s187 = smul.u32 2, %s18
      %p188 = scmp.lt.s32.totalorder %s17, 1
      %s189 = scalar_select %p188, %s17, 1
      %s190 = smul.addr %s189, 4
      %s191 = smul.addr %s190, 4
      %s192 = scalar_lea.vmem %s1, %s191
      %s193 = smul.u32 2, %s18
      %p194 = scmp.lt.s32.totalorder %s17, 1
      %s195 = scalar_select %p194, %s17, 1
      %p196 = scmp.lt.s32.totalorder %s193, 1
      %s197 = scalar_select %p196, %s193, 1
      %s198 = smul.addr %s195, 8
      %s199 = sadd.s32 %s197, %s198
      %s200 = smul.addr %s199, 4
      %s201 = scalar_lea.vmem %s2, %s200
      %s202 = smul.u32 2, %s18
      %v203 = vld [vmem:[%s186] sm:$0x77]
      %v204 = vld [vmem:[%s192] sm:$0x7]
      %206 = vset.pattern.permute.xlu0 0
      %207 = vperm.xlu0 %206, %v204
      %v208 = vpop.permute.xlu0 %207
      %v210 = vunpack.c.l.s4 839922192
      %v211 = vunpack.c.0.s8 %v210
      %v212 = vlaneseq
      %v213 = vshrl.u32 %v212, 7
      %v214 = vsub.s32 %v211, %v213
      %v215 = vrot.slane %v208, %v214
      %v217 = vmul.f32 %v203, %v215
      %s218 = scalar_lea.vmem %s186, 8
      %v219 = vld [vmem:[%s218] sm:$0x77]
      %s220 = scalar_lea.vmem %s192, 4
      %v221 = vld [vmem:[%s220] sm:$0x7]
      %223 = vset.pattern.permute.xlu0 0
      %224 = vperm.xlu0 %223, %v221
      %v225 = vpop.permute.xlu0 %224
      %v227 = vunpack.c.l.s4 839922192
      %v228 = vunpack.c.0.s8 %v227
      %v229 = vlaneseq
      %v230 = vshrl.u32 %v229, 7
      %v231 = vsub.s32 %v228, %v230
      %v232 = vrot.slane %v225, %v231
      %v234 = vmul.f32 %v219, %v232
      %s235 = scalar_lea.vmem %s186, 16
      %v236 = vld [vmem:[%s235] sm:$0x77]
      %s237 = scalar_lea.vmem %s192, 8
      %v238 = vld [vmem:[%s237] sm:$0x7]
      %240 = vset.pattern.permute.xlu0 0
      %241 = vperm.xlu0 %240, %v238
      %v242 = vpop.permute.xlu0 %241
      %v244 = vunpack.c.l.s4 839922192
      %v245 = vunpack.c.0.s8 %v244
      %v246 = vlaneseq
      %v247 = vshrl.u32 %v246, 7
      %v248 = vsub.s32 %v245, %v247
      %v249 = vrot.slane %v242, %v248
      %v251 = vmul.f32 %v236, %v249
      %s252 = scalar_lea.vmem %s186, 24
      %v253 = vld [vmem:[%s252] sm:$0x77]
      %s254 = scalar_lea.vmem %s192, 12
      %v255 = vld [vmem:[%s254] sm:$0x7]
      %257 = vset.pattern.permute.xlu0 0
      %258 = vperm.xlu0 %257, %v255
      %v259 = vpop.permute.xlu0 %258
      %v261 = vunpack.c.l.s4 839922192
      %v262 = vunpack.c.0.s8 %v261
      %v263 = vlaneseq
      %v264 = vshrl.u32 %v263, 7
      %v265 = vsub.s32 %v262, %v264
      %v266 = vrot.slane %v259, %v265
      %v268 = vmul.f32 %v253, %v266
      %v269 = vadd.f32 %v217, %v234
      %v270 = vadd.f32 %v269, %v251
      %v271 = vadd.f32 %v270, %v268
      %v272 = vmul.f32 %v271, 0.5
      %273 = vst [vmem:[%s201] sm:$0x77] %v272
      %v274 = vsub.f32 %v269, %v251
      %v275 = vsub.f32 %v274, %v268
      %v276 = vmul.f32 %v275, 0.5
      %s277 = scalar_lea.vmem %s201, 8
      %278 = vst [vmem:[%s277] sm:$0x77] %v276
      %v279 = vsub.f32 %v217, %v234
      %v280 = vadd.f32 %v279, %v251
      %v281 = vsub.f32 %v280, %v268
      %v282 = vmul.f32 %v281, 0.5
      %s283 = scalar_lea.vmem %s201, 16
      %284 = vst [vmem:[%s283] sm:$0x77] %v282
      %v285 = vsub.f32 %v279, %v251
      %v286 = vadd.f32 %v285, %v268
      %v287 = vmul.f32 %v286, 0.5
      %s288 = scalar_lea.vmem %s201, 24
      %289 = vst [vmem:[%s288] sm:$0x77] %v287
      %s290 = smul.u32 2, %s18
      %p291 = scmp.lt.s32.totalorder %s17, 1
      %s292 = scalar_select %p291, %s17, 1
      %p293 = scmp.lt.s32.totalorder %s290, 1
      %s294 = scalar_select %p293, %s290, 1
      %s295 = smul.addr %s292, 8
      %s296 = sadd.s32 %s294, %s295
      %s297 = smul.addr %s296, 4
      %s298 = scalar_lea.vmem %s2, %s297
      // Predicated region
      $region29: #{mobile_synthesis_forward.17} parent=27 // pred_check
        %p299 = pneg %p99
      $region30: #{mobile_synthesis_forward.17} parent=27 // pred_check_branch
        %301 = sbr.rel (%p299) target = $region32
      $region31: #{mobile_synthesis_forward.17} parent=27 // pred_region
        %s302 = smul.u32 2, %s18
      $region32: #{mobile_synthesis_forward.17} parent=27 // pred_fallthru
        _
    $region28: #{mobile_synthesis_forward.17} parent=5 // pred_fallthru
      _
    %p303 = scmp.le.s32.totalorder 2, %s8
    // Predicated region
    $region33: #{mobile_synthesis_forward.17} parent=5 // pred_check
      %p304 = pneg %p303
    $region34: #{mobile_synthesis_forward.17} parent=5 // pred_check_branch
      %306 = sbr.rel (%p304) target = $region36
    $region35: #{mobile_synthesis_forward.17} parent=5 // pred_region
      %s307 = ssub.s32 %s8, 2
      // Predicated region
      $region37: #{mobile_synthesis_forward.17} parent=35 // pred_check
        %p308 = pneg %p105
      $region38: #{mobile_synthesis_forward.17} parent=35 // pred_check_branch
        %310 = sbr.rel (%p308) target = $region40
      $region39: #{mobile_synthesis_forward.17} parent=35 // pred_region
        %s311 = smul.u32 2, %s20
        %p312 = scmp.lt.s32.totalorder %s19, 1
        %s313 = scalar_select %p312, %s19, 1
        %p314 = scmp.lt.s32.totalorder %s311, 1
        %s315 = scalar_select %p314, %s311, 1
        %s316 = smul.addr %s313, 8
        %s317 = sadd.s32 %s315, %s316
        %s318 = smul.addr %s317, 4
        %s319 = scalar_lea.vmem %s2, %s318
      $region40: #{mobile_synthesis_forward.17} parent=35 // pred_fallthru
        _
    $region36: #{mobile_synthesis_forward.17} parent=5 // pred_fallthru
      _
  $region6: #{mobile_synthesis_forward.17} parent=0 // loop_footer
    %s12 = sadd.s32 1, %s8
  $region7: #{mobile_synthesis_forward.17} parent=0 // loop_footer_branch
    %7 = sbr.rel target = $region3
  $region8: #{mobile_synthesis_forward.17} parent=0 // loop_exit
    _

// kernel: mobile_synthesis_forward.16
$region0: #{mobile_synthesis_forward.16}
  #allocation0 [shape = 'u32[]', space=smem, size = 0x4, offset = 0x4, fixed_abs, tag = 'smem constant byte address 0x4 - core index']
  #allocation1 [shape = 'u32[144,128]{1,0:T(1,128)}', space=vmem, size = 0x12000, scoped, tag = 'internal scratch']
  %s0 = inlined_call_operand.vmem [shape: bf16[2,8,326], index: 0, kind: input, shape index: {}]
  %s1 = inlined_call_operand.vmem [shape: f32[2,8,1], index: 1, kind: input, shape index: {}]
  %s2 = inlined_call_operand.vmem [shape: f32[2,1,8], index: 2, kind: input, shape index: {}]
  %s3 = inlined_call_operand.vmem [shape: bf16[8,9], index: 3, kind: input, shape index: {}]
  %s4 = inlined_call_operand.vmem [shape: bf16[8,8], index: 4, kind: input, shape index: {}]
  %s5 = inlined_call_operand.vmem [shape: f32[8,1], index: 5, kind: input, shape index: {}]
  %s6 = inlined_call_operand.vmem [shape: f32[1,288], index: 6, kind: input, shape index: {}]
  %s7 = inlined_call_operand.vmem [shape: f32[8,1], index: 7, kind: input, shape index: {}]
  %s8 = inlined_call_operand.vmem [shape: bf16[12,8], index: 8, kind: input, shape index: {}]
  %s9 = inlined_call_operand.vmem [shape: f32[12,1], index: 9, kind: input, shape index: {}]
  %s10 = inlined_call_operand.hbm [shape: bf16[2,8,288], index: 10, kind: output, shape index: {0}]
  %s11 = inlined_call_operand.vmem [shape: f32[2,12,288], index: 11, kind: output, shape index: {1}]
  %12 = xla_tuple %s10, %s11
  %s13 = sld [smem:[#allocation0]]
  $region81: #{mobile_synthesis_forward.16} parent=0
    _
  %s15 = ssub.s32 1, %s13
  %s16 = scalar_select 0, %s15, %s13
  $region1: #{mobile_synthesis_forward.16} parent=0
    #allocation2 [shape = 'u8[12288]{0}', space=vmem, size = 0x3000, scoped, tag = 'output window, operand 0']
    #allocation3 [shape = 's32[2]{0}', space=sflag, size = 0x8, scoped, tag = 'scoped memory for mobile_synthesis_forward.16']
    %17 = vsyncpa [#allocation3], 0
    %s18 = scalar_lea.sflag [#allocation3], 1
    %19 = vsyncpa %s18, 0
    loop: start=0, step=1, limit=4
    $region2: #{mobile_synthesis_forward.16} parent=1 // loop_pre_header
      _
    $region3: #{mobile_synthesis_forward.16} parent=1 // loop_header
      %s21 = sphi 0, %s25
      %p22 = scmp.ge.s32.totalorder %s21, 4
      %s31 = sphi 0, %s33
      %s34 = sphi 0, %s31
      %s35 = sphi 0, %s34
      %s51 = sphi 0, %s35
      %s57 = sphi 0, %s59
      %s60 = sphi 0, %s57
      %s61 = sphi 0, %s60
      %s77 = sphi 0, %s61
      %s83 = sphi 0, %s85
      %s86 = sphi 0, %s83
      %s87 = sphi 0, %s86
      %s103 = sphi 0, %s87
      %s107 = sphi 0, %s107
      %s109 = sphi 0, %s107
      %s110 = sphi 0, %s109
      %s124 = sphi 0, %s110
      %s128 = sphi 0, %s128
      %s130 = sphi 0, %s128
      %s131 = sphi 0, %s130
      %s145 = sphi 0, %s131
      %s149 = sphi 0, %s149
      %s151 = sphi 0, %s149
      %s152 = sphi 0, %s151
      %s166 = sphi 0, %s152
      %s170 = sphi 0, %s170
      %s172 = sphi 0, %s170
      %s173 = sphi 0, %s172
      %s187 = sphi 0, %s173
      %s191 = sphi 0, %s191
      %s193 = sphi 0, %s191
      %s194 = sphi 0, %s193
      %s208 = sphi 0, %s194
      %s212 = sphi 0, %s212
      %s214 = sphi 0, %s212
      %s215 = sphi 0, %s214
      %s229 = sphi 0, %s215
      %s233 = sphi 0, %s233
      %s235 = sphi 0, %s233
      %s236 = sphi 0, %s235
      %s250 = sphi 0, %s236
      %s256 = sphi 0, %s258
      %s259 = sphi 0, %s256
      %s260 = sphi 0, %s259
      %s276 = sphi 0, %s260
      %s282 = sphi 0, %s284
      %s285 = sphi 0, %s282
      %s286 = sphi 0, %s285
      %s302 = sphi 0, %s286
    $region4: #{mobile_synthesis_forward.16} parent=1 // loop_header_branch
      %24 = sbr.rel (%p22) target = $region8
    $region5: #{mobile_synthesis_forward.16} parent=1 // loop_body
      %s26 = ssub.s32 %s21, 1
      %s27 = ssub.s32 %s21, 2
      %s28 = sadd.s32 %s21, 1
      %s29 = ssub.s32 %s21, %s28
      %p30 = scmp.eq.s32.totalorder %s29, 0
      %s32 = sadd.s32 %s31, 1
      %s33 = scalar_select %p30, %s31, %s32
      %p36 = pneg %p30
      %p37 = scmp.eq.s32.totalorder %s21, 1
      %p38 = por %p36, %p37
      %p39 = scmp.ne.s32.totalorder %s31, %s34
      %p40 = scmp.eq.s32.totalorder %s21, 0
      %p41 = por %p39, %p40
      %p42 = scmp.ne.s32.totalorder %s31, %s34
      %p43 = scmp.eq.s32.totalorder %s26, 1
      %p44 = por %p42, %p43
      %p45 = scmp.ne.s32.totalorder %s34, %s35
      %p46 = scmp.eq.s32.totalorder %s26, 0
      %p47 = por %p45, %p46
      %p48 = scmp.ne.s32.totalorder %s34, %s35
      %p49 = scmp.eq.s32.totalorder %s27, 1
      %p50 = por %p48, %p49
      %p52 = scmp.ne.s32.totalorder %s35, %s51
      %p53 = scmp.eq.s32.totalorder %s27, 0
      %p54 = por %p52, %p53
      %s55 = ssub.s32 %s21, %s28
      %p56 = scmp.eq.s32.totalorder %s55, 0
      %s58 = sadd.s32 %s57, 1
      %s59 = scalar_select %p56, %s57, %s58
      %p62 = pneg %p56
      %p63 = scmp.eq.s32.totalorder %s21, 1
      %p64 = por %p62, %p63
      %p65 = scmp.ne.s32.totalorder %s57, %s60
      %p66 = scmp.eq.s32.totalorder %s21, 0
      %p67 = por %p65, %p66
      %p68 = scmp.ne.s32.totalorder %s57, %s60
      %p69 = scmp.eq.s32.totalorder %s26, 1
      %p70 = por %p68, %p69
      %p71 = scmp.ne.s32.totalorder %s60, %s61
      %p72 = scmp.eq.s32.totalorder %s26, 0
      %p73 = por %p71, %p72
      %p74 = scmp.ne.s32.totalorder %s60, %s61
      %p75 = scmp.eq.s32.totalorder %s27, 1
      %p76 = por %p74, %p75
      %p78 = scmp.ne.s32.totalorder %s61, %s77
      %p79 = scmp.eq.s32.totalorder %s27, 0
      %p80 = por %p78, %p79
      %s81 = ssub.s32 %s21, %s28
      %p82 = scmp.eq.s32.totalorder %s81, 0
      %s84 = sadd.s32 %s83, 1
      %s85 = scalar_select %p82, %s83, %s84
      %p88 = pneg %p82
      %p89 = scmp.eq.s32.totalorder %s21, 1
      %p90 = por %p88, %p89
      %p91 = scmp.ne.s32.totalorder %s83, %s86
      %p92 = scmp.eq.s32.totalorder %s21, 0
      %p93 = por %p91, %p92
      %p94 = scmp.ne.s32.totalorder %s83, %s86
      %p95 = scmp.eq.s32.totalorder %s26, 1
      %p96 = por %p94, %p95
      %p97 = scmp.ne.s32.totalorder %s86, %s87
      %p98 = scmp.eq.s32.totalorder %s26, 0
      %p99 = por %p97, %p98
      %p100 = scmp.ne.s32.totalorder %s86, %s87
      %p101 = scmp.eq.s32.totalorder %s27, 1
      %p102 = por %p100, %p101
      %p104 = scmp.ne.s32.totalorder %s87, %s103
      %p105 = scmp.eq.s32.totalorder %s27, 0
      %p106 = por %p104, %p105
      %s108 = sadd.s32 %s107, 1
      %p111 = scmp.eq.s32.totalorder %s21, 1
      %p112 = scmp.ne.s32.totalorder %s107, %s109
      %p113 = scmp.eq.s32.totalorder %s21, 0
      %p114 = por %p112, %p113
      %p115 = scmp.ne.s32.totalorder %s107, %s109
      %p116 = scmp.eq.s32.totalorder %s26, 1
      %p117 = por %p115, %p116
      %p118 = scmp.ne.s32.totalorder %s109, %s110
      %p119 = scmp.eq.s32.totalorder %s26, 0
      %p120 = por %p118, %p119
      %p121 = scmp.ne.s32.totalorder %s109, %s110
      %p122 = scmp.eq.s32.totalorder %s27, 1
      %p123 = por %p121, %p122
      %p125 = scmp.ne.s32.totalorder %s110, %s124
      %p126 = scmp.eq.s32.totalorder %s27, 0
      %p127 = por %p125, %p126
      %s129 = sadd.s32 %s128, 1
      %p132 = scmp.eq.s32.totalorder %s21, 1
      %p133 = scmp.ne.s32.totalorder %s128, %s130
      %p134 = scmp.eq.s32.totalorder %s21, 0
      %p135 = por %p133, %p134
      %p136 = scmp.ne.s32.totalorder %s128, %s130
      %p137 = scmp.eq.s32.totalorder %s26, 1
      %p138 = por %p136, %p137
      %p139 = scmp.ne.s32.totalorder %s130, %s131
      %p140 = scmp.eq.s32.totalorder %s26, 0
      %p141 = por %p139, %p140
      %p142 = scmp.ne.s32.totalorder %s130, %s131
      %p143 = scmp.eq.s32.totalorder %s27, 1
      %p144 = por %p142, %p143
      %p146 = scmp.ne.s32.totalorder %s131, %s145
      %p147 = scmp.eq.s32.totalorder %s27, 0
      %p148 = por %p146, %p147
      %s150 = sadd.s32 %s149, 1
      %p153 = scmp.eq.s32.totalorder %s21, 1
      %p154 = scmp.ne.s32.totalorder %s149, %s151
      %p155 = scmp.eq.s32.totalorder %s21, 0
      %p156 = por %p154, %p155
      %p157 = scmp.ne.s32.totalorder %s149, %s151
      %p158 = scmp.eq.s32.totalorder %s26, 1
      %p159 = por %p157, %p158
      %p160 = scmp.ne.s32.totalorder %s151, %s152
      %p161 = scmp.eq.s32.totalorder %s26, 0
      %p162 = por %p160, %p161
      %p163 = scmp.ne.s32.totalorder %s151, %s152
      %p164 = scmp.eq.s32.totalorder %s27, 1
      %p165 = por %p163, %p164
      %p167 = scmp.ne.s32.totalorder %s152, %s166
      %p168 = scmp.eq.s32.totalorder %s27, 0
      %p169 = por %p167, %p168
      %s171 = sadd.s32 %s170, 1
      %p174 = scmp.eq.s32.totalorder %s21, 1
      %p175 = scmp.ne.s32.totalorder %s170, %s172
      %p176 = scmp.eq.s32.totalorder %s21, 0
      %p177 = por %p175, %p176
      %p178 = scmp.ne.s32.totalorder %s170, %s172
      %p179 = scmp.eq.s32.totalorder %s26, 1
      %p180 = por %p178, %p179
      %p181 = scmp.ne.s32.totalorder %s172, %s173
      %p182 = scmp.eq.s32.totalorder %s26, 0
      %p183 = por %p181, %p182
      %p184 = scmp.ne.s32.totalorder %s172, %s173
      %p185 = scmp.eq.s32.totalorder %s27, 1
      %p186 = por %p184, %p185
      %p188 = scmp.ne.s32.totalorder %s173, %s187
      %p189 = scmp.eq.s32.totalorder %s27, 0
      %p190 = por %p188, %p189
      %s192 = sadd.s32 %s191, 1
      %p195 = scmp.eq.s32.totalorder %s21, 1
      %p196 = scmp.ne.s32.totalorder %s191, %s193
      %p197 = scmp.eq.s32.totalorder %s21, 0
      %p198 = por %p196, %p197
      %p199 = scmp.ne.s32.totalorder %s191, %s193
      %p200 = scmp.eq.s32.totalorder %s26, 1
      %p201 = por %p199, %p200
      %p202 = scmp.ne.s32.totalorder %s193, %s194
      %p203 = scmp.eq.s32.totalorder %s26, 0
      %p204 = por %p202, %p203
      %p205 = scmp.ne.s32.totalorder %s193, %s194
      %p206 = scmp.eq.s32.totalorder %s27, 1
      %p207 = por %p205, %p206
      %p209 = scmp.ne.s32.totalorder %s194, %s208
      %p210 = scmp.eq.s32.totalorder %s27, 0
      %p211 = por %p209, %p210
      %s213 = sadd.s32 %s212, 1
      %p216 = scmp.eq.s32.totalorder %s21, 1
      %p217 = scmp.ne.s32.totalorder %s212, %s214
      %p218 = scmp.eq.s32.totalorder %s21, 0
      %p219 = por %p217, %p218
      %p220 = scmp.ne.s32.totalorder %s212, %s214
      %p221 = scmp.eq.s32.totalorder %s26, 1
      %p222 = por %p220, %p221
      %p223 = scmp.ne.s32.totalorder %s214, %s215
      %p224 = scmp.eq.s32.totalorder %s26, 0
      %p225 = por %p223, %p224
      %p226 = scmp.ne.s32.totalorder %s214, %s215
      %p227 = scmp.eq.s32.totalorder %s27, 1
      %p228 = por %p226, %p227
      %p230 = scmp.ne.s32.totalorder %s215, %s229
      %p231 = scmp.eq.s32.totalorder %s27, 0
      %p232 = por %p230, %p231
      %s234 = sadd.s32 %s233, 1
      %p237 = scmp.eq.s32.totalorder %s21, 1
      %p238 = scmp.ne.s32.totalorder %s233, %s235
      %p239 = scmp.eq.s32.totalorder %s21, 0
      %p240 = por %p238, %p239
      %p241 = scmp.ne.s32.totalorder %s233, %s235
      %p242 = scmp.eq.s32.totalorder %s26, 1
      %p243 = por %p241, %p242
      %p244 = scmp.ne.s32.totalorder %s235, %s236
      %p245 = scmp.eq.s32.totalorder %s26, 0
      %p246 = por %p244, %p245
      %p247 = scmp.ne.s32.totalorder %s235, %s236
      %p248 = scmp.eq.s32.totalorder %s27, 1
      %p249 = por %p247, %p248
      %p251 = scmp.ne.s32.totalorder %s236, %s250
      %p252 = scmp.eq.s32.totalorder %s27, 0
      %p253 = por %p251, %p252
      %s254 = ssub.s32 %s21, %s28
      %p255 = scmp.eq.s32.totalorder %s254, 0
      %s257 = sadd.s32 %s256, 1
      %s258 = scalar_select %p255, %s256, %s257
      %p261 = pneg %p255
      %p262 = scmp.eq.s32.totalorder %s21, 1
      %p263 = por %p261, %p262
      %p264 = scmp.ne.s32.totalorder %s256, %s259
      %p265 = scmp.eq.s32.totalorder %s21, 0
      %p266 = por %p264, %p265
      %p267 = scmp.ne.s32.totalorder %s256, %s259
      %p268 = scmp.eq.s32.totalorder %s26, 1
      %p269 = por %p267, %p268
      %p270 = scmp.ne.s32.totalorder %s259, %s260
      %p271 = scmp.eq.s32.totalorder %s26, 0
      %p272 = por %p270, %p271
      %p273 = scmp.ne.s32.totalorder %s259, %s260
      %p274 = scmp.eq.s32.totalorder %s27, 1
      %p275 = por %p273, %p274
      %p277 = scmp.ne.s32.totalorder %s260, %s276
      %p278 = scmp.eq.s32.totalorder %s27, 0
      %p279 = por %p277, %p278
      %s280 = ssub.s32 %s21, %s28
      %p281 = scmp.eq.s32.totalorder %s280, 0
      %s283 = sadd.s32 %s282, 1
      %s284 = scalar_select %p281, %s282, %s283
      %p287 = pneg %p281
      %p288 = scmp.eq.s32.totalorder %s21, 1
      %p289 = por %p287, %p288
      %p290 = scmp.ne.s32.totalorder %s282, %s285
      %p291 = scmp.eq.s32.totalorder %s21, 0
      %p292 = por %p290, %p291
      %p293 = scmp.ne.s32.totalorder %s282, %s285
      %p294 = scmp.eq.s32.totalorder %s26, 1
      %p295 = por %p293, %p294
      %p296 = scmp.ne.s32.totalorder %s285, %s286
      %p297 = scmp.eq.s32.totalorder %s26, 0
      %p298 = por %p296, %p297
      %p299 = scmp.ne.s32.totalorder %s285, %s286
      %p300 = scmp.eq.s32.totalorder %s27, 1
      %p301 = por %p299, %p300
      %p303 = scmp.ne.s32.totalorder %s286, %s302
      %p304 = scmp.eq.s32.totalorder %s27, 0
      %p305 = por %p303, %p304
      %p306 = scmp.le.s32.totalorder 1, %s21
      %p307 = scmp.lt.s32.totalorder %s21, 3
      %p308 = pnand %p306, %p307
      %p309 = pneg %p308
      // Predicated region
      $region9: #{mobile_synthesis_forward.16} parent=5 // pred_check
        _
      $region10: #{mobile_synthesis_forward.16} parent=5 // pred_check_branch
        %311 = sbr.rel (%p308) target = $region12
      $region11: #{mobile_synthesis_forward.16} parent=5 // pred_region
        %s312 = ssub.s32 %s21, 1
        // Predicated region
        $region13: #{mobile_synthesis_forward.16} parent=11 // pred_check
          %p313 = pneg %p120
        $region14: #{mobile_synthesis_forward.16} parent=11 // pred_check_branch
          %315 = sbr.rel (%p313) target = $region16
        $region15: #{mobile_synthesis_forward.16} parent=11 // pred_region
          _
        $region16: #{mobile_synthesis_forward.16} parent=11 // pred_fallthru
          _
        // Predicated region
        $region17: #{mobile_synthesis_forward.16} parent=11 // pred_check
          %p316 = pneg %p141
        $region18: #{mobile_synthesis_forward.16} parent=11 // pred_check_branch
          %318 = sbr.rel (%p316) target = $region20
        $region19: #{mobile_synthesis_forward.16} parent=11 // pred_region
          _
        $region20: #{mobile_synthesis_forward.16} parent=11 // pred_fallthru
          _
        // Predicated region
        $region21: #{mobile_synthesis_forward.16} parent=11 // pred_check
          %p319 = pneg %p162
        $region22: #{mobile_synthesis_forward.16} parent=11 // pred_check_branch
          %321 = sbr.rel (%p319) target = $region24
        $region23: #{mobile_synthesis_forward.16} parent=11 // pred_region
          _
        $region24: #{mobile_synthesis_forward.16} parent=11 // pred_fallthru
          _
        // Predicated region
        $region25: #{mobile_synthesis_forward.16} parent=11 // pred_check
          %p322 = pneg %p183
        $region26: #{mobile_synthesis_forward.16} parent=11 // pred_check_branch
          %324 = sbr.rel (%p322) target = $region28
        $region27: #{mobile_synthesis_forward.16} parent=11 // pred_region
          _
        $region28: #{mobile_synthesis_forward.16} parent=11 // pred_fallthru
          _
        // Predicated region
        $region29: #{mobile_synthesis_forward.16} parent=11 // pred_check
          %p325 = pneg %p204
        $region30: #{mobile_synthesis_forward.16} parent=11 // pred_check_branch
          %327 = sbr.rel (%p325) target = $region32
        $region31: #{mobile_synthesis_forward.16} parent=11 // pred_region
          _
        $region32: #{mobile_synthesis_forward.16} parent=11 // pred_fallthru
          _
        // Predicated region
        $region33: #{mobile_synthesis_forward.16} parent=11 // pred_check
          %p328 = pneg %p225
        $region34: #{mobile_synthesis_forward.16} parent=11 // pred_check_branch
          %330 = sbr.rel (%p328) target = $region36
        $region35: #{mobile_synthesis_forward.16} parent=11 // pred_region
          _
        $region36: #{mobile_synthesis_forward.16} parent=11 // pred_fallthru
          _
        // Predicated region
        $region37: #{mobile_synthesis_forward.16} parent=11 // pred_check
          %p331 = pneg %p246
        $region38: #{mobile_synthesis_forward.16} parent=11 // pred_check_branch
          %333 = sbr.rel (%p331) target = $region40
        $region39: #{mobile_synthesis_forward.16} parent=11 // pred_region
          _
        $region40: #{mobile_synthesis_forward.16} parent=11 // pred_fallthru
          _
      $region12: #{mobile_synthesis_forward.16} parent=5 // pred_fallthru
        _
      %p334 = scmp.lt.s32.totalorder %s21, 2
      // Predicated region
      $region41: #{mobile_synthesis_forward.16} parent=5 // pred_check
        %p335 = pneg %p334
      $region42: #{mobile_synthesis_forward.16} parent=5 // pred_check_branch
        %337 = sbr.rel (%p335) target = $region44
      $region43: #{mobile_synthesis_forward.16} parent=5 // pred_region
        // Predicated region
        $region45: #{mobile_synthesis_forward.16} parent=43 // pred_check
          %p338 = pneg %p41
        $region46: #{mobile_synthesis_forward.16} parent=43 // pred_check_branch
          %340 = sbr.rel (%p338) target = $region48
        $region47: #{mobile_synthesis_forward.16} parent=43 // pred_region
          %p341 = scmp.lt.s32.totalorder %s21, 1
          %s342 = scalar_select %p341, %s21, 1
          %s343 = smul.addr %s342, 3
          %s344 = smul.addr %s343, 4
          %s345 = scalar_lea.vmem %s0, %s344
        $region48: #{mobile_synthesis_forward.16} parent=43 // pred_fallthru
          _
        // Predicated region
        $region49: #{mobile_synthesis_forward.16} parent=43 // pred_check
          %p346 = pneg %p67
        $region50: #{mobile_synthesis_forward.16} parent=43 // pred_check_branch
          %348 = sbr.rel (%p346) target = $region52
        $region51: #{mobile_synthesis_forward.16} parent=43 // pred_region
          %p349 = scmp.lt.s32.totalorder %s21, 1
          %s350 = scalar_select %p349, %s21, 1
          %s351 = smul.addr %s350, 8
          %s352 = scalar_lea.vmem %s1, %s351
        $region52: #{mobile_synthesis_forward.16} parent=43 // pred_fallthru
          _
        // Predicated region
        $region53: #{mobile_synthesis_forward.16} parent=43 // pred_check
          %p353 = pneg %p93
        $region54: #{mobile_synthesis_forward.16} parent=43 // pred_check_branch
          %355 = sbr.rel (%p353) target = $region56
        $region55: #{mobile_synthesis_forward.16} parent=43 // pred_region
          %p356 = scmp.lt.s32.totalorder %s21, 1
          %s357 = scalar_select %p356, %s21, 1
          %s358 = scalar_lea.vmem %s2, %s357
        $region56: #{mobile_synthesis_forward.16} parent=43 // pred_fallthru
          _
      $region44: #{mobile_synthesis_forward.16} parent=5 // pred_fallthru
        _
      %p359 = scmp.le.s32.totalorder 1, %s21
      %p360 = scmp.lt.s32.totalorder %s21, 3
      %p361 = pnand %p359, %p360
      %p362 = pneg %p361
      // Predicated region
      $region57: #{mobile_synthesis_forward.16} parent=5 // pred_check
        _
      $region58: #{mobile_synthesis_forward.16} parent=5 // pred_check_branch
        %364 = sbr.rel (%p361) target = $region60
      $region59: #{mobile_synthesis_forward.16} parent=5 // pred_region
        %s365 = ssub.s32 %s21, 1
        %p366 = scmp.lt.s32.totalorder %s26, 1
        %s367 = scalar_select %p366, %s26, 1
        %s368 = smul.addr %s367, 3
        %s369 = smul.addr %s368, 4
        %s370 = scalar_lea.vmem %s0, %s369
        %p371 = pneg %p47
        %p372 = pneg %p44
        %p373 = scmp.lt.s32.totalorder %s26, 1
        %s374 = scalar_select %p373, %s26, 1
        %s375 = smul.addr %s374, 8
        %s376 = scalar_lea.vmem %s1, %s375
        %p377 = pneg %p73
        %p378 = pneg %p70
        %p379 = scmp.lt.s32.totalorder %s26, 1
        %s380 = scalar_select %p379, %s26, 1
        %s381 = scalar_lea.vmem %s2, %s380
        %p382 = pneg %p99
        %p383 = pneg %p96
        %p384 = pneg %p120
        %p385 = pneg %p117
        %p386 = pneg %p141
        %p387 = pneg %p138
        %p388 = pneg %p162
        %p389 = pneg %p159
        %p390 = pneg %p183
        %p391 = pneg %p180
        %p392 = pneg %p204
        %p393 = pneg %p201
        %p394 = pneg %p225
        %p395 = pneg %p222
        %p396 = pneg %p246
        %p397 = pneg %p243
        %p398 = pneg %p272
        %p399 = pneg %p269
        %s400 = sand.u32 %s259, 1
        %s401 = scalar_lea.sflag [#allocation3], %s400
        %s402 = sand.u32 %s259, 1
        %s403 = smul.addr %s402, 12
        %s404 = scalar_lea.vmem [#allocation2], %s403
        %p405 = pneg %p298
        %p406 = pneg %p295
        %p407 = scmp.lt.s32.totalorder %s26, 1
        %s408 = scalar_select %p407, %s26, 1
        %s409 = smul.addr %s408, 6
        %s410 = smul.addr %s409, 8
        %s411 = scalar_lea.vmem %s11, %s410
        %p412 = scmp.lt.s32.totalorder %s26, 1
        %s413 = scalar_select %p412, %s26, 1
        %s414 = smul.addr %s413, 3
        %s415 = smul.addr %s414, 4
        %s416 = scalar_lea.vmem %s0, %s415
        %p417 = scmp.lt.s32.totalorder %s26, 1
        %s418 = scalar_select %p417, %s26, 1
        %s419 = smul.addr %s418, 8
        %s420 = scalar_lea.vmem %s1, %s419
        %p421 = scmp.lt.s32.totalorder %s26, 1
        %s422 = scalar_select %p421, %s26, 1
        %s423 = scalar_lea.vmem %s2, %s422
        %p424 = scmp.lt.s32.totalorder %s26, 1
        %s425 = scalar_select %p424, %s26, 1
        %s426 = smul.addr %s425, 6
        %s427 = smul.addr %s426, 8
        %s428 = scalar_lea.vmem %s11, %s427
        %v430 = vld [vmem:[%s3] sm:$0xf]
        %v431 = vunpack.c.l.bf16 %v430
        %v432 = vld [vmem:[%s420] sm:$0xff]
        %434 = vset.pattern.permute.xlu0 0
        %435 = vperm.xlu0 %434, %v432
        %v436 = vpop.permute.xlu0 %435
        %v438 = vmul.f32 %v431, %v436
        %v439 = vld [vmem:[%s416] sm:$0xff]
        %v440 = vld [vmem:[%s416 + $0x8] sm:$0xf]
        %v441 = vunpack.c.l.bf16 %v439
        %v442 = vunpack.c.h.bf16 %v439
        %v443 = vunpack.c.l.bf16 %v440
        %445 = vset.pattern.permute.xlu0 0
        %446 = vperm.xlu0 %445, %v438
        %v447 = vpop.permute.xlu0 %446
        %v449 = vmul.f32 %v441, %v447
        %v450 = vmul.f32 %v442, %v447
        %v451 = vmul.f32 %v443, %v447
        %452 = vset.pattern.permute.xlu0 1
        %453 = vperm.xlu0 %452, %v438
        %v454 = vpop.permute.xlu0 %453
        %v456 = vmul.f32 %v441, %v454
        %v457 = vmul.f32 %v442, %v454
        %v458 = vmul.f32 %v443, %v454
        %462 = vrot.lane.b32.xlu0 %v456, 127
        %v463 = vpop.permute.xlu0 %462
        %464 = vrot.lane.b32.xlu0 %v457, 127
        %v465 = vpop.permute.xlu0 %464
        %466 = vrot.lane.b32.xlu0 %v458, 127
        %v467 = vpop.permute.xlu0 %466
        %vm468 = vcmask 1039360
        %v469 = vsel %vm468, %v463, %v465
        %v470 = vsel %vm468, %v465, %v467
        %v474 = vadd.f32 %v449, %v469
        %v475 = vadd.f32 %v450, %v470
        %v476 = vadd.f32 %v451, %v467
        %477 = vset.pattern.permute.xlu0 2
        %478 = vperm.xlu0 %477, %v438
        %v479 = vpop.permute.xlu0 %478
        %v481 = vmul.f32 %v441, %v479
        %v482 = vmul.f32 %v442, %v479
        %v483 = vmul.f32 %v443, %v479
        %487 = vrot.lane.b32.xlu0 %v481, 126
        %v488 = vpop.permute.xlu0 %487
        %489 = vrot.lane.b32.xlu0 %v482, 126
        %v490 = vpop.permute.xlu0 %489
        %491 = vrot.lane.b32.xlu0 %v483, 126
        %v492 = vpop.permute.xlu0 %491
        %vm493 = vcmask 1031168
        %v494 = vsel %vm493, %v488, %v490
        %v495 = vsel %vm493, %v490, %v492
        %v499 = vadd.f32 %v474, %v494
        %v500 = vadd.f32 %v475, %v495
        %v501 = vadd.f32 %v476, %v492
        %502 = vset.pattern.permute.xlu0 3
        %503 = vperm.xlu0 %502, %v438
        %v504 = vpop.permute.xlu0 %503
        %v506 = vmul.f32 %v441, %v504
        %v507 = vmul.f32 %v442, %v504
        %v508 = vmul.f32 %v443, %v504
        %512 = vrot.lane.b32.xlu0 %v506, 110
        %v513 = vpop.permute.xlu0 %512
        %514 = vrot.lane.b32.xlu0 %v507, 110
        %v515 = vpop.permute.xlu0 %514
        %516 = vrot.lane.b32.xlu0 %v508, 110
        %v517 = vpop.permute.xlu0 %516
        %vm518 = vcmask 900096
        %v519 = vsel %vm518, %v513, %v515
        %v520 = vsel %vm518, %v515, %v517
        %v524 = vadd.f32 %v499, %v519
        %v525 = vadd.f32 %v500, %v520
        %v526 = vadd.f32 %v501, %v517
        %527 = vset.pattern.permute.xlu0 4
        %528 = vperm.xlu0 %527, %v438
        %v529 = vpop.permute.xlu0 %528
        %v531 = vmul.f32 %v441, %v529
        %v532 = vmul.f32 %v442, %v529
        %v533 = vmul.f32 %v443, %v529
        %537 = vrot.lane.b32.xlu0 %v531, 109
        %v538 = vpop.permute.xlu0 %537
        %539 = vrot.lane.b32.xlu0 %v532, 109
        %v540 = vpop.permute.xlu0 %539
        %541 = vrot.lane.b32.xlu0 %v533, 109
        %v542 = vpop.permute.xlu0 %541
        %vm543 = vcmask 891904
        %v544 = vsel %vm543, %v538, %v540
        %v545 = vsel %vm543, %v540, %v542
        %v549 = vadd.f32 %v524, %v544
        %v550 = vadd.f32 %v525, %v545
        %v551 = vadd.f32 %v526, %v542
        %552 = vset.pattern.permute.xlu0 5
        %553 = vperm.xlu0 %552, %v438
        %v554 = vpop.permute.xlu0 %553
        %v556 = vmul.f32 %v441, %v554
        %v557 = vmul.f32 %v442, %v554
        %v558 = vmul.f32 %v443, %v554
        %562 = vrot.lane.b32.xlu0 %v556, 108
        %v563 = vpop.permute.xlu0 %562
        %564 = vrot.lane.b32.xlu0 %v557, 108
        %v565 = vpop.permute.xlu0 %564
        %566 = vrot.lane.b32.xlu0 %v558, 108
        %v567 = vpop.permute.xlu0 %566
        %vm568 = vcmask 883712
        %v569 = vsel %vm568, %v563, %v565
        %v570 = vsel %vm568, %v565, %v567
        %v574 = vadd.f32 %v549, %v569
        %v575 = vadd.f32 %v550, %v570
        %v576 = vadd.f32 %v551, %v567
        %577 = vset.pattern.permute.xlu0 6
        %578 = vperm.xlu0 %577, %v438
        %v579 = vpop.permute.xlu0 %578
        %v581 = vmul.f32 %v441, %v579
        %v582 = vmul.f32 %v442, %v579
        %v583 = vmul.f32 %v443, %v579
        %587 = vrot.lane.b32.xlu0 %v581, 92
        %v588 = vpop.permute.xlu0 %587
        %589 = vrot.lane.b32.xlu0 %v582, 92
        %v590 = vpop.permute.xlu0 %589
        %591 = vrot.lane.b32.xlu0 %v583, 92
        %v592 = vpop.permute.xlu0 %591
        %vm593 = vcmask 752640
        %v594 = vsel %vm593, %v588, %v590
        %v595 = vsel %vm593, %v590, %v592
        %v599 = vadd.f32 %v574, %v594
        %v600 = vadd.f32 %v575, %v595
        %v601 = vadd.f32 %v576, %v592
        %602 = vset.pattern.permute.xlu0 7
        %603 = vperm.xlu0 %602, %v438
        %v604 = vpop.permute.xlu0 %603
        %v606 = vmul.f32 %v441, %v604
        %v607 = vmul.f32 %v442, %v604
        %v608 = vmul.f32 %v443, %v604
        %612 = vrot.lane.b32.xlu0 %v606, 91
        %v613 = vpop.permute.xlu0 %612
        %614 = vrot.lane.b32.xlu0 %v607, 91
        %v615 = vpop.permute.xlu0 %614
        %616 = vrot.lane.b32.xlu0 %v608, 91
        %v617 = vpop.permute.xlu0 %616
        %vm618 = vcmask 744448
        %v619 = vsel %vm618, %v613, %v615
        %v620 = vsel %vm618, %v615, %v617
        %v624 = vadd.f32 %v599, %v619
        %v625 = vadd.f32 %v600, %v620
        %v626 = vadd.f32 %v601, %v617
        %627 = vset.pattern.permute.xlu0 8
        %628 = vperm.xlu0 %627, %v438
        %v629 = vpop.permute.xlu0 %628
        %v631 = vmul.f32 %v441, %v629
        %v632 = vmul.f32 %v442, %v629
        %v633 = vmul.f32 %v443, %v629
        %637 = vrot.lane.b32.xlu0 %v631, 90
        %v638 = vpop.permute.xlu0 %637
        %639 = vrot.lane.b32.xlu0 %v632, 90
        %v640 = vpop.permute.xlu0 %639
        %641 = vrot.lane.b32.xlu0 %v633, 90
        %v642 = vpop.permute.xlu0 %641
        %vm643 = vcmask 736256
        %v644 = vsel %vm643, %v638, %v640
        %v645 = vsel %vm643, %v640, %v642
        %v649 = vadd.f32 %v624, %v644
        %v650 = vadd.f32 %v625, %v645
        %v651 = vadd.f32 %v626, %v642
        %v652 = vld [vmem:[%s4] sm:$0xf]
        %v653 = vpack.c.bf16 %v649, %v649
        %v654 = vpack.c.bf16 %v650, %v650
        %v655 = vpack.c.bf16 %v651, %v651
        %vm656 = vcmask 64512
        %v658 = vsel %vm656, %v652, 0
        %vm660 = vcmask 1043456
        %v662 = vsel %vm660, %v653, 0
        %v665 = vsel %vm660, %v654, 0
        %v668 = vsel %vm660, %v655, 0
        %670 = vmatprep.subr.bf16.mxu0 %v665
        %671 = vmatpush1.bf16.msra.mxu0 %v662
        %672 = vmatprep.subr.bf16.mxu0 0
        %673 = vmatpush1.bf16.msra.mxu0 0
        %674 = vmatprep.subr.bf16.mxu0 0
        %675 = vmatpush1.bf16.msra.mxu0 0
        %676 = vmatprep.subr.bf16.mxu0 0
        %677 = vmatpush1.bf16.msra.mxu0 0
        %678 = vmatprep.subr.bf16.mxu0 0
        %679 = vmatpush1.bf16.msra.mxu0 0
        %680 = vmatprep.subr.bf16.mxu0 0
        %681 = vmatpush1.bf16.msra.mxu0 0
        %682 = vmatprep.subr.bf16.mxu0 0
        %683 = vmatpush1.bf16.msra.mxu0 0
        %684 = vmatprep.subr.bf16.mxu0 0
        %685 = vmatpush1.bf16.msra.mxu0 0
        %686 = vmatprep.subr.bf16.mxu0 0
        %687 = vmatpush1.bf16.msra.mxu0 0
        %688 = vmatprep.subr.bf16.mxu0 0
        %689 = vmatpush1.bf16.msra.mxu0 0
        %690 = vmatprep.subr.bf16.mxu0 0
        %691 = vmatpush1.bf16.msra.mxu0 0
        %692 = vmatprep.subr.bf16.mxu0 0
        %693 = vmatpush1.bf16.msra.mxu0 0
        %694 = vmatprep.subr.bf16.mxu0 0
        %695 = vmatpush1.bf16.msra.mxu0 0
        %696 = vmatprep.subr.bf16.mxu0 0
        %697 = vmatpush1.bf16.msra.mxu0 0
        %698 = vmatprep.subr.bf16.mxu0 0
        %699 = vmatpush1.bf16.msra.mxu0 0
        %700 = vmatprep.subr.bf16.mxu0 0
        %701 = vmatpush1.bf16.msra.mxu0 0
        %702 = vmatprep.mubr.bf16.mxu0 0
        %703 = vmatmul.mubr.bf16.gmra.mrb[0].mxu0 %v658
        %v704 = vpop.f32.mrb[0].mxu0
        %v705 = vadd.f32 0.0, %v704
        %v706 = vpop.f32.mrb[0].mxu0
        %v707 = vadd.f32 0.0, %v706
        %v708 = vpop.f32.mrb[0].mxu0
        %v709 = vpop.f32.mrb[0].mxu0
        %710 = vdwg.mxu0
        %711 = vmatprep.subr.bf16.mxu0 0
        %712 = vmatpush1.bf16.msra.mxu0 %v668
        %713 = vmatprep.subr.bf16.mxu0 0
        %714 = vmatpush1.bf16.msra.mxu0 0
        %715 = vmatprep.subr.bf16.mxu0 0
        %716 = vmatpush1.bf16.msra.mxu0 0
        %717 = vmatprep.subr.bf16.mxu0 0
        %718 = vmatpush1.bf16.msra.mxu0 0
        %719 = vmatprep.subr.bf16.mxu0 0
        %720 = vmatpush1.bf16.msra.mxu0 0
        %721 = vmatprep.subr.bf16.mxu0 0
        %722 = vmatpush1.bf16.msra.mxu0 0
        %723 = vmatprep.subr.bf16.mxu0 0
        %724 = vmatpush1.bf16.msra.mxu0 0
        %725 = vmatprep.subr.bf16.mxu0 0
        %726 = vmatpush1.bf16.msra.mxu0 0
        %727 = vmatprep.subr.bf16.mxu0 0
        %728 = vmatpush1.bf16.msra.mxu0 0
        %729 = vmatprep.subr.bf16.mxu0 0
        %730 = vmatpush1.bf16.msra.mxu0 0
        %731 = vmatprep.subr.bf16.mxu0 0
        %732 = vmatpush1.bf16.msra.mxu0 0
        %733 = vmatprep.subr.bf16.mxu0 0
        %734 = vmatpush1.bf16.msra.mxu0 0
        %735 = vmatprep.subr.bf16.mxu0 0
        %736 = vmatpush1.bf16.msra.mxu0 0
        %737 = vmatprep.subr.bf16.mxu0 0
        %738 = vmatpush1.bf16.msra.mxu0 0
        %739 = vmatprep.subr.bf16.mxu0 0
        %740 = vmatpush1.bf16.msra.mxu0 0
        %741 = vmatprep.subr.bf16.mxu0 0
        %742 = vmatpush1.bf16.msra.mxu0 0
        %743 = vmatprep.mubr.bf16.mxu0 0
        %744 = vmatmul.mubr.bf16.gmra.mrb[0].mxu0 %v658
        %v745 = vpop.f32.mrb[0].mxu0
        %v746 = vadd.f32 0.0, %v745
        %v747 = vpop.f32.mrb[0].mxu0
        %v748 = vpop.f32.mrb[0].mxu0
        %v749 = vpop.f32.mrb[0].mxu0
        %750 = vdwg.mxu0
        %v751 = vld [vmem:[%s5] sm:$0xff]
        %753 = vset.pattern.permute.xlu0 0
        %754 = vperm.xlu0 %753, %v751
        %v755 = vpop.permute.xlu0 %754
        %v757 = vmul.f32 %v705, %v755
        %v758 = vmul.f32 %v707, %v755
        %v759 = vmul.f32 %v746, %v755
        %v760 = vld [vmem:[%s6] sm:$0x7]
        %v762 = vlaneseq
        %v763 = vshrl.u32 %v762, 7
        %v764 = vsub.s32 0, %v763
        %v765 = vrot.slane %v760, %v764
        %v766 = vlaneseq
        %v767 = vshrl.u32 %v766, 7
        %v768 = vsub.s32 1, %v767
        %v769 = vrot.slane %v760, %v768
        %v770 = vlaneseq
        %v771 = vshrl.u32 %v770, 7
        %v772 = vsub.s32 2, %v771
        %v773 = vrot.slane %v760, %v772
        %v777 = vadd.f32 %v757, %v765
        %v778 = vadd.f32 %v758, %v769
        %v779 = vadd.f32 %v759, %v773
        %v780 = vld [vmem:[%s7] sm:$0xff]
        %782 = vset.pattern.permute.xlu0 0
        %783 = vperm.xlu0 %782, %v780
        %v784 = vpop.permute.xlu0 %783
        %v786 = vadd.f32 %v777, %v784
        %v787 = vadd.f32 %v778, %v784
        %v788 = vadd.f32 %v779, %v784
        %vm789 = vcmp.gt.f32.partialorder %v786, 0.0
        %vm790 = vcmp.gt.f32.partialorder %v787, 0.0
        %vm791 = vcmp.gt.f32.partialorder %v788, 0.0
        %v792 = vmul.f32 %v786, 0.2
        %v793 = vmul.f32 %v787, 0.2
        %v794 = vmul.f32 %v788, 0.2
        %v795 = vsel %vm789, %v786, %v792
        %v796 = vsel %vm790, %v787, %v793
        %v797 = vsel %vm791, %v788, %v794
        %v798 = vpack.c.bf16 %v795, %v795
        %v799 = vpack.c.bf16 %v796, %v796
        %v800 = vpack.c.bf16 %v797, %v797
        %v804 = vunpack.c.l.b16 %v798
        %v805 = vunpack.c.l.b16 %v799
        %v806 = vunpack.c.l.b16 %v800
        %v807 = vpack.c.b16 %v805, %v804
        %v808 = vpack.c.b16 %v806, %v806
        %811 = vst [vmem:[%s404] sm:$0xff] %v807
        %vm812 = vcmask 257024
        %813 = vst.msk [vmem:[%s404 + $0x8] sm:$0xf] %vm812, %v808
        %v814 = vld [vmem:[%s8] sm:$0xf]
        %v815 = vld [vmem:[%s8 + $0x4] sm:$0x3]
        %v816 = vunpack.c.l.bf16 %v814
        %v817 = vunpack.c.l.bf16 %v815
        %v818 = vld [vmem:[%s423] sm:$0x1]
        %v820 = vlaneseq
        %v821 = vshrl.u32 %v820, 7
        %v822 = vsub.s32 0, %v821
        %v823 = vrot.slane %v818, %v822
        %v825 = vmul.f32 %v816, %v823
        %v826 = vmul.f32 %v817, %v823
        %v827 = vpack.c.bf16 %v826, %v825
        %v828 = vld [vmem:[%s9] sm:$0xff]
        %v829 = vld [vmem:[%s9 + $0x8] sm:$0xf]
        %831 = vset.pattern.permute.xlu0 0
        %832 = vperm.xlu0 %831, %v828
        %v833 = vpop.permute.xlu0 %832
        %836 = vset.pattern.permute.xlu0 0
        %837 = vperm.xlu0 %836, %v829
        %v838 = vpop.permute.xlu0 %837
        %v841 = vsel %vm656, %v827, 0
        %v844 = vsel %vm660, %v798, 0
        %v847 = vsel %vm660, %v799, 0
        %v850 = vsel %vm660, %v800, 0
        %852 = vmatprep.subr.bf16.mxu0 %v847
        %853 = vmatpush1.bf16.msra.mxu0 %v844
        %854 = vmatprep.subr.bf16.mxu0 0
        %855 = vmatpush1.bf16.msra.mxu0 0
        %856 = vmatprep.subr.bf16.mxu0 0
        %857 = vmatpush1.bf16.msra.mxu0 0
        %858 = vmatprep.subr.bf16.mxu0 0
        %859 = vmatpush1.bf16.msra.mxu0 0
        %860 = vmatprep.subr.bf16.mxu0 0
        %861 = vmatpush1.bf16.msra.mxu0 0
        %862 = vmatprep.subr.bf16.mxu0 0
        %863 = vmatpush1.bf16.msra.mxu0 0
        %864 = vmatprep.subr.bf16.mxu0 0
        %865 = vmatpush1.bf16.msra.mxu0 0
        %866 = vmatprep.subr.bf16.mxu0 0
        %867 = vmatpush1.bf16.msra.mxu0 0
        %868 = vmatprep.subr.bf16.mxu0 0
        %869 = vmatpush1.bf16.msra.mxu0 0
        %870 = vmatprep.subr.bf16.mxu0 0
        %871 = vmatpush1.bf16.msra.mxu0 0
        %872 = vmatprep.subr.bf16.mxu0 0
        %873 = vmatpush1.bf16.msra.mxu0 0
        %874 = vmatprep.subr.bf16.mxu0 0
        %875 = vmatpush1.bf16.msra.mxu0 0
        %876 = vmatprep.subr.bf16.mxu0 0
        %877 = vmatpush1.bf16.msra.mxu0 0
        %878 = vmatprep.subr.bf16.mxu0 0
        %879 = vmatpush1.bf16.msra.mxu0 0
        %880 = vmatprep.subr.bf16.mxu0 0
        %881 = vmatpush1.bf16.msra.mxu0 0
        %882 = vmatprep.subr.bf16.mxu0 0
        %883 = vmatpush1.bf16.msra.mxu0 0
        %884 = vmatprep.mubr.bf16.mxu0 0
        %885 = vmatmul.mubr.bf16.gmra.mrb[0].mxu0 %v841
        %v886 = vpop.f32.mrb[0].mxu0
        %v887 = vadd.f32 %v833, %v886
        %v888 = vpop.f32.mrb[0].mxu0
        %v889 = vadd.f32 %v833, %v888
        %v890 = vpop.f32.mrb[0].mxu0
        %v891 = vadd.f32 %v838, %v890
        %v892 = vpop.f32.mrb[0].mxu0
        %v893 = vadd.f32 %v838, %v892
        %894 = vdwg.mxu0
        %895 = vmatprep.subr.bf16.mxu0 0
        %896 = vmatpush1.bf16.msra.mxu0 %v850
        %897 = vmatprep.subr.bf16.mxu0 0
        %898 = vmatpush1.bf16.msra.mxu0 0
        %899 = vmatprep.subr.bf16.mxu0 0
        %900 = vmatpush1.bf16.msra.mxu0 0
        %901 = vmatprep.subr.bf16.mxu0 0
        %902 = vmatpush1.bf16.msra.mxu0 0
        %903 = vmatprep.subr.bf16.mxu0 0
        %904 = vmatpush1.bf16.msra.mxu0 0
        %905 = vmatprep.subr.bf16.mxu0 0
        %906 = vmatpush1.bf16.msra.mxu0 0
        %907 = vmatprep.subr.bf16.mxu0 0
        %908 = vmatpush1.bf16.msra.mxu0 0
        %909 = vmatprep.subr.bf16.mxu0 0
        %910 = vmatpush1.bf16.msra.mxu0 0
        %911 = vmatprep.subr.bf16.mxu0 0
        %912 = vmatpush1.bf16.msra.mxu0 0
        %913 = vmatprep.subr.bf16.mxu0 0
        %914 = vmatpush1.bf16.msra.mxu0 0
        %915 = vmatprep.subr.bf16.mxu0 0
        %916 = vmatpush1.bf16.msra.mxu0 0
        %917 = vmatprep.subr.bf16.mxu0 0
        %918 = vmatpush1.bf16.msra.mxu0 0
        %919 = vmatprep.subr.bf16.mxu0 0
        %920 = vmatpush1.bf16.msra.mxu0 0
        %921 = vmatprep.subr.bf16.mxu0 0
        %922 = vmatpush1.bf16.msra.mxu0 0
        %923 = vmatprep.subr.bf16.mxu0 0
        %924 = vmatpush1.bf16.msra.mxu0 0
        %925 = vmatprep.subr.bf16.mxu0 0
        %926 = vmatpush1.bf16.msra.mxu0 0
        %927 = vmatprep.mubr.bf16.mxu0 0
        %928 = vmatmul.mubr.bf16.gmra.mrb[0].mxu0 %v841
        %v929 = vpop.f32.mrb[0].mxu0
        %v930 = vadd.f32 %v833, %v929
        %v931 = vpop.f32.mrb[0].mxu0
        %v932 = vpop.f32.mrb[0].mxu0
        %v933 = vadd.f32 %v838, %v932
        %v934 = vpop.f32.mrb[0].mxu0
        %935 = vdwg.mxu0
        %936 = vst [vmem:[%s428] sm:$0xff] %v887
        %937 = vst [vmem:[%s428 + $0x8] sm:$0xff] %v889
        %vm938 = vcmask 261120
        %939 = vst.msk [vmem:[%s428 + $0x10] sm:$0xff] %vm938, %v930
        %940 = vst [vmem:[%s428 + $0x18] sm:$0xf] %v891
        %941 = vst [vmem:[%s428 + $0x20] sm:$0xf] %v893
        %942 = vst.msk [vmem:[%s428 + $0x28] sm:$0xf] %vm812, %v933
        %s943 = sand.u32 %s259, 1
        %s944 = scalar_lea.sflag [#allocation3], %s943
        %s945 = sand.u32 %s259, 1
        %s946 = smul.addr %s945, 12
        %s947 = scalar_lea.vmem [#allocation2], %s946
        %p948 = scmp.lt.s32.totalorder %s26, 1
        %s949 = scalar_select %p948, %s26, 1
        %s950 = smul.addr %s949, 6
        %s951 = smul.addr %s950, 8
        %s952 = scalar_lea.vmem %s11, %s951
        // Predicated region
        $region61: #{mobile_synthesis_forward.16} parent=59 // pred_check
          %p953 = pneg %p269
        $region62: #{mobile_synthesis_forward.16} parent=59 // pred_check_branch
          %955 = sbr.rel (%p953) target = $region64
        $region63: #{mobile_synthesis_forward.16} parent=59 // pred_region
          %s957 = ssub.s32 192, 192
          %958 = vsyncadd %s944, %s957
          %s959 = smul.addr %s26, 3
          %s960 = smul.addr %s959, 64
          %s961 = scalar_lea.hbm %s10, %s960
          %s963 = sshll.u32 %s947, 4
          %s964 = int_to_ptr.vmem [resolvable:$true] %s963
          %966 = dma.vmem_to_hbm [thread:$0]  %s964, 192, %s961, %s944
        $region64: #{mobile_synthesis_forward.16} parent=59 // pred_fallthru
          _
        // Predicated region
        $region65: #{mobile_synthesis_forward.16} parent=59 // pred_check
          %p967 = pneg %p295
        $region66: #{mobile_synthesis_forward.16} parent=59 // pred_check_branch
          %969 = sbr.rel (%p967) target = $region68
        $region67: #{mobile_synthesis_forward.16} parent=59 // pred_region
          _
        $region68: #{mobile_synthesis_forward.16} parent=59 // pred_fallthru
          _
      $region60: #{mobile_synthesis_forward.16} parent=5 // pred_fallthru
        _
      %p970 = scmp.le.s32.totalorder 2, %s21
      // Predicated region
      $region69: #{mobile_synthesis_forward.16} parent=5 // pred_check
        %p971 = pneg %p970
      $region70: #{mobile_synthesis_forward.16} parent=5 // pred_check_branch
        %973 = sbr.rel (%p971) target = $region72
      $region71: #{mobile_synthesis_forward.16} parent=5 // pred_region
        %s974 = ssub.s32 %s21, 2
        // Predicated region
        $region73: #{mobile_synthesis_forward.16} parent=71 // pred_check
          %p975 = pneg %p275
        $region74: #{mobile_synthesis_forward.16} parent=71 // pred_check_branch
          %977 = sbr.rel (%p975) target = $region76
        $region75: #{mobile_synthesis_forward.16} parent=71 // pred_region
          %s978 = sand.u32 %s260, 1
          %s979 = scalar_lea.sflag [#allocation3], %s978
          %s980 = sand.u32 %s260, 1
          %s981 = smul.addr %s980, 12
          %s982 = scalar_lea.vmem [#allocation2], %s981
          %983 = dma.done %s979, 192
        $region76: #{mobile_synthesis_forward.16} parent=71 // pred_fallthru
          _
        // Predicated region
        $region77: #{mobile_synthesis_forward.16} parent=71 // pred_check
          %p984 = pneg %p301
        $region78: #{mobile_synthesis_forward.16} parent=71 // pred_check_branch
          %986 = sbr.rel (%p984) target = $region80
        $region79: #{mobile_synthesis_forward.16} parent=71 // pred_region
          %p987 = scmp.lt.s32.totalorder %s27, 1
          %s988 = scalar_select %p987, %s27, 1
          %s989 = smul.addr %s988, 6
          %s990 = smul.addr %s989, 8
          %s991 = scalar_lea.vmem %s11, %s990
        $region80: #{mobile_synthesis_forward.16} parent=71 // pred_fallthru
          _
      $region72: #{mobile_synthesis_forward.16} parent=5 // pred_fallthru
        _
    $region6: #{mobile_synthesis_forward.16} parent=1 // loop_footer
      %s25 = sadd.s32 1, %s21
    $region7: #{mobile_synthesis_forward.16} parent=1 // loop_footer_branch
      %20 = sbr.rel target = $region3
    $region8: #{mobile_synthesis_forward.16} parent=1 // loop_exit
      _
    %992 = vsyncpa [#allocation3], 1
    %s993 = scalar_lea.sflag [#allocation3], 1
    %994 = vsyncpa %s993, 1

</llo_original>
